<compile_context>
chip_gen: v6e
topology: v6e:2x2x1
jax: 0.10.0
libtpu: 0.0.40
codegen_flags: <defaults>
</compile_context>

<pallas_src>
import functools
import numpy as np
import jax
import jax.numpy as jnp
from jax import lax
from jax.experimental import pallas as pl
from jax.experimental.pallas import tpu as pltpu


# ------------------------------ small helpers (glue) -------------------------

def make_divisible(v, divisor=8, min_value=None):
    min_value = min_value or divisor
    new_v = max(min_value, int(v + divisor / 2) // divisor * divisor)
    if new_v < 0.9 * v:
        new_v += divisor
    return new_v


def block_diag(groups_w):
    """(G, a, b) per-group weights -> (G*a, G*b) block-diagonal matrix (glue)."""
    G, a, b = groups_w.shape
    out = jnp.zeros((G * a, G * b), groups_w.dtype)
    for g in range(G):
        out = out.at[g * a:(g + 1) * a, g * b:(g + 1) * b].set(groups_w[g])
    return out


def inverted_reorg(x_nhwc, s):
    """InvertedReorg in NHWC, matching the PyTorch view/transpose dance (glue)."""
    N, H, W, Cin = x_nhwc.shape
    C = Cin // (s * s)
    t = x_nhwc.reshape(N, H, W, s, s, C)        # channel -> (p, q, c)
    t = t.transpose(0, 3, 1, 4, 2, 5)           # (N, p, H, q, W, C)
    return t.reshape(N, s * H, s * W, C)        # out[n, p*H+h, q*W+w, c]


# ------------------------------ fused Pallas kernel ---------------------------

def _fuse_diff_kernel(xa_ref, xb_ref,
                      w1a_ref, b1a_ref, wda_ref, b2a_ref, w3a_ref, b3a_ref,
                      w1b_ref, b1b_ref, wdb_ref, b2b_ref, w3b_ref, b3b_ref,
                      o1_ref, o23_ref, pad_ref,
                      *, H, W, Cmid, stride, res1, res2):
    """All three InvertedResidual branches for ONE image, entirely in VMEM.

    Lane-dense layout (rows = spatial rows, lanes = W*C):
      xa_ref/xb_ref : (1, H, W*Cin)
      w1*_ref : (W*Cin, W*Cmid)     per-pixel block-diag grouped 1x1, BN1 folded
      wd*_ref : (9, W*Cmid)         3x3 depthwise taps, BN2 folded, tiled over W
      w3*_ref : (W*Cmid, Wo*Cout)   grouped 1x1, BN3 + W-stride selection folded
      b**_ref : (1, ...)            folded BN biases
      o1_ref  : (1, H, W*Cout)      branch-1 output slab (lane dense, 256 lanes)
      o23_ref : (1, 2, Ho, Wo*Cout) branch-2/3 output slabs (lane dense, 128)
      pad_ref : (H+2, (W+2)*Cmid)   VMEM halo buffer for the depthwise stage
    """
    WC = W * Cmid

    # Zero the halo frame once per grid step; every branch fully rewrites the
    # interior, so the zero frame stays valid for all three branch passes.
    pad_ref[...] = jnp.zeros_like(pad_ref)

    # Stride-H row subsampling as tiny exact 0/1 matmuls on the (otherwise
    # idle) MXU, built once and shared by the two strided branches, so the VPU
    # depthwise stage only produces the Ho rows that are actually needed.
    if stride > 1:
        Hs = H // stride
        io = lax.broadcasted_iota(jnp.int32, (Hs, H + 2), 0)
        rr = lax.broadcasted_iota(jnp.int32, (Hs, H + 2), 1)
        row_sel = [(rr == stride * io + di).astype(jnp.float32)
                   for di in range(3)]
    else:
        row_sel = None

    def branch(x, w1, b1, wd, b2, w3, b3, br_stride, residual):
        Ho = H // br_stride
        # ---- K1: grouped 1x1 conv + BN1 + ReLU (MXU) ------------------------
        y1 = jnp.dot(x, w1, preferred_element_type=jnp.float32)
        y1 = jnp.maximum(y1 + b1, 0.0)                       # (H, W*Cmid)
        # ---- halo: write interior of the zero-framed VMEM buffer ------------
        pad_ref[1:H + 1, Cmid:(W + 1) * Cmid] = y1
        padv = pad_ref[...]                                  # (H+2, (W+2)*Cmid)
        rows = []
        for di in range(3):
            if br_stride == 1:
                rows.append(padv[di:di + H, :])
            else:
                rows.append(jnp.dot(row_sel[di], padv,
                                    preferred_element_type=jnp.float32))
        # ---- K2: depthwise 3x3 + BN2 + ReLU (VPU, lane shifts for W taps) ---
        acc = jnp.zeros((Ho, WC), jnp.float32)
        for di in range(3):
            for dj in range(3):
                tap = rows[di][:, dj * Cmid:dj * Cmid + WC]
                acc = acc + tap * wd[3 * di + dj:3 * di + dj + 1, :]
        a = jnp.maximum(acc + b2, 0.0)                       # (Ho, W*Cmid)
        # ---- K3: grouped 1x1 conv + BN3 (+ residual) (MXU) ------------------
        # W-stride subsampling is folded into w3, so nothing strided leaves
        # VMEM or hits HBM.
        out = jnp.dot(a, w3, preferred_element_type=jnp.float32) + b3
        if residual:               # only when br_stride == 1 and Cin == Cout
            out = out + x          # layouts match exactly: (H, W*Cin)
        return out

    xa = xa_ref[0]                                           # (H, W*Cin)
    xb = xb_ref[0]
    o1_ref[0] = branch(xa, w1a_ref[...], b1a_ref[...], wda_ref[...],
                       b2a_ref[...], w3a_ref[...], b3a_ref[...],
                       1, res1).astype(o1_ref.dtype)
    o23_ref[0, 0] = branch(xa, w1b_ref[...], b1b_ref[...], wdb_ref[...],
                           b2b_ref[...], w3b_ref[...], b3b_ref[...],
                           stride, res2).astype(o23_ref.dtype)
    o23_ref[0, 1] = branch(xb, w1b_ref[...], b1b_ref[...], wdb_ref[...],
                           b2b_ref[...], w3b_ref[...], b3b_ref[...],
                           stride, res2).astype(o23_ref.dtype)


def fuse_diff_pallas(xa_rows, xb_rows, f1, f2, *, H, W, Cin, Cmid, Cout,
                     stride, res1, res2):
    """xa/xb: (N, H, W*Cin) -> ((N, H, W*Cout), (N, 2, Ho, Wo*Cout))."""
    N = xa_rows.shape[0]
    Ho, Wo = H // stride, W // stride
    kernel = functools.partial(_fuse_diff_kernel, H=H, W=W, Cmid=Cmid,
                               stride=stride, res1=res1, res2=res2)

    def wspec(shape):
        return pl.BlockSpec(shape, lambda n: (0,) * len(shape))

    return pl.pallas_call(
        kernel,
        grid=(N,),
        in_specs=[
            pl.BlockSpec((1, H, W * Cin), lambda n: (n, 0, 0)),
            pl.BlockSpec((1, H, W * Cin), lambda n: (n, 0, 0)),
            # conv1 (stride 1) folded params
            wspec((W * Cin, W * Cmid)), wspec((1, W * Cmid)),
            wspec((9, W * Cmid)), wspec((1, W * Cmid)),
            wspec((W * Cmid, W * Cout)), wspec((1, W * Cout)),
            # conv2 (stride `stride`) folded params (shared by branches 2 & 3)
            wspec((W * Cin, W * Cmid)), wspec((1, W * Cmid)),
            wspec((9, W * Cmid)), wspec((1, W * Cmid)),
            wspec((W * Cmid, Wo * Cout)), wspec((1, Wo * Cout)),
        ],
        out_specs=[
            pl.BlockSpec((1, H, W * Cout), lambda n: (n, 0, 0)),
            pl.BlockSpec((1, 2, Ho, Wo * Cout), lambda n: (n, 0, 0, 0)),
        ],
        out_shape=[
            jax.ShapeDtypeStruct((N, H, W * Cout), jnp.float32),
            jax.ShapeDtypeStruct((N, 2, Ho, Wo * Cout), jnp.float32),
        ],
        scratch_shapes=[pltpu.VMEM((H + 2, (W + 2) * Cmid), jnp.float32)],
        compiler_params=pltpu.CompilerParams(
            dimension_semantics=("parallel",)),
    )(xa_rows, xb_rows,
      f1["w1"], f1["b1"], f1["wd"], f1["b2"], f1["w3"], f1["b3"],
      f2["w1"], f2["b1"], f2["wd"], f2["b2"], f2["w3"], f2["b3"])


# ------------------------- parameter folding (glue) ---------------------------

def fold_ir_params(p, *, W, stride):
    """Fold eval-mode BN scales + stride-W selection into the conv weights."""
    E, _, mid = p["w_pw_g"].shape
    Cmid = E * mid
    Wo = W // stride
    w1 = block_diag(p["w_pw_g"]) * p["s1"][None, :]         # (Cin, Cmid)
    w3 = block_diag(p["w_pwl_g"]) * p["s3"][None, :]        # (Cmid, Cout)
    eye = jnp.eye(W, dtype=jnp.float32)
    sel = (jnp.arange(W)[:, None] ==
           stride * jnp.arange(Wo)[None, :]).astype(jnp.float32)   # (W, Wo)
    return dict(
        w1=jnp.kron(eye, w1),                               # (W*Cin, W*Cmid)
        w3=jnp.kron(sel, w3),                               # (W*Cmid, Wo*Cout)
        wd=jnp.tile((p["w_dw"] * p["s2"][None, None, :]).reshape(9, Cmid), (1, W)),
        b1=jnp.tile(p["b1"], W)[None, :],
        b2=jnp.tile(p["b2"], W)[None, :],
        b3=jnp.tile(p["b3"], Wo)[None, :],
    )


# ------------------------------ model (Pallas path) ---------------------------

def fuse_diff_v2(x_nchw, params, *, in_chs, out_chs, slices, stride):
    N, Ctot, H, W = x_nchw.shape
    E0 = slices[0] * slices[0]
    split = out_chs * E0
    Cin, Cout = in_chs * E0, out_chs * E0
    Cmid = params["conv1"]["w_pw_g"].shape[0] * params["conv1"]["w_pw_g"].shape[2]
    assert H % stride == 0 and W % stride == 0
    assert split == Cin                 # PyTorch model requires in_chs == out_chs here
    assert Ctot - split == Cin          # second slab also feeds conv2

    x = jnp.transpose(x_nchw, (0, 2, 3, 1)).astype(jnp.float32)   # NCHW -> NHWC (glue)
    xa = x[..., :split].reshape(N, H, W * Cin)                    # lane-dense row slabs
    xb = x[..., split:].reshape(N, H, W * Cin)

    f1 = fold_ir_params(params["conv1"], W=W, stride=1)
    f2 = fold_ir_params(params["conv2"], W=W, stride=stride)
    res1 = (in_chs == out_chs)                       # conv1 always stride 1
    res2 = (in_chs == out_chs) and stride == 1

    y1_rows, y23_rows = fuse_diff_pallas(
        xa, xb, f1, f2, H=H, W=W, Cin=Cin, Cmid=Cmid, Cout=Cout,
        stride=stride, res1=res1, res2=res2)

    Ho, Wo = H // stride, W // stride
    s = slices[1]
    y1 = y1_rows.reshape(N, H, W, Cout)
    z = inverted_reorg(y23_rows.reshape(N * 2, Ho, Wo, Cout), s)  # glue
    z = z.reshape(N, 2, s * Ho, s * Wo, Cout // (s * s))
    out = jnp.concatenate([y1, z[:, 0], z[:, 1]], axis=-1)
    return jnp.transpose(out, (0, 3, 1, 2))                       # NHWC -> NCHW


# ------------------------------ pure-JAX reference ----------------------------

def ref_inverted_residual(x, p, *, stride, has_residual):
    E, in_chs, mid = p["w_pw_g"].shape
    dn = ("NHWC", "HWIO", "NHWC")
    prec = lax.Precision.HIGHEST
    hwio = p["w_pw_g"].transpose(1, 0, 2).reshape(1, 1, in_chs, E * mid)
    y = lax.conv_general_dilated(x, hwio, (1, 1), "VALID", dimension_numbers=dn,
                                 feature_group_count=E, precision=prec)
    y = jnp.maximum(y * p["s1"] + p["b1"], 0.0)
    Cm = E * mid
    hwio = p["w_dw"].reshape(3, 3, 1, Cm)
    y = lax.conv_general_dilated(y, hwio, (stride, stride), ((1, 1), (1, 1)),
                                 dimension_numbers=dn, feature_group_count=Cm,
                                 precision=prec)
    y = jnp.maximum(y * p["s2"] + p["b2"], 0.0)
    out_chs = p["w_pwl_g"].shape[2]
    hwio = p["w_pwl_g"].transpose(1, 0, 2).reshape(1, 1, mid, E * out_chs)
    y = lax.conv_general_dilated(y, hwio, (1, 1), "VALID", dimension_numbers=dn,
                                 feature_group_count=E, precision=prec)
    y = y * p["s3"] + p["b3"]
    if has_residual:
        y = y + x
    return y


def ref_fuse_diff_v2(x_nchw, params, *, in_chs, out_chs, slices, stride):
    x = jnp.transpose(x_nchw, (0, 2, 3, 1)).astype(jnp.float32)
    split = out_chs * slices[0] * slices[0]
    xa, xb = x[..., :split], x[..., split:]
    hr1 = in_chs == out_chs
    hr2 = (in_chs == out_chs) and stride == 1
    y1 = ref_inverted_residual(xa, params["conv1"], stride=1, has_residual=hr1)
    y2 = ref_inverted_residual(xa, params["conv2"], stride=stride, has_residual=hr2)
    y3 = ref_inverted_residual(xb, params["conv2"], stride=stride, has_residual=hr2)
    z2 = inverted_reorg(y2, slices[1])
    z3 = inverted_reorg(y3, slices[1])
    return jnp.transpose(jnp.concatenate([y1, z2, z3], axis=-1), (0, 3, 1, 2))


# ------------------------------- parameter init -------------------------------

def make_branch_params(key, in_chs, out_chs, mid, s):
    E = s * s
    ks = jax.random.split(key, 6)

    def bn(k, C):
        k1, k2, k3, k4 = jax.random.split(k, 4)
        gamma = 1.0 + 0.1 * jax.random.normal(k1, (C,), jnp.float32)
        beta = 0.1 * jax.random.normal(k2, (C,), jnp.float32)
        mean = 0.1 * jax.random.normal(k3, (C,), jnp.float32)
        var = 1.0 + 0.1 * jax.random.uniform(k4, (C,), jnp.float32)
        scale = gamma / jnp.sqrt(var + 1e-5)          # eval-mode BN, folded
        bias = beta - mean * scale
        return scale, bias

    w_pw_g = jax.random.normal(ks[0], (E, in_chs, mid), jnp.float32) / np.sqrt(in_chs)
    w_dw = jax.random.normal(ks[1], (3, 3, E * mid), jnp.float32) / 3.0
    w_pwl_g = jax.random.normal(ks[2], (E, mid, out_chs), jnp.float32) / np.sqrt(mid)
    s1, b1 = bn(ks[3], E * mid)
    s2, b2 = bn(ks[4], E * mid)
    s3, b3 = bn(ks[5], E * out_chs)
    return dict(w_pw_g=w_pw_g, w_dw=w_dw, w_pwl_g=w_pwl_g,
                s1=s1, b1=b1, s2=s2, b2=b2, s3=s3, b3=b3)


# ------------------------------------ main ------------------------------------

if __name__ == "__main__":
    IN_CHS, OUT_CHS = 4, 4
    EXP_RATIO = 2.0
    SLICES = [2, 2]
    STRIDE = 2
    MID = make_divisible(IN_CHS * EXP_RATIO)                 # = 8
    B, H, W = 2, 16, 16
    TOTAL_IN = OUT_CHS * SLICES[0] ** 2 + IN_CHS * SLICES[0] ** 2   # 16 + 16 = 32

    key = jax.random.PRNGKey(0)
    kx, k1, k2 = jax.random.split(key, 3)
    x = jax.random.normal(kx, (B, TOTAL_IN, H, W), jnp.float32)     # NCHW, like PyTorch

    params = {
        "conv1": make_branch_params(k1, IN_CHS, OUT_CHS, MID, SLICES[0]),
        "conv2": make_branch_params(k2, IN_CHS, OUT_CHS, MID, SLICES[0]),
    }

    fwd = jax.jit(functools.partial(fuse_diff_v2, in_chs=IN_CHS, out_chs=OUT_CHS,
                                    slices=SLICES, stride=STRIDE))
    out = jax.block_until_ready(fwd(x, params))

    ref = jax.block_until_ready(
        ref_fuse_diff_v2(x, params, in_chs=IN_CHS, out_chs=OUT_CHS,
                         slices=SLICES, stride=STRIDE))

    exp_c = OUT_CHS * SLICES[0] ** 2 + 2 * (OUT_CHS * SLICES[0] ** 2) // SLICES[1] ** 2
    assert out.shape == ref.shape == (B, exp_c, H, W), (out.shape, ref.shape)
    np.testing.assert_allclose(np.asarray(out), np.asarray(ref), rtol=2e-2, atol=2e-2)
    print("KERNEL_OK")
</pallas_src>

<mosaic_0001>
module attributes {stable_mosaic.version = 11 : i64} {
  func.func @_fuse_diff_kernel(%arg0: i32, %arg1: memref<1x16x256xf32, #tpu.memory_space<vmem>>, %arg2: memref<1x16x256xf32, #tpu.memory_space<vmem>>, %arg3: memref<256x512xf32, #tpu.memory_space<vmem>>, %arg4: memref<1x512xf32, #tpu.memory_space<vmem>>, %arg5: memref<9x512xf32, #tpu.memory_space<vmem>>, %arg6: memref<1x512xf32, #tpu.memory_space<vmem>>, %arg7: memref<512x256xf32, #tpu.memory_space<vmem>>, %arg8: memref<1x256xf32, #tpu.memory_space<vmem>>, %arg9: memref<256x512xf32, #tpu.memory_space<vmem>>, %arg10: memref<1x512xf32, #tpu.memory_space<vmem>>, %arg11: memref<9x512xf32, #tpu.memory_space<vmem>>, %arg12: memref<1x512xf32, #tpu.memory_space<vmem>>, %arg13: memref<512x128xf32, #tpu.memory_space<vmem>>, %arg14: memref<1x128xf32, #tpu.memory_space<vmem>>, %arg15: memref<1x16x256xf32, #tpu.memory_space<vmem>>, %arg16: memref<1x2x8x128xf32, #tpu.memory_space<vmem>>, %arg17: memref<18x576xf32, #tpu.memory_space<vmem>>) attributes {dimension_semantics = [#tpu.dimension_semantics<parallel>], iteration_bounds = array<i64: 2>, scalar_prefetch = 0 : i64, scratch_operands = 1 : i64, tpu.core_type = #tpu.core_type<tc>, window_params = [{transform_indices = @transform_0, window_bounds = array<i64: 1, 16, 256>}, {transform_indices = @transform_1, window_bounds = array<i64: 1, 16, 256>}, {pipeline_mode = #tpu.pipeline_mode<synchronous>, transform_indices = @transform_2, window_bounds = array<i64: 256, 512>}, {pipeline_mode = #tpu.pipeline_mode<synchronous>, transform_indices = @transform_3, window_bounds = array<i64: 1, 512>}, {pipeline_mode = #tpu.pipeline_mode<synchronous>, transform_indices = @transform_4, window_bounds = array<i64: 9, 512>}, {pipeline_mode = #tpu.pipeline_mode<synchronous>, transform_indices = @transform_5, window_bounds = array<i64: 1, 512>}, {pipeline_mode = #tpu.pipeline_mode<synchronous>, transform_indices = @transform_6, window_bounds = array<i64: 512, 256>}, {pipeline_mode = #tpu.pipeline_mode<synchronous>, transform_indices = @transform_7, window_bounds = array<i64: 1, 256>}, {pipeline_mode = #tpu.pipeline_mode<synchronous>, transform_indices = @transform_8, window_bounds = array<i64: 256, 512>}, {pipeline_mode = #tpu.pipeline_mode<synchronous>, transform_indices = @transform_9, window_bounds = array<i64: 1, 512>}, {pipeline_mode = #tpu.pipeline_mode<synchronous>, transform_indices = @transform_10, window_bounds = array<i64: 9, 512>}, {pipeline_mode = #tpu.pipeline_mode<synchronous>, transform_indices = @transform_11, window_bounds = array<i64: 1, 512>}, {pipeline_mode = #tpu.pipeline_mode<synchronous>, transform_indices = @transform_12, window_bounds = array<i64: 512, 128>}, {pipeline_mode = #tpu.pipeline_mode<synchronous>, transform_indices = @transform_13, window_bounds = array<i64: 1, 128>}, {transform_indices = @transform_14, window_bounds = array<i64: 1, 16, 256>}, {transform_indices = @transform_15, window_bounds = array<i64: 1, 2, 8, 128>}]} {
    %cst = arith.constant 0.000000e+00 : f32
    %0 = vector.broadcast %cst : f32 to vector<18x576xf32>
    %c0 = arith.constant 0 : index
    %c0_0 = arith.constant 0 : index
    %1 = vector.load %arg17[%c0, %c0_0] : memref<18x576xf32, #tpu.memory_space<vmem>>, vector<18x576xf32>
    tpu.vector_store %arg17[%c0, %c0_0], %0 {strides = array<i32>} : memref<18x576xf32, #tpu.memory_space<vmem>>, vector<18x576xf32>,
    %2 = tpu.iota {dimensions = array<i32: 0>} : vector<8x18xi32>
    %3 = tpu.iota {dimensions = array<i32: 1>} : vector<8x18xi32>
    %c2_i32 = arith.constant 2 : i32
    %4 = vector.broadcast %c2_i32 : i32 to vector<8x18xi32>
    %5 = arith.muli %4, %2 : vector<8x18xi32>
    %c0_i32 = arith.constant 0 : i32
    %6 = vector.broadcast %c0_i32 : i32 to vector<8x18xi32>
    %7 = arith.addi %5, %6 : vector<8x18xi32>
    %8 = arith.cmpi eq, %3, %7 : vector<8x18xi32>
    %9 = arith.extui %8 : vector<8x18xi1> to vector<8x18xi32>
    %10 = arith.sitofp %9 : vector<8x18xi32> to vector<8x18xf32>
    %c2_i32_1 = arith.constant 2 : i32
    %11 = vector.broadcast %c2_i32_1 : i32 to vector<8x18xi32>
    %12 = arith.muli %11, %2 : vector<8x18xi32>
    %c1_i32 = arith.constant 1 : i32
    %13 = vector.broadcast %c1_i32 : i32 to vector<8x18xi32>
    %14 = arith.addi %12, %13 : vector<8x18xi32>
    %15 = arith.cmpi eq, %3, %14 : vector<8x18xi32>
    %16 = arith.extui %15 : vector<8x18xi1> to vector<8x18xi32>
    %17 = arith.sitofp %16 : vector<8x18xi32> to vector<8x18xf32>
    %c2_i32_2 = arith.constant 2 : i32
    %18 = vector.broadcast %c2_i32_2 : i32 to vector<8x18xi32>
    %19 = arith.muli %18, %2 : vector<8x18xi32>
    %c2_i32_3 = arith.constant 2 : i32
    %20 = vector.broadcast %c2_i32_3 : i32 to vector<8x18xi32>
    %21 = arith.addi %19, %20 : vector<8x18xi32>
    %22 = arith.cmpi eq, %3, %21 : vector<8x18xi32>
    %23 = arith.extui %22 : vector<8x18xi1> to vector<8x18xi32>
    %24 = arith.sitofp %23 : vector<8x18xi32> to vector<8x18xf32>
    %c0_4 = arith.constant 0 : index
    %c0_5 = arith.constant 0 : index
    %c0_6 = arith.constant 0 : index
    %25 = vector.load %arg1[%c0_4, %c0_5, %c0_6] : memref<1x16x256xf32, #tpu.memory_space<vmem>>, vector<1x16x256xf32>
    %26 = vector.shape_cast %25 : vector<1x16x256xf32> to vector<16x256xf32>
    %c0_7 = arith.constant 0 : index
    %c0_8 = arith.constant 0 : index
    %c0_9 = arith.constant 0 : index
    %27 = vector.load %arg2[%c0_7, %c0_8, %c0_9] : memref<1x16x256xf32, #tpu.memory_space<vmem>>, vector<1x16x256xf32>
    %28 = vector.shape_cast %27 : vector<1x16x256xf32> to vector<16x256xf32>
    %c0_10 = arith.constant 0 : index
    %c0_11 = arith.constant 0 : index
    %29 = vector.load %arg3[%c0_10, %c0_11] : memref<256x512xf32, #tpu.memory_space<vmem>>, vector<256x512xf32>
    %c0_12 = arith.constant 0 : index
    %c0_13 = arith.constant 0 : index
    %30 = vector.load %arg4[%c0_12, %c0_13] : memref<1x512xf32, #tpu.memory_space<vmem>>, vector<1x512xf32>
    %c0_14 = arith.constant 0 : index
    %c0_15 = arith.constant 0 : index
    %31 = vector.load %arg5[%c0_14, %c0_15] : memref<9x512xf32, #tpu.memory_space<vmem>>, vector<9x512xf32>
    %c0_16 = arith.constant 0 : index
    %c0_17 = arith.constant 0 : index
    %32 = vector.load %arg6[%c0_16, %c0_17] : memref<1x512xf32, #tpu.memory_space<vmem>>, vector<1x512xf32>
    %c0_18 = arith.constant 0 : index
    %c0_19 = arith.constant 0 : index
    %33 = vector.load %arg7[%c0_18, %c0_19] : memref<512x256xf32, #tpu.memory_space<vmem>>, vector<512x256xf32>
    %c0_20 = arith.constant 0 : index
    %c0_21 = arith.constant 0 : index
    %34 = vector.load %arg8[%c0_20, %c0_21] : memref<1x256xf32, #tpu.memory_space<vmem>>, vector<1x256xf32>
    %cst_22 = arith.constant dense<0.000000e+00> : vector<16x512xf32>
    %35 = tpu.matmul %26, %29, %cst_22 {dimension_numbers = #tpu.dot_dimension_numbers<[1], [0], [0], [1], [0, 0, 1, 1], [], []>} : vector<16x256xf32>, vector<256x512xf32>, vector<16x512xf32> -> vector<16x512xf32>
    %36 = vector.broadcast %30 : vector<1x512xf32> to vector<16x512xf32>
    %37 = arith.addf %35, %36 : vector<16x512xf32>
    %cst_23 = arith.constant 0.000000e+00 : f32
    %38 = vector.broadcast %cst_23 : f32 to vector<16x512xf32>
    %39 = arith.maximumf %37, %38 : vector<16x512xf32>
    %c1 = arith.constant 1 : index
    %c32 = arith.constant 32 : index
    %40 = vector.load %arg17[%c1, %c32] : memref<18x576xf32, #tpu.memory_space<vmem>>, vector<16x512xf32>
    tpu.vector_store %arg17[%c1, %c32], %39 {strides = array<i32>} : memref<18x576xf32, #tpu.memory_space<vmem>>, vector<16x512xf32>,
    %c0_24 = arith.constant 0 : index
    %c0_25 = arith.constant 0 : index
    %41 = vector.load %arg17[%c0_24, %c0_25] : memref<18x576xf32, #tpu.memory_space<vmem>>, vector<18x576xf32>
    %42 = vector.extract_strided_slice %41 {offsets = [0, 0], sizes = [16, 576], strides = [1, 1]} : vector<18x576xf32> to vector<16x576xf32>
    %43 = vector.extract_strided_slice %41 {offsets = [1, 0], sizes = [16, 576], strides = [1, 1]} : vector<18x576xf32> to vector<16x576xf32>
    %44 = vector.extract_strided_slice %41 {offsets = [2, 0], sizes = [16, 576], strides = [1, 1]} : vector<18x576xf32> to vector<16x576xf32>
    %cst_26 = arith.constant 0.000000e+00 : f32
    %45 = vector.broadcast %cst_26 : f32 to vector<16x512xf32>
    %46 = vector.extract_strided_slice %42 {offsets = [0, 0], sizes = [16, 512], strides = [1, 1]} : vector<16x576xf32> to vector<16x512xf32>
    %47 = vector.extract_strided_slice %31 {offsets = [0, 0], sizes = [1, 512], strides = [1, 1]} : vector<9x512xf32> to vector<1x512xf32>
    %48 = vector.broadcast %47 : vector<1x512xf32> to vector<16x512xf32>
    %49 = arith.mulf %46, %48 : vector<16x512xf32>
    %50 = arith.addf %45, %49 : vector<16x512xf32>
    %51 = vector.extract_strided_slice %42 {offsets = [0, 32], sizes = [16, 512], strides = [1, 1]} : vector<16x576xf32> to vector<16x512xf32>
    %52 = vector.extract_strided_slice %31 {offsets = [1, 0], sizes = [1, 512], strides = [1, 1]} : vector<9x512xf32> to vector<1x512xf32>
    %53 = vector.broadcast %52 : vector<1x512xf32> to vector<16x512xf32>
    %54 = arith.mulf %51, %53 : vector<16x512xf32>
    %55 = arith.addf %50, %54 : vector<16x512xf32>
    %56 = vector.extract_strided_slice %42 {offsets = [0, 64], sizes = [16, 512], strides = [1, 1]} : vector<16x576xf32> to vector<16x512xf32>
    %57 = vector.extract_strided_slice %31 {offsets = [2, 0], sizes = [1, 512], strides = [1, 1]} : vector<9x512xf32> to vector<1x512xf32>
    %58 = vector.broadcast %57 : vector<1x512xf32> to vector<16x512xf32>
    %59 = arith.mulf %56, %58 : vector<16x512xf32>
    %60 = arith.addf %55, %59 : vector<16x512xf32>
    %61 = vector.extract_strided_slice %43 {offsets = [0, 0], sizes = [16, 512], strides = [1, 1]} : vector<16x576xf32> to vector<16x512xf32>
    %62 = vector.extract_strided_slice %31 {offsets = [3, 0], sizes = [1, 512], strides = [1, 1]} : vector<9x512xf32> to vector<1x512xf32>
    %63 = vector.broadcast %62 : vector<1x512xf32> to vector<16x512xf32>
    %64 = arith.mulf %61, %63 : vector<16x512xf32>
    %65 = arith.addf %60, %64 : vector<16x512xf32>
    %66 = vector.extract_strided_slice %43 {offsets = [0, 32], sizes = [16, 512], strides = [1, 1]} : vector<16x576xf32> to vector<16x512xf32>
    %67 = vector.extract_strided_slice %31 {offsets = [4, 0], sizes = [1, 512], strides = [1, 1]} : vector<9x512xf32> to vector<1x512xf32>
    %68 = vector.broadcast %67 : vector<1x512xf32> to vector<16x512xf32>
    %69 = arith.mulf %66, %68 : vector<16x512xf32>
    %70 = arith.addf %65, %69 : vector<16x512xf32>
    %71 = vector.extract_strided_slice %43 {offsets = [0, 64], sizes = [16, 512], strides = [1, 1]} : vector<16x576xf32> to vector<16x512xf32>
    %72 = vector.extract_strided_slice %31 {offsets = [5, 0], sizes = [1, 512], strides = [1, 1]} : vector<9x512xf32> to vector<1x512xf32>
    %73 = vector.broadcast %72 : vector<1x512xf32> to vector<16x512xf32>
    %74 = arith.mulf %71, %73 : vector<16x512xf32>
    %75 = arith.addf %70, %74 : vector<16x512xf32>
    %76 = vector.extract_strided_slice %44 {offsets = [0, 0], sizes = [16, 512], strides = [1, 1]} : vector<16x576xf32> to vector<16x512xf32>
    %77 = vector.extract_strided_slice %31 {offsets = [6, 0], sizes = [1, 512], strides = [1, 1]} : vector<9x512xf32> to vector<1x512xf32>
    %78 = vector.broadcast %77 : vector<1x512xf32> to vector<16x512xf32>
    %79 = arith.mulf %76, %78 : vector<16x512xf32>
    %80 = arith.addf %75, %79 : vector<16x512xf32>
    %81 = vector.extract_strided_slice %44 {offsets = [0, 32], sizes = [16, 512], strides = [1, 1]} : vector<16x576xf32> to vector<16x512xf32>
    %82 = vector.extract_strided_slice %31 {offsets = [7, 0], sizes = [1, 512], strides = [1, 1]} : vector<9x512xf32> to vector<1x512xf32>
    %83 = vector.broadcast %82 : vector<1x512xf32> to vector<16x512xf32>
    %84 = arith.mulf %81, %83 : vector<16x512xf32>
    %85 = arith.addf %80, %84 : vector<16x512xf32>
    %86 = vector.extract_strided_slice %44 {offsets = [0, 64], sizes = [16, 512], strides = [1, 1]} : vector<16x576xf32> to vector<16x512xf32>
    %87 = vector.extract_strided_slice %31 {offsets = [8, 0], sizes = [1, 512], strides = [1, 1]} : vector<9x512xf32> to vector<1x512xf32>
    %88 = vector.broadcast %87 : vector<1x512xf32> to vector<16x512xf32>
    %89 = arith.mulf %86, %88 : vector<16x512xf32>
    %90 = arith.addf %85, %89 : vector<16x512xf32>
    %91 = vector.broadcast %32 : vector<1x512xf32> to vector<16x512xf32>
    %92 = arith.addf %90, %91 : vector<16x512xf32>
    %cst_27 = arith.constant 0.000000e+00 : f32
    %93 = vector.broadcast %cst_27 : f32 to vector<16x512xf32>
    %94 = arith.maximumf %92, %93 : vector<16x512xf32>
    %cst_28 = arith.constant dense<0.000000e+00> : vector<16x256xf32>
    %95 = tpu.matmul %94, %33, %cst_28 {dimension_numbers = #tpu.dot_dimension_numbers<[1], [0], [0], [1], [0, 0, 1, 1], [], []>} : vector<16x512xf32>, vector<512x256xf32>, vector<16x256xf32> -> vector<16x256xf32>
    %96 = vector.broadcast %34 : vector<1x256xf32> to vector<16x256xf32>
    %97 = arith.addf %95, %96 : vector<16x256xf32>
    %98 = arith.addf %97, %26 : vector<16x256xf32>
    %c0_29 = arith.constant 0 : index
    %c0_30 = arith.constant 0 : index
    %c0_31 = arith.constant 0 : index
    %99 = vector.load %arg15[%c0_29, %c0_30, %c0_31] : memref<1x16x256xf32, #tpu.memory_space<vmem>>, vector<1x16x256xf32>
    %100 = vector.shape_cast %99 : vector<1x16x256xf32> to vector<16x256xf32>
    %101 = vector.shape_cast %98 : vector<16x256xf32> to vector<1x16x256xf32>
    tpu.vector_store %arg15[%c0_29, %c0_30, %c0_31], %101 {strides = array<i32>} : memref<1x16x256xf32, #tpu.memory_space<vmem>>, vector<1x16x256xf32>,
    %c0_32 = arith.constant 0 : index
    %c0_33 = arith.constant 0 : index
    %102 = vector.load %arg9[%c0_32, %c0_33] : memref<256x512xf32, #tpu.memory_space<vmem>>, vector<256x512xf32>
    %c0_34 = arith.constant 0 : index
    %c0_35 = arith.constant 0 : index
    %103 = vector.load %arg10[%c0_34, %c0_35] : memref<1x512xf32, #tpu.memory_space<vmem>>, vector<1x512xf32>
    %c0_36 = arith.constant 0 : index
    %c0_37 = arith.constant 0 : index
    %104 = vector.load %arg11[%c0_36, %c0_37] : memref<9x512xf32, #tpu.memory_space<vmem>>, vector<9x512xf32>
    %c0_38 = arith.constant 0 : index
    %c0_39 = arith.constant 0 : index
    %105 = vector.load %arg12[%c0_38, %c0_39] : memref<1x512xf32, #tpu.memory_space<vmem>>, vector<1x512xf32>
    %c0_40 = arith.constant 0 : index
    %c0_41 = arith.constant 0 : index
    %106 = vector.load %arg13[%c0_40, %c0_41] : memref<512x128xf32, #tpu.memory_space<vmem>>, vector<512x128xf32>
    %c0_42 = arith.constant 0 : index
    %c0_43 = arith.constant 0 : index
    %107 = vector.load %arg14[%c0_42, %c0_43] : memref<1x128xf32, #tpu.memory_space<vmem>>, vector<1x128xf32>
    %cst_44 = arith.constant dense<0.000000e+00> : vector<16x512xf32>
    %108 = tpu.matmul %26, %102, %cst_44 {dimension_numbers = #tpu.dot_dimension_numbers<[1], [0], [0], [1], [0, 0, 1, 1], [], []>} : vector<16x256xf32>, vector<256x512xf32>, vector<16x512xf32> -> vector<16x512xf32>
    %109 = vector.broadcast %103 : vector<1x512xf32> to vector<16x512xf32>
    %110 = arith.addf %108, %109 : vector<16x512xf32>
    %cst_45 = arith.constant 0.000000e+00 : f32
    %111 = vector.broadcast %cst_45 : f32 to vector<16x512xf32>
    %112 = arith.maximumf %110, %111 : vector<16x512xf32>
    %c1_46 = arith.constant 1 : index
    %c32_47 = arith.constant 32 : index
    %113 = vector.load %arg17[%c1_46, %c32_47] : memref<18x576xf32, #tpu.memory_space<vmem>>, vector<16x512xf32>
    tpu.vector_store %arg17[%c1_46, %c32_47], %112 {strides = array<i32>} : memref<18x576xf32, #tpu.memory_space<vmem>>, vector<16x512xf32>,
    %c0_48 = arith.constant 0 : index
    %c0_49 = arith.constant 0 : index
    %114 = vector.load %arg17[%c0_48, %c0_49] : memref<18x576xf32, #tpu.memory_space<vmem>>, vector<18x576xf32>
    %cst_50 = arith.constant dense<0.000000e+00> : vector<8x576xf32>
    %115 = tpu.matmul %10, %114, %cst_50 {dimension_numbers = #tpu.dot_dimension_numbers<[1], [0], [0], [1], [0, 0, 1, 1], [], []>} : vector<8x18xf32>, vector<18x576xf32>, vector<8x576xf32> -> vector<8x576xf32>
    %cst_51 = arith.constant dense<0.000000e+00> : vector<8x576xf32>
    %116 = tpu.matmul %17, %114, %cst_51 {dimension_numbers = #tpu.dot_dimension_numbers<[1], [0], [0], [1], [0, 0, 1, 1], [], []>} : vector<8x18xf32>, vector<18x576xf32>, vector<8x576xf32> -> vector<8x576xf32>
    %cst_52 = arith.constant dense<0.000000e+00> : vector<8x576xf32>
    %117 = tpu.matmul %24, %114, %cst_52 {dimension_numbers = #tpu.dot_dimension_numbers<[1], [0], [0], [1], [0, 0, 1, 1], [], []>} : vector<8x18xf32>, vector<18x576xf32>, vector<8x576xf32> -> vector<8x576xf32>
    %cst_53 = arith.constant 0.000000e+00 : f32
    %118 = vector.broadcast %cst_53 : f32 to vector<8x512xf32>
    %119 = vector.extract_strided_slice %115 {offsets = [0, 0], sizes = [8, 512], strides = [1, 1]} : vector<8x576xf32> to vector<8x512xf32>
    %120 = vector.extract_strided_slice %104 {offsets = [0, 0], sizes = [1, 512], strides = [1, 1]} : vector<9x512xf32> to vector<1x512xf32>
    %121 = vector.broadcast %120 : vector<1x512xf32> to vector<8x512xf32>
    %122 = arith.mulf %119, %121 : vector<8x512xf32>
    %123 = arith.addf %118, %122 : vector<8x512xf32>
    %124 = vector.extract_strided_slice %115 {offsets = [0, 32], sizes = [8, 512], strides = [1, 1]} : vector<8x576xf32> to vector<8x512xf32>
    %125 = vector.extract_strided_slice %104 {offsets = [1, 0], sizes = [1, 512], strides = [1, 1]} : vector<9x512xf32> to vector<1x512xf32>
    %126 = vector.broadcast %125 : vector<1x512xf32> to vector<8x512xf32>
    %127 = arith.mulf %124, %126 : vector<8x512xf32>
    %128 = arith.addf %123, %127 : vector<8x512xf32>
    %129 = vector.extract_strided_slice %115 {offsets = [0, 64], sizes = [8, 512], strides = [1, 1]} : vector<8x576xf32> to vector<8x512xf32>
    %130 = vector.extract_strided_slice %104 {offsets = [2, 0], sizes = [1, 512], strides = [1, 1]} : vector<9x512xf32> to vector<1x512xf32>
    %131 = vector.broadcast %130 : vector<1x512xf32> to vector<8x512xf32>
    %132 = arith.mulf %129, %131 : vector<8x512xf32>
    %133 = arith.addf %128, %132 : vector<8x512xf32>
    %134 = vector.extract_strided_slice %116 {offsets = [0, 0], sizes = [8, 512], strides = [1, 1]} : vector<8x576xf32> to vector<8x512xf32>
    %135 = vector.extract_strided_slice %104 {offsets = [3, 0], sizes = [1, 512], strides = [1, 1]} : vector<9x512xf32> to vector<1x512xf32>
    %136 = vector.broadcast %135 : vector<1x512xf32> to vector<8x512xf32>
    %137 = arith.mulf %134, %136 : vector<8x512xf32>
    %138 = arith.addf %133, %137 : vector<8x512xf32>
    %139 = vector.extract_strided_slice %116 {offsets = [0, 32], sizes = [8, 512], strides = [1, 1]} : vector<8x576xf32> to vector<8x512xf32>
    %140 = vector.extract_strided_slice %104 {offsets = [4, 0], sizes = [1, 512], strides = [1, 1]} : vector<9x512xf32> to vector<1x512xf32>
    %141 = vector.broadcast %140 : vector<1x512xf32> to vector<8x512xf32>
    %142 = arith.mulf %139, %141 : vector<8x512xf32>
    %143 = arith.addf %138, %142 : vector<8x512xf32>
    %144 = vector.extract_strided_slice %116 {offsets = [0, 64], sizes = [8, 512], strides = [1, 1]} : vector<8x576xf32> to vector<8x512xf32>
    %145 = vector.extract_strided_slice %104 {offsets = [5, 0], sizes = [1, 512], strides = [1, 1]} : vector<9x512xf32> to vector<1x512xf32>
    %146 = vector.broadcast %145 : vector<1x512xf32> to vector<8x512xf32>
    %147 = arith.mulf %144, %146 : vector<8x512xf32>
    %148 = arith.addf %143, %147 : vector<8x512xf32>
    %149 = vector.extract_strided_slice %117 {offsets = [0, 0], sizes = [8, 512], strides = [1, 1]} : vector<8x576xf32> to vector<8x512xf32>
    %150 = vector.extract_strided_slice %104 {offsets = [6, 0], sizes = [1, 512], strides = [1, 1]} : vector<9x512xf32> to vector<1x512xf32>
    %151 = vector.broadcast %150 : vector<1x512xf32> to vector<8x512xf32>
    %152 = arith.mulf %149, %151 : vector<8x512xf32>
    %153 = arith.addf %148, %152 : vector<8x512xf32>
    %154 = vector.extract_strided_slice %117 {offsets = [0, 32], sizes = [8, 512], strides = [1, 1]} : vector<8x576xf32> to vector<8x512xf32>
    %155 = vector.extract_strided_slice %104 {offsets = [7, 0], sizes = [1, 512], strides = [1, 1]} : vector<9x512xf32> to vector<1x512xf32>
    %156 = vector.broadcast %155 : vector<1x512xf32> to vector<8x512xf32>
    %157 = arith.mulf %154, %156 : vector<8x512xf32>
    %158 = arith.addf %153, %157 : vector<8x512xf32>
    %159 = vector.extract_strided_slice %117 {offsets = [0, 64], sizes = [8, 512], strides = [1, 1]} : vector<8x576xf32> to vector<8x512xf32>
    %160 = vector.extract_strided_slice %104 {offsets = [8, 0], sizes = [1, 512], strides = [1, 1]} : vector<9x512xf32> to vector<1x512xf32>
    %161 = vector.broadcast %160 : vector<1x512xf32> to vector<8x512xf32>
    %162 = arith.mulf %159, %161 : vector<8x512xf32>
    %163 = arith.addf %158, %162 : vector<8x512xf32>
    %164 = vector.broadcast %105 : vector<1x512xf32> to vector<8x512xf32>
    %165 = arith.addf %163, %164 : vector<8x512xf32>
    %cst_54 = arith.constant 0.000000e+00 : f32
    %166 = vector.broadcast %cst_54 : f32 to vector<8x512xf32>
    %167 = arith.maximumf %165, %166 : vector<8x512xf32>
    %cst_55 = arith.constant dense<0.000000e+00> : vector<8x128xf32>
    %168 = tpu.matmul %167, %106, %cst_55 {dimension_numbers = #tpu.dot_dimension_numbers<[1], [0], [0], [1], [0, 0, 1, 1], [], []>} : vector<8x512xf32>, vector<512x128xf32>, vector<8x128xf32> -> vector<8x128xf32>
    %169 = vector.broadcast %107 : vector<1x128xf32> to vector<8x128xf32>
    %170 = arith.addf %168, %169 : vector<8x128xf32>
    %c0_56 = arith.constant 0 : index
    %c0_57 = arith.constant 0 : index
    %c0_58 = arith.constant 0 : index
    %c0_59 = arith.constant 0 : index
    %171 = vector.load %arg16[%c0_56, %c0_57, %c0_58, %c0_59] : memref<1x2x8x128xf32, #tpu.memory_space<vmem>>, vector<1x1x8x128xf32>
    %172 = vector.shape_cast %171 : vector<1x1x8x128xf32> to vector<8x128xf32>
    %173 = vector.shape_cast %170 : vector<8x128xf32> to vector<1x1x8x128xf32>
    tpu.vector_store %arg16[%c0_56, %c0_57, %c0_58, %c0_59], %173 {strides = array<i32>} : memref<1x2x8x128xf32, #tpu.memory_space<vmem>>, vector<1x1x8x128xf32>,
    %c0_60 = arith.constant 0 : index
    %c0_61 = arith.constant 0 : index
    %174 = vector.load %arg9[%c0_60, %c0_61] : memref<256x512xf32, #tpu.memory_space<vmem>>, vector<256x512xf32>
    %c0_62 = arith.constant 0 : index
    %c0_63 = arith.constant 0 : index
    %175 = vector.load %arg10[%c0_62, %c0_63] : memref<1x512xf32, #tpu.memory_space<vmem>>, vector<1x512xf32>
    %c0_64 = arith.constant 0 : index
    %c0_65 = arith.constant 0 : index
    %176 = vector.load %arg11[%c0_64, %c0_65] : memref<9x512xf32, #tpu.memory_space<vmem>>, vector<9x512xf32>
    %c0_66 = arith.constant 0 : index
    %c0_67 = arith.constant 0 : index
    %177 = vector.load %arg12[%c0_66, %c0_67] : memref<1x512xf32, #tpu.memory_space<vmem>>, vector<1x512xf32>
    %c0_68 = arith.constant 0 : index
    %c0_69 = arith.constant 0 : index
    %178 = vector.load %arg13[%c0_68, %c0_69] : memref<512x128xf32, #tpu.memory_space<vmem>>, vector<512x128xf32>
    %c0_70 = arith.constant 0 : index
    %c0_71 = arith.constant 0 : index
    %179 = vector.load %arg14[%c0_70, %c0_71] : memref<1x128xf32, #tpu.memory_space<vmem>>, vector<1x128xf32>
    %cst_72 = arith.constant dense<0.000000e+00> : vector<16x512xf32>
    %180 = tpu.matmul %28, %174, %cst_72 {dimension_numbers = #tpu.dot_dimension_numbers<[1], [0], [0], [1], [0, 0, 1, 1], [], []>} : vector<16x256xf32>, vector<256x512xf32>, vector<16x512xf32> -> vector<16x512xf32>
    %181 = vector.broadcast %175 : vector<1x512xf32> to vector<16x512xf32>
    %182 = arith.addf %180, %181 : vector<16x512xf32>
    %cst_73 = arith.constant 0.000000e+00 : f32
    %183 = vector.broadcast %cst_73 : f32 to vector<16x512xf32>
    %184 = arith.maximumf %182, %183 : vector<16x512xf32>
    %c1_74 = arith.constant 1 : index
    %c32_75 = arith.constant 32 : index
    %185 = vector.load %arg17[%c1_74, %c32_75] : memref<18x576xf32, #tpu.memory_space<vmem>>, vector<16x512xf32>
    tpu.vector_store %arg17[%c1_74, %c32_75], %184 {strides = array<i32>} : memref<18x576xf32, #tpu.memory_space<vmem>>, vector<16x512xf32>,
    %c0_76 = arith.constant 0 : index
    %c0_77 = arith.constant 0 : index
    %186 = vector.load %arg17[%c0_76, %c0_77] : memref<18x576xf32, #tpu.memory_space<vmem>>, vector<18x576xf32>
    %cst_78 = arith.constant dense<0.000000e+00> : vector<8x576xf32>
    %187 = tpu.matmul %10, %186, %cst_78 {dimension_numbers = #tpu.dot_dimension_numbers<[1], [0], [0], [1], [0, 0, 1, 1], [], []>} : vector<8x18xf32>, vector<18x576xf32>, vector<8x576xf32> -> vector<8x576xf32>
    %cst_79 = arith.constant dense<0.000000e+00> : vector<8x576xf32>
    %188 = tpu.matmul %17, %186, %cst_79 {dimension_numbers = #tpu.dot_dimension_numbers<[1], [0], [0], [1], [0, 0, 1, 1], [], []>} : vector<8x18xf32>, vector<18x576xf32>, vector<8x576xf32> -> vector<8x576xf32>
    %cst_80 = arith.constant dense<0.000000e+00> : vector<8x576xf32>
    %189 = tpu.matmul %24, %186, %cst_80 {dimension_numbers = #tpu.dot_dimension_numbers<[1], [0], [0], [1], [0, 0, 1, 1], [], []>} : vector<8x18xf32>, vector<18x576xf32>, vector<8x576xf32> -> vector<8x576xf32>
    %cst_81 = arith.constant 0.000000e+00 : f32
    %190 = vector.broadcast %cst_81 : f32 to vector<8x512xf32>
    %191 = vector.extract_strided_slice %187 {offsets = [0, 0], sizes = [8, 512], strides = [1, 1]} : vector<8x576xf32> to vector<8x512xf32>
    %192 = vector.extract_strided_slice %176 {offsets = [0, 0], sizes = [1, 512], strides = [1, 1]} : vector<9x512xf32> to vector<1x512xf32>
    %193 = vector.broadcast %192 : vector<1x512xf32> to vector<8x512xf32>
    %194 = arith.mulf %191, %193 : vector<8x512xf32>
    %195 = arith.addf %190, %194 : vector<8x512xf32>
    %196 = vector.extract_strided_slice %187 {offsets = [0, 32], sizes = [8, 512], strides = [1, 1]} : vector<8x576xf32> to vector<8x512xf32>
    %197 = vector.extract_strided_slice %176 {offsets = [1, 0], sizes = [1, 512], strides = [1, 1]} : vector<9x512xf32> to vector<1x512xf32>
    %198 = vector.broadcast %197 : vector<1x512xf32> to vector<8x512xf32>
    %199 = arith.mulf %196, %198 : vector<8x512xf32>
    %200 = arith.addf %195, %199 : vector<8x512xf32>
    %201 = vector.extract_strided_slice %187 {offsets = [0, 64], sizes = [8, 512], strides = [1, 1]} : vector<8x576xf32> to vector<8x512xf32>
    %202 = vector.extract_strided_slice %176 {offsets = [2, 0], sizes = [1, 512], strides = [1, 1]} : vector<9x512xf32> to vector<1x512xf32>
    %203 = vector.broadcast %202 : vector<1x512xf32> to vector<8x512xf32>
    %204 = arith.mulf %201, %203 : vector<8x512xf32>
    %205 = arith.addf %200, %204 : vector<8x512xf32>
    %206 = vector.extract_strided_slice %188 {offsets = [0, 0], sizes = [8, 512], strides = [1, 1]} : vector<8x576xf32> to vector<8x512xf32>
    %207 = vector.extract_strided_slice %176 {offsets = [3, 0], sizes = [1, 512], strides = [1, 1]} : vector<9x512xf32> to vector<1x512xf32>
    %208 = vector.broadcast %207 : vector<1x512xf32> to vector<8x512xf32>
    %209 = arith.mulf %206, %208 : vector<8x512xf32>
    %210 = arith.addf %205, %209 : vector<8x512xf32>
    %211 = vector.extract_strided_slice %188 {offsets = [0, 32], sizes = [8, 512], strides = [1, 1]} : vector<8x576xf32> to vector<8x512xf32>
    %212 = vector.extract_strided_slice %176 {offsets = [4, 0], sizes = [1, 512], strides = [1, 1]} : vector<9x512xf32> to vector<1x512xf32>
    %213 = vector.broadcast %212 : vector<1x512xf32> to vector<8x512xf32>
    %214 = arith.mulf %211, %213 : vector<8x512xf32>
    %215 = arith.addf %210, %214 : vector<8x512xf32>
    %216 = vector.extract_strided_slice %188 {offsets = [0, 64], sizes = [8, 512], strides = [1, 1]} : vector<8x576xf32> to vector<8x512xf32>
    %217 = vector.extract_strided_slice %176 {offsets = [5, 0], sizes = [1, 512], strides = [1, 1]} : vector<9x512xf32> to vector<1x512xf32>
    %218 = vector.broadcast %217 : vector<1x512xf32> to vector<8x512xf32>
    %219 = arith.mulf %216, %218 : vector<8x512xf32>
    %220 = arith.addf %215, %219 : vector<8x512xf32>
    %221 = vector.extract_strided_slice %189 {offsets = [0, 0], sizes = [8, 512], strides = [1, 1]} : vector<8x576xf32> to vector<8x512xf32>
    %222 = vector.extract_strided_slice %176 {offsets = [6, 0], sizes = [1, 512], strides = [1, 1]} : vector<9x512xf32> to vector<1x512xf32>
    %223 = vector.broadcast %222 : vector<1x512xf32> to vector<8x512xf32>
    %224 = arith.mulf %221, %223 : vector<8x512xf32>
    %225 = arith.addf %220, %224 : vector<8x512xf32>
    %226 = vector.extract_strided_slice %189 {offsets = [0, 32], sizes = [8, 512], strides = [1, 1]} : vector<8x576xf32> to vector<8x512xf32>
    %227 = vector.extract_strided_slice %176 {offsets = [7, 0], sizes = [1, 512], strides = [1, 1]} : vector<9x512xf32> to vector<1x512xf32>
    %228 = vector.broadcast %227 : vector<1x512xf32> to vector<8x512xf32>
    %229 = arith.mulf %226, %228 : vector<8x512xf32>
    %230 = arith.addf %225, %229 : vector<8x512xf32>
    %231 = vector.extract_strided_slice %189 {offsets = [0, 64], sizes = [8, 512], strides = [1, 1]} : vector<8x576xf32> to vector<8x512xf32>
    %232 = vector.extract_strided_slice %176 {offsets = [8, 0], sizes = [1, 512], strides = [1, 1]} : vector<9x512xf32> to vector<1x512xf32>
    %233 = vector.broadcast %232 : vector<1x512xf32> to vector<8x512xf32>
    %234 = arith.mulf %231, %233 : vector<8x512xf32>
    %235 = arith.addf %230, %234 : vector<8x512xf32>
    %236 = vector.broadcast %177 : vector<1x512xf32> to vector<8x512xf32>
    %237 = arith.addf %235, %236 : vector<8x512xf32>
    %cst_82 = arith.constant 0.000000e+00 : f32
    %238 = vector.broadcast %cst_82 : f32 to vector<8x512xf32>
    %239 = arith.maximumf %237, %238 : vector<8x512xf32>
    %cst_83 = arith.constant dense<0.000000e+00> : vector<8x128xf32>
    %240 = tpu.matmul %239, %178, %cst_83 {dimension_numbers = #tpu.dot_dimension_numbers<[1], [0], [0], [1], [0, 0, 1, 1], [], []>} : vector<8x512xf32>, vector<512x128xf32>, vector<8x128xf32> -> vector<8x128xf32>
    %241 = vector.broadcast %179 : vector<1x128xf32> to vector<8x128xf32>
    %242 = arith.addf %240, %241 : vector<8x128xf32>
    %c0_84 = arith.constant 0 : index
    %c1_85 = arith.constant 1 : index
    %c0_86 = arith.constant 0 : index
    %c0_87 = arith.constant 0 : index
    %243 = vector.load %arg16[%c0_84, %c1_85, %c0_86, %c0_87] : memref<1x2x8x128xf32, #tpu.memory_space<vmem>>, vector<1x1x8x128xf32>
    %244 = vector.shape_cast %243 : vector<1x1x8x128xf32> to vector<8x128xf32>
    %245 = vector.shape_cast %242 : vector<8x128xf32> to vector<1x1x8x128xf32>
    tpu.vector_store %arg16[%c0_84, %c1_85, %c0_86, %c0_87], %245 {strides = array<i32>} : memref<1x2x8x128xf32, #tpu.memory_space<vmem>>, vector<1x1x8x128xf32>,
    return
  }
  func.func @transform_0(%arg0: i32) -> (i32, i32, i32) {
    %c0_i32 = arith.constant 0 : i32
    %c0_i32_0 = arith.constant 0 : i32
    %c0_i32_1 = arith.constant 0 : i32
    return %arg0, %c0_i32, %c0_i32_0 : i32, i32, i32
  }
  func.func @transform_1(%arg0: i32) -> (i32, i32, i32) {
    %c0_i32 = arith.constant 0 : i32
    %c0_i32_0 = arith.constant 0 : i32
    %c0_i32_1 = arith.constant 0 : i32
    return %arg0, %c0_i32, %c0_i32_0 : i32, i32, i32
  }
  func.func @transform_2(%arg0: i32) -> (i32, i32) {
    %c0_i32 = arith.constant 0 : i32
    %c0_i32_0 = arith.constant 0 : i32
    %c0_i32_1 = arith.constant 0 : i32
    return %c0_i32, %c0_i32_0 : i32, i32
  }
  func.func @transform_3(%arg0: i32) -> (i32, i32) {
    %c0_i32 = arith.constant 0 : i32
    %c0_i32_0 = arith.constant 0 : i32
    %c0_i32_1 = arith.constant 0 : i32
    return %c0_i32, %c0_i32_0 : i32, i32
  }
  func.func @transform_4(%arg0: i32) -> (i32, i32) {
    %c0_i32 = arith.constant 0 : i32
    %c0_i32_0 = arith.constant 0 : i32
    %c0_i32_1 = arith.constant 0 : i32
    return %c0_i32, %c0_i32_0 : i32, i32
  }
  func.func @transform_5(%arg0: i32) -> (i32, i32) {
    %c0_i32 = arith.constant 0 : i32
    %c0_i32_0 = arith.constant 0 : i32
    %c0_i32_1 = arith.constant 0 : i32
    return %c0_i32, %c0_i32_0 : i32, i32
  }
  func.func @transform_6(%arg0: i32) -> (i32, i32) {
    %c0_i32 = arith.constant 0 : i32
    %c0_i32_0 = arith.constant 0 : i32
    %c0_i32_1 = arith.constant 0 : i32
    return %c0_i32, %c0_i32_0 : i32, i32
  }
  func.func @transform_7(%arg0: i32) -> (i32, i32) {
    %c0_i32 = arith.constant 0 : i32
    %c0_i32_0 = arith.constant 0 : i32
    %c0_i32_1 = arith.constant 0 : i32
    return %c0_i32, %c0_i32_0 : i32, i32
  }
  func.func @transform_8(%arg0: i32) -> (i32, i32) {
    %c0_i32 = arith.constant 0 : i32
    %c0_i32_0 = arith.constant 0 : i32
    %c0_i32_1 = arith.constant 0 : i32
    return %c0_i32, %c0_i32_0 : i32, i32
  }
  func.func @transform_9(%arg0: i32) -> (i32, i32) {
    %c0_i32 = arith.constant 0 : i32
    %c0_i32_0 = arith.constant 0 : i32
    %c0_i32_1 = arith.constant 0 : i32
    return %c0_i32, %c0_i32_0 : i32, i32
  }
  func.func @transform_10(%arg0: i32) -> (i32, i32) {
    %c0_i32 = arith.constant 0 : i32
    %c0_i32_0 = arith.constant 0 : i32
    %c0_i32_1 = arith.constant 0 : i32
    return %c0_i32, %c0_i32_0 : i32, i32
  }
  func.func @transform_11(%arg0: i32) -> (i32, i32) {
    %c0_i32 = arith.constant 0 : i32
    %c0_i32_0 = arith.constant 0 : i32
    %c0_i32_1 = arith.constant 0 : i32
    return %c0_i32, %c0_i32_0 : i32, i32
  }
  func.func @transform_12(%arg0: i32) -> (i32, i32) {
    %c0_i32 = arith.constant 0 : i32
    %c0_i32_0 = arith.constant 0 : i32
    %c0_i32_1 = arith.constant 0 : i32
    return %c0_i32, %c0_i32_0 : i32, i32
  }
  func.func @transform_13(%arg0: i32) -> (i32, i32) {
    %c0_i32 = arith.constant 0 : i32
    %c0_i32_0 = arith.constant 0 : i32
    %c0_i32_1 = arith.constant 0 : i32
    return %c0_i32, %c0_i32_0 : i32, i32
  }
  func.func @transform_14(%arg0: i32) -> (i32, i32, i32) {
    %c0_i32 = arith.constant 0 : i32
    %c0_i32_0 = arith.constant 0 : i32
    %c0_i32_1 = arith.constant 0 : i32
    return %arg0, %c0_i32, %c0_i32_0 : i32, i32, i32
  }
  func.func @transform_15(%arg0: i32) -> (i32, i32, i32, i32) {
    %c0_i32 = arith.constant 0 : i32
    %c0_i32_0 = arith.constant 0 : i32
    %c0_i32_1 = arith.constant 0 : i32
    %c0_i32_2 = arith.constant 0 : i32
    return %arg0, %c0_i32, %c0_i32_0, %c0_i32_1 : i32, i32, i32, i32
  }
}

</mosaic_0001>

<llo_original>
// kernel: tile.41
$region0: #{tile.41}
  %s0 = inlined_call_operand.vmem [shape: f32[9,16,32], index: 0, kind: input, shape index: {}]
  %s1 = inlined_call_operand.vmem [shape: f32[9,512], index: 1, kind: output, shape index: {}]
  %v2 = vld [vmem:[%s0] ss:$4 sm:$0xff]
  %vm3 = vcmask 261120
  %4 = vst.msk [vmem:[%s1] ss:$8 sm:$0xf] %vm3, %v2
  %s5 = scalar_lea.vmem %s1, 4294967265
  %6 = vst.msk [vmem:[%s5] ss:$8 sm:$0xf0] %vm3, %v2
  %s7 = scalar_lea.vmem %s0, 32
  %v8 = vld [vmem:[%s7] ss:$4 sm:$0xff]
  %vm9 = vcmask 261120
  %s10 = scalar_lea.vmem %s1, 2
  %11 = vst.msk [vmem:[%s10] ss:$8 sm:$0xf] %vm9, %v8
  %s12 = scalar_lea.vmem %s1, 4294967267
  %13 = vst.msk [vmem:[%s12] ss:$8 sm:$0xf0] %vm9, %v8
  %s14 = scalar_lea.vmem %s0, 64
  %v15 = vld [vmem:[%s14] ss:$4 sm:$0xff]
  %vm16 = vcmask 261120
  %s17 = scalar_lea.vmem %s1, 4
  %18 = vst.msk [vmem:[%s17] ss:$8 sm:$0xf] %vm16, %v15
  %s19 = scalar_lea.vmem %s1, 4294967269
  %20 = vst.msk [vmem:[%s19] ss:$8 sm:$0xf0] %vm16, %v15
  %s21 = scalar_lea.vmem %s0, 96
  %v22 = vld [vmem:[%s21] ss:$4 sm:$0xff]
  %vm23 = vcmask 261120
  %s24 = scalar_lea.vmem %s1, 6
  %25 = vst.msk [vmem:[%s24] ss:$8 sm:$0xf] %vm23, %v22
  %s26 = scalar_lea.vmem %s1, 4294967271
  %27 = vst.msk [vmem:[%s26] ss:$8 sm:$0xf0] %vm23, %v22
  %s28 = scalar_lea.vmem %s0, 128
  %v29 = vld [vmem:[%s28] ss:$4 sm:$0xf]
  %vm30 = vcmask 261120
  %s31 = scalar_lea.vmem %s1, 32
  %32 = vst.msk [vmem:[%s31] ss:$8 sm:$0xf] %vm30, %v29
  %s33 = scalar_lea.vmem %s0, 3
  %s34 = smov 3
  %v35 = vld [vmem:[%s33] ss:$16 sm:%s34]
  %s36 = scalar_lea.vmem %s0, 3
  %s37 = smov 12
  %v38 = vld [vmem:[%s36] ss:$16 sm:%s37]
  %vm39 = vcmask 1043458
  %v40 = vsel %vm39, %v38, %v35
  %s41 = scalar_lea.vmem %s0, 3
  %s42 = smov 48
  %v43 = vld [vmem:[%s41] ss:$16 sm:%s42]
  %vm44 = vcmask 1045508
  %v45 = vsel %vm44, %v43, %v40
  %s46 = scalar_lea.vmem %s0, 3
  %s47 = smov 192
  %v48 = vld [vmem:[%s46] ss:$16 sm:%s47]
  %vm49 = vcmask 1047558
  %v50 = vsel %vm49, %v48, %v45
  %51 = vrot.lane.b32.xlu0 %v50, 96
  %v52 = vpop.permute.xlu0 %51
  %vm53 = vcmask 1048320
  %54 = vst.msk [vmem:[%s1] sm:$0xff] %vm53, %v52
  %s55 = scalar_lea.vmem %s0, 131
  %s56 = smov 3
  %v57 = vld [vmem:[%s55] ss:$-124 sm:%s56]
  %s58 = scalar_lea.vmem %s0, 4294967287
  %s59 = smov 12
  %v60 = vld [vmem:[%s58] ss:$16 sm:%s59]
  %vm61 = vcmask 1043458
  %v62 = vsel %vm61, %v60, %v57
  %s63 = scalar_lea.vmem %s0, 4294967287
  %s64 = smov 48
  %v65 = vld [vmem:[%s63] ss:$16 sm:%s64]
  %vm66 = vcmask 1045508
  %v67 = vsel %vm66, %v65, %v62
  %s68 = scalar_lea.vmem %s0, 4294967287
  %s69 = smov 192
  %v70 = vld [vmem:[%s68] ss:$16 sm:%s69]
  %vm71 = vcmask 1047558
  %v72 = vsel %vm71, %v70, %v67
  %73 = vrot.lane.b32.xlu0 %v72, 96
  %v74 = vpop.permute.xlu0 %73
  %vm75 = vcmask 1048320
  %s76 = scalar_lea.vmem %s1, 32
  %77 = vst.msk [vmem:[%s76] ss:$-24 sm:$0x3] %vm75, %v74
  %s78 = scalar_lea.vmem %s1, 7
  %79 = vst.msk [vmem:[%s78] sm:$0xfc] %vm75, %v74
  %s80 = scalar_lea.vmem %s0, 135
  %s81 = smov 3
  %v82 = vld [vmem:[%s80] ss:$-16 sm:%s81]
  %s83 = scalar_lea.vmem %s0, 4294967275
  %s84 = smov 12
  %v85 = vld [vmem:[%s83] ss:$16 sm:%s84]
  %vm86 = vcmask 1043458
  %v87 = vsel %vm86, %v85, %v82
  %s88 = scalar_lea.vmem %s0, 4294967275
  %s89 = smov 48
  %v90 = vld [vmem:[%s88] ss:$16 sm:%s89]
  %vm91 = vcmask 1045508
  %v92 = vsel %vm91, %v90, %v87
  %s93 = scalar_lea.vmem %s0, 4294967275
  %s94 = smov 192
  %v95 = vld [vmem:[%s93] ss:$16 sm:%s94]
  %vm96 = vcmask 1047558
  %v97 = vsel %vm96, %v95, %v92
  %98 = vrot.lane.b32.xlu0 %v97, 96
  %v99 = vpop.permute.xlu0 %98
  %vm100 = vcmask 1048320
  %s101 = scalar_lea.vmem %s1, 40
  %102 = vst.msk [vmem:[%s101] ss:$-25 sm:$0x3] %vm100, %v99
  %s103 = scalar_lea.vmem %s1, 14
  %104 = vst.msk [vmem:[%s103] sm:$0xfc] %vm100, %v99
  %s105 = scalar_lea.vmem %s0, 139
  %v106 = vld [vmem:[%s105] sm:$0x1]
  %s107 = scalar_lea.vmem %s0, 91
  %s108 = smov 6
  %v109 = vld [vmem:[%s107] ss:$16 sm:%s108]
  %vm110 = vcmask 1042433
  %v111 = vsel %vm110, %v109, %v106
  %s112 = scalar_lea.vmem %s0, 4294967263
  %s113 = smov 24
  %v114 = vld [vmem:[%s112] ss:$16 sm:%s113]
  %vm115 = vcmask 1044483
  %v116 = vsel %vm115, %v114, %v111
  %s117 = scalar_lea.vmem %s0, 4294967263
  %s118 = smov 96
  %v119 = vld [vmem:[%s117] ss:$16 sm:%s118]
  %vm120 = vcmask 1046533
  %v121 = vsel %vm120, %v119, %v116
  %s122 = scalar_lea.vmem %s0, 72
  %v123 = vld [vmem:[%s122] sm:$0x80]
  %vm124 = vcmask 1047559
  %v125 = vsel %vm124, %v123, %v121
  %126 = vrot.lane.b32.xlu0 %v125, 96
  %v127 = vpop.permute.xlu0 %126
  %vm128 = vcmask 1048320
  %s129 = scalar_lea.vmem %s1, 48
  %130 = vst.msk [vmem:[%s129] ss:$-26 sm:$0x3] %vm128, %v127
  %s131 = scalar_lea.vmem %s1, 21
  %132 = vst.msk [vmem:[%s131] sm:$0xfc] %vm128, %v127
  %s133 = scalar_lea.vmem %s0, 143
  %s134 = smov 3
  %v135 = vld [vmem:[%s133] ss:$-48 sm:%s134]
  %s136 = scalar_lea.vmem %s0, 79
  %s137 = smov 12
  %v138 = vld [vmem:[%s136] ss:$16 sm:%s137]
  %vm139 = vcmask 1043458
  %v140 = vsel %vm139, %v138, %v135
  %141 = vrot.lane.b32.xlu0 %v140, 96
  %v142 = vpop.permute.xlu0 %141
  %vm143 = vcmask 1048320
  %s144 = scalar_lea.vmem %s1, 56
  %145 = vst.msk [vmem:[%s144] ss:$-27 sm:$0x3] %vm143, %v142
  %s146 = scalar_lea.vmem %s1, 28
  %147 = vst.msk [vmem:[%s146] sm:$0xc] %vm143, %v142
  %s148 = scalar_lea.vmem %s0, 2
  %s149 = smov 3
  %v150 = vld [vmem:[%s148] ss:$16 sm:%s149]
  %s151 = scalar_lea.vmem %s0, 2
  %s152 = smov 12
  %v153 = vld [vmem:[%s151] ss:$16 sm:%s152]
  %vm154 = vcmask 1043458
  %v155 = vsel %vm154, %v153, %v150
  %s156 = scalar_lea.vmem %s0, 2
  %s157 = smov 48
  %v158 = vld [vmem:[%s156] ss:$16 sm:%s157]
  %vm159 = vcmask 1045508
  %v160 = vsel %vm159, %v158, %v155
  %s161 = scalar_lea.vmem %s0, 2
  %s162 = smov 192
  %v163 = vld [vmem:[%s161] ss:$16 sm:%s162]
  %vm164 = vcmask 1047558
  %v165 = vsel %vm164, %v163, %v160
  %166 = vrot.lane.b32.xlu0 %v165, 64
  %v167 = vpop.permute.xlu0 %166
  %vm168 = vcmask 785920
  %169 = vst.msk [vmem:[%s1] sm:$0xff] %vm168, %v167
  %s170 = scalar_lea.vmem %s0, 130
  %s171 = smov 3
  %v172 = vld [vmem:[%s170] ss:$-124 sm:%s171]
  %s173 = scalar_lea.vmem %s0, 4294967286
  %s174 = smov 12
  %v175 = vld [vmem:[%s173] ss:$16 sm:%s174]
  %vm176 = vcmask 1043458
  %v177 = vsel %vm176, %v175, %v172
  %s178 = scalar_lea.vmem %s0, 4294967286
  %s179 = smov 48
  %v180 = vld [vmem:[%s178] ss:$16 sm:%s179]
  %vm181 = vcmask 1045508
  %v182 = vsel %vm181, %v180, %v177
  %s183 = scalar_lea.vmem %s0, 4294967286
  %s184 = smov 192
  %v185 = vld [vmem:[%s183] ss:$16 sm:%s184]
  %vm186 = vcmask 1047558
  %v187 = vsel %vm186, %v185, %v182
  %188 = vrot.lane.b32.xlu0 %v187, 64
  %v189 = vpop.permute.xlu0 %188
  %vm190 = vcmask 785920
  %s191 = scalar_lea.vmem %s1, 32
  %192 = vst.msk [vmem:[%s191] ss:$-24 sm:$0x3] %vm190, %v189
  %s193 = scalar_lea.vmem %s1, 7
  %194 = vst.msk [vmem:[%s193] sm:$0xfc] %vm190, %v189
  %s195 = scalar_lea.vmem %s0, 134
  %s196 = smov 3
  %v197 = vld [vmem:[%s195] ss:$-16 sm:%s196]
  %s198 = scalar_lea.vmem %s0, 4294967274
  %s199 = smov 12
  %v200 = vld [vmem:[%s198] ss:$16 sm:%s199]
  %vm201 = vcmask 1043458
  %v202 = vsel %vm201, %v200, %v197
  %s203 = scalar_lea.vmem %s0, 4294967274
  %s204 = smov 48
  %v205 = vld [vmem:[%s203] ss:$16 sm:%s204]
  %vm206 = vcmask 1045508
  %v207 = vsel %vm206, %v205, %v202
  %s208 = scalar_lea.vmem %s0, 4294967274
  %s209 = smov 192
  %v210 = vld [vmem:[%s208] ss:$16 sm:%s209]
  %vm211 = vcmask 1047558
  %v212 = vsel %vm211, %v210, %v207
  %213 = vrot.lane.b32.xlu0 %v212, 64
  %v214 = vpop.permute.xlu0 %213
  %vm215 = vcmask 785920
  %s216 = scalar_lea.vmem %s1, 40
  %217 = vst.msk [vmem:[%s216] ss:$-25 sm:$0x3] %vm215, %v214
  %s218 = scalar_lea.vmem %s1, 14
  %219 = vst.msk [vmem:[%s218] sm:$0xfc] %vm215, %v214
  %s220 = scalar_lea.vmem %s0, 138
  %v221 = vld [vmem:[%s220] sm:$0x1]
  %s222 = scalar_lea.vmem %s0, 90
  %s223 = smov 6
  %v224 = vld [vmem:[%s222] ss:$16 sm:%s223]
  %vm225 = vcmask 1042433
  %v226 = vsel %vm225, %v224, %v221
  %s227 = scalar_lea.vmem %s0, 4294967262
  %s228 = smov 24
  %v229 = vld [vmem:[%s227] ss:$16 sm:%s228]
  %vm230 = vcmask 1044483
  %v231 = vsel %vm230, %v229, %v226
  %s232 = scalar_lea.vmem %s0, 4294967262
  %s233 = smov 96
  %v234 = vld [vmem:[%s232] ss:$16 sm:%s233]
  %vm235 = vcmask 1046533
  %v236 = vsel %vm235, %v234, %v231
  %s237 = scalar_lea.vmem %s0, 71
  %v238 = vld [vmem:[%s237] sm:$0x80]
  %vm239 = vcmask 1047559
  %v240 = vsel %vm239, %v238, %v236
  %241 = vrot.lane.b32.xlu0 %v240, 64
  %v242 = vpop.permute.xlu0 %241
  %vm243 = vcmask 785920
  %s244 = scalar_lea.vmem %s1, 48
  %245 = vst.msk [vmem:[%s244] ss:$-26 sm:$0x3] %vm243, %v242
  %s246 = scalar_lea.vmem %s1, 21
  %247 = vst.msk [vmem:[%s246] sm:$0xfc] %vm243, %v242
  %s248 = scalar_lea.vmem %s0, 142
  %s249 = smov 3
  %v250 = vld [vmem:[%s248] ss:$-48 sm:%s249]
  %s251 = scalar_lea.vmem %s0, 78
  %s252 = smov 12
  %v253 = vld [vmem:[%s251] ss:$16 sm:%s252]
  %vm254 = vcmask 1043458
  %v255 = vsel %vm254, %v253, %v250
  %256 = vrot.lane.b32.xlu0 %v255, 64
  %v257 = vpop.permute.xlu0 %256
  %vm258 = vcmask 785920
  %s259 = scalar_lea.vmem %s1, 56
  %260 = vst.msk [vmem:[%s259] ss:$-27 sm:$0x3] %vm258, %v257
  %s261 = scalar_lea.vmem %s1, 28
  %262 = vst.msk [vmem:[%s261] sm:$0xc] %vm258, %v257
  %s263 = scalar_lea.vmem %s0, 1
  %s264 = smov 3
  %v265 = vld [vmem:[%s263] ss:$16 sm:%s264]
  %s266 = scalar_lea.vmem %s0, 1
  %s267 = smov 12
  %v268 = vld [vmem:[%s266] ss:$16 sm:%s267]
  %vm269 = vcmask 1043458
  %v270 = vsel %vm269, %v268, %v265
  %s271 = scalar_lea.vmem %s0, 1
  %s272 = smov 48
  %v273 = vld [vmem:[%s271] ss:$16 sm:%s272]
  %vm274 = vcmask 1045508
  %v275 = vsel %vm274, %v273, %v270
  %s276 = scalar_lea.vmem %s0, 1
  %s277 = smov 192
  %v278 = vld [vmem:[%s276] ss:$16 sm:%s277]
  %vm279 = vcmask 1047558
  %v280 = vsel %vm279, %v278, %v275
  %281 = vrot.lane.b32.xlu0 %v280, 32
  %v282 = vpop.permute.xlu0 %281
  %vm283 = vcmask 523520
  %284 = vst.msk [vmem:[%s1] sm:$0xff] %vm283, %v282
  %s285 = scalar_lea.vmem %s0, 129
  %s286 = smov 3
  %v287 = vld [vmem:[%s285] ss:$-124 sm:%s286]
  %s288 = scalar_lea.vmem %s0, 4294967285
  %s289 = smov 12
  %v290 = vld [vmem:[%s288] ss:$16 sm:%s289]
  %vm291 = vcmask 1043458
  %v292 = vsel %vm291, %v290, %v287
  %s293 = scalar_lea.vmem %s0, 4294967285
  %s294 = smov 48
  %v295 = vld [vmem:[%s293] ss:$16 sm:%s294]
  %vm296 = vcmask 1045508
  %v297 = vsel %vm296, %v295, %v292
  %s298 = scalar_lea.vmem %s0, 4294967285
  %s299 = smov 192
  %v300 = vld [vmem:[%s298] ss:$16 sm:%s299]
  %vm301 = vcmask 1047558
  %v302 = vsel %vm301, %v300, %v297
  %303 = vrot.lane.b32.xlu0 %v302, 32
  %v304 = vpop.permute.xlu0 %303
  %vm305 = vcmask 523520
  %s306 = scalar_lea.vmem %s1, 32
  %307 = vst.msk [vmem:[%s306] ss:$-24 sm:$0x3] %vm305, %v304
  %s308 = scalar_lea.vmem %s1, 7
  %309 = vst.msk [vmem:[%s308] sm:$0xfc] %vm305, %v304
  %s310 = scalar_lea.vmem %s0, 133
  %s311 = smov 3
  %v312 = vld [vmem:[%s310] ss:$-16 sm:%s311]
  %s313 = scalar_lea.vmem %s0, 4294967273
  %s314 = smov 12
  %v315 = vld [vmem:[%s313] ss:$16 sm:%s314]
  %vm316 = vcmask 1043458
  %v317 = vsel %vm316, %v315, %v312
  %s318 = scalar_lea.vmem %s0, 4294967273
  %s319 = smov 48
  %v320 = vld [vmem:[%s318] ss:$16 sm:%s319]
  %vm321 = vcmask 1045508
  %v322 = vsel %vm321, %v320, %v317
  %s323 = scalar_lea.vmem %s0, 4294967273
  %s324 = smov 192
  %v325 = vld [vmem:[%s323] ss:$16 sm:%s324]
  %vm326 = vcmask 1047558
  %v327 = vsel %vm326, %v325, %v322
  %328 = vrot.lane.b32.xlu0 %v327, 32
  %v329 = vpop.permute.xlu0 %328
  %vm330 = vcmask 523520
  %s331 = scalar_lea.vmem %s1, 40
  %332 = vst.msk [vmem:[%s331] ss:$-25 sm:$0x3] %vm330, %v329
  %s333 = scalar_lea.vmem %s1, 14
  %334 = vst.msk [vmem:[%s333] sm:$0xfc] %vm330, %v329
  %s335 = scalar_lea.vmem %s0, 137
  %v336 = vld [vmem:[%s335] sm:$0x1]
  %s337 = scalar_lea.vmem %s0, 89
  %s338 = smov 6
  %v339 = vld [vmem:[%s337] ss:$16 sm:%s338]
  %vm340 = vcmask 1042433
  %v341 = vsel %vm340, %v339, %v336
  %s342 = scalar_lea.vmem %s0, 4294967261
  %s343 = smov 24
  %v344 = vld [vmem:[%s342] ss:$16 sm:%s343]
  %vm345 = vcmask 1044483
  %v346 = vsel %vm345, %v344, %v341
  %s347 = scalar_lea.vmem %s0, 4294967261
  %s348 = smov 96
  %v349 = vld [vmem:[%s347] ss:$16 sm:%s348]
  %vm350 = vcmask 1046533
  %v351 = vsel %vm350, %v349, %v346
  %s352 = scalar_lea.vmem %s0, 70
  %v353 = vld [vmem:[%s352] sm:$0x80]
  %vm354 = vcmask 1047559
  %v355 = vsel %vm354, %v353, %v351
  %356 = vrot.lane.b32.xlu0 %v355, 32
  %v357 = vpop.permute.xlu0 %356
  %vm358 = vcmask 523520
  %s359 = scalar_lea.vmem %s1, 48
  %360 = vst.msk [vmem:[%s359] ss:$-26 sm:$0x3] %vm358, %v357
  %s361 = scalar_lea.vmem %s1, 21
  %362 = vst.msk [vmem:[%s361] sm:$0xfc] %vm358, %v357
  %s363 = scalar_lea.vmem %s0, 141
  %s364 = smov 3
  %v365 = vld [vmem:[%s363] ss:$-48 sm:%s364]
  %s366 = scalar_lea.vmem %s0, 77
  %s367 = smov 12
  %v368 = vld [vmem:[%s366] ss:$16 sm:%s367]
  %vm369 = vcmask 1043458
  %v370 = vsel %vm369, %v368, %v365
  %371 = vrot.lane.b32.xlu0 %v370, 32
  %v372 = vpop.permute.xlu0 %371
  %vm373 = vcmask 523520
  %s374 = scalar_lea.vmem %s1, 56
  %375 = vst.msk [vmem:[%s374] ss:$-27 sm:$0x3] %vm373, %v372
  %s376 = scalar_lea.vmem %s1, 28
  %377 = vst.msk [vmem:[%s376] sm:$0xc] %vm373, %v372

// kernel: tile.45
$region0: #{tile.45}
  #allocation0 [shape = 's32[1]{0}', space=sflag, size = 0x4, scoped, tag = 'scoped memory for tile.45']
  %s0 = inlined_call_operand.vmem [shape: f32[32], index: 0, kind: input, shape index: {}]
  %s1 = inlined_call_operand.vmem [shape: f32[16,32], index: 1, kind: output, shape index: {}]
  // Predicated region
  $region2: #{tile.45} parent=0 // pred_check
    _
  $region3: #{tile.45} parent=0 // pred_check_branch
    %3 = sbr.rel (0) target = $region5
  $region4: #{tile.45} parent=0 // pred_region
    _
  $region5: #{tile.45} parent=0 // pred_fallthru
    _
  %v4 = vld [vmem:[%s0] ss:$0 sm:$0xff]
  %5 = vst [vmem:[%s1] sm:$0xff] %v4
  %s6 = scalar_lea.vmem %s1, 8
  %7 = vst [vmem:[%s6] sm:$0xff] %v4

// kernel: tile.46
$region0: #{tile.46}
  %s0 = inlined_call_operand.vmem [shape: f32[16,32], index: 0, kind: input, shape index: {}]
  %s1 = inlined_call_operand.vmem [shape: f32[1,512], index: 1, kind: output, shape index: {}]
  $region1: #{tile.46} parent=0
    #allocation0 [shape = 'u8[16384]{0}', space=vmem, size = 0x4000, scoped, tag = 'scoped mem for output reshape']
    %v2 = vld [vmem:[%s0] ss:$4 sm:$0xf]
    %vm3 = vcmask 261120
    %4 = vst.msk [vmem:[#allocation0] ss:$8 sm:$0xf] %vm3, %v2
    %s5 = scalar_lea.vmem %s0, 3
    %v6 = vld [vmem:[%s5] ss:$4 sm:$0xf]
    %7 = vrot.lane.b32.xlu0 %v6, 96
    %v8 = vpop.permute.xlu0 %7
    %vm9 = vcmask 1048320
    %10 = vst.msk [vmem:[#allocation0] ss:$8 sm:$0xf] %vm9, %v8
    %s11 = scalar_lea.vmem %s0, 2
    %v12 = vld [vmem:[%s11] ss:$4 sm:$0xf]
    %13 = vrot.lane.b32.xlu0 %v12, 64
    %v14 = vpop.permute.xlu0 %13
    %vm15 = vcmask 785920
    %16 = vst.msk [vmem:[#allocation0] ss:$8 sm:$0xf] %vm15, %v14
    %s17 = scalar_lea.vmem %s0, 1
    %v18 = vld [vmem:[%s17] ss:$4 sm:$0xf]
    %19 = vrot.lane.b32.xlu0 %v18, 32
    %v20 = vpop.permute.xlu0 %19
    %vm21 = vcmask 523520
    %22 = vst.msk [vmem:[#allocation0] ss:$8 sm:$0xf] %vm21, %v20
    %s24 = sshll.u32 1, 1
    %s25 = ssub.s32 %s24, 1
    %v27 = vld [vmem:[#allocation0] sm:%s25]
    %s28 = sshll.u32 1, 1
    %s29 = ssub.s32 %s28, 1
    %30 = vst [vmem:[%s1] sm:%s29] %v27
    %s31 = scalar_lea.vmem [#allocation0], 8
    %v32 = vld [vmem:[%s31] sm:%s25]
    %s33 = sshll.u32 1, 1
    %s34 = ssub.s32 %s33, 1
    %s35 = scalar_lea.vmem %s1, 1
    %36 = vst [vmem:[%s35] sm:%s34] %v32
    %s37 = scalar_lea.vmem [#allocation0], 16
    %v38 = vld [vmem:[%s37] sm:%s25]
    %s39 = sshll.u32 1, 1
    %s40 = ssub.s32 %s39, 1
    %s41 = smul.addr 1, 2
    %s42 = scalar_lea.vmem %s1, %s41
    %43 = vst [vmem:[%s42] sm:%s40] %v38
    %s44 = scalar_lea.vmem [#allocation0], 24
    %v45 = vld [vmem:[%s44] sm:%s25]
    %s46 = sshll.u32 1, 1
    %s47 = ssub.s32 %s46, 1
    %s48 = smul.addr 1, 3
    %s49 = scalar_lea.vmem %s1, %s48
    %50 = vst [vmem:[%s49] sm:%s47] %v45

// kernel: tile.55
$region0: #{tile.55}
  #allocation0 [shape = 's32[1]{0}', space=sflag, size = 0x4, scoped, tag = 'scoped memory for tile.55']
  %s0 = inlined_call_operand.vmem [shape: f32[16], index: 0, kind: input, shape index: {}]
  %s1 = inlined_call_operand.vmem [shape: f32[16,16], index: 1, kind: output, shape index: {}]
  // Predicated region
  $region2: #{tile.55} parent=0 // pred_check
    _
  $region3: #{tile.55} parent=0 // pred_check_branch
    %3 = sbr.rel (0) target = $region5
  $region4: #{tile.55} parent=0 // pred_region
    _
  $region5: #{tile.55} parent=0 // pred_fallthru
    _
  %v4 = vld [vmem:[%s0] ss:$0 sm:$0xff]
  %5 = vst [vmem:[%s1] sm:$0xff] %v4
  %s6 = scalar_lea.vmem %s1, 8
  %7 = vst [vmem:[%s6] sm:$0xff] %v4

// kernel: tile.56
$region0: #{tile.56}
  %s0 = inlined_call_operand.vmem [shape: f32[16,16], index: 0, kind: input, shape index: {}]
  %s1 = inlined_call_operand.vmem [shape: f32[1,256], index: 1, kind: output, shape index: {}]
  $region1: #{tile.56} parent=0
    #allocation0 [shape = 'u8[8192]{0}', space=vmem, size = 0x2000, scoped, tag = 'scoped mem for output reshape']
    %s2 = smov 3
    %v3 = vld [vmem:[%s0] ss:$8 sm:%s2]
    %vm4 = vcmask 130048
    %5 = vst.msk [vmem:[#allocation0] ss:$8 sm:$0x3] %vm4, %v3
    %s6 = scalar_lea.vmem %s0, 7
    %s7 = smov 3
    %v8 = vld [vmem:[%s6] ss:$8 sm:%s7]
    %9 = vrot.lane.b32.xlu0 %v8, 112
    %v10 = vpop.permute.xlu0 %9
    %vm11 = vcmask 1048448
    %12 = vst.msk [vmem:[#allocation0] ss:$8 sm:$0x3] %vm11, %v10
    %s13 = scalar_lea.vmem %s0, 6
    %s14 = smov 3
    %v15 = vld [vmem:[%s13] ss:$8 sm:%s14]
    %16 = vrot.lane.b32.xlu0 %v15, 96
    %v17 = vpop.permute.xlu0 %16
    %vm18 = vcmask 917248
    %19 = vst.msk [vmem:[#allocation0] ss:$8 sm:$0x3] %vm18, %v17
    %s20 = scalar_lea.vmem %s0, 5
    %s21 = smov 3
    %v22 = vld [vmem:[%s20] ss:$8 sm:%s21]
    %23 = vrot.lane.b32.xlu0 %v22, 80
    %v24 = vpop.permute.xlu0 %23
    %vm25 = vcmask 786048
    %26 = vst.msk [vmem:[#allocation0] ss:$8 sm:$0x3] %vm25, %v24
    %s27 = scalar_lea.vmem %s0, 4
    %s28 = smov 3
    %v29 = vld [vmem:[%s27] ss:$8 sm:%s28]
    %30 = vrot.lane.b32.xlu0 %v29, 64
    %v31 = vpop.permute.xlu0 %30
    %vm32 = vcmask 654848
    %33 = vst.msk [vmem:[#allocation0] ss:$8 sm:$0x3] %vm32, %v31
    %s34 = scalar_lea.vmem %s0, 3
    %s35 = smov 3
    %v36 = vld [vmem:[%s34] ss:$8 sm:%s35]
    %37 = vrot.lane.b32.xlu0 %v36, 48
    %v38 = vpop.permute.xlu0 %37
    %vm39 = vcmask 523648
    %40 = vst.msk [vmem:[#allocation0] ss:$8 sm:$0x3] %vm39, %v38
    %s41 = scalar_lea.vmem %s0, 2
    %s42 = smov 3
    %v43 = vld [vmem:[%s41] ss:$8 sm:%s42]
    %44 = vrot.lane.b32.xlu0 %v43, 32
    %v45 = vpop.permute.xlu0 %44
    %vm46 = vcmask 392448
    %47 = vst.msk [vmem:[#allocation0] ss:$8 sm:$0x3] %vm46, %v45
    %s48 = scalar_lea.vmem %s0, 1
    %s49 = smov 3
    %v50 = vld [vmem:[%s48] ss:$8 sm:%s49]
    %51 = vrot.lane.b32.xlu0 %v50, 16
    %v52 = vpop.permute.xlu0 %51
    %vm53 = vcmask 261248
    %54 = vst.msk [vmem:[#allocation0] ss:$8 sm:$0x3] %vm53, %v52
    %s56 = sshll.u32 1, 1
    %s57 = ssub.s32 %s56, 1
    %v59 = vld [vmem:[#allocation0] sm:%s57]
    %s60 = sshll.u32 1, 1
    %s61 = ssub.s32 %s60, 1
    %62 = vst [vmem:[%s1] sm:%s61] %v59
    %s63 = scalar_lea.vmem [#allocation0], 8
    %v64 = vld [vmem:[%s63] sm:%s57]
    %s65 = sshll.u32 1, 1
    %s66 = ssub.s32 %s65, 1
    %s67 = scalar_lea.vmem %s1, 1
    %68 = vst [vmem:[%s67] sm:%s66] %v64

// kernel: tile.74
$region0: #{tile.74}
  #allocation0 [shape = 's32[1]{0}', space=sflag, size = 0x4, scoped, tag = 'scoped memory for tile.74']
  %s0 = inlined_call_operand.vmem [shape: f32[16], index: 0, kind: input, shape index: {}]
  %s1 = inlined_call_operand.vmem [shape: f32[8,16], index: 1, kind: output, shape index: {}]
  // Predicated region
  $region2: #{tile.74} parent=0 // pred_check
    _
  $region3: #{tile.74} parent=0 // pred_check_branch
    %3 = sbr.rel (0) target = $region5
  $region4: #{tile.74} parent=0 // pred_region
    _
  $region5: #{tile.74} parent=0 // pred_fallthru
    _
  %v4 = vld [vmem:[%s0] ss:$0 sm:$0xff]
  %5 = vst [vmem:[%s1] sm:$0xff] %v4

// kernel: tile.75
$region0: #{tile.75}
  %s0 = inlined_call_operand.vmem [shape: f32[8,16], index: 0, kind: input, shape index: {}]
  %s1 = inlined_call_operand.vmem [shape: f32[1,128], index: 1, kind: output, shape index: {}]
  $region1: #{tile.75} parent=0
    #allocation0 [shape = 'u8[4096]{0}', space=vmem, size = 0x1000, scoped, tag = 'scoped mem for output reshape']
    %v2 = vld [vmem:[%s0] sm:$0x1]
    %vm3 = vcmask 130048
    %4 = vst.msk [vmem:[#allocation0] sm:$0x1] %vm3, %v2
    %s5 = scalar_lea.vmem %s0, 7
    %v6 = vld [vmem:[%s5] sm:$0x1]
    %7 = vrot.lane.b32.xlu0 %v6, 112
    %v8 = vpop.permute.xlu0 %7
    %vm9 = vcmask 1048448
    %10 = vst.msk [vmem:[#allocation0] sm:$0x1] %vm9, %v8
    %s11 = scalar_lea.vmem %s0, 6
    %v12 = vld [vmem:[%s11] sm:$0x1]
    %13 = vrot.lane.b32.xlu0 %v12, 96
    %v14 = vpop.permute.xlu0 %13
    %vm15 = vcmask 917248
    %16 = vst.msk [vmem:[#allocation0] sm:$0x1] %vm15, %v14
    %s17 = scalar_lea.vmem %s0, 5
    %v18 = vld [vmem:[%s17] sm:$0x1]
    %19 = vrot.lane.b32.xlu0 %v18, 80
    %v20 = vpop.permute.xlu0 %19
    %vm21 = vcmask 786048
    %22 = vst.msk [vmem:[#allocation0] sm:$0x1] %vm21, %v20
    %s23 = scalar_lea.vmem %s0, 4
    %v24 = vld [vmem:[%s23] sm:$0x1]
    %25 = vrot.lane.b32.xlu0 %v24, 64
    %v26 = vpop.permute.xlu0 %25
    %vm27 = vcmask 654848
    %28 = vst.msk [vmem:[#allocation0] sm:$0x1] %vm27, %v26
    %s29 = scalar_lea.vmem %s0, 3
    %v30 = vld [vmem:[%s29] sm:$0x1]
    %31 = vrot.lane.b32.xlu0 %v30, 48
    %v32 = vpop.permute.xlu0 %31
    %vm33 = vcmask 523648
    %34 = vst.msk [vmem:[#allocation0] sm:$0x1] %vm33, %v32
    %s35 = scalar_lea.vmem %s0, 2
    %v36 = vld [vmem:[%s35] sm:$0x1]
    %37 = vrot.lane.b32.xlu0 %v36, 32
    %v38 = vpop.permute.xlu0 %37
    %vm39 = vcmask 392448
    %40 = vst.msk [vmem:[#allocation0] sm:$0x1] %vm39, %v38
    %s41 = scalar_lea.vmem %s0, 1
    %v42 = vld [vmem:[%s41] sm:$0x1]
    %43 = vrot.lane.b32.xlu0 %v42, 16
    %v44 = vpop.permute.xlu0 %43
    %vm45 = vcmask 261248
    %46 = vst.msk [vmem:[#allocation0] sm:$0x1] %vm45, %v44
    %s48 = sshll.u32 1, 1
    %s49 = ssub.s32 %s48, 1
    %v51 = vld [vmem:[#allocation0] sm:%s49]
    %s52 = sshll.u32 1, 1
    %s53 = ssub.s32 %s52, 1
    %54 = vst [vmem:[%s1] sm:%s53] %v51

// kernel: fuse_diff_v2.1
$region0: #{fuse_diff_v2.1}
  #allocation0 [shape = 'u32[]', space=smem, size = 0x4, offset = 0x4, fixed_abs, tag = 'smem constant byte address 0x4 - core index']
  #allocation1 [shape = 'u32[144,128]{1,0:T(1,128)}', space=vmem, size = 0x12000, scoped, tag = 'internal scratch']
  #allocation2 [shape = 'f32[18,576]{1,0:T(8,128)}', space=vmem, size = 0xf000, scoped, tag = 'scratch operand']
  %s0 = inlined_call_operand.vmem [shape: f32[2,16,256], index: 0, kind: input, shape index: {}]
  %s1 = inlined_call_operand.vmem [shape: f32[2,16,256], index: 1, kind: input, shape index: {}]
  %s2 = inlined_call_operand.vmem [shape: f32[256,512], index: 2, kind: input, shape index: {}]
  %s3 = inlined_call_operand.vmem [shape: f32[1,512], index: 3, kind: input, shape index: {}]
  %s4 = inlined_call_operand.vmem [shape: f32[9,512], index: 4, kind: input, shape index: {}]
  %s5 = inlined_call_operand.vmem [shape: f32[1,512], index: 5, kind: input, shape index: {}]
  %s6 = inlined_call_operand.vmem [shape: f32[512,256], index: 6, kind: input, shape index: {}]
  %s7 = inlined_call_operand.vmem [shape: f32[1,256], index: 7, kind: input, shape index: {}]
  %s8 = inlined_call_operand.vmem [shape: f32[256,512], index: 8, kind: input, shape index: {}]
  %s9 = inlined_call_operand.vmem [shape: f32[1,512], index: 9, kind: input, shape index: {}]
  %s10 = inlined_call_operand.vmem [shape: f32[9,512], index: 10, kind: input, shape index: {}]
  %s11 = inlined_call_operand.vmem [shape: f32[1,512], index: 11, kind: input, shape index: {}]
  %s12 = inlined_call_operand.vmem [shape: f32[512,128], index: 12, kind: input, shape index: {}]
  %s13 = inlined_call_operand.vmem [shape: f32[1,128], index: 13, kind: input, shape index: {}]
  %s14 = inlined_call_operand.vmem [shape: f32[2,16,256], index: 14, kind: output, shape index: {0}]
  %s15 = inlined_call_operand.vmem [shape: f32[2,2,8,128], index: 15, kind: output, shape index: {1}]
  %16 = xla_tuple %s14, %s15
  %s17 = sld [smem:[#allocation0]]
  $region97: #{fuse_diff_v2.1} parent=0
    _
  %s19 = ssub.s32 1, %s17
  %s20 = scalar_select 0, %s19, %s17
  loop: start=0, step=1, limit=4
  $region2: #{fuse_diff_v2.1} parent=0 // loop_pre_header
    _
  $region3: #{fuse_diff_v2.1} parent=0 // loop_header
    %s22 = sphi 0, %s26
    %p23 = scmp.ge.s32.totalorder %s22, 4
    %s32 = sphi 0, %s34
    %s35 = sphi 0, %s32
    %s36 = sphi 0, %s35
    %s52 = sphi 0, %s36
    %s58 = sphi 0, %s60
    %s61 = sphi 0, %s58
    %s62 = sphi 0, %s61
    %s78 = sphi 0, %s62
    %s82 = sphi 0, %s82
    %s84 = sphi 0, %s82
    %s85 = sphi 0, %s84
    %s99 = sphi 0, %s85
    %s103 = sphi 0, %s103
    %s105 = sphi 0, %s103
    %s106 = sphi 0, %s105
    %s120 = sphi 0, %s106
    %s124 = sphi 0, %s124
    %s126 = sphi 0, %s124
    %s127 = sphi 0, %s126
    %s141 = sphi 0, %s127
    %s145 = sphi 0, %s145
    %s147 = sphi 0, %s145
    %s148 = sphi 0, %s147
    %s162 = sphi 0, %s148
    %s166 = sphi 0, %s166
    %s168 = sphi 0, %s166
    %s169 = sphi 0, %s168
    %s183 = sphi 0, %s169
    %s187 = sphi 0, %s187
    %s189 = sphi 0, %s187
    %s190 = sphi 0, %s189
    %s204 = sphi 0, %s190
    %s208 = sphi 0, %s208
    %s210 = sphi 0, %s208
    %s211 = sphi 0, %s210
    %s225 = sphi 0, %s211
    %s229 = sphi 0, %s229
    %s231 = sphi 0, %s229
    %s232 = sphi 0, %s231
    %s246 = sphi 0, %s232
    %s250 = sphi 0, %s250
    %s252 = sphi 0, %s250
    %s253 = sphi 0, %s252
    %s267 = sphi 0, %s253
    %s271 = sphi 0, %s271
    %s273 = sphi 0, %s271
    %s274 = sphi 0, %s273
    %s288 = sphi 0, %s274
    %s292 = sphi 0, %s292
    %s294 = sphi 0, %s292
    %s295 = sphi 0, %s294
    %s309 = sphi 0, %s295
    %s313 = sphi 0, %s313
    %s315 = sphi 0, %s313
    %s316 = sphi 0, %s315
    %s330 = sphi 0, %s316
    %s336 = sphi 0, %s338
    %s339 = sphi 0, %s336
    %s340 = sphi 0, %s339
    %s356 = sphi 0, %s340
    %s362 = sphi 0, %s364
    %s365 = sphi 0, %s362
    %s366 = sphi 0, %s365
    %s382 = sphi 0, %s366
  $region4: #{fuse_diff_v2.1} parent=0 // loop_header_branch
    %25 = sbr.rel (%p23) target = $region8
  $region5: #{fuse_diff_v2.1} parent=0 // loop_body
    %s27 = ssub.s32 %s22, 1
    %s28 = ssub.s32 %s22, 2
    %s29 = sadd.s32 %s22, 1
    %s30 = ssub.s32 %s22, %s29
    %p31 = scmp.eq.s32.totalorder %s30, 0
    %s33 = sadd.s32 %s32, 1
    %s34 = scalar_select %p31, %s32, %s33
    %p37 = pneg %p31
    %p38 = scmp.eq.s32.totalorder %s22, 1
    %p39 = por %p37, %p38
    %p40 = scmp.ne.s32.totalorder %s32, %s35
    %p41 = scmp.eq.s32.totalorder %s22, 0
    %p42 = por %p40, %p41
    %p43 = scmp.ne.s32.totalorder %s32, %s35
    %p44 = scmp.eq.s32.totalorder %s27, 1
    %p45 = por %p43, %p44
    %p46 = scmp.ne.s32.totalorder %s35, %s36
    %p47 = scmp.eq.s32.totalorder %s27, 0
    %p48 = por %p46, %p47
    %p49 = scmp.ne.s32.totalorder %s35, %s36
    %p50 = scmp.eq.s32.totalorder %s28, 1
    %p51 = por %p49, %p50
    %p53 = scmp.ne.s32.totalorder %s36, %s52
    %p54 = scmp.eq.s32.totalorder %s28, 0
    %p55 = por %p53, %p54
    %s56 = ssub.s32 %s22, %s29
    %p57 = scmp.eq.s32.totalorder %s56, 0
    %s59 = sadd.s32 %s58, 1
    %s60 = scalar_select %p57, %s58, %s59
    %p63 = pneg %p57
    %p64 = scmp.eq.s32.totalorder %s22, 1
    %p65 = por %p63, %p64
    %p66 = scmp.ne.s32.totalorder %s58, %s61
    %p67 = scmp.eq.s32.totalorder %s22, 0
    %p68 = por %p66, %p67
    %p69 = scmp.ne.s32.totalorder %s58, %s61
    %p70 = scmp.eq.s32.totalorder %s27, 1
    %p71 = por %p69, %p70
    %p72 = scmp.ne.s32.totalorder %s61, %s62
    %p73 = scmp.eq.s32.totalorder %s27, 0
    %p74 = por %p72, %p73
    %p75 = scmp.ne.s32.totalorder %s61, %s62
    %p76 = scmp.eq.s32.totalorder %s28, 1
    %p77 = por %p75, %p76
    %p79 = scmp.ne.s32.totalorder %s62, %s78
    %p80 = scmp.eq.s32.totalorder %s28, 0
    %p81 = por %p79, %p80
    %s83 = sadd.s32 %s82, 1
    %p86 = scmp.eq.s32.totalorder %s22, 1
    %p87 = scmp.ne.s32.totalorder %s82, %s84
    %p88 = scmp.eq.s32.totalorder %s22, 0
    %p89 = por %p87, %p88
    %p90 = scmp.ne.s32.totalorder %s82, %s84
    %p91 = scmp.eq.s32.totalorder %s27, 1
    %p92 = por %p90, %p91
    %p93 = scmp.ne.s32.totalorder %s84, %s85
    %p94 = scmp.eq.s32.totalorder %s27, 0
    %p95 = por %p93, %p94
    %p96 = scmp.ne.s32.totalorder %s84, %s85
    %p97 = scmp.eq.s32.totalorder %s28, 1
    %p98 = por %p96, %p97
    %p100 = scmp.ne.s32.totalorder %s85, %s99
    %p101 = scmp.eq.s32.totalorder %s28, 0
    %p102 = por %p100, %p101
    %s104 = sadd.s32 %s103, 1
    %p107 = scmp.eq.s32.totalorder %s22, 1
    %p108 = scmp.ne.s32.totalorder %s103, %s105
    %p109 = scmp.eq.s32.totalorder %s22, 0
    %p110 = por %p108, %p109
    %p111 = scmp.ne.s32.totalorder %s103, %s105
    %p112 = scmp.eq.s32.totalorder %s27, 1
    %p113 = por %p111, %p112
    %p114 = scmp.ne.s32.totalorder %s105, %s106
    %p115 = scmp.eq.s32.totalorder %s27, 0
    %p116 = por %p114, %p115
    %p117 = scmp.ne.s32.totalorder %s105, %s106
    %p118 = scmp.eq.s32.totalorder %s28, 1
    %p119 = por %p117, %p118
    %p121 = scmp.ne.s32.totalorder %s106, %s120
    %p122 = scmp.eq.s32.totalorder %s28, 0
    %p123 = por %p121, %p122
    %s125 = sadd.s32 %s124, 1
    %p128 = scmp.eq.s32.totalorder %s22, 1
    %p129 = scmp.ne.s32.totalorder %s124, %s126
    %p130 = scmp.eq.s32.totalorder %s22, 0
    %p131 = por %p129, %p130
    %p132 = scmp.ne.s32.totalorder %s124, %s126
    %p133 = scmp.eq.s32.totalorder %s27, 1
    %p134 = por %p132, %p133
    %p135 = scmp.ne.s32.totalorder %s126, %s127
    %p136 = scmp.eq.s32.totalorder %s27, 0
    %p137 = por %p135, %p136
    %p138 = scmp.ne.s32.totalorder %s126, %s127
    %p139 = scmp.eq.s32.totalorder %s28, 1
    %p140 = por %p138, %p139
    %p142 = scmp.ne.s32.totalorder %s127, %s141
    %p143 = scmp.eq.s32.totalorder %s28, 0
    %p144 = por %p142, %p143
    %s146 = sadd.s32 %s145, 1
    %p149 = scmp.eq.s32.totalorder %s22, 1
    %p150 = scmp.ne.s32.totalorder %s145, %s147
    %p151 = scmp.eq.s32.totalorder %s22, 0
    %p152 = por %p150, %p151
    %p153 = scmp.ne.s32.totalorder %s145, %s147
    %p154 = scmp.eq.s32.totalorder %s27, 1
    %p155 = por %p153, %p154
    %p156 = scmp.ne.s32.totalorder %s147, %s148
    %p157 = scmp.eq.s32.totalorder %s27, 0
    %p158 = por %p156, %p157
    %p159 = scmp.ne.s32.totalorder %s147, %s148
    %p160 = scmp.eq.s32.totalorder %s28, 1
    %p161 = por %p159, %p160
    %p163 = scmp.ne.s32.totalorder %s148, %s162
    %p164 = scmp.eq.s32.totalorder %s28, 0
    %p165 = por %p163, %p164
    %s167 = sadd.s32 %s166, 1
    %p170 = scmp.eq.s32.totalorder %s22, 1
    %p171 = scmp.ne.s32.totalorder %s166, %s168
    %p172 = scmp.eq.s32.totalorder %s22, 0
    %p173 = por %p171, %p172
    %p174 = scmp.ne.s32.totalorder %s166, %s168
    %p175 = scmp.eq.s32.totalorder %s27, 1
    %p176 = por %p174, %p175
    %p177 = scmp.ne.s32.totalorder %s168, %s169
    %p178 = scmp.eq.s32.totalorder %s27, 0
    %p179 = por %p177, %p178
    %p180 = scmp.ne.s32.totalorder %s168, %s169
    %p181 = scmp.eq.s32.totalorder %s28, 1
    %p182 = por %p180, %p181
    %p184 = scmp.ne.s32.totalorder %s169, %s183
    %p185 = scmp.eq.s32.totalorder %s28, 0
    %p186 = por %p184, %p185
    %s188 = sadd.s32 %s187, 1
    %p191 = scmp.eq.s32.totalorder %s22, 1
    %p192 = scmp.ne.s32.totalorder %s187, %s189
    %p193 = scmp.eq.s32.totalorder %s22, 0
    %p194 = por %p192, %p193
    %p195 = scmp.ne.s32.totalorder %s187, %s189
    %p196 = scmp.eq.s32.totalorder %s27, 1
    %p197 = por %p195, %p196
    %p198 = scmp.ne.s32.totalorder %s189, %s190
    %p199 = scmp.eq.s32.totalorder %s27, 0
    %p200 = por %p198, %p199
    %p201 = scmp.ne.s32.totalorder %s189, %s190
    %p202 = scmp.eq.s32.totalorder %s28, 1
    %p203 = por %p201, %p202
    %p205 = scmp.ne.s32.totalorder %s190, %s204
    %p206 = scmp.eq.s32.totalorder %s28, 0
    %p207 = por %p205, %p206
    %s209 = sadd.s32 %s208, 1
    %p212 = scmp.eq.s32.totalorder %s22, 1
    %p213 = scmp.ne.s32.totalorder %s208, %s210
    %p214 = scmp.eq.s32.totalorder %s22, 0
    %p215 = por %p213, %p214
    %p216 = scmp.ne.s32.totalorder %s208, %s210
    %p217 = scmp.eq.s32.totalorder %s27, 1
    %p218 = por %p216, %p217
    %p219 = scmp.ne.s32.totalorder %s210, %s211
    %p220 = scmp.eq.s32.totalorder %s27, 0
    %p221 = por %p219, %p220
    %p222 = scmp.ne.s32.totalorder %s210, %s211
    %p223 = scmp.eq.s32.totalorder %s28, 1
    %p224 = por %p222, %p223
    %p226 = scmp.ne.s32.totalorder %s211, %s225
    %p227 = scmp.eq.s32.totalorder %s28, 0
    %p228 = por %p226, %p227
    %s230 = sadd.s32 %s229, 1
    %p233 = scmp.eq.s32.totalorder %s22, 1
    %p234 = scmp.ne.s32.totalorder %s229, %s231
    %p235 = scmp.eq.s32.totalorder %s22, 0
    %p236 = por %p234, %p235
    %p237 = scmp.ne.s32.totalorder %s229, %s231
    %p238 = scmp.eq.s32.totalorder %s27, 1
    %p239 = por %p237, %p238
    %p240 = scmp.ne.s32.totalorder %s231, %s232
    %p241 = scmp.eq.s32.totalorder %s27, 0
    %p242 = por %p240, %p241
    %p243 = scmp.ne.s32.totalorder %s231, %s232
    %p244 = scmp.eq.s32.totalorder %s28, 1
    %p245 = por %p243, %p244
    %p247 = scmp.ne.s32.totalorder %s232, %s246
    %p248 = scmp.eq.s32.totalorder %s28, 0
    %p249 = por %p247, %p248
    %s251 = sadd.s32 %s250, 1
    %p254 = scmp.eq.s32.totalorder %s22, 1
    %p255 = scmp.ne.s32.totalorder %s250, %s252
    %p256 = scmp.eq.s32.totalorder %s22, 0
    %p257 = por %p255, %p256
    %p258 = scmp.ne.s32.totalorder %s250, %s252
    %p259 = scmp.eq.s32.totalorder %s27, 1
    %p260 = por %p258, %p259
    %p261 = scmp.ne.s32.totalorder %s252, %s253
    %p262 = scmp.eq.s32.totalorder %s27, 0
    %p263 = por %p261, %p262
    %p264 = scmp.ne.s32.totalorder %s252, %s253
    %p265 = scmp.eq.s32.totalorder %s28, 1
    %p266 = por %p264, %p265
    %p268 = scmp.ne.s32.totalorder %s253, %s267
    %p269 = scmp.eq.s32.totalorder %s28, 0
    %p270 = por %p268, %p269
    %s272 = sadd.s32 %s271, 1
    %p275 = scmp.eq.s32.totalorder %s22, 1
    %p276 = scmp.ne.s32.totalorder %s271, %s273
    %p277 = scmp.eq.s32.totalorder %s22, 0
    %p278 = por %p276, %p277
    %p279 = scmp.ne.s32.totalorder %s271, %s273
    %p280 = scmp.eq.s32.totalorder %s27, 1
    %p281 = por %p279, %p280
    %p282 = scmp.ne.s32.totalorder %s273, %s274
    %p283 = scmp.eq.s32.totalorder %s27, 0
    %p284 = por %p282, %p283
    %p285 = scmp.ne.s32.totalorder %s273, %s274
    %p286 = scmp.eq.s32.totalorder %s28, 1
    %p287 = por %p285, %p286
    %p289 = scmp.ne.s32.totalorder %s274, %s288
    %p290 = scmp.eq.s32.totalorder %s28, 0
    %p291 = por %p289, %p290
    %s293 = sadd.s32 %s292, 1
    %p296 = scmp.eq.s32.totalorder %s22, 1
    %p297 = scmp.ne.s32.totalorder %s292, %s294
    %p298 = scmp.eq.s32.totalorder %s22, 0
    %p299 = por %p297, %p298
    %p300 = scmp.ne.s32.totalorder %s292, %s294
    %p301 = scmp.eq.s32.totalorder %s27, 1
    %p302 = por %p300, %p301
    %p303 = scmp.ne.s32.totalorder %s294, %s295
    %p304 = scmp.eq.s32.totalorder %s27, 0
    %p305 = por %p303, %p304
    %p306 = scmp.ne.s32.totalorder %s294, %s295
    %p307 = scmp.eq.s32.totalorder %s28, 1
    %p308 = por %p306, %p307
    %p310 = scmp.ne.s32.totalorder %s295, %s309
    %p311 = scmp.eq.s32.totalorder %s28, 0
    %p312 = por %p310, %p311
    %s314 = sadd.s32 %s313, 1
    %p317 = scmp.eq.s32.totalorder %s22, 1
    %p318 = scmp.ne.s32.totalorder %s313, %s315
    %p319 = scmp.eq.s32.totalorder %s22, 0
    %p320 = por %p318, %p319
    %p321 = scmp.ne.s32.totalorder %s313, %s315
    %p322 = scmp.eq.s32.totalorder %s27, 1
    %p323 = por %p321, %p322
    %p324 = scmp.ne.s32.totalorder %s315, %s316
    %p325 = scmp.eq.s32.totalorder %s27, 0
    %p326 = por %p324, %p325
    %p327 = scmp.ne.s32.totalorder %s315, %s316
    %p328 = scmp.eq.s32.totalorder %s28, 1
    %p329 = por %p327, %p328
    %p331 = scmp.ne.s32.totalorder %s316, %s330
    %p332 = scmp.eq.s32.totalorder %s28, 0
    %p333 = por %p331, %p332
    %s334 = ssub.s32 %s22, %s29
    %p335 = scmp.eq.s32.totalorder %s334, 0
    %s337 = sadd.s32 %s336, 1
    %s338 = scalar_select %p335, %s336, %s337
    %p341 = pneg %p335
    %p342 = scmp.eq.s32.totalorder %s22, 1
    %p343 = por %p341, %p342
    %p344 = scmp.ne.s32.totalorder %s336, %s339
    %p345 = scmp.eq.s32.totalorder %s22, 0
    %p346 = por %p344, %p345
    %p347 = scmp.ne.s32.totalorder %s336, %s339
    %p348 = scmp.eq.s32.totalorder %s27, 1
    %p349 = por %p347, %p348
    %p350 = scmp.ne.s32.totalorder %s339, %s340
    %p351 = scmp.eq.s32.totalorder %s27, 0
    %p352 = por %p350, %p351
    %p353 = scmp.ne.s32.totalorder %s339, %s340
    %p354 = scmp.eq.s32.totalorder %s28, 1
    %p355 = por %p353, %p354
    %p357 = scmp.ne.s32.totalorder %s340, %s356
    %p358 = scmp.eq.s32.totalorder %s28, 0
    %p359 = por %p357, %p358
    %s360 = ssub.s32 %s22, %s29
    %p361 = scmp.eq.s32.totalorder %s360, 0
    %s363 = sadd.s32 %s362, 1
    %s364 = scalar_select %p361, %s362, %s363
    %p367 = pneg %p361
    %p368 = scmp.eq.s32.totalorder %s22, 1
    %p369 = por %p367, %p368
    %p370 = scmp.ne.s32.totalorder %s362, %s365
    %p371 = scmp.eq.s32.totalorder %s22, 0
    %p372 = por %p370, %p371
    %p373 = scmp.ne.s32.totalorder %s362, %s365
    %p374 = scmp.eq.s32.totalorder %s27, 1
    %p375 = por %p373, %p374
    %p376 = scmp.ne.s32.totalorder %s365, %s366
    %p377 = scmp.eq.s32.totalorder %s27, 0
    %p378 = por %p376, %p377
    %p379 = scmp.ne.s32.totalorder %s365, %s366
    %p380 = scmp.eq.s32.totalorder %s28, 1
    %p381 = por %p379, %p380
    %p383 = scmp.ne.s32.totalorder %s366, %s382
    %p384 = scmp.eq.s32.totalorder %s28, 0
    %p385 = por %p383, %p384
    %p386 = scmp.le.s32.totalorder 1, %s22
    %p387 = scmp.lt.s32.totalorder %s22, 3
    %p388 = pnand %p386, %p387
    %p389 = pneg %p388
    // Predicated region
    $region9: #{fuse_diff_v2.1} parent=5 // pred_check
      _
    $region10: #{fuse_diff_v2.1} parent=5 // pred_check_branch
      %391 = sbr.rel (%p388) target = $region12
    $region11: #{fuse_diff_v2.1} parent=5 // pred_region
      %s392 = ssub.s32 %s22, 1
      // Predicated region
      $region13: #{fuse_diff_v2.1} parent=11 // pred_check
        %p393 = pneg %p95
      $region14: #{fuse_diff_v2.1} parent=11 // pred_check_branch
        %395 = sbr.rel (%p393) target = $region16
      $region15: #{fuse_diff_v2.1} parent=11 // pred_region
        _
      $region16: #{fuse_diff_v2.1} parent=11 // pred_fallthru
        _
      // Predicated region
      $region17: #{fuse_diff_v2.1} parent=11 // pred_check
        %p396 = pneg %p116
      $region18: #{fuse_diff_v2.1} parent=11 // pred_check_branch
        %398 = sbr.rel (%p396) target = $region20
      $region19: #{fuse_diff_v2.1} parent=11 // pred_region
        _
      $region20: #{fuse_diff_v2.1} parent=11 // pred_fallthru
        _
      // Predicated region
      $region21: #{fuse_diff_v2.1} parent=11 // pred_check
        %p399 = pneg %p137
      $region22: #{fuse_diff_v2.1} parent=11 // pred_check_branch
        %401 = sbr.rel (%p399) target = $region24
      $region23: #{fuse_diff_v2.1} parent=11 // pred_region
        _
      $region24: #{fuse_diff_v2.1} parent=11 // pred_fallthru
        _
      // Predicated region
      $region25: #{fuse_diff_v2.1} parent=11 // pred_check
        %p402 = pneg %p158
      $region26: #{fuse_diff_v2.1} parent=11 // pred_check_branch
        %404 = sbr.rel (%p402) target = $region28
      $region27: #{fuse_diff_v2.1} parent=11 // pred_region
        _
      $region28: #{fuse_diff_v2.1} parent=11 // pred_fallthru
        _
      // Predicated region
      $region29: #{fuse_diff_v2.1} parent=11 // pred_check
        %p405 = pneg %p179
      $region30: #{fuse_diff_v2.1} parent=11 // pred_check_branch
        %407 = sbr.rel (%p405) target = $region32
      $region31: #{fuse_diff_v2.1} parent=11 // pred_region
        _
      $region32: #{fuse_diff_v2.1} parent=11 // pred_fallthru
        _
      // Predicated region
      $region33: #{fuse_diff_v2.1} parent=11 // pred_check
        %p408 = pneg %p200
      $region34: #{fuse_diff_v2.1} parent=11 // pred_check_branch
        %410 = sbr.rel (%p408) target = $region36
      $region35: #{fuse_diff_v2.1} parent=11 // pred_region
        _
      $region36: #{fuse_diff_v2.1} parent=11 // pred_fallthru
        _
      // Predicated region
      $region37: #{fuse_diff_v2.1} parent=11 // pred_check
        %p411 = pneg %p221
      $region38: #{fuse_diff_v2.1} parent=11 // pred_check_branch
        %413 = sbr.rel (%p411) target = $region40
      $region39: #{fuse_diff_v2.1} parent=11 // pred_region
        _
      $region40: #{fuse_diff_v2.1} parent=11 // pred_fallthru
        _
      // Predicated region
      $region41: #{fuse_diff_v2.1} parent=11 // pred_check
        %p414 = pneg %p242
      $region42: #{fuse_diff_v2.1} parent=11 // pred_check_branch
        %416 = sbr.rel (%p414) target = $region44
      $region43: #{fuse_diff_v2.1} parent=11 // pred_region
        _
      $region44: #{fuse_diff_v2.1} parent=11 // pred_fallthru
        _
      // Predicated region
      $region45: #{fuse_diff_v2.1} parent=11 // pred_check
        %p417 = pneg %p263
      $region46: #{fuse_diff_v2.1} parent=11 // pred_check_branch
        %419 = sbr.rel (%p417) target = $region48
      $region47: #{fuse_diff_v2.1} parent=11 // pred_region
        _
      $region48: #{fuse_diff_v2.1} parent=11 // pred_fallthru
        _
      // Predicated region
      $region49: #{fuse_diff_v2.1} parent=11 // pred_check
        %p420 = pneg %p284
      $region50: #{fuse_diff_v2.1} parent=11 // pred_check_branch
        %422 = sbr.rel (%p420) target = $region52
      $region51: #{fuse_diff_v2.1} parent=11 // pred_region
        _
      $region52: #{fuse_diff_v2.1} parent=11 // pred_fallthru
        _
      // Predicated region
      $region53: #{fuse_diff_v2.1} parent=11 // pred_check
        %p423 = pneg %p305
      $region54: #{fuse_diff_v2.1} parent=11 // pred_check_branch
        %425 = sbr.rel (%p423) target = $region56
      $region55: #{fuse_diff_v2.1} parent=11 // pred_region
        _
      $region56: #{fuse_diff_v2.1} parent=11 // pred_fallthru
        _
      // Predicated region
      $region57: #{fuse_diff_v2.1} parent=11 // pred_check
        %p426 = pneg %p326
      $region58: #{fuse_diff_v2.1} parent=11 // pred_check_branch
        %428 = sbr.rel (%p426) target = $region60
      $region59: #{fuse_diff_v2.1} parent=11 // pred_region
        _
      $region60: #{fuse_diff_v2.1} parent=11 // pred_fallthru
        _
    $region12: #{fuse_diff_v2.1} parent=5 // pred_fallthru
      _
    %p429 = scmp.lt.s32.totalorder %s22, 2
    // Predicated region
    $region61: #{fuse_diff_v2.1} parent=5 // pred_check
      %p430 = pneg %p429
    $region62: #{fuse_diff_v2.1} parent=5 // pred_check_branch
      %432 = sbr.rel (%p430) target = $region64
    $region63: #{fuse_diff_v2.1} parent=5 // pred_region
      // Predicated region
      $region65: #{fuse_diff_v2.1} parent=63 // pred_check
        %p433 = pneg %p42
      $region66: #{fuse_diff_v2.1} parent=63 // pred_check_branch
        %435 = sbr.rel (%p433) target = $region68
      $region67: #{fuse_diff_v2.1} parent=63 // pred_region
        %p436 = scmp.lt.s32.totalorder %s22, 1
        %s437 = scalar_select %p436, %s22, 1
        %s438 = smul.addr %s437, 4
        %s439 = smul.addr %s438, 8
        %s440 = scalar_lea.vmem %s0, %s439
      $region68: #{fuse_diff_v2.1} parent=63 // pred_fallthru
        _
      // Predicated region
      $region69: #{fuse_diff_v2.1} parent=63 // pred_check
        %p441 = pneg %p68
      $region70: #{fuse_diff_v2.1} parent=63 // pred_check_branch
        %443 = sbr.rel (%p441) target = $region72
      $region71: #{fuse_diff_v2.1} parent=63 // pred_region
        %p444 = scmp.lt.s32.totalorder %s22, 1
        %s445 = scalar_select %p444, %s22, 1
        %s446 = smul.addr %s445, 4
        %s447 = smul.addr %s446, 8
        %s448 = scalar_lea.vmem %s1, %s447
      $region72: #{fuse_diff_v2.1} parent=63 // pred_fallthru
        _
    $region64: #{fuse_diff_v2.1} parent=5 // pred_fallthru
      _
    %p449 = scmp.le.s32.totalorder 1, %s22
    %p450 = scmp.lt.s32.totalorder %s22, 3
    %p451 = pnand %p449, %p450
    %p452 = pneg %p451
    // Predicated region
    $region73: #{fuse_diff_v2.1} parent=5 // pred_check
      _
    $region74: #{fuse_diff_v2.1} parent=5 // pred_check_branch
      %454 = sbr.rel (%p451) target = $region76
    $region75: #{fuse_diff_v2.1} parent=5 // pred_region
      %s455 = ssub.s32 %s22, 1
      %p456 = scmp.lt.s32.totalorder %s27, 1
      %s457 = scalar_select %p456, %s27, 1
      %s458 = smul.addr %s457, 4
      %s459 = smul.addr %s458, 8
      %s460 = scalar_lea.vmem %s0, %s459
      %p461 = pneg %p48
      %p462 = pneg %p45
      %p463 = scmp.lt.s32.totalorder %s27, 1
      %s464 = scalar_select %p463, %s27, 1
      %s465 = smul.addr %s464, 4
      %s466 = smul.addr %s465, 8
      %s467 = scalar_lea.vmem %s1, %s466
      %p468 = pneg %p74
      %p469 = pneg %p71
      %p470 = pneg %p95
      %p471 = pneg %p92
      %p472 = pneg %p116
      %p473 = pneg %p113
      %p474 = pneg %p137
      %p475 = pneg %p134
      %p476 = pneg %p158
      %p477 = pneg %p155
      %p478 = pneg %p179
      %p479 = pneg %p176
      %p480 = pneg %p200
      %p481 = pneg %p197
      %p482 = pneg %p221
      %p483 = pneg %p218
      %p484 = pneg %p242
      %p485 = pneg %p239
      %p486 = pneg %p263
      %p487 = pneg %p260
      %p488 = pneg %p284
      %p489 = pneg %p281
      %p490 = pneg %p305
      %p491 = pneg %p302
      %p492 = pneg %p326
      %p493 = pneg %p323
      %p494 = pneg %p352
      %p495 = pneg %p349
      %p496 = scmp.lt.s32.totalorder %s27, 1
      %s497 = scalar_select %p496, %s27, 1
      %s498 = smul.addr %s497, 4
      %s499 = smul.addr %s498, 8
      %s500 = scalar_lea.vmem %s14, %s499
      %p501 = pneg %p378
      %p502 = pneg %p375
      %p503 = scmp.lt.s32.totalorder %s27, 1
      %s504 = scalar_select %p503, %s27, 1
      %s505 = smul.addr %s504, 2
      %s506 = smul.addr %s505, 8
      %s507 = scalar_lea.vmem %s15, %s506
      %p508 = scmp.lt.s32.totalorder %s27, 1
      %s509 = scalar_select %p508, %s27, 1
      %s510 = smul.addr %s509, 4
      %s511 = smul.addr %s510, 8
      %s512 = scalar_lea.vmem %s0, %s511
      %p513 = scmp.lt.s32.totalorder %s27, 1
      %s514 = scalar_select %p513, %s27, 1
      %s515 = smul.addr %s514, 4
      %s516 = smul.addr %s515, 8
      %s517 = scalar_lea.vmem %s1, %s516
      %p518 = scmp.lt.s32.totalorder %s27, 1
      %s519 = scalar_select %p518, %s27, 1
      %s520 = smul.addr %s519, 4
      %s521 = smul.addr %s520, 8
      %s522 = scalar_lea.vmem %s14, %s521
      %p523 = scmp.lt.s32.totalorder %s27, 1
      %s524 = scalar_select %p523, %s27, 1
      %s525 = smul.addr %s524, 2
      %s526 = smul.addr %s525, 8
      %s527 = scalar_lea.vmem %s15, %s526
      %528 = vst [vmem:[#allocation2] sm:$0xff] 0.0
      %529 = vst [vmem:[#allocation2 + $0x8] sm:$0xff] 0.0
      %530 = vst [vmem:[#allocation2 + $0x10] sm:$0xff] 0.0
      %531 = vst [vmem:[#allocation2 + $0x18] sm:$0xff] 0.0
      %vm532 = vcmask 523264
      %533 = vst.msk [vmem:[#allocation2 + $0x20] sm:$0xff] %vm532, 0.0
      %534 = vst [vmem:[#allocation2 + $0x28] sm:$0xff] 0.0
      %535 = vst [vmem:[#allocation2 + $0x30] sm:$0xff] 0.0
      %536 = vst [vmem:[#allocation2 + $0x38] sm:$0xff] 0.0
      %537 = vst [vmem:[#allocation2 + $0x40] sm:$0xff] 0.0
      %538 = vst.msk [vmem:[#allocation2 + $0x48] sm:$0xff] %vm532, 0.0
      %539 = vst [vmem:[#allocation2 + $0x50] sm:$0x3] 0.0
      %540 = vst [vmem:[#allocation2 + $0x58] sm:$0x3] 0.0
      %541 = vst [vmem:[#allocation2 + $0x60] sm:$0x3] 0.0
      %542 = vst [vmem:[#allocation2 + $0x68] sm:$0x3] 0.0
      %vm543 = vcmask 517120
      %544 = vst.msk [vmem:[#allocation2 + $0x70] sm:$0x3] %vm543, 0.0
      %v545 = vlaneseq
      %v546 = vshrl.u32 %v545, 7
      %v547 = vlaneseq
      %v548 = vand.u32 %v547, 127
      %v549 = vmul.u32 %v546, 2
      %vm550 = vcmp.eq.s32.totalorder %v548, %v549
      %v551 = vsel %vm550, 1, 0
      %v552 = vcvt.s32.f32 %v551
      %v553 = vadd.s32 %v549, 1
      %vm554 = vcmp.eq.s32.totalorder %v548, %v553
      %v555 = vsel %vm554, 1, 0
      %v556 = vcvt.s32.f32 %v555
      %v557 = vadd.s32 %v549, 2
      %vm558 = vcmp.eq.s32.totalorder %v548, %v557
      %v559 = vsel %vm558, 1, 0
      %v560 = vcvt.s32.f32 %v559
      %v561 = vld [vmem:[%s512] sm:$0xff]
      %v562 = vld [vmem:[%s512 + $0x8] sm:$0xff]
      %v563 = vld [vmem:[%s512 + $0x10] sm:$0xff]
      %v564 = vld [vmem:[%s512 + $0x18] sm:$0xff]
      %v565 = vld [vmem:[%s517] sm:$0xff]
      %v566 = vld [vmem:[%s517 + $0x8] sm:$0xff]
      %v567 = vld [vmem:[%s517 + $0x10] sm:$0xff]
      %v568 = vld [vmem:[%s517 + $0x18] sm:$0xff]
      %v569 = vld [vmem:[%s2] sm:$0xff]
      %v570 = vld [vmem:[%s2 + $0x8] sm:$0xff]
      %v571 = vld [vmem:[%s2 + $0x10] sm:$0xff]
      %v572 = vld [vmem:[%s2 + $0x18] sm:$0xff]
      %v573 = vld [vmem:[%s2 + $0x20] sm:$0xff]
      %v574 = vld [vmem:[%s2 + $0x28] sm:$0xff]
      %v575 = vld [vmem:[%s2 + $0x30] sm:$0xff]
      %v576 = vld [vmem:[%s2 + $0x38] sm:$0xff]
      %v577 = vld [vmem:[%s2 + $0x40] sm:$0xff]
      %v578 = vld [vmem:[%s2 + $0x48] sm:$0xff]
      %v579 = vld [vmem:[%s2 + $0x50] sm:$0xff]
      %v580 = vld [vmem:[%s2 + $0x58] sm:$0xff]
      %v581 = vld [vmem:[%s2 + $0x60] sm:$0xff]
      %v582 = vld [vmem:[%s2 + $0x68] sm:$0xff]
      %v583 = vld [vmem:[%s2 + $0x70] sm:$0xff]
      %v584 = vld [vmem:[%s2 + $0x78] sm:$0xff]
      %v585 = vld [vmem:[%s2 + $0x80] sm:$0xff]
      %v586 = vld [vmem:[%s2 + $0x88] sm:$0xff]
      %v587 = vld [vmem:[%s2 + $0x90] sm:$0xff]
      %v588 = vld [vmem:[%s2 + $0x98] sm:$0xff]
      %v589 = vld [vmem:[%s2 + $0xa0] sm:$0xff]
      %v590 = vld [vmem:[%s2 + $0xa8] sm:$0xff]
      %v591 = vld [vmem:[%s2 + $0xb0] sm:$0xff]
      %v592 = vld [vmem:[%s2 + $0xb8] sm:$0xff]
      %v593 = vld [vmem:[%s2 + $0xc0] sm:$0xff]
      %v594 = vld [vmem:[%s2 + $0xc8] sm:$0xff]
      %v595 = vld [vmem:[%s2 + $0xd0] sm:$0xff]
      %v596 = vld [vmem:[%s2 + $0xd8] sm:$0xff]
      %v597 = vld [vmem:[%s2 + $0xe0] sm:$0xff]
      %v598 = vld [vmem:[%s2 + $0xe8] sm:$0xff]
      %v599 = vld [vmem:[%s2 + $0xf0] sm:$0xff]
      %v600 = vld [vmem:[%s2 + $0xf8] sm:$0xff]
      %v601 = vld [vmem:[%s2 + $0x100] sm:$0xff]
      %v602 = vld [vmem:[%s2 + $0x108] sm:$0xff]
      %v603 = vld [vmem:[%s2 + $0x110] sm:$0xff]
      %v604 = vld [vmem:[%s2 + $0x118] sm:$0xff]
      %v605 = vld [vmem:[%s2 + $0x120] sm:$0xff]
      %v606 = vld [vmem:[%s2 + $0x128] sm:$0xff]
      %v607 = vld [vmem:[%s2 + $0x130] sm:$0xff]
      %v608 = vld [vmem:[%s2 + $0x138] sm:$0xff]
      %v609 = vld [vmem:[%s2 + $0x140] sm:$0xff]
      %v610 = vld [vmem:[%s2 + $0x148] sm:$0xff]
      %v611 = vld [vmem:[%s2 + $0x150] sm:$0xff]
      %v612 = vld [vmem:[%s2 + $0x158] sm:$0xff]
      %v613 = vld [vmem:[%s2 + $0x160] sm:$0xff]
      %v614 = vld [vmem:[%s2 + $0x168] sm:$0xff]
      %v615 = vld [vmem:[%s2 + $0x170] sm:$0xff]
      %v616 = vld [vmem:[%s2 + $0x178] sm:$0xff]
      %v617 = vld [vmem:[%s2 + $0x180] sm:$0xff]
      %v618 = vld [vmem:[%s2 + $0x188] sm:$0xff]
      %v619 = vld [vmem:[%s2 + $0x190] sm:$0xff]
      %v620 = vld [vmem:[%s2 + $0x198] sm:$0xff]
      %v621 = vld [vmem:[%s2 + $0x1a0] sm:$0xff]
      %v622 = vld [vmem:[%s2 + $0x1a8] sm:$0xff]
      %v623 = vld [vmem:[%s2 + $0x1b0] sm:$0xff]
      %v624 = vld [vmem:[%s2 + $0x1b8] sm:$0xff]
      %v625 = vld [vmem:[%s2 + $0x1c0] sm:$0xff]
      %v626 = vld [vmem:[%s2 + $0x1c8] sm:$0xff]
      %v627 = vld [vmem:[%s2 + $0x1d0] sm:$0xff]
      %v628 = vld [vmem:[%s2 + $0x1d8] sm:$0xff]
      %v629 = vld [vmem:[%s2 + $0x1e0] sm:$0xff]
      %v630 = vld [vmem:[%s2 + $0x1e8] sm:$0xff]
      %v631 = vld [vmem:[%s2 + $0x1f0] sm:$0xff]
      %v632 = vld [vmem:[%s2 + $0x1f8] sm:$0xff]
      %v633 = vld [vmem:[%s2 + $0x200] sm:$0xff]
      %v634 = vld [vmem:[%s2 + $0x208] sm:$0xff]
      %v635 = vld [vmem:[%s2 + $0x210] sm:$0xff]
      %v636 = vld [vmem:[%s2 + $0x218] sm:$0xff]
      %v637 = vld [vmem:[%s2 + $0x220] sm:$0xff]
      %v638 = vld [vmem:[%s2 + $0x228] sm:$0xff]
      %v639 = vld [vmem:[%s2 + $0x230] sm:$0xff]
      %v640 = vld [vmem:[%s2 + $0x238] sm:$0xff]
      %v641 = vld [vmem:[%s2 + $0x240] sm:$0xff]
      %v642 = vld [vmem:[%s2 + $0x248] sm:$0xff]
      %v643 = vld [vmem:[%s2 + $0x250] sm:$0xff]
      %v644 = vld [vmem:[%s2 + $0x258] sm:$0xff]
      %v645 = vld [vmem:[%s2 + $0x260] sm:$0xff]
      %v646 = vld [vmem:[%s2 + $0x268] sm:$0xff]
      %v647 = vld [vmem:[%s2 + $0x270] sm:$0xff]
      %v648 = vld [vmem:[%s2 + $0x278] sm:$0xff]
      %v649 = vld [vmem:[%s2 + $0x280] sm:$0xff]
      %v650 = vld [vmem:[%s2 + $0x288] sm:$0xff]
      %v651 = vld [vmem:[%s2 + $0x290] sm:$0xff]
      %v652 = vld [vmem:[%s2 + $0x298] sm:$0xff]
      %v653 = vld [vmem:[%s2 + $0x2a0] sm:$0xff]
      %v654 = vld [vmem:[%s2 + $0x2a8] sm:$0xff]
      %v655 = vld [vmem:[%s2 + $0x2b0] sm:$0xff]
      %v656 = vld [vmem:[%s2 + $0x2b8] sm:$0xff]
      %v657 = vld [vmem:[%s2 + $0x2c0] sm:$0xff]
      %v658 = vld [vmem:[%s2 + $0x2c8] sm:$0xff]
      %v659 = vld [vmem:[%s2 + $0x2d0] sm:$0xff]
      %v660 = vld [vmem:[%s2 + $0x2d8] sm:$0xff]
      %v661 = vld [vmem:[%s2 + $0x2e0] sm:$0xff]
      %v662 = vld [vmem:[%s2 + $0x2e8] sm:$0xff]
      %v663 = vld [vmem:[%s2 + $0x2f0] sm:$0xff]
      %v664 = vld [vmem:[%s2 + $0x2f8] sm:$0xff]
      %v665 = vld [vmem:[%s2 + $0x300] sm:$0xff]
      %v666 = vld [vmem:[%s2 + $0x308] sm:$0xff]
      %v667 = vld [vmem:[%s2 + $0x310] sm:$0xff]
      %v668 = vld [vmem:[%s2 + $0x318] sm:$0xff]
      %v669 = vld [vmem:[%s2 + $0x320] sm:$0xff]
      %v670 = vld [vmem:[%s2 + $0x328] sm:$0xff]
      %v671 = vld [vmem:[%s2 + $0x330] sm:$0xff]
      %v672 = vld [vmem:[%s2 + $0x338] sm:$0xff]
      %v673 = vld [vmem:[%s2 + $0x340] sm:$0xff]
      %v674 = vld [vmem:[%s2 + $0x348] sm:$0xff]
      %v675 = vld [vmem:[%s2 + $0x350] sm:$0xff]
      %v676 = vld [vmem:[%s2 + $0x358] sm:$0xff]
      %v677 = vld [vmem:[%s2 + $0x360] sm:$0xff]
      %v678 = vld [vmem:[%s2 + $0x368] sm:$0xff]
      %v679 = vld [vmem:[%s2 + $0x370] sm:$0xff]
      %v680 = vld [vmem:[%s2 + $0x378] sm:$0xff]
      %v681 = vld [vmem:[%s2 + $0x380] sm:$0xff]
      %v682 = vld [vmem:[%s2 + $0x388] sm:$0xff]
      %v683 = vld [vmem:[%s2 + $0x390] sm:$0xff]
      %v684 = vld [vmem:[%s2 + $0x398] sm:$0xff]
      %v685 = vld [vmem:[%s2 + $0x3a0] sm:$0xff]
      %v686 = vld [vmem:[%s2 + $0x3a8] sm:$0xff]
      %v687 = vld [vmem:[%s2 + $0x3b0] sm:$0xff]
      %v688 = vld [vmem:[%s2 + $0x3b8] sm:$0xff]
      %v689 = vld [vmem:[%s2 + $0x3c0] sm:$0xff]
      %v690 = vld [vmem:[%s2 + $0x3c8] sm:$0xff]
      %v691 = vld [vmem:[%s2 + $0x3d0] sm:$0xff]
      %v692 = vld [vmem:[%s2 + $0x3d8] sm:$0xff]
      %v693 = vld [vmem:[%s2 + $0x3e0] sm:$0xff]
      %v694 = vld [vmem:[%s2 + $0x3e8] sm:$0xff]
      %v695 = vld [vmem:[%s2 + $0x3f0] sm:$0xff]
      %v696 = vld [vmem:[%s2 + $0x3f8] sm:$0xff]
      %v697 = vld [vmem:[%s3] sm:$0xf]
      %v698 = vld [vmem:[%s4] sm:$0xff]
      %v699 = vld [vmem:[%s4 + $0x8] sm:$0xff]
      %v700 = vld [vmem:[%s4 + $0x10] sm:$0xff]
      %v701 = vld [vmem:[%s4 + $0x18] sm:$0xff]
      %v702 = vld [vmem:[%s4 + $0x20] sm:$0x1]
      %v703 = vld [vmem:[%s4 + $0x28] sm:$0x1]
      %v704 = vld [vmem:[%s4 + $0x30] sm:$0x1]
      %v705 = vld [vmem:[%s4 + $0x38] sm:$0x1]
      %v706 = vld [vmem:[%s5] sm:$0xf]
      %v707 = vld [vmem:[%s6] sm:$0xff]
      %v708 = vld [vmem:[%s6 + $0x8] sm:$0xff]
      %v709 = vld [vmem:[%s6 + $0x10] sm:$0xff]
      %v710 = vld [vmem:[%s6 + $0x18] sm:$0xff]
      %v711 = vld [vmem:[%s6 + $0x20] sm:$0xff]
      %v712 = vld [vmem:[%s6 + $0x28] sm:$0xff]
      %v713 = vld [vmem:[%s6 + $0x30] sm:$0xff]
      %v714 = vld [vmem:[%s6 + $0x38] sm:$0xff]
      %v715 = vld [vmem:[%s6 + $0x40] sm:$0xff]
      %v716 = vld [vmem:[%s6 + $0x48] sm:$0xff]
      %v717 = vld [vmem:[%s6 + $0x50] sm:$0xff]
      %v718 = vld [vmem:[%s6 + $0x58] sm:$0xff]
      %v719 = vld [vmem:[%s6 + $0x60] sm:$0xff]
      %v720 = vld [vmem:[%s6 + $0x68] sm:$0xff]
      %v721 = vld [vmem:[%s6 + $0x70] sm:$0xff]
      %v722 = vld [vmem:[%s6 + $0x78] sm:$0xff]
      %v723 = vld [vmem:[%s6 + $0x80] sm:$0xff]
      %v724 = vld [vmem:[%s6 + $0x88] sm:$0xff]
      %v725 = vld [vmem:[%s6 + $0x90] sm:$0xff]
      %v726 = vld [vmem:[%s6 + $0x98] sm:$0xff]
      %v727 = vld [vmem:[%s6 + $0xa0] sm:$0xff]
      %v728 = vld [vmem:[%s6 + $0xa8] sm:$0xff]
      %v729 = vld [vmem:[%s6 + $0xb0] sm:$0xff]
      %v730 = vld [vmem:[%s6 + $0xb8] sm:$0xff]
      %v731 = vld [vmem:[%s6 + $0xc0] sm:$0xff]
      %v732 = vld [vmem:[%s6 + $0xc8] sm:$0xff]
      %v733 = vld [vmem:[%s6 + $0xd0] sm:$0xff]
      %v734 = vld [vmem:[%s6 + $0xd8] sm:$0xff]
      %v735 = vld [vmem:[%s6 + $0xe0] sm:$0xff]
      %v736 = vld [vmem:[%s6 + $0xe8] sm:$0xff]
      %v737 = vld [vmem:[%s6 + $0xf0] sm:$0xff]
      %v738 = vld [vmem:[%s6 + $0xf8] sm:$0xff]
      %v739 = vld [vmem:[%s6 + $0x100] sm:$0xff]
      %v740 = vld [vmem:[%s6 + $0x108] sm:$0xff]
      %v741 = vld [vmem:[%s6 + $0x110] sm:$0xff]
      %v742 = vld [vmem:[%s6 + $0x118] sm:$0xff]
      %v743 = vld [vmem:[%s6 + $0x120] sm:$0xff]
      %v744 = vld [vmem:[%s6 + $0x128] sm:$0xff]
      %v745 = vld [vmem:[%s6 + $0x130] sm:$0xff]
      %v746 = vld [vmem:[%s6 + $0x138] sm:$0xff]
      %v747 = vld [vmem:[%s6 + $0x140] sm:$0xff]
      %v748 = vld [vmem:[%s6 + $0x148] sm:$0xff]
      %v749 = vld [vmem:[%s6 + $0x150] sm:$0xff]
      %v750 = vld [vmem:[%s6 + $0x158] sm:$0xff]
      %v751 = vld [vmem:[%s6 + $0x160] sm:$0xff]
      %v752 = vld [vmem:[%s6 + $0x168] sm:$0xff]
      %v753 = vld [vmem:[%s6 + $0x170] sm:$0xff]
      %v754 = vld [vmem:[%s6 + $0x178] sm:$0xff]
      %v755 = vld [vmem:[%s6 + $0x180] sm:$0xff]
      %v756 = vld [vmem:[%s6 + $0x188] sm:$0xff]
      %v757 = vld [vmem:[%s6 + $0x190] sm:$0xff]
      %v758 = vld [vmem:[%s6 + $0x198] sm:$0xff]
      %v759 = vld [vmem:[%s6 + $0x1a0] sm:$0xff]
      %v760 = vld [vmem:[%s6 + $0x1a8] sm:$0xff]
      %v761 = vld [vmem:[%s6 + $0x1b0] sm:$0xff]
      %v762 = vld [vmem:[%s6 + $0x1b8] sm:$0xff]
      %v763 = vld [vmem:[%s6 + $0x1c0] sm:$0xff]
      %v764 = vld [vmem:[%s6 + $0x1c8] sm:$0xff]
      %v765 = vld [vmem:[%s6 + $0x1d0] sm:$0xff]
      %v766 = vld [vmem:[%s6 + $0x1d8] sm:$0xff]
      %v767 = vld [vmem:[%s6 + $0x1e0] sm:$0xff]
      %v768 = vld [vmem:[%s6 + $0x1e8] sm:$0xff]
      %v769 = vld [vmem:[%s6 + $0x1f0] sm:$0xff]
      %v770 = vld [vmem:[%s6 + $0x1f8] sm:$0xff]
      %v771 = vld [vmem:[%s6 + $0x200] sm:$0xff]
      %v772 = vld [vmem:[%s6 + $0x208] sm:$0xff]
      %v773 = vld [vmem:[%s6 + $0x210] sm:$0xff]
      %v774 = vld [vmem:[%s6 + $0x218] sm:$0xff]
      %v775 = vld [vmem:[%s6 + $0x220] sm:$0xff]
      %v776 = vld [vmem:[%s6 + $0x228] sm:$0xff]
      %v777 = vld [vmem:[%s6 + $0x230] sm:$0xff]
      %v778 = vld [vmem:[%s6 + $0x238] sm:$0xff]
      %v779 = vld [vmem:[%s6 + $0x240] sm:$0xff]
      %v780 = vld [vmem:[%s6 + $0x248] sm:$0xff]
      %v781 = vld [vmem:[%s6 + $0x250] sm:$0xff]
      %v782 = vld [vmem:[%s6 + $0x258] sm:$0xff]
      %v783 = vld [vmem:[%s6 + $0x260] sm:$0xff]
      %v784 = vld [vmem:[%s6 + $0x268] sm:$0xff]
      %v785 = vld [vmem:[%s6 + $0x270] sm:$0xff]
      %v786 = vld [vmem:[%s6 + $0x278] sm:$0xff]
      %v787 = vld [vmem:[%s6 + $0x280] sm:$0xff]
      %v788 = vld [vmem:[%s6 + $0x288] sm:$0xff]
      %v789 = vld [vmem:[%s6 + $0x290] sm:$0xff]
      %v790 = vld [vmem:[%s6 + $0x298] sm:$0xff]
      %v791 = vld [vmem:[%s6 + $0x2a0] sm:$0xff]
      %v792 = vld [vmem:[%s6 + $0x2a8] sm:$0xff]
      %v793 = vld [vmem:[%s6 + $0x2b0] sm:$0xff]
      %v794 = vld [vmem:[%s6 + $0x2b8] sm:$0xff]
      %v795 = vld [vmem:[%s6 + $0x2c0] sm:$0xff]
      %v796 = vld [vmem:[%s6 + $0x2c8] sm:$0xff]
      %v797 = vld [vmem:[%s6 + $0x2d0] sm:$0xff]
      %v798 = vld [vmem:[%s6 + $0x2d8] sm:$0xff]
      %v799 = vld [vmem:[%s6 + $0x2e0] sm:$0xff]
      %v800 = vld [vmem:[%s6 + $0x2e8] sm:$0xff]
      %v801 = vld [vmem:[%s6 + $0x2f0] sm:$0xff]
      %v802 = vld [vmem:[%s6 + $0x2f8] sm:$0xff]
      %v803 = vld [vmem:[%s6 + $0x300] sm:$0xff]
      %v804 = vld [vmem:[%s6 + $0x308] sm:$0xff]
      %v805 = vld [vmem:[%s6 + $0x310] sm:$0xff]
      %v806 = vld [vmem:[%s6 + $0x318] sm:$0xff]
      %v807 = vld [vmem:[%s6 + $0x320] sm:$0xff]
      %v808 = vld [vmem:[%s6 + $0x328] sm:$0xff]
      %v809 = vld [vmem:[%s6 + $0x330] sm:$0xff]
      %v810 = vld [vmem:[%s6 + $0x338] sm:$0xff]
      %v811 = vld [vmem:[%s6 + $0x340] sm:$0xff]
      %v812 = vld [vmem:[%s6 + $0x348] sm:$0xff]
      %v813 = vld [vmem:[%s6 + $0x350] sm:$0xff]
      %v814 = vld [vmem:[%s6 + $0x358] sm:$0xff]
      %v815 = vld [vmem:[%s6 + $0x360] sm:$0xff]
      %v816 = vld [vmem:[%s6 + $0x368] sm:$0xff]
      %v817 = vld [vmem:[%s6 + $0x370] sm:$0xff]
      %v818 = vld [vmem:[%s6 + $0x378] sm:$0xff]
      %v819 = vld [vmem:[%s6 + $0x380] sm:$0xff]
      %v820 = vld [vmem:[%s6 + $0x388] sm:$0xff]
      %v821 = vld [vmem:[%s6 + $0x390] sm:$0xff]
      %v822 = vld [vmem:[%s6 + $0x398] sm:$0xff]
      %v823 = vld [vmem:[%s6 + $0x3a0] sm:$0xff]
      %v824 = vld [vmem:[%s6 + $0x3a8] sm:$0xff]
      %v825 = vld [vmem:[%s6 + $0x3b0] sm:$0xff]
      %v826 = vld [vmem:[%s6 + $0x3b8] sm:$0xff]
      %v827 = vld [vmem:[%s6 + $0x3c0] sm:$0xff]
      %v828 = vld [vmem:[%s6 + $0x3c8] sm:$0xff]
      %v829 = vld [vmem:[%s6 + $0x3d0] sm:$0xff]
      %v830 = vld [vmem:[%s6 + $0x3d8] sm:$0xff]
      %v831 = vld [vmem:[%s6 + $0x3e0] sm:$0xff]
      %v832 = vld [vmem:[%s6 + $0x3e8] sm:$0xff]
      %v833 = vld [vmem:[%s6 + $0x3f0] sm:$0xff]
      %v834 = vld [vmem:[%s6 + $0x3f8] sm:$0xff]
      %v835 = vld [vmem:[%s7] sm:$0x3]
      %v837 = vlaneseq
      %v838 = vshrl.u32 %v837, 7
      %v839 = vsub.s32 0, %v838
      %v840 = vrot.slane %v697, %v839
      %v841 = vlaneseq
      %v842 = vshrl.u32 %v841, 7
      %v843 = vsub.s32 1, %v842
      %v844 = vrot.slane %v697, %v843
      %v845 = vlaneseq
      %v846 = vshrl.u32 %v845, 7
      %v847 = vsub.s32 2, %v846
      %v848 = vrot.slane %v697, %v847
      %v849 = vlaneseq
      %v850 = vshrl.u32 %v849, 7
      %v851 = vsub.s32 3, %v850
      %v852 = vrot.slane %v697, %v851
      %857 = vmatprep.subr.mxu0 %v630
      %858 = vmatpush1.msra.mxu0 %v629
      %859 = vmatprep.subr.mxu0 %v626
      %860 = vmatpush1.msra.mxu0 %v625
      %861 = vmatprep.subr.mxu0 %v622
      %862 = vmatpush1.msra.mxu0 %v621
      %863 = vmatprep.subr.mxu0 %v618
      %864 = vmatpush1.msra.mxu0 %v617
      %865 = vmatprep.subr.mxu0 %v614
      %866 = vmatpush1.msra.mxu0 %v613
      %867 = vmatprep.subr.mxu0 %v610
      %868 = vmatpush1.msra.mxu0 %v609
      %869 = vmatprep.subr.mxu0 %v606
      %870 = vmatpush1.msra.mxu0 %v605
      %871 = vmatprep.subr.mxu0 %v602
      %872 = vmatpush1.msra.mxu0 %v601
      %873 = vmatprep.subr.mxu0 %v598
      %874 = vmatpush1.msra.mxu0 %v597
      %875 = vmatprep.subr.mxu0 %v594
      %876 = vmatpush1.msra.mxu0 %v593
      %877 = vmatprep.subr.mxu0 %v590
      %878 = vmatpush1.msra.mxu0 %v589
      %879 = vmatprep.subr.mxu0 %v586
      %880 = vmatpush1.msra.mxu0 %v585
      %881 = vmatprep.subr.mxu0 %v582
      %882 = vmatpush1.msra.mxu0 %v581
      %883 = vmatprep.subr.mxu0 %v578
      %884 = vmatpush1.msra.mxu0 %v577
      %885 = vmatprep.subr.mxu0 %v574
      %886 = vmatpush1.msra.mxu0 %v573
      %887 = vmatprep.subr.mxu0 %v570
      %888 = vmatpush1.msra.mxu0 %v569
      %889 = vmatprep.subr.mxu0 %v694
      %890 = vmatpush2.msra.mxu0 %v693
      %891 = vmatprep.subr.mxu0 %v690
      %892 = vmatpush2.msra.mxu0 %v689
      %893 = vmatprep.subr.mxu0 %v686
      %894 = vmatpush2.msra.mxu0 %v685
      %895 = vmatprep.subr.mxu0 %v682
      %896 = vmatpush2.msra.mxu0 %v681
      %897 = vmatprep.subr.mxu0 %v678
      %898 = vmatpush2.msra.mxu0 %v677
      %899 = vmatprep.subr.mxu0 %v674
      %900 = vmatpush2.msra.mxu0 %v673
      %901 = vmatprep.subr.mxu0 %v670
      %902 = vmatpush2.msra.mxu0 %v669
      %903 = vmatprep.subr.mxu0 %v666
      %904 = vmatpush2.msra.mxu0 %v665
      %905 = vmatprep.subr.mxu0 %v662
      %906 = vmatpush2.msra.mxu0 %v661
      %907 = vmatprep.subr.mxu0 %v658
      %908 = vmatpush2.msra.mxu0 %v657
      %909 = vmatprep.subr.mxu0 %v654
      %910 = vmatpush2.msra.mxu0 %v653
      %911 = vmatprep.subr.mxu0 %v650
      %912 = vmatpush2.msra.mxu0 %v649
      %913 = vmatprep.subr.mxu0 %v646
      %914 = vmatpush2.msra.mxu0 %v645
      %915 = vmatprep.subr.mxu0 %v642
      %916 = vmatpush2.msra.mxu0 %v641
      %917 = vmatprep.subr.mxu0 %v638
      %918 = vmatpush2.msra.mxu0 %v637
      %919 = vmatprep.subr.mxu0 %v634
      %920 = vmatpush2.msra.mxu0 %v633
      %921 = vmatprep.mubr.f32.mxu0 %v562
      %922 = vmatmul.mubr.f32.gmra.mxu0 %v561
      %v923 = vpop.f32.mrf.mxu0
      %v924 = vadd.f32 %v840, %v923
      %v925 = vpop.f32.mrf.mxu0
      %v926 = vadd.f32 %v844, %v925
      %927 = vmatprep.mubr.f32.mxu0 %v564
      %928 = vmatmul.mubr.f32.gmra.mxu0 %v563
      %v929 = vpop.f32.mrf.mxu0
      %v930 = vadd.f32 %v840, %v929
      %v931 = vpop.f32.mrf.mxu0
      %v932 = vadd.f32 %v844, %v931
      %933 = vdwg.mxu0
      %934 = vmatprep.subr.mxu0 %v632
      %935 = vmatpush1.msra.mxu0 %v631
      %936 = vmatprep.subr.mxu0 %v628
      %937 = vmatpush1.msra.mxu0 %v627
      %938 = vmatprep.subr.mxu0 %v624
      %939 = vmatpush1.msra.mxu0 %v623
      %940 = vmatprep.subr.mxu0 %v620
      %941 = vmatpush1.msra.mxu0 %v619
      %942 = vmatprep.subr.mxu0 %v616
      %943 = vmatpush1.msra.mxu0 %v615
      %944 = vmatprep.subr.mxu0 %v612
      %945 = vmatpush1.msra.mxu0 %v611
      %946 = vmatprep.subr.mxu0 %v608
      %947 = vmatpush1.msra.mxu0 %v607
      %948 = vmatprep.subr.mxu0 %v604
      %949 = vmatpush1.msra.mxu0 %v603
      %950 = vmatprep.subr.mxu0 %v600
      %951 = vmatpush1.msra.mxu0 %v599
      %952 = vmatprep.subr.mxu0 %v596
      %953 = vmatpush1.msra.mxu0 %v595
      %954 = vmatprep.subr.mxu0 %v592
      %955 = vmatpush1.msra.mxu0 %v591
      %956 = vmatprep.subr.mxu0 %v588
      %957 = vmatpush1.msra.mxu0 %v587
      %958 = vmatprep.subr.mxu0 %v584
      %959 = vmatpush1.msra.mxu0 %v583
      %960 = vmatprep.subr.mxu0 %v580
      %961 = vmatpush1.msra.mxu0 %v579
      %962 = vmatprep.subr.mxu0 %v576
      %963 = vmatpush1.msra.mxu0 %v575
      %964 = vmatprep.subr.mxu0 %v572
      %965 = vmatpush1.msra.mxu0 %v571
      %966 = vmatprep.subr.mxu0 %v696
      %967 = vmatpush2.msra.mxu0 %v695
      %968 = vmatprep.subr.mxu0 %v692
      %969 = vmatpush2.msra.mxu0 %v691
      %970 = vmatprep.subr.mxu0 %v688
      %971 = vmatpush2.msra.mxu0 %v687
      %972 = vmatprep.subr.mxu0 %v684
      %973 = vmatpush2.msra.mxu0 %v683
      %974 = vmatprep.subr.mxu0 %v680
      %975 = vmatpush2.msra.mxu0 %v679
      %976 = vmatprep.subr.mxu0 %v676
      %977 = vmatpush2.msra.mxu0 %v675
      %978 = vmatprep.subr.mxu0 %v672
      %979 = vmatpush2.msra.mxu0 %v671
      %980 = vmatprep.subr.mxu0 %v668
      %981 = vmatpush2.msra.mxu0 %v667
      %982 = vmatprep.subr.mxu0 %v664
      %983 = vmatpush2.msra.mxu0 %v663
      %984 = vmatprep.subr.mxu0 %v660
      %985 = vmatpush2.msra.mxu0 %v659
      %986 = vmatprep.subr.mxu0 %v656
      %987 = vmatpush2.msra.mxu0 %v655
      %988 = vmatprep.subr.mxu0 %v652
      %989 = vmatpush2.msra.mxu0 %v651
      %990 = vmatprep.subr.mxu0 %v648
      %991 = vmatpush2.msra.mxu0 %v647
      %992 = vmatprep.subr.mxu0 %v644
      %993 = vmatpush2.msra.mxu0 %v643
      %994 = vmatprep.subr.mxu0 %v640
      %995 = vmatpush2.msra.mxu0 %v639
      %996 = vmatprep.subr.mxu0 %v636
      %997 = vmatpush2.msra.mxu0 %v635
      %998 = vmatprep.mubr.f32.mxu0 %v562
      %999 = vmatmul.mubr.f32.gmra.mxu0 %v561
      %v1000 = vpop.f32.mrf.mxu0
      %v1001 = vadd.f32 %v848, %v1000
      %v1002 = vpop.f32.mrf.mxu0
      %v1003 = vadd.f32 %v852, %v1002
      %1004 = vmatprep.mubr.f32.mxu0 %v564
      %1005 = vmatmul.mubr.f32.gmra.mxu0 %v563
      %v1006 = vpop.f32.mrf.mxu0
      %v1007 = vadd.f32 %v848, %v1006
      %v1008 = vpop.f32.mrf.mxu0
      %v1009 = vadd.f32 %v852, %v1008
      %1010 = vdwg.mxu0
      %v1011 = vmax.f32 %v924, 0.0
      %v1012 = vmax.f32 %v926, 0.0
      %v1013 = vmax.f32 %v1001, 0.0
      %v1014 = vmax.f32 %v1003, 0.0
      %v1015 = vmax.f32 %v930, 0.0
      %v1016 = vmax.f32 %v932, 0.0
      %v1017 = vmax.f32 %v1007, 0.0
      %v1018 = vmax.f32 %v1009, 0.0
      %vm1027 = vcmask 1040384
      %v1028 = vrot.slane %v1011, 7
      %v1029 = vrot.slane %v1012, 7
      %v1030 = vrot.slane %v1013, 7
      %v1031 = vrot.slane %v1014, 7
      %v1032 = vrot.slane %v1015, 7
      %v1033 = vsel %vm1027, %v1028, %v1032
      %v1034 = vrot.slane %v1016, 7
      %v1035 = vsel %vm1027, %v1029, %v1034
      %v1036 = vrot.slane %v1017, 7
      %v1037 = vsel %vm1027, %v1030, %v1036
      %v1038 = vrot.slane %v1018, 7
      %v1039 = vsel %vm1027, %v1031, %v1038
      %1040 = vrot.lane.b32.xlu0 %v1028, 32
      %v1041 = vpop.permute.xlu0 %1040
      %1042 = vrot.lane.b32.xlu0 %v1029, 32
      %v1043 = vpop.permute.xlu0 %1042
      %1044 = vrot.lane.b32.xlu0 %v1030, 32
      %v1045 = vpop.permute.xlu0 %1044
      %1046 = vrot.lane.b32.xlu0 %v1031, 32
      %v1047 = vpop.permute.xlu0 %1046
      %1048 = vrot.lane.b32.xlu0 %v1033, 32
      %v1049 = vpop.permute.xlu0 %1048
      %1050 = vrot.lane.b32.xlu0 %v1035, 32
      %v1051 = vpop.permute.xlu0 %1050
      %1052 = vrot.lane.b32.xlu0 %v1037, 32
      %v1053 = vpop.permute.xlu0 %1052
      %1054 = vrot.lane.b32.xlu0 %v1039, 32
      %v1055 = vpop.permute.xlu0 %1054
      %1056 = vrot.lane.b32.xlu0 %v1032, 32
      %v1057 = vpop.permute.xlu0 %1056
      %1058 = vrot.lane.b32.xlu0 %v1034, 32
      %v1059 = vpop.permute.xlu0 %1058
      %1060 = vrot.lane.b32.xlu0 %v1036, 32
      %v1061 = vpop.permute.xlu0 %1060
      %1062 = vrot.lane.b32.xlu0 %v1038, 32
      %v1063 = vpop.permute.xlu0 %1062
      %vm1064 = vcmask 261120
      %v1065 = vsel %vm1064, %v1041, %v1043
      %v1066 = vsel %vm1064, %v1043, %v1045
      %v1067 = vsel %vm1064, %v1045, %v1047
      %v1068 = vsel %vm1064, %v1049, %v1051
      %v1069 = vsel %vm1064, %v1051, %v1053
      %v1070 = vsel %vm1064, %v1053, %v1055
      %v1071 = vsel %vm1064, %v1057, %v1059
      %v1072 = vsel %vm1064, %v1059, %v1061
      %v1073 = vsel %vm1064, %v1061, %v1063
      %vm1089 = vcmask 1047809
      %1090 = vst.msk [vmem:[#allocation2] sm:$0xfe] %vm1089, %v1041
      %1091 = vst [vmem:[#allocation2 + $0x8] sm:$0xfe] %v1065
      %1092 = vst [vmem:[#allocation2 + $0x10] sm:$0xfe] %v1066
      %1093 = vst [vmem:[#allocation2 + $0x18] sm:$0xfe] %v1067
      %vm1094 = vcmask 261121
      %1095 = vst.msk [vmem:[#allocation2 + $0x20] sm:$0xfe] %vm1094, %v1047
      %vm1096 = vcmask 1047808
      %1097 = vst.msk [vmem:[#allocation2 + $0x28] sm:$0xff] %vm1096, %v1049
      %1098 = vst [vmem:[#allocation2 + $0x30] sm:$0xff] %v1068
      %1099 = vst [vmem:[#allocation2 + $0x38] sm:$0xff] %v1069
      %1100 = vst [vmem:[#allocation2 + $0x40] sm:$0xff] %v1070
      %1101 = vst.msk [vmem:[#allocation2 + $0x48] sm:$0xff] %vm1064, %v1055
      %vm1102 = vcmask 1040640
      %1103 = vst.msk [vmem:[#allocation2 + $0x50] sm:$0x1] %vm1102, %v1057
      %1104 = vst [vmem:[#allocation2 + $0x58] sm:$0x1] %v1071
      %1105 = vst [vmem:[#allocation2 + $0x60] sm:$0x1] %v1072
      %1106 = vst [vmem:[#allocation2 + $0x68] sm:$0x1] %v1073
      %vm1107 = vcmask 253952
      %1108 = vst.msk [vmem:[#allocation2 + $0x70] sm:$0x1] %vm1107, %v1063
      %v1109 = vld [vmem:[#allocation2] sm:$0xff]
      %v1110 = vld [vmem:[#allocation2 + $0x8] sm:$0xff]
      %v1111 = vld [vmem:[#allocation2 + $0x10] sm:$0xff]
      %v1112 = vld [vmem:[#allocation2 + $0x18] sm:$0xff]
      %v1113 = vld [vmem:[#allocation2 + $0x20] sm:$0xff]
      %v1114 = vld [vmem:[#allocation2 + $0x28] sm:$0xff]
      %v1115 = vld [vmem:[#allocation2 + $0x30] sm:$0xff]
      %v1116 = vld [vmem:[#allocation2 + $0x38] sm:$0xff]
      %v1117 = vld [vmem:[#allocation2 + $0x40] sm:$0xff]
      %v1118 = vld [vmem:[#allocation2 + $0x48] sm:$0xff]
      %v1119 = vld [vmem:[#allocation2 + $0x50] sm:$0x3]
      %v1120 = vld [vmem:[#allocation2 + $0x58] sm:$0x3]
      %v1121 = vld [vmem:[#allocation2 + $0x60] sm:$0x3]
      %v1122 = vld [vmem:[#allocation2 + $0x68] sm:$0x3]
      %v1123 = vld [vmem:[#allocation2 + $0x70] sm:$0x3]
      %v1124 = vlaneseq
      %v1125 = vshrl.u32 %v1124, 7
      %v1126 = vsub.s32 0, %v1125
      %v1127 = vrot.slane %v698, %v1126
      %v1128 = vlaneseq
      %v1129 = vshrl.u32 %v1128, 7
      %v1130 = vsub.s32 0, %v1129
      %v1131 = vrot.slane %v699, %v1130
      %v1132 = vlaneseq
      %v1133 = vshrl.u32 %v1132, 7
      %v1134 = vsub.s32 0, %v1133
      %v1135 = vrot.slane %v700, %v1134
      %v1136 = vlaneseq
      %v1137 = vshrl.u32 %v1136, 7
      %v1138 = vsub.s32 0, %v1137
      %v1139 = vrot.slane %v701, %v1138
      %v1140 = vmul.f32 %v1109, %v1127
      %v1141 = vmul.f32 %v1110, %v1131
      %v1142 = vmul.f32 %v1111, %v1135
      %v1143 = vmul.f32 %v1112, %v1139
      %v1144 = vmul.f32 %v1114, %v1127
      %v1145 = vmul.f32 %v1115, %v1131
      %v1146 = vmul.f32 %v1116, %v1135
      %v1147 = vmul.f32 %v1117, %v1139
      %v1148 = vadd.f32 %v1140, 0.0
      %v1149 = vadd.f32 %v1141, 0.0
      %v1150 = vadd.f32 %v1142, 0.0
      %v1151 = vadd.f32 %v1143, 0.0
      %v1152 = vadd.f32 %v1144, 0.0
      %v1153 = vadd.f32 %v1145, 0.0
      %v1154 = vadd.f32 %v1146, 0.0
      %v1155 = vadd.f32 %v1147, 0.0
      %v1156 = vlaneseq
      %v1157 = vshrl.u32 %v1156, 7
      %v1158 = vsub.s32 1, %v1157
      %v1159 = vrot.slane %v698, %v1158
      %v1160 = vlaneseq
      %v1161 = vshrl.u32 %v1160, 7
      %v1162 = vsub.s32 1, %v1161
      %v1163 = vrot.slane %v699, %v1162
      %v1164 = vlaneseq
      %v1165 = vshrl.u32 %v1164, 7
      %v1166 = vsub.s32 1, %v1165
      %v1167 = vrot.slane %v700, %v1166
      %v1168 = vlaneseq
      %v1169 = vshrl.u32 %v1168, 7
      %v1170 = vsub.s32 1, %v1169
      %v1171 = vrot.slane %v701, %v1170
      %1176 = vrot.lane.b32.xlu0 %v1159, 32
      %v1177 = vpop.permute.xlu0 %1176
      %1178 = vrot.lane.b32.xlu0 %v1163, 32
      %v1179 = vpop.permute.xlu0 %1178
      %1180 = vrot.lane.b32.xlu0 %v1167, 32
      %v1181 = vpop.permute.xlu0 %1180
      %1182 = vrot.lane.b32.xlu0 %v1171, 32
      %v1183 = vpop.permute.xlu0 %1182
      %v1184 = vsel %vm1064, %v1177, %v1179
      %v1185 = vsel %vm1064, %v1179, %v1181
      %v1186 = vsel %vm1064, %v1181, %v1183
      %v1192 = vmul.f32 %v1109, %v1177
      %v1193 = vmul.f32 %v1110, %v1184
      %v1194 = vmul.f32 %v1111, %v1185
      %v1195 = vmul.f32 %v1112, %v1186
      %v1196 = vmul.f32 %v1113, %v1183
      %v1197 = vmul.f32 %v1114, %v1177
      %v1198 = vmul.f32 %v1115, %v1184
      %v1199 = vmul.f32 %v1116, %v1185
      %v1200 = vmul.f32 %v1117, %v1186
      %v1201 = vmul.f32 %v1118, %v1183
      %1212 = vrot.lane.b32.xlu0 %v1192, 96
      %v1213 = vpop.permute.xlu0 %1212
      %1214 = vrot.lane.b32.xlu0 %v1193, 96
      %v1215 = vpop.permute.xlu0 %1214
      %1216 = vrot.lane.b32.xlu0 %v1194, 96
      %v1217 = vpop.permute.xlu0 %1216
      %1218 = vrot.lane.b32.xlu0 %v1195, 96
      %v1219 = vpop.permute.xlu0 %1218
      %1220 = vrot.lane.b32.xlu0 %v1196, 96
      %v1221 = vpop.permute.xlu0 %1220
      %1222 = vrot.lane.b32.xlu0 %v1197, 96
      %v1223 = vpop.permute.xlu0 %1222
      %1224 = vrot.lane.b32.xlu0 %v1198, 96
      %v1225 = vpop.permute.xlu0 %1224
      %1226 = vrot.lane.b32.xlu0 %v1199, 96
      %v1227 = vpop.permute.xlu0 %1226
      %1228 = vrot.lane.b32.xlu0 %v1200, 96
      %v1229 = vpop.permute.xlu0 %1228
      %1230 = vrot.lane.b32.xlu0 %v1201, 96
      %v1231 = vpop.permute.xlu0 %1230
      %vm1232 = vcmask 785408
      %v1233 = vsel %vm1232, %v1213, %v1215
      %v1234 = vsel %vm1232, %v1215, %v1217
      %v1235 = vsel %vm1232, %v1217, %v1219
      %v1236 = vsel %vm1232, %v1219, %v1221
      %v1237 = vsel %vm1232, %v1223, %v1225
      %v1238 = vsel %vm1232, %v1225, %v1227
      %v1239 = vsel %vm1232, %v1227, %v1229
      %v1240 = vsel %vm1232, %v1229, %v1231
      %v1249 = vadd.f32 %v1148, %v1233
      %v1250 = vadd.f32 %v1149, %v1234
      %v1251 = vadd.f32 %v1150, %v1235
      %v1252 = vadd.f32 %v1151, %v1236
      %v1253 = vadd.f32 %v1152, %v1237
      %v1254 = vadd.f32 %v1153, %v1238
      %v1255 = vadd.f32 %v1154, %v1239
      %v1256 = vadd.f32 %v1155, %v1240
      %v1257 = vlaneseq
      %v1258 = vshrl.u32 %v1257, 7
      %v1259 = vsub.s32 2, %v1258
      %v1260 = vrot.slane %v698, %v1259
      %v1261 = vlaneseq
      %v1262 = vshrl.u32 %v1261, 7
      %v1263 = vsub.s32 2, %v1262
      %v1264 = vrot.slane %v699, %v1263
      %v1265 = vlaneseq
      %v1266 = vshrl.u32 %v1265, 7
      %v1267 = vsub.s32 2, %v1266
      %v1268 = vrot.slane %v700, %v1267
      %v1269 = vlaneseq
      %v1270 = vshrl.u32 %v1269, 7
      %v1271 = vsub.s32 2, %v1270
      %v1272 = vrot.slane %v701, %v1271
      %1277 = vrot.lane.b32.xlu0 %v1260, 64
      %v1278 = vpop.permute.xlu0 %1277
      %1279 = vrot.lane.b32.xlu0 %v1264, 64
      %v1280 = vpop.permute.xlu0 %1279
      %1281 = vrot.lane.b32.xlu0 %v1268, 64
      %v1282 = vpop.permute.xlu0 %1281
      %1283 = vrot.lane.b32.xlu0 %v1272, 64
      %v1284 = vpop.permute.xlu0 %1283
      %v1285 = vsel %vm532, %v1278, %v1280
      %v1286 = vsel %vm532, %v1280, %v1282
      %v1287 = vsel %vm532, %v1282, %v1284
      %v1293 = vmul.f32 %v1109, %v1278
      %v1294 = vmul.f32 %v1110, %v1285
      %v1295 = vmul.f32 %v1111, %v1286
      %v1296 = vmul.f32 %v1112, %v1287
      %v1297 = vmul.f32 %v1113, %v1284
      %v1298 = vmul.f32 %v1114, %v1278
      %v1299 = vmul.f32 %v1115, %v1285
      %v1300 = vmul.f32 %v1116, %v1286
      %v1301 = vmul.f32 %v1117, %v1287
      %v1302 = vmul.f32 %v1118, %v1284
      %1313 = vrot.lane.b32.xlu0 %v1293, 64
      %v1314 = vpop.permute.xlu0 %1313
      %1315 = vrot.lane.b32.xlu0 %v1294, 64
      %v1316 = vpop.permute.xlu0 %1315
      %1317 = vrot.lane.b32.xlu0 %v1295, 64
      %v1318 = vpop.permute.xlu0 %1317
      %1319 = vrot.lane.b32.xlu0 %v1296, 64
      %v1320 = vpop.permute.xlu0 %1319
      %1321 = vrot.lane.b32.xlu0 %v1297, 64
      %v1322 = vpop.permute.xlu0 %1321
      %1323 = vrot.lane.b32.xlu0 %v1298, 64
      %v1324 = vpop.permute.xlu0 %1323
      %1325 = vrot.lane.b32.xlu0 %v1299, 64
      %v1326 = vpop.permute.xlu0 %1325
      %1327 = vrot.lane.b32.xlu0 %v1300, 64
      %v1328 = vpop.permute.xlu0 %1327
      %1329 = vrot.lane.b32.xlu0 %v1301, 64
      %v1330 = vpop.permute.xlu0 %1329
      %1331 = vrot.lane.b32.xlu0 %v1302, 64
      %v1332 = vpop.permute.xlu0 %1331
      %v1333 = vsel %vm532, %v1314, %v1316
      %v1334 = vsel %vm532, %v1316, %v1318
      %v1335 = vsel %vm532, %v1318, %v1320
      %v1336 = vsel %vm532, %v1320, %v1322
      %v1337 = vsel %vm532, %v1324, %v1326
      %v1338 = vsel %vm532, %v1326, %v1328
      %v1339 = vsel %vm532, %v1328, %v1330
      %v1340 = vsel %vm532, %v1330, %v1332
      %v1349 = vadd.f32 %v1249, %v1333
      %v1350 = vadd.f32 %v1250, %v1334
      %v1351 = vadd.f32 %v1251, %v1335
      %v1352 = vadd.f32 %v1252, %v1336
      %v1353 = vadd.f32 %v1253, %v1337
      %v1354 = vadd.f32 %v1254, %v1338
      %v1355 = vadd.f32 %v1255, %v1339
      %v1356 = vadd.f32 %v1256, %v1340
      %v1357 = vlaneseq
      %v1358 = vshrl.u32 %v1357, 7
      %v1359 = vsub.s32 3, %v1358
      %v1360 = vrot.slane %v698, %v1359
      %v1361 = vlaneseq
      %v1362 = vshrl.u32 %v1361, 7
      %v1363 = vsub.s32 3, %v1362
      %v1364 = vrot.slane %v699, %v1363
      %v1365 = vlaneseq
      %v1366 = vshrl.u32 %v1365, 7
      %v1367 = vsub.s32 3, %v1366
      %v1368 = vrot.slane %v700, %v1367
      %v1369 = vlaneseq
      %v1370 = vshrl.u32 %v1369, 7
      %v1371 = vsub.s32 3, %v1370
      %v1372 = vrot.slane %v701, %v1371
      %v1373 = vmul.f32 %v1109, %v1360
      %v1374 = vmul.f32 %v1110, %v1364
      %v1375 = vmul.f32 %v1111, %v1368
      %v1376 = vmul.f32 %v1112, %v1372
      %v1377 = vmul.f32 %v1114, %v1360
      %v1378 = vmul.f32 %v1115, %v1364
      %v1379 = vmul.f32 %v1116, %v1368
      %v1380 = vmul.f32 %v1117, %v1372
      %v1381 = vmul.f32 %v1119, %v1360
      %v1382 = vmul.f32 %v1120, %v1364
      %v1383 = vmul.f32 %v1121, %v1368
      %v1384 = vmul.f32 %v1122, %v1372
      %vm1397 = vcmask 1046528
      %v1398 = vrot.slane %v1373, 1
      %v1399 = vrot.slane %v1377, 1
      %v1400 = vsel %vm1397, %v1398, %v1399
      %v1401 = vrot.slane %v1374, 1
      %v1402 = vrot.slane %v1378, 1
      %v1403 = vsel %vm1397, %v1401, %v1402
      %v1404 = vrot.slane %v1375, 1
      %v1405 = vrot.slane %v1379, 1
      %v1406 = vsel %vm1397, %v1404, %v1405
      %v1407 = vrot.slane %v1376, 1
      %v1408 = vrot.slane %v1380, 1
      %v1409 = vsel %vm1397, %v1407, %v1408
      %v1410 = vrot.slane %v1381, 1
      %v1411 = vsel %vm1397, %v1399, %v1410
      %v1412 = vrot.slane %v1382, 1
      %v1413 = vsel %vm1397, %v1402, %v1412
      %v1414 = vrot.slane %v1383, 1
      %v1415 = vsel %vm1397, %v1405, %v1414
      %v1416 = vrot.slane %v1384, 1
      %v1417 = vsel %vm1397, %v1408, %v1416
      %v1426 = vadd.f32 %v1349, %v1400
      %v1427 = vadd.f32 %v1350, %v1403
      %v1428 = vadd.f32 %v1351, %v1406
      %v1429 = vadd.f32 %v1352, %v1409
      %v1430 = vadd.f32 %v1353, %v1411
      %v1431 = vadd.f32 %v1354, %v1413
      %v1432 = vadd.f32 %v1355, %v1415
      %v1433 = vadd.f32 %v1356, %v1417
      %v1434 = vlaneseq
      %v1435 = vshrl.u32 %v1434, 7
      %v1436 = vsub.s32 4, %v1435
      %v1437 = vrot.slane %v698, %v1436
      %v1438 = vlaneseq
      %v1439 = vshrl.u32 %v1438, 7
      %v1440 = vsub.s32 4, %v1439
      %v1441 = vrot.slane %v699, %v1440
      %v1442 = vlaneseq
      %v1443 = vshrl.u32 %v1442, 7
      %v1444 = vsub.s32 4, %v1443
      %v1445 = vrot.slane %v700, %v1444
      %v1446 = vlaneseq
      %v1447 = vshrl.u32 %v1446, 7
      %v1448 = vsub.s32 4, %v1447
      %v1449 = vrot.slane %v701, %v1448
      %1454 = vrot.lane.b32.xlu0 %v1437, 32
      %v1455 = vpop.permute.xlu0 %1454
      %1456 = vrot.lane.b32.xlu0 %v1441, 32
      %v1457 = vpop.permute.xlu0 %1456
      %1458 = vrot.lane.b32.xlu0 %v1445, 32
      %v1459 = vpop.permute.xlu0 %1458
      %1460 = vrot.lane.b32.xlu0 %v1449, 32
      %v1461 = vpop.permute.xlu0 %1460
      %v1462 = vsel %vm1064, %v1455, %v1457
      %v1463 = vsel %vm1064, %v1457, %v1459
      %v1464 = vsel %vm1064, %v1459, %v1461
      %v1470 = vmul.f32 %v1109, %v1455
      %v1471 = vmul.f32 %v1110, %v1462
      %v1472 = vmul.f32 %v1111, %v1463
      %v1473 = vmul.f32 %v1112, %v1464
      %v1474 = vmul.f32 %v1113, %v1461
      %v1475 = vmul.f32 %v1114, %v1455
      %v1476 = vmul.f32 %v1115, %v1462
      %v1477 = vmul.f32 %v1116, %v1463
      %v1478 = vmul.f32 %v1117, %v1464
      %v1479 = vmul.f32 %v1118, %v1461
      %v1480 = vmul.f32 %v1119, %v1455
      %v1481 = vmul.f32 %v1120, %v1462
      %v1482 = vmul.f32 %v1121, %v1463
      %v1483 = vmul.f32 %v1122, %v1464
      %v1484 = vmul.f32 %v1123, %v1461
      %v1500 = vrot.slane %v1470, 1
      %v1501 = vrot.slane %v1475, 1
      %v1502 = vsel %vm1397, %v1500, %v1501
      %v1503 = vrot.slane %v1471, 1
      %v1504 = vrot.slane %v1476, 1
      %v1505 = vsel %vm1397, %v1503, %v1504
      %v1506 = vrot.slane %v1472, 1
      %v1507 = vrot.slane %v1477, 1
      %v1508 = vsel %vm1397, %v1506, %v1507
      %v1509 = vrot.slane %v1473, 1
      %v1510 = vrot.slane %v1478, 1
      %v1511 = vsel %vm1397, %v1509, %v1510
      %v1512 = vrot.slane %v1474, 1
      %v1513 = vrot.slane %v1479, 1
      %v1514 = vsel %vm1397, %v1512, %v1513
      %v1515 = vrot.slane %v1480, 1
      %v1516 = vsel %vm1397, %v1501, %v1515
      %v1517 = vrot.slane %v1481, 1
      %v1518 = vsel %vm1397, %v1504, %v1517
      %v1519 = vrot.slane %v1482, 1
      %v1520 = vsel %vm1397, %v1507, %v1519
      %v1521 = vrot.slane %v1483, 1
      %v1522 = vsel %vm1397, %v1510, %v1521
      %v1523 = vrot.slane %v1484, 1
      %v1524 = vsel %vm1397, %v1513, %v1523
      %1525 = vrot.lane.b32.xlu0 %v1502, 96
      %v1526 = vpop.permute.xlu0 %1525
      %1527 = vrot.lane.b32.xlu0 %v1505, 96
      %v1528 = vpop.permute.xlu0 %1527
      %1529 = vrot.lane.b32.xlu0 %v1508, 96
      %v1530 = vpop.permute.xlu0 %1529
      %1531 = vrot.lane.b32.xlu0 %v1511, 96
      %v1532 = vpop.permute.xlu0 %1531
      %1533 = vrot.lane.b32.xlu0 %v1514, 96
      %v1534 = vpop.permute.xlu0 %1533
      %1535 = vrot.lane.b32.xlu0 %v1516, 96
      %v1536 = vpop.permute.xlu0 %1535
      %1537 = vrot.lane.b32.xlu0 %v1518, 96
      %v1538 = vpop.permute.xlu0 %1537
      %1539 = vrot.lane.b32.xlu0 %v1520, 96
      %v1540 = vpop.permute.xlu0 %1539
      %1541 = vrot.lane.b32.xlu0 %v1522, 96
      %v1542 = vpop.permute.xlu0 %1541
      %1543 = vrot.lane.b32.xlu0 %v1524, 96
      %v1544 = vpop.permute.xlu0 %1543
      %v1545 = vsel %vm1232, %v1526, %v1528
      %v1546 = vsel %vm1232, %v1528, %v1530
      %v1547 = vsel %vm1232, %v1530, %v1532
      %v1548 = vsel %vm1232, %v1532, %v1534
      %v1549 = vsel %vm1232, %v1536, %v1538
      %v1550 = vsel %vm1232, %v1538, %v1540
      %v1551 = vsel %vm1232, %v1540, %v1542
      %v1552 = vsel %vm1232, %v1542, %v1544
      %v1561 = vadd.f32 %v1426, %v1545
      %v1562 = vadd.f32 %v1427, %v1546
      %v1563 = vadd.f32 %v1428, %v1547
      %v1564 = vadd.f32 %v1429, %v1548
      %v1565 = vadd.f32 %v1430, %v1549
      %v1566 = vadd.f32 %v1431, %v1550
      %v1567 = vadd.f32 %v1432, %v1551
      %v1568 = vadd.f32 %v1433, %v1552
      %v1569 = vlaneseq
      %v1570 = vshrl.u32 %v1569, 7
      %v1571 = vsub.s32 5, %v1570
      %v1572 = vrot.slane %v698, %v1571
      %v1573 = vlaneseq
      %v1574 = vshrl.u32 %v1573, 7
      %v1575 = vsub.s32 5, %v1574
      %v1576 = vrot.slane %v699, %v1575
      %v1577 = vlaneseq
      %v1578 = vshrl.u32 %v1577, 7
      %v1579 = vsub.s32 5, %v1578
      %v1580 = vrot.slane %v700, %v1579
      %v1581 = vlaneseq
      %v1582 = vshrl.u32 %v1581, 7
      %v1583 = vsub.s32 5, %v1582
      %v1584 = vrot.slane %v701, %v1583
      %1589 = vrot.lane.b32.xlu0 %v1572, 64
      %v1590 = vpop.permute.xlu0 %1589
      %1591 = vrot.lane.b32.xlu0 %v1576, 64
      %v1592 = vpop.permute.xlu0 %1591
      %1593 = vrot.lane.b32.xlu0 %v1580, 64
      %v1594 = vpop.permute.xlu0 %1593
      %1595 = vrot.lane.b32.xlu0 %v1584, 64
      %v1596 = vpop.permute.xlu0 %1595
      %v1597 = vsel %vm532, %v1590, %v1592
      %v1598 = vsel %vm532, %v1592, %v1594
      %v1599 = vsel %vm532, %v1594, %v1596
      %v1605 = vmul.f32 %v1109, %v1590
      %v1606 = vmul.f32 %v1110, %v1597
      %v1607 = vmul.f32 %v1111, %v1598
      %v1608 = vmul.f32 %v1112, %v1599
      %v1609 = vmul.f32 %v1113, %v1596
      %v1610 = vmul.f32 %v1114, %v1590
      %v1611 = vmul.f32 %v1115, %v1597
      %v1612 = vmul.f32 %v1116, %v1598
      %v1613 = vmul.f32 %v1117, %v1599
      %v1614 = vmul.f32 %v1118, %v1596
      %v1615 = vmul.f32 %v1119, %v1590
      %v1616 = vmul.f32 %v1120, %v1597
      %v1617 = vmul.f32 %v1121, %v1598
      %v1618 = vmul.f32 %v1122, %v1599
      %v1619 = vmul.f32 %v1123, %v1596
      %v1635 = vrot.slane %v1605, 1
      %v1636 = vrot.slane %v1610, 1
      %v1637 = vsel %vm1397, %v1635, %v1636
      %v1638 = vrot.slane %v1606, 1
      %v1639 = vrot.slane %v1611, 1
      %v1640 = vsel %vm1397, %v1638, %v1639
      %v1641 = vrot.slane %v1607, 1
      %v1642 = vrot.slane %v1612, 1
      %v1643 = vsel %vm1397, %v1641, %v1642
      %v1644 = vrot.slane %v1608, 1
      %v1645 = vrot.slane %v1613, 1
      %v1646 = vsel %vm1397, %v1644, %v1645
      %v1647 = vrot.slane %v1609, 1
      %v1648 = vrot.slane %v1614, 1
      %v1649 = vsel %vm1397, %v1647, %v1648
      %v1650 = vrot.slane %v1615, 1
      %v1651 = vsel %vm1397, %v1636, %v1650
      %v1652 = vrot.slane %v1616, 1
      %v1653 = vsel %vm1397, %v1639, %v1652
      %v1654 = vrot.slane %v1617, 1
      %v1655 = vsel %vm1397, %v1642, %v1654
      %v1656 = vrot.slane %v1618, 1
      %v1657 = vsel %vm1397, %v1645, %v1656
      %v1658 = vrot.slane %v1619, 1
      %v1659 = vsel %vm1397, %v1648, %v1658
      %1660 = vrot.lane.b32.xlu0 %v1637, 64
      %v1661 = vpop.permute.xlu0 %1660
      %1662 = vrot.lane.b32.xlu0 %v1640, 64
      %v1663 = vpop.permute.xlu0 %1662
      %1664 = vrot.lane.b32.xlu0 %v1643, 64
      %v1665 = vpop.permute.xlu0 %1664
      %1666 = vrot.lane.b32.xlu0 %v1646, 64
      %v1667 = vpop.permute.xlu0 %1666
      %1668 = vrot.lane.b32.xlu0 %v1649, 64
      %v1669 = vpop.permute.xlu0 %1668
      %1670 = vrot.lane.b32.xlu0 %v1651, 64
      %v1671 = vpop.permute.xlu0 %1670
      %1672 = vrot.lane.b32.xlu0 %v1653, 64
      %v1673 = vpop.permute.xlu0 %1672
      %1674 = vrot.lane.b32.xlu0 %v1655, 64
      %v1675 = vpop.permute.xlu0 %1674
      %1676 = vrot.lane.b32.xlu0 %v1657, 64
      %v1677 = vpop.permute.xlu0 %1676
      %1678 = vrot.lane.b32.xlu0 %v1659, 64
      %v1679 = vpop.permute.xlu0 %1678
      %v1680 = vsel %vm532, %v1661, %v1663
      %v1681 = vsel %vm532, %v1663, %v1665
      %v1682 = vsel %vm532, %v1665, %v1667
      %v1683 = vsel %vm532, %v1667, %v1669
      %v1684 = vsel %vm532, %v1671, %v1673
      %v1685 = vsel %vm532, %v1673, %v1675
      %v1686 = vsel %vm532, %v1675, %v1677
      %v1687 = vsel %vm532, %v1677, %v1679
      %v1696 = vadd.f32 %v1561, %v1680
      %v1697 = vadd.f32 %v1562, %v1681
      %v1698 = vadd.f32 %v1563, %v1682
      %v1699 = vadd.f32 %v1564, %v1683
      %v1700 = vadd.f32 %v1565, %v1684
      %v1701 = vadd.f32 %v1566, %v1685
      %v1702 = vadd.f32 %v1567, %v1686
      %v1703 = vadd.f32 %v1568, %v1687
      %v1704 = vlaneseq
      %v1705 = vshrl.u32 %v1704, 7
      %v1706 = vsub.s32 6, %v1705
      %v1707 = vrot.slane %v698, %v1706
      %v1708 = vlaneseq
      %v1709 = vshrl.u32 %v1708, 7
      %v1710 = vsub.s32 6, %v1709
      %v1711 = vrot.slane %v699, %v1710
      %v1712 = vlaneseq
      %v1713 = vshrl.u32 %v1712, 7
      %v1714 = vsub.s32 6, %v1713
      %v1715 = vrot.slane %v700, %v1714
      %v1716 = vlaneseq
      %v1717 = vshrl.u32 %v1716, 7
      %v1718 = vsub.s32 6, %v1717
      %v1719 = vrot.slane %v701, %v1718
      %v1720 = vmul.f32 %v1109, %v1707
      %v1721 = vmul.f32 %v1110, %v1711
      %v1722 = vmul.f32 %v1111, %v1715
      %v1723 = vmul.f32 %v1112, %v1719
      %v1724 = vmul.f32 %v1114, %v1707
      %v1725 = vmul.f32 %v1115, %v1711
      %v1726 = vmul.f32 %v1116, %v1715
      %v1727 = vmul.f32 %v1117, %v1719
      %v1728 = vmul.f32 %v1119, %v1707
      %v1729 = vmul.f32 %v1120, %v1711
      %v1730 = vmul.f32 %v1121, %v1715
      %v1731 = vmul.f32 %v1122, %v1719
      %vm1744 = vcmask 1045504
      %v1745 = vrot.slane %v1720, 2
      %v1746 = vrot.slane %v1724, 2
      %v1747 = vsel %vm1744, %v1745, %v1746
      %v1748 = vrot.slane %v1721, 2
      %v1749 = vrot.slane %v1725, 2
      %v1750 = vsel %vm1744, %v1748, %v1749
      %v1751 = vrot.slane %v1722, 2
      %v1752 = vrot.slane %v1726, 2
      %v1753 = vsel %vm1744, %v1751, %v1752
      %v1754 = vrot.slane %v1723, 2
      %v1755 = vrot.slane %v1727, 2
      %v1756 = vsel %vm1744, %v1754, %v1755
      %v1757 = vrot.slane %v1728, 2
      %v1758 = vsel %vm1744, %v1746, %v1757
      %v1759 = vrot.slane %v1729, 2
      %v1760 = vsel %vm1744, %v1749, %v1759
      %v1761 = vrot.slane %v1730, 2
      %v1762 = vsel %vm1744, %v1752, %v1761
      %v1763 = vrot.slane %v1731, 2
      %v1764 = vsel %vm1744, %v1755, %v1763
      %v1773 = vadd.f32 %v1696, %v1747
      %v1774 = vadd.f32 %v1697, %v1750
      %v1775 = vadd.f32 %v1698, %v1753
      %v1776 = vadd.f32 %v1699, %v1756
      %v1777 = vadd.f32 %v1700, %v1758
      %v1778 = vadd.f32 %v1701, %v1760
      %v1779 = vadd.f32 %v1702, %v1762
      %v1780 = vadd.f32 %v1703, %v1764
      %v1781 = vlaneseq
      %v1782 = vshrl.u32 %v1781, 7
      %v1783 = vsub.s32 7, %v1782
      %v1784 = vrot.slane %v698, %v1783
      %v1785 = vlaneseq
      %v1786 = vshrl.u32 %v1785, 7
      %v1787 = vsub.s32 7, %v1786
      %v1788 = vrot.slane %v699, %v1787
      %v1789 = vlaneseq
      %v1790 = vshrl.u32 %v1789, 7
      %v1791 = vsub.s32 7, %v1790
      %v1792 = vrot.slane %v700, %v1791
      %v1793 = vlaneseq
      %v1794 = vshrl.u32 %v1793, 7
      %v1795 = vsub.s32 7, %v1794
      %v1796 = vrot.slane %v701, %v1795
      %1801 = vrot.lane.b32.xlu0 %v1784, 32
      %v1802 = vpop.permute.xlu0 %1801
      %1803 = vrot.lane.b32.xlu0 %v1788, 32
      %v1804 = vpop.permute.xlu0 %1803
      %1805 = vrot.lane.b32.xlu0 %v1792, 32
      %v1806 = vpop.permute.xlu0 %1805
      %1807 = vrot.lane.b32.xlu0 %v1796, 32
      %v1808 = vpop.permute.xlu0 %1807
      %v1809 = vsel %vm1064, %v1802, %v1804
      %v1810 = vsel %vm1064, %v1804, %v1806
      %v1811 = vsel %vm1064, %v1806, %v1808
      %v1817 = vmul.f32 %v1109, %v1802
      %v1818 = vmul.f32 %v1110, %v1809
      %v1819 = vmul.f32 %v1111, %v1810
      %v1820 = vmul.f32 %v1112, %v1811
      %v1821 = vmul.f32 %v1113, %v1808
      %v1822 = vmul.f32 %v1114, %v1802
      %v1823 = vmul.f32 %v1115, %v1809
      %v1824 = vmul.f32 %v1116, %v1810
      %v1825 = vmul.f32 %v1117, %v1811
      %v1826 = vmul.f32 %v1118, %v1808
      %v1827 = vmul.f32 %v1119, %v1802
      %v1828 = vmul.f32 %v1120, %v1809
      %v1829 = vmul.f32 %v1121, %v1810
      %v1830 = vmul.f32 %v1122, %v1811
      %v1831 = vmul.f32 %v1123, %v1808
      %v1847 = vrot.slane %v1817, 2
      %v1848 = vrot.slane %v1822, 2
      %v1849 = vsel %vm1744, %v1847, %v1848
      %v1850 = vrot.slane %v1818, 2
      %v1851 = vrot.slane %v1823, 2
      %v1852 = vsel %vm1744, %v1850, %v1851
      %v1853 = vrot.slane %v1819, 2
      %v1854 = vrot.slane %v1824, 2
      %v1855 = vsel %vm1744, %v1853, %v1854
      %v1856 = vrot.slane %v1820, 2
      %v1857 = vrot.slane %v1825, 2
      %v1858 = vsel %vm1744, %v1856, %v1857
      %v1859 = vrot.slane %v1821, 2
      %v1860 = vrot.slane %v1826, 2
      %v1861 = vsel %vm1744, %v1859, %v1860
      %v1862 = vrot.slane %v1827, 2
      %v1863 = vsel %vm1744, %v1848, %v1862
      %v1864 = vrot.slane %v1828, 2
      %v1865 = vsel %vm1744, %v1851, %v1864
      %v1866 = vrot.slane %v1829, 2
      %v1867 = vsel %vm1744, %v1854, %v1866
      %v1868 = vrot.slane %v1830, 2
      %v1869 = vsel %vm1744, %v1857, %v1868
      %v1870 = vrot.slane %v1831, 2
      %v1871 = vsel %vm1744, %v1860, %v1870
      %1872 = vrot.lane.b32.xlu0 %v1849, 96
      %v1873 = vpop.permute.xlu0 %1872
      %1874 = vrot.lane.b32.xlu0 %v1852, 96
      %v1875 = vpop.permute.xlu0 %1874
      %1876 = vrot.lane.b32.xlu0 %v1855, 96
      %v1877 = vpop.permute.xlu0 %1876
      %1878 = vrot.lane.b32.xlu0 %v1858, 96
      %v1879 = vpop.permute.xlu0 %1878
      %1880 = vrot.lane.b32.xlu0 %v1861, 96
      %v1881 = vpop.permute.xlu0 %1880
      %1882 = vrot.lane.b32.xlu0 %v1863, 96
      %v1883 = vpop.permute.xlu0 %1882
      %1884 = vrot.lane.b32.xlu0 %v1865, 96
      %v1885 = vpop.permute.xlu0 %1884
      %1886 = vrot.lane.b32.xlu0 %v1867, 96
      %v1887 = vpop.permute.xlu0 %1886
      %1888 = vrot.lane.b32.xlu0 %v1869, 96
      %v1889 = vpop.permute.xlu0 %1888
      %1890 = vrot.lane.b32.xlu0 %v1871, 96
      %v1891 = vpop.permute.xlu0 %1890
      %v1892 = vsel %vm1232, %v1873, %v1875
      %v1893 = vsel %vm1232, %v1875, %v1877
      %v1894 = vsel %vm1232, %v1877, %v1879
      %v1895 = vsel %vm1232, %v1879, %v1881
      %v1896 = vsel %vm1232, %v1883, %v1885
      %v1897 = vsel %vm1232, %v1885, %v1887
      %v1898 = vsel %vm1232, %v1887, %v1889
      %v1899 = vsel %vm1232, %v1889, %v1891
      %v1908 = vadd.f32 %v1773, %v1892
      %v1909 = vadd.f32 %v1774, %v1893
      %v1910 = vadd.f32 %v1775, %v1894
      %v1911 = vadd.f32 %v1776, %v1895
      %v1912 = vadd.f32 %v1777, %v1896
      %v1913 = vadd.f32 %v1778, %v1897
      %v1914 = vadd.f32 %v1779, %v1898
      %v1915 = vadd.f32 %v1780, %v1899
      %v1916 = vlaneseq
      %v1917 = vshrl.u32 %v1916, 7
      %v1918 = vsub.s32 0, %v1917
      %v1919 = vrot.slane %v702, %v1918
      %v1920 = vlaneseq
      %v1921 = vshrl.u32 %v1920, 7
      %v1922 = vsub.s32 0, %v1921
      %v1923 = vrot.slane %v703, %v1922
      %v1924 = vlaneseq
      %v1925 = vshrl.u32 %v1924, 7
      %v1926 = vsub.s32 0, %v1925
      %v1927 = vrot.slane %v704, %v1926
      %v1928 = vlaneseq
      %v1929 = vshrl.u32 %v1928, 7
      %v1930 = vsub.s32 0, %v1929
      %v1931 = vrot.slane %v705, %v1930
      %1936 = vrot.lane.b32.xlu0 %v1919, 64
      %v1937 = vpop.permute.xlu0 %1936
      %1938 = vrot.lane.b32.xlu0 %v1923, 64
      %v1939 = vpop.permute.xlu0 %1938
      %1940 = vrot.lane.b32.xlu0 %v1927, 64
      %v1941 = vpop.permute.xlu0 %1940
      %1942 = vrot.lane.b32.xlu0 %v1931, 64
      %v1943 = vpop.permute.xlu0 %1942
      %v1944 = vsel %vm532, %v1937, %v1939
      %v1945 = vsel %vm532, %v1939, %v1941
      %v1946 = vsel %vm532, %v1941, %v1943
      %v1952 = vmul.f32 %v1109, %v1937
      %v1953 = vmul.f32 %v1110, %v1944
      %v1954 = vmul.f32 %v1111, %v1945
      %v1955 = vmul.f32 %v1112, %v1946
      %v1956 = vmul.f32 %v1113, %v1943
      %v1957 = vmul.f32 %v1114, %v1937
      %v1958 = vmul.f32 %v1115, %v1944
      %v1959 = vmul.f32 %v1116, %v1945
      %v1960 = vmul.f32 %v1117, %v1946
      %v1961 = vmul.f32 %v1118, %v1943
      %v1962 = vmul.f32 %v1119, %v1937
      %v1963 = vmul.f32 %v1120, %v1944
      %v1964 = vmul.f32 %v1121, %v1945
      %v1965 = vmul.f32 %v1122, %v1946
      %v1966 = vmul.f32 %v1123, %v1943
      %v1982 = vrot.slane %v1952, 2
      %v1983 = vrot.slane %v1957, 2
      %v1984 = vsel %vm1744, %v1982, %v1983
      %v1985 = vrot.slane %v1953, 2
      %v1986 = vrot.slane %v1958, 2
      %v1987 = vsel %vm1744, %v1985, %v1986
      %v1988 = vrot.slane %v1954, 2
      %v1989 = vrot.slane %v1959, 2
      %v1990 = vsel %vm1744, %v1988, %v1989
      %v1991 = vrot.slane %v1955, 2
      %v1992 = vrot.slane %v1960, 2
      %v1993 = vsel %vm1744, %v1991, %v1992
      %v1994 = vrot.slane %v1956, 2
      %v1995 = vrot.slane %v1961, 2
      %v1996 = vsel %vm1744, %v1994, %v1995
      %v1997 = vrot.slane %v1962, 2
      %v1998 = vsel %vm1744, %v1983, %v1997
      %v1999 = vrot.slane %v1963, 2
      %v2000 = vsel %vm1744, %v1986, %v1999
      %v2001 = vrot.slane %v1964, 2
      %v2002 = vsel %vm1744, %v1989, %v2001
      %v2003 = vrot.slane %v1965, 2
      %v2004 = vsel %vm1744, %v1992, %v2003
      %v2005 = vrot.slane %v1966, 2
      %v2006 = vsel %vm1744, %v1995, %v2005
      %2007 = vrot.lane.b32.xlu0 %v1984, 64
      %v2008 = vpop.permute.xlu0 %2007
      %2009 = vrot.lane.b32.xlu0 %v1987, 64
      %v2010 = vpop.permute.xlu0 %2009
      %2011 = vrot.lane.b32.xlu0 %v1990, 64
      %v2012 = vpop.permute.xlu0 %2011
      %2013 = vrot.lane.b32.xlu0 %v1993, 64
      %v2014 = vpop.permute.xlu0 %2013
      %2015 = vrot.lane.b32.xlu0 %v1996, 64
      %v2016 = vpop.permute.xlu0 %2015
      %2017 = vrot.lane.b32.xlu0 %v1998, 64
      %v2018 = vpop.permute.xlu0 %2017
      %2019 = vrot.lane.b32.xlu0 %v2000, 64
      %v2020 = vpop.permute.xlu0 %2019
      %2021 = vrot.lane.b32.xlu0 %v2002, 64
      %v2022 = vpop.permute.xlu0 %2021
      %2023 = vrot.lane.b32.xlu0 %v2004, 64
      %v2024 = vpop.permute.xlu0 %2023
      %2025 = vrot.lane.b32.xlu0 %v2006, 64
      %v2026 = vpop.permute.xlu0 %2025
      %v2027 = vsel %vm532, %v2008, %v2010
      %v2028 = vsel %vm532, %v2010, %v2012
      %v2029 = vsel %vm532, %v2012, %v2014
      %v2030 = vsel %vm532, %v2014, %v2016
      %v2031 = vsel %vm532, %v2018, %v2020
      %v2032 = vsel %vm532, %v2020, %v2022
      %v2033 = vsel %vm532, %v2022, %v2024
      %v2034 = vsel %vm532, %v2024, %v2026
      %v2043 = vadd.f32 %v1908, %v2027
      %v2044 = vadd.f32 %v1909, %v2028
      %v2045 = vadd.f32 %v1910, %v2029
      %v2046 = vadd.f32 %v1911, %v2030
      %v2047 = vadd.f32 %v1912, %v2031
      %v2048 = vadd.f32 %v1913, %v2032
      %v2049 = vadd.f32 %v1914, %v2033
      %v2050 = vadd.f32 %v1915, %v2034
      %v2052 = vlaneseq
      %v2053 = vshrl.u32 %v2052, 7
      %v2054 = vsub.s32 0, %v2053
      %v2055 = vrot.slane %v706, %v2054
      %v2056 = vlaneseq
      %v2057 = vshrl.u32 %v2056, 7
      %v2058 = vsub.s32 1, %v2057
      %v2059 = vrot.slane %v706, %v2058
      %v2060 = vlaneseq
      %v2061 = vshrl.u32 %v2060, 7
      %v2062 = vsub.s32 2, %v2061
      %v2063 = vrot.slane %v706, %v2062
      %v2064 = vlaneseq
      %v2065 = vshrl.u32 %v2064, 7
      %v2066 = vsub.s32 3, %v2065
      %v2067 = vrot.slane %v706, %v2066
      %v2072 = vadd.f32 %v2043, %v2055
      %v2073 = vadd.f32 %v2044, %v2059
      %v2074 = vadd.f32 %v2045, %v2063
      %v2075 = vadd.f32 %v2046, %v2067
      %v2076 = vadd.f32 %v2047, %v2055
      %v2077 = vadd.f32 %v2048, %v2059
      %v2078 = vadd.f32 %v2049, %v2063
      %v2079 = vadd.f32 %v2050, %v2067
      %v2080 = vmax.f32 %v2072, 0.0
      %v2081 = vmax.f32 %v2073, 0.0
      %v2082 = vmax.f32 %v2074, 0.0
      %v2083 = vmax.f32 %v2075, 0.0
      %v2084 = vmax.f32 %v2076, 0.0
      %v2085 = vmax.f32 %v2077, 0.0
      %v2086 = vmax.f32 %v2078, 0.0
      %v2087 = vmax.f32 %v2079, 0.0
      %v2089 = vlaneseq
      %v2090 = vshrl.u32 %v2089, 7
      %v2091 = vsub.s32 0, %v2090
      %v2092 = vrot.slane %v835, %v2091
      %v2093 = vlaneseq
      %v2094 = vshrl.u32 %v2093, 7
      %v2095 = vsub.s32 1, %v2094
      %v2096 = vrot.slane %v835, %v2095
      %2099 = vmatprep.subr.mxu0 %v738
      %2100 = vmatpush1.msra.mxu0 %v737
      %2101 = vmatprep.subr.mxu0 %v736
      %2102 = vmatpush1.msra.mxu0 %v735
      %2103 = vmatprep.subr.mxu0 %v734
      %2104 = vmatpush1.msra.mxu0 %v733
      %2105 = vmatprep.subr.mxu0 %v732
      %2106 = vmatpush1.msra.mxu0 %v731
      %2107 = vmatprep.subr.mxu0 %v730
      %2108 = vmatpush1.msra.mxu0 %v729
      %2109 = vmatprep.subr.mxu0 %v728
      %2110 = vmatpush1.msra.mxu0 %v727
      %2111 = vmatprep.subr.mxu0 %v726
      %2112 = vmatpush1.msra.mxu0 %v725
      %2113 = vmatprep.subr.mxu0 %v724
      %2114 = vmatpush1.msra.mxu0 %v723
      %2115 = vmatprep.subr.mxu0 %v722
      %2116 = vmatpush1.msra.mxu0 %v721
      %2117 = vmatprep.subr.mxu0 %v720
      %2118 = vmatpush1.msra.mxu0 %v719
      %2119 = vmatprep.subr.mxu0 %v718
      %2120 = vmatpush1.msra.mxu0 %v717
      %2121 = vmatprep.subr.mxu0 %v716
      %2122 = vmatpush1.msra.mxu0 %v715
      %2123 = vmatprep.subr.mxu0 %v714
      %2124 = vmatpush1.msra.mxu0 %v713
      %2125 = vmatprep.subr.mxu0 %v712
      %2126 = vmatpush1.msra.mxu0 %v711
      %2127 = vmatprep.subr.mxu0 %v710
      %2128 = vmatpush1.msra.mxu0 %v709
      %2129 = vmatprep.subr.mxu0 %v708
      %2130 = vmatpush1.msra.mxu0 %v707
      %2131 = vmatprep.subr.mxu0 %v770
      %2132 = vmatpush2.msra.mxu0 %v769
      %2133 = vmatprep.subr.mxu0 %v768
      %2134 = vmatpush2.msra.mxu0 %v767
      %2135 = vmatprep.subr.mxu0 %v766
      %2136 = vmatpush2.msra.mxu0 %v765
      %2137 = vmatprep.subr.mxu0 %v764
      %2138 = vmatpush2.msra.mxu0 %v763
      %2139 = vmatprep.subr.mxu0 %v762
      %2140 = vmatpush2.msra.mxu0 %v761
      %2141 = vmatprep.subr.mxu0 %v760
      %2142 = vmatpush2.msra.mxu0 %v759
      %2143 = vmatprep.subr.mxu0 %v758
      %2144 = vmatpush2.msra.mxu0 %v757
      %2145 = vmatprep.subr.mxu0 %v756
      %2146 = vmatpush2.msra.mxu0 %v755
      %2147 = vmatprep.subr.mxu0 %v754
      %2148 = vmatpush2.msra.mxu0 %v753
      %2149 = vmatprep.subr.mxu0 %v752
      %2150 = vmatpush2.msra.mxu0 %v751
      %2151 = vmatprep.subr.mxu0 %v750
      %2152 = vmatpush2.msra.mxu0 %v749
      %2153 = vmatprep.subr.mxu0 %v748
      %2154 = vmatpush2.msra.mxu0 %v747
      %2155 = vmatprep.subr.mxu0 %v746
      %2156 = vmatpush2.msra.mxu0 %v745
      %2157 = vmatprep.subr.mxu0 %v744
      %2158 = vmatpush2.msra.mxu0 %v743
      %2159 = vmatprep.subr.mxu0 %v742
      %2160 = vmatpush2.msra.mxu0 %v741
      %2161 = vmatprep.subr.mxu0 %v740
      %2162 = vmatpush2.msra.mxu0 %v739
      %2163 = vmatprep.mubr.f32.mxu0 %v2081
      %2164 = vmatmul.mubr.f32.gmra.mxu0 %v2080
      %v2165 = vpop.f32.mrf.mxu0
      %v2166 = vadd.f32 %v2092, %v2165
      %v2167 = vpop.f32.mrf.mxu0
      %v2168 = vadd.f32 %v2096, %v2167
      %2169 = vmatprep.mubr.f32.mxu0 %v2085
      %2170 = vmatmul.mubr.f32.gmra.mxu0 %v2084
      %v2171 = vpop.f32.mrf.mxu0
      %v2172 = vadd.f32 %v2092, %v2171
      %v2173 = vpop.f32.mrf.mxu0
      %v2174 = vadd.f32 %v2096, %v2173
      %2175 = vdwg.mxu0
      %2176 = vmatprep.subr.mxu0 %v802
      %2177 = vmatpush1.msra.mxu0 %v801
      %2178 = vmatprep.subr.mxu0 %v800
      %2179 = vmatpush1.msra.mxu0 %v799
      %2180 = vmatprep.subr.mxu0 %v798
      %2181 = vmatpush1.msra.mxu0 %v797
      %2182 = vmatprep.subr.mxu0 %v796
      %2183 = vmatpush1.msra.mxu0 %v795
      %2184 = vmatprep.subr.mxu0 %v794
      %2185 = vmatpush1.msra.mxu0 %v793
      %2186 = vmatprep.subr.mxu0 %v792
      %2187 = vmatpush1.msra.mxu0 %v791
      %2188 = vmatprep.subr.mxu0 %v790
      %2189 = vmatpush1.msra.mxu0 %v789
      %2190 = vmatprep.subr.mxu0 %v788
      %2191 = vmatpush1.msra.mxu0 %v787
      %2192 = vmatprep.subr.mxu0 %v786
      %2193 = vmatpush1.msra.mxu0 %v785
      %2194 = vmatprep.subr.mxu0 %v784
      %2195 = vmatpush1.msra.mxu0 %v783
      %2196 = vmatprep.subr.mxu0 %v782
      %2197 = vmatpush1.msra.mxu0 %v781
      %2198 = vmatprep.subr.mxu0 %v780
      %2199 = vmatpush1.msra.mxu0 %v779
      %2200 = vmatprep.subr.mxu0 %v778
      %2201 = vmatpush1.msra.mxu0 %v777
      %2202 = vmatprep.subr.mxu0 %v776
      %2203 = vmatpush1.msra.mxu0 %v775
      %2204 = vmatprep.subr.mxu0 %v774
      %2205 = vmatpush1.msra.mxu0 %v773
      %2206 = vmatprep.subr.mxu0 %v772
      %2207 = vmatpush1.msra.mxu0 %v771
      %2208 = vmatprep.subr.mxu0 %v834
      %2209 = vmatpush2.msra.mxu0 %v833
      %2210 = vmatprep.subr.mxu0 %v832
      %2211 = vmatpush2.msra.mxu0 %v831
      %2212 = vmatprep.subr.mxu0 %v830
      %2213 = vmatpush2.msra.mxu0 %v829
      %2214 = vmatprep.subr.mxu0 %v828
      %2215 = vmatpush2.msra.mxu0 %v827
      %2216 = vmatprep.subr.mxu0 %v826
      %2217 = vmatpush2.msra.mxu0 %v825
      %2218 = vmatprep.subr.mxu0 %v824
      %2219 = vmatpush2.msra.mxu0 %v823
      %2220 = vmatprep.subr.mxu0 %v822
      %2221 = vmatpush2.msra.mxu0 %v821
      %2222 = vmatprep.subr.mxu0 %v820
      %2223 = vmatpush2.msra.mxu0 %v819
      %2224 = vmatprep.subr.mxu0 %v818
      %2225 = vmatpush2.msra.mxu0 %v817
      %2226 = vmatprep.subr.mxu0 %v816
      %2227 = vmatpush2.msra.mxu0 %v815
      %2228 = vmatprep.subr.mxu0 %v814
      %2229 = vmatpush2.msra.mxu0 %v813
      %2230 = vmatprep.subr.mxu0 %v812
      %2231 = vmatpush2.msra.mxu0 %v811
      %2232 = vmatprep.subr.mxu0 %v810
      %2233 = vmatpush2.msra.mxu0 %v809
      %2234 = vmatprep.subr.mxu0 %v808
      %2235 = vmatpush2.msra.mxu0 %v807
      %2236 = vmatprep.subr.mxu0 %v806
      %2237 = vmatpush2.msra.mxu0 %v805
      %2238 = vmatprep.subr.mxu0 %v804
      %2239 = vmatpush2.msra.mxu0 %v803
      %2240 = vmatprep.mubr.f32.mxu0 %v2083
      %2241 = vmatmul.mubr.f32.gmra.mxu0 %v2082
      %v2242 = vpop.f32.mrf.mxu0
      %v2243 = vadd.f32 %v2166, %v2242
      %v2244 = vpop.f32.mrf.mxu0
      %v2245 = vadd.f32 %v2168, %v2244
      %2246 = vmatprep.mubr.f32.mxu0 %v2087
      %2247 = vmatmul.mubr.f32.gmra.mxu0 %v2086
      %v2248 = vpop.f32.mrf.mxu0
      %v2249 = vadd.f32 %v2172, %v2248
      %v2250 = vpop.f32.mrf.mxu0
      %v2251 = vadd.f32 %v2174, %v2250
      %2252 = vdwg.mxu0
      %v2253 = vadd.f32 %v2243, %v561
      %v2254 = vadd.f32 %v2245, %v562
      %v2255 = vadd.f32 %v2249, %v563
      %v2256 = vadd.f32 %v2251, %v564
      %2257 = vst [vmem:[%s522] sm:$0xff] %v2253
      %2258 = vst [vmem:[%s522 + $0x8] sm:$0xff] %v2254
      %2259 = vst [vmem:[%s522 + $0x10] sm:$0xff] %v2255
      %2260 = vst [vmem:[%s522 + $0x18] sm:$0xff] %v2256
      %v2261 = vld [vmem:[%s8] sm:$0xff]
      %v2262 = vld [vmem:[%s8 + $0x8] sm:$0xff]
      %v2263 = vld [vmem:[%s8 + $0x10] sm:$0xff]
      %v2264 = vld [vmem:[%s8 + $0x18] sm:$0xff]
      %v2265 = vld [vmem:[%s8 + $0x20] sm:$0xff]
      %v2266 = vld [vmem:[%s8 + $0x28] sm:$0xff]
      %v2267 = vld [vmem:[%s8 + $0x30] sm:$0xff]
      %v2268 = vld [vmem:[%s8 + $0x38] sm:$0xff]
      %v2269 = vld [vmem:[%s8 + $0x40] sm:$0xff]
      %v2270 = vld [vmem:[%s8 + $0x48] sm:$0xff]
      %v2271 = vld [vmem:[%s8 + $0x50] sm:$0xff]
      %v2272 = vld [vmem:[%s8 + $0x58] sm:$0xff]
      %v2273 = vld [vmem:[%s8 + $0x60] sm:$0xff]
      %v2274 = vld [vmem:[%s8 + $0x68] sm:$0xff]
      %v2275 = vld [vmem:[%s8 + $0x70] sm:$0xff]
      %v2276 = vld [vmem:[%s8 + $0x78] sm:$0xff]
      %v2277 = vld [vmem:[%s8 + $0x80] sm:$0xff]
      %v2278 = vld [vmem:[%s8 + $0x88] sm:$0xff]
      %v2279 = vld [vmem:[%s8 + $0x90] sm:$0xff]
      %v2280 = vld [vmem:[%s8 + $0x98] sm:$0xff]
      %v2281 = vld [vmem:[%s8 + $0xa0] sm:$0xff]
      %v2282 = vld [vmem:[%s8 + $0xa8] sm:$0xff]
      %v2283 = vld [vmem:[%s8 + $0xb0] sm:$0xff]
      %v2284 = vld [vmem:[%s8 + $0xb8] sm:$0xff]
      %v2285 = vld [vmem:[%s8 + $0xc0] sm:$0xff]
      %v2286 = vld [vmem:[%s8 + $0xc8] sm:$0xff]
      %v2287 = vld [vmem:[%s8 + $0xd0] sm:$0xff]
      %v2288 = vld [vmem:[%s8 + $0xd8] sm:$0xff]
      %v2289 = vld [vmem:[%s8 + $0xe0] sm:$0xff]
      %v2290 = vld [vmem:[%s8 + $0xe8] sm:$0xff]
      %v2291 = vld [vmem:[%s8 + $0xf0] sm:$0xff]
      %v2292 = vld [vmem:[%s8 + $0xf8] sm:$0xff]
      %v2293 = vld [vmem:[%s8 + $0x100] sm:$0xff]
      %v2294 = vld [vmem:[%s8 + $0x108] sm:$0xff]
      %v2295 = vld [vmem:[%s8 + $0x110] sm:$0xff]
      %v2296 = vld [vmem:[%s8 + $0x118] sm:$0xff]
      %v2297 = vld [vmem:[%s8 + $0x120] sm:$0xff]
      %v2298 = vld [vmem:[%s8 + $0x128] sm:$0xff]
      %v2299 = vld [vmem:[%s8 + $0x130] sm:$0xff]
      %v2300 = vld [vmem:[%s8 + $0x138] sm:$0xff]
      %v2301 = vld [vmem:[%s8 + $0x140] sm:$0xff]
      %v2302 = vld [vmem:[%s8 + $0x148] sm:$0xff]
      %v2303 = vld [vmem:[%s8 + $0x150] sm:$0xff]
      %v2304 = vld [vmem:[%s8 + $0x158] sm:$0xff]
      %v2305 = vld [vmem:[%s8 + $0x160] sm:$0xff]
      %v2306 = vld [vmem:[%s8 + $0x168] sm:$0xff]
      %v2307 = vld [vmem:[%s8 + $0x170] sm:$0xff]
      %v2308 = vld [vmem:[%s8 + $0x178] sm:$0xff]
      %v2309 = vld [vmem:[%s8 + $0x180] sm:$0xff]
      %v2310 = vld [vmem:[%s8 + $0x188] sm:$0xff]
      %v2311 = vld [vmem:[%s8 + $0x190] sm:$0xff]
      %v2312 = vld [vmem:[%s8 + $0x198] sm:$0xff]
      %v2313 = vld [vmem:[%s8 + $0x1a0] sm:$0xff]
      %v2314 = vld [vmem:[%s8 + $0x1a8] sm:$0xff]
      %v2315 = vld [vmem:[%s8 + $0x1b0] sm:$0xff]
      %v2316 = vld [vmem:[%s8 + $0x1b8] sm:$0xff]
      %v2317 = vld [vmem:[%s8 + $0x1c0] sm:$0xff]
      %v2318 = vld [vmem:[%s8 + $0x1c8] sm:$0xff]
      %v2319 = vld [vmem:[%s8 + $0x1d0] sm:$0xff]
      %v2320 = vld [vmem:[%s8 + $0x1d8] sm:$0xff]
      %v2321 = vld [vmem:[%s8 + $0x1e0] sm:$0xff]
      %v2322 = vld [vmem:[%s8 + $0x1e8] sm:$0xff]
      %v2323 = vld [vmem:[%s8 + $0x1f0] sm:$0xff]
      %v2324 = vld [vmem:[%s8 + $0x1f8] sm:$0xff]
      %v2325 = vld [vmem:[%s8 + $0x200] sm:$0xff]
      %v2326 = vld [vmem:[%s8 + $0x208] sm:$0xff]
      %v2327 = vld [vmem:[%s8 + $0x210] sm:$0xff]
      %v2328 = vld [vmem:[%s8 + $0x218] sm:$0xff]
      %v2329 = vld [vmem:[%s8 + $0x220] sm:$0xff]
      %v2330 = vld [vmem:[%s8 + $0x228] sm:$0xff]
      %v2331 = vld [vmem:[%s8 + $0x230] sm:$0xff]
      %v2332 = vld [vmem:[%s8 + $0x238] sm:$0xff]
      %v2333 = vld [vmem:[%s8 + $0x240] sm:$0xff]
      %v2334 = vld [vmem:[%s8 + $0x248] sm:$0xff]
      %v2335 = vld [vmem:[%s8 + $0x250] sm:$0xff]
      %v2336 = vld [vmem:[%s8 + $0x258] sm:$0xff]
      %v2337 = vld [vmem:[%s8 + $0x260] sm:$0xff]
      %v2338 = vld [vmem:[%s8 + $0x268] sm:$0xff]
      %v2339 = vld [vmem:[%s8 + $0x270] sm:$0xff]
      %v2340 = vld [vmem:[%s8 + $0x278] sm:$0xff]
      %v2341 = vld [vmem:[%s8 + $0x280] sm:$0xff]
      %v2342 = vld [vmem:[%s8 + $0x288] sm:$0xff]
      %v2343 = vld [vmem:[%s8 + $0x290] sm:$0xff]
      %v2344 = vld [vmem:[%s8 + $0x298] sm:$0xff]
      %v2345 = vld [vmem:[%s8 + $0x2a0] sm:$0xff]
      %v2346 = vld [vmem:[%s8 + $0x2a8] sm:$0xff]
      %v2347 = vld [vmem:[%s8 + $0x2b0] sm:$0xff]
      %v2348 = vld [vmem:[%s8 + $0x2b8] sm:$0xff]
      %v2349 = vld [vmem:[%s8 + $0x2c0] sm:$0xff]
      %v2350 = vld [vmem:[%s8 + $0x2c8] sm:$0xff]
      %v2351 = vld [vmem:[%s8 + $0x2d0] sm:$0xff]
      %v2352 = vld [vmem:[%s8 + $0x2d8] sm:$0xff]
      %v2353 = vld [vmem:[%s8 + $0x2e0] sm:$0xff]
      %v2354 = vld [vmem:[%s8 + $0x2e8] sm:$0xff]
      %v2355 = vld [vmem:[%s8 + $0x2f0] sm:$0xff]
      %v2356 = vld [vmem:[%s8 + $0x2f8] sm:$0xff]
      %v2357 = vld [vmem:[%s8 + $0x300] sm:$0xff]
      %v2358 = vld [vmem:[%s8 + $0x308] sm:$0xff]
      %v2359 = vld [vmem:[%s8 + $0x310] sm:$0xff]
      %v2360 = vld [vmem:[%s8 + $0x318] sm:$0xff]
      %v2361 = vld [vmem:[%s8 + $0x320] sm:$0xff]
      %v2362 = vld [vmem:[%s8 + $0x328] sm:$0xff]
      %v2363 = vld [vmem:[%s8 + $0x330] sm:$0xff]
      %v2364 = vld [vmem:[%s8 + $0x338] sm:$0xff]
      %v2365 = vld [vmem:[%s8 + $0x340] sm:$0xff]
      %v2366 = vld [vmem:[%s8 + $0x348] sm:$0xff]
      %v2367 = vld [vmem:[%s8 + $0x350] sm:$0xff]
      %v2368 = vld [vmem:[%s8 + $0x358] sm:$0xff]
      %v2369 = vld [vmem:[%s8 + $0x360] sm:$0xff]
      %v2370 = vld [vmem:[%s8 + $0x368] sm:$0xff]
      %v2371 = vld [vmem:[%s8 + $0x370] sm:$0xff]
      %v2372 = vld [vmem:[%s8 + $0x378] sm:$0xff]
      %v2373 = vld [vmem:[%s8 + $0x380] sm:$0xff]
      %v2374 = vld [vmem:[%s8 + $0x388] sm:$0xff]
      %v2375 = vld [vmem:[%s8 + $0x390] sm:$0xff]
      %v2376 = vld [vmem:[%s8 + $0x398] sm:$0xff]
      %v2377 = vld [vmem:[%s8 + $0x3a0] sm:$0xff]
      %v2378 = vld [vmem:[%s8 + $0x3a8] sm:$0xff]
      %v2379 = vld [vmem:[%s8 + $0x3b0] sm:$0xff]
      %v2380 = vld [vmem:[%s8 + $0x3b8] sm:$0xff]
      %v2381 = vld [vmem:[%s8 + $0x3c0] sm:$0xff]
      %v2382 = vld [vmem:[%s8 + $0x3c8] sm:$0xff]
      %v2383 = vld [vmem:[%s8 + $0x3d0] sm:$0xff]
      %v2384 = vld [vmem:[%s8 + $0x3d8] sm:$0xff]
      %v2385 = vld [vmem:[%s8 + $0x3e0] sm:$0xff]
      %v2386 = vld [vmem:[%s8 + $0x3e8] sm:$0xff]
      %v2387 = vld [vmem:[%s8 + $0x3f0] sm:$0xff]
      %v2388 = vld [vmem:[%s8 + $0x3f8] sm:$0xff]
      %v2389 = vld [vmem:[%s9] sm:$0xf]
      %v2390 = vld [vmem:[%s10] sm:$0xff]
      %v2391 = vld [vmem:[%s10 + $0x8] sm:$0xff]
      %v2392 = vld [vmem:[%s10 + $0x10] sm:$0xff]
      %v2393 = vld [vmem:[%s10 + $0x18] sm:$0xff]
      %v2394 = vld [vmem:[%s10 + $0x20] sm:$0x1]
      %v2395 = vld [vmem:[%s10 + $0x28] sm:$0x1]
      %v2396 = vld [vmem:[%s10 + $0x30] sm:$0x1]
      %v2397 = vld [vmem:[%s10 + $0x38] sm:$0x1]
      %v2398 = vld [vmem:[%s11] sm:$0xf]
      %v2399 = vld [vmem:[%s12] sm:$0xff]
      %v2400 = vld [vmem:[%s12 + $0x8] sm:$0xff]
      %v2401 = vld [vmem:[%s12 + $0x10] sm:$0xff]
      %v2402 = vld [vmem:[%s12 + $0x18] sm:$0xff]
      %v2403 = vld [vmem:[%s12 + $0x20] sm:$0xff]
      %v2404 = vld [vmem:[%s12 + $0x28] sm:$0xff]
      %v2405 = vld [vmem:[%s12 + $0x30] sm:$0xff]
      %v2406 = vld [vmem:[%s12 + $0x38] sm:$0xff]
      %v2407 = vld [vmem:[%s12 + $0x40] sm:$0xff]
      %v2408 = vld [vmem:[%s12 + $0x48] sm:$0xff]
      %v2409 = vld [vmem:[%s12 + $0x50] sm:$0xff]
      %v2410 = vld [vmem:[%s12 + $0x58] sm:$0xff]
      %v2411 = vld [vmem:[%s12 + $0x60] sm:$0xff]
      %v2412 = vld [vmem:[%s12 + $0x68] sm:$0xff]
      %v2413 = vld [vmem:[%s12 + $0x70] sm:$0xff]
      %v2414 = vld [vmem:[%s12 + $0x78] sm:$0xff]
      %v2415 = vld [vmem:[%s12 + $0x80] sm:$0xff]
      %v2416 = vld [vmem:[%s12 + $0x88] sm:$0xff]
      %v2417 = vld [vmem:[%s12 + $0x90] sm:$0xff]
      %v2418 = vld [vmem:[%s12 + $0x98] sm:$0xff]
      %v2419 = vld [vmem:[%s12 + $0xa0] sm:$0xff]
      %v2420 = vld [vmem:[%s12 + $0xa8] sm:$0xff]
      %v2421 = vld [vmem:[%s12 + $0xb0] sm:$0xff]
      %v2422 = vld [vmem:[%s12 + $0xb8] sm:$0xff]
      %v2423 = vld [vmem:[%s12 + $0xc0] sm:$0xff]
      %v2424 = vld [vmem:[%s12 + $0xc8] sm:$0xff]
      %v2425 = vld [vmem:[%s12 + $0xd0] sm:$0xff]
      %v2426 = vld [vmem:[%s12 + $0xd8] sm:$0xff]
      %v2427 = vld [vmem:[%s12 + $0xe0] sm:$0xff]
      %v2428 = vld [vmem:[%s12 + $0xe8] sm:$0xff]
      %v2429 = vld [vmem:[%s12 + $0xf0] sm:$0xff]
      %v2430 = vld [vmem:[%s12 + $0xf8] sm:$0xff]
      %v2431 = vld [vmem:[%s12 + $0x100] sm:$0xff]
      %v2432 = vld [vmem:[%s12 + $0x108] sm:$0xff]
      %v2433 = vld [vmem:[%s12 + $0x110] sm:$0xff]
      %v2434 = vld [vmem:[%s12 + $0x118] sm:$0xff]
      %v2435 = vld [vmem:[%s12 + $0x120] sm:$0xff]
      %v2436 = vld [vmem:[%s12 + $0x128] sm:$0xff]
      %v2437 = vld [vmem:[%s12 + $0x130] sm:$0xff]
      %v2438 = vld [vmem:[%s12 + $0x138] sm:$0xff]
      %v2439 = vld [vmem:[%s12 + $0x140] sm:$0xff]
      %v2440 = vld [vmem:[%s12 + $0x148] sm:$0xff]
      %v2441 = vld [vmem:[%s12 + $0x150] sm:$0xff]
      %v2442 = vld [vmem:[%s12 + $0x158] sm:$0xff]
      %v2443 = vld [vmem:[%s12 + $0x160] sm:$0xff]
      %v2444 = vld [vmem:[%s12 + $0x168] sm:$0xff]
      %v2445 = vld [vmem:[%s12 + $0x170] sm:$0xff]
      %v2446 = vld [vmem:[%s12 + $0x178] sm:$0xff]
      %v2447 = vld [vmem:[%s12 + $0x180] sm:$0xff]
      %v2448 = vld [vmem:[%s12 + $0x188] sm:$0xff]
      %v2449 = vld [vmem:[%s12 + $0x190] sm:$0xff]
      %v2450 = vld [vmem:[%s12 + $0x198] sm:$0xff]
      %v2451 = vld [vmem:[%s12 + $0x1a0] sm:$0xff]
      %v2452 = vld [vmem:[%s12 + $0x1a8] sm:$0xff]
      %v2453 = vld [vmem:[%s12 + $0x1b0] sm:$0xff]
      %v2454 = vld [vmem:[%s12 + $0x1b8] sm:$0xff]
      %v2455 = vld [vmem:[%s12 + $0x1c0] sm:$0xff]
      %v2456 = vld [vmem:[%s12 + $0x1c8] sm:$0xff]
      %v2457 = vld [vmem:[%s12 + $0x1d0] sm:$0xff]
      %v2458 = vld [vmem:[%s12 + $0x1d8] sm:$0xff]
      %v2459 = vld [vmem:[%s12 + $0x1e0] sm:$0xff]
      %v2460 = vld [vmem:[%s12 + $0x1e8] sm:$0xff]
      %v2461 = vld [vmem:[%s12 + $0x1f0] sm:$0xff]
      %v2462 = vld [vmem:[%s12 + $0x1f8] sm:$0xff]
      %v2463 = vld [vmem:[%s13] sm:$0x1]
      %v2465 = vlaneseq
      %v2466 = vshrl.u32 %v2465, 7
      %v2467 = vsub.s32 0, %v2466
      %v2468 = vrot.slane %v2389, %v2467
      %v2469 = vlaneseq
      %v2470 = vshrl.u32 %v2469, 7
      %v2471 = vsub.s32 1, %v2470
      %v2472 = vrot.slane %v2389, %v2471
      %v2473 = vlaneseq
      %v2474 = vshrl.u32 %v2473, 7
      %v2475 = vsub.s32 2, %v2474
      %v2476 = vrot.slane %v2389, %v2475
      %v2477 = vlaneseq
      %v2478 = vshrl.u32 %v2477, 7
      %v2479 = vsub.s32 3, %v2478
      %v2480 = vrot.slane %v2389, %v2479
      %2485 = vmatprep.subr.mxu0 %v2322
      %2486 = vmatpush1.msra.mxu0 %v2321
      %2487 = vmatprep.subr.mxu0 %v2318
      %2488 = vmatpush1.msra.mxu0 %v2317
      %2489 = vmatprep.subr.mxu0 %v2314
      %2490 = vmatpush1.msra.mxu0 %v2313
      %2491 = vmatprep.subr.mxu0 %v2310
      %2492 = vmatpush1.msra.mxu0 %v2309
      %2493 = vmatprep.subr.mxu0 %v2306
      %2494 = vmatpush1.msra.mxu0 %v2305
      %2495 = vmatprep.subr.mxu0 %v2302
      %2496 = vmatpush1.msra.mxu0 %v2301
      %2497 = vmatprep.subr.mxu0 %v2298
      %2498 = vmatpush1.msra.mxu0 %v2297
      %2499 = vmatprep.subr.mxu0 %v2294
      %2500 = vmatpush1.msra.mxu0 %v2293
      %2501 = vmatprep.subr.mxu0 %v2290
      %2502 = vmatpush1.msra.mxu0 %v2289
      %2503 = vmatprep.subr.mxu0 %v2286
      %2504 = vmatpush1.msra.mxu0 %v2285
      %2505 = vmatprep.subr.mxu0 %v2282
      %2506 = vmatpush1.msra.mxu0 %v2281
      %2507 = vmatprep.subr.mxu0 %v2278
      %2508 = vmatpush1.msra.mxu0 %v2277
      %2509 = vmatprep.subr.mxu0 %v2274
      %2510 = vmatpush1.msra.mxu0 %v2273
      %2511 = vmatprep.subr.mxu0 %v2270
      %2512 = vmatpush1.msra.mxu0 %v2269
      %2513 = vmatprep.subr.mxu0 %v2266
      %2514 = vmatpush1.msra.mxu0 %v2265
      %2515 = vmatprep.subr.mxu0 %v2262
      %2516 = vmatpush1.msra.mxu0 %v2261
      %2517 = vmatprep.subr.mxu0 %v2386
      %2518 = vmatpush2.msra.mxu0 %v2385
      %2519 = vmatprep.subr.mxu0 %v2382
      %2520 = vmatpush2.msra.mxu0 %v2381
      %2521 = vmatprep.subr.mxu0 %v2378
      %2522 = vmatpush2.msra.mxu0 %v2377
      %2523 = vmatprep.subr.mxu0 %v2374
      %2524 = vmatpush2.msra.mxu0 %v2373
      %2525 = vmatprep.subr.mxu0 %v2370
      %2526 = vmatpush2.msra.mxu0 %v2369
      %2527 = vmatprep.subr.mxu0 %v2366
      %2528 = vmatpush2.msra.mxu0 %v2365
      %2529 = vmatprep.subr.mxu0 %v2362
      %2530 = vmatpush2.msra.mxu0 %v2361
      %2531 = vmatprep.subr.mxu0 %v2358
      %2532 = vmatpush2.msra.mxu0 %v2357
      %2533 = vmatprep.subr.mxu0 %v2354
      %2534 = vmatpush2.msra.mxu0 %v2353
      %2535 = vmatprep.subr.mxu0 %v2350
      %2536 = vmatpush2.msra.mxu0 %v2349
      %2537 = vmatprep.subr.mxu0 %v2346
      %2538 = vmatpush2.msra.mxu0 %v2345
      %2539 = vmatprep.subr.mxu0 %v2342
      %2540 = vmatpush2.msra.mxu0 %v2341
      %2541 = vmatprep.subr.mxu0 %v2338
      %2542 = vmatpush2.msra.mxu0 %v2337
      %2543 = vmatprep.subr.mxu0 %v2334
      %2544 = vmatpush2.msra.mxu0 %v2333
      %2545 = vmatprep.subr.mxu0 %v2330
      %2546 = vmatpush2.msra.mxu0 %v2329
      %2547 = vmatprep.subr.mxu0 %v2326
      %2548 = vmatpush2.msra.mxu0 %v2325
      %2549 = vmatprep.mubr.f32.mxu0 %v562
      %2550 = vmatmul.mubr.f32.gmra.mxu0 %v561
      %v2551 = vpop.f32.mrf.mxu0
      %v2552 = vadd.f32 %v2468, %v2551
      %v2553 = vpop.f32.mrf.mxu0
      %v2554 = vadd.f32 %v2472, %v2553
      %2555 = vmatprep.mubr.f32.mxu0 %v564
      %2556 = vmatmul.mubr.f32.gmra.mxu0 %v563
      %v2557 = vpop.f32.mrf.mxu0
      %v2558 = vadd.f32 %v2468, %v2557
      %v2559 = vpop.f32.mrf.mxu0
      %v2560 = vadd.f32 %v2472, %v2559
      %2561 = vdwg.mxu0
      %2562 = vmatprep.subr.mxu0 %v2324
      %2563 = vmatpush1.msra.mxu0 %v2323
      %2564 = vmatprep.subr.mxu0 %v2320
      %2565 = vmatpush1.msra.mxu0 %v2319
      %2566 = vmatprep.subr.mxu0 %v2316
      %2567 = vmatpush1.msra.mxu0 %v2315
      %2568 = vmatprep.subr.mxu0 %v2312
      %2569 = vmatpush1.msra.mxu0 %v2311
      %2570 = vmatprep.subr.mxu0 %v2308
      %2571 = vmatpush1.msra.mxu0 %v2307
      %2572 = vmatprep.subr.mxu0 %v2304
      %2573 = vmatpush1.msra.mxu0 %v2303
      %2574 = vmatprep.subr.mxu0 %v2300
      %2575 = vmatpush1.msra.mxu0 %v2299
      %2576 = vmatprep.subr.mxu0 %v2296
      %2577 = vmatpush1.msra.mxu0 %v2295
      %2578 = vmatprep.subr.mxu0 %v2292
      %2579 = vmatpush1.msra.mxu0 %v2291
      %2580 = vmatprep.subr.mxu0 %v2288
      %2581 = vmatpush1.msra.mxu0 %v2287
      %2582 = vmatprep.subr.mxu0 %v2284
      %2583 = vmatpush1.msra.mxu0 %v2283
      %2584 = vmatprep.subr.mxu0 %v2280
      %2585 = vmatpush1.msra.mxu0 %v2279
      %2586 = vmatprep.subr.mxu0 %v2276
      %2587 = vmatpush1.msra.mxu0 %v2275
      %2588 = vmatprep.subr.mxu0 %v2272
      %2589 = vmatpush1.msra.mxu0 %v2271
      %2590 = vmatprep.subr.mxu0 %v2268
      %2591 = vmatpush1.msra.mxu0 %v2267
      %2592 = vmatprep.subr.mxu0 %v2264
      %2593 = vmatpush1.msra.mxu0 %v2263
      %2594 = vmatprep.subr.mxu0 %v2388
      %2595 = vmatpush2.msra.mxu0 %v2387
      %2596 = vmatprep.subr.mxu0 %v2384
      %2597 = vmatpush2.msra.mxu0 %v2383
      %2598 = vmatprep.subr.mxu0 %v2380
      %2599 = vmatpush2.msra.mxu0 %v2379
      %2600 = vmatprep.subr.mxu0 %v2376
      %2601 = vmatpush2.msra.mxu0 %v2375
      %2602 = vmatprep.subr.mxu0 %v2372
      %2603 = vmatpush2.msra.mxu0 %v2371
      %2604 = vmatprep.subr.mxu0 %v2368
      %2605 = vmatpush2.msra.mxu0 %v2367
      %2606 = vmatprep.subr.mxu0 %v2364
      %2607 = vmatpush2.msra.mxu0 %v2363
      %2608 = vmatprep.subr.mxu0 %v2360
      %2609 = vmatpush2.msra.mxu0 %v2359
      %2610 = vmatprep.subr.mxu0 %v2356
      %2611 = vmatpush2.msra.mxu0 %v2355
      %2612 = vmatprep.subr.mxu0 %v2352
      %2613 = vmatpush2.msra.mxu0 %v2351
      %2614 = vmatprep.subr.mxu0 %v2348
      %2615 = vmatpush2.msra.mxu0 %v2347
      %2616 = vmatprep.subr.mxu0 %v2344
      %2617 = vmatpush2.msra.mxu0 %v2343
      %2618 = vmatprep.subr.mxu0 %v2340
      %2619 = vmatpush2.msra.mxu0 %v2339
      %2620 = vmatprep.subr.mxu0 %v2336
      %2621 = vmatpush2.msra.mxu0 %v2335
      %2622 = vmatprep.subr.mxu0 %v2332
      %2623 = vmatpush2.msra.mxu0 %v2331
      %2624 = vmatprep.subr.mxu0 %v2328
      %2625 = vmatpush2.msra.mxu0 %v2327
      %2626 = vmatprep.mubr.f32.mxu0 %v562
      %2627 = vmatmul.mubr.f32.gmra.mxu0 %v561
      %v2628 = vpop.f32.mrf.mxu0
      %v2629 = vadd.f32 %v2476, %v2628
      %v2630 = vpop.f32.mrf.mxu0
      %v2631 = vadd.f32 %v2480, %v2630
      %2632 = vmatprep.mubr.f32.mxu0 %v564
      %2633 = vmatmul.mubr.f32.gmra.mxu0 %v563
      %v2634 = vpop.f32.mrf.mxu0
      %v2635 = vadd.f32 %v2476, %v2634
      %v2636 = vpop.f32.mrf.mxu0
      %v2637 = vadd.f32 %v2480, %v2636
      %2638 = vdwg.mxu0
      %v2639 = vmax.f32 %v2552, 0.0
      %v2640 = vmax.f32 %v2554, 0.0
      %v2641 = vmax.f32 %v2629, 0.0
      %v2642 = vmax.f32 %v2631, 0.0
      %v2643 = vmax.f32 %v2558, 0.0
      %v2644 = vmax.f32 %v2560, 0.0
      %v2645 = vmax.f32 %v2635, 0.0
      %v2646 = vmax.f32 %v2637, 0.0
      %v2655 = vrot.slane %v2639, 7
      %v2656 = vrot.slane %v2640, 7
      %v2657 = vrot.slane %v2641, 7
      %v2658 = vrot.slane %v2642, 7
      %v2659 = vrot.slane %v2643, 7
      %v2660 = vsel %vm1027, %v2655, %v2659
      %v2661 = vrot.slane %v2644, 7
      %v2662 = vsel %vm1027, %v2656, %v2661
      %v2663 = vrot.slane %v2645, 7
      %v2664 = vsel %vm1027, %v2657, %v2663
      %v2665 = vrot.slane %v2646, 7
      %v2666 = vsel %vm1027, %v2658, %v2665
      %2667 = vrot.lane.b32.xlu0 %v2655, 32
      %v2668 = vpop.permute.xlu0 %2667
      %2669 = vrot.lane.b32.xlu0 %v2656, 32
      %v2670 = vpop.permute.xlu0 %2669
      %2671 = vrot.lane.b32.xlu0 %v2657, 32
      %v2672 = vpop.permute.xlu0 %2671
      %2673 = vrot.lane.b32.xlu0 %v2658, 32
      %v2674 = vpop.permute.xlu0 %2673
      %2675 = vrot.lane.b32.xlu0 %v2660, 32
      %v2676 = vpop.permute.xlu0 %2675
      %2677 = vrot.lane.b32.xlu0 %v2662, 32
      %v2678 = vpop.permute.xlu0 %2677
      %2679 = vrot.lane.b32.xlu0 %v2664, 32
      %v2680 = vpop.permute.xlu0 %2679
      %2681 = vrot.lane.b32.xlu0 %v2666, 32
      %v2682 = vpop.permute.xlu0 %2681
      %2683 = vrot.lane.b32.xlu0 %v2659, 32
      %v2684 = vpop.permute.xlu0 %2683
      %2685 = vrot.lane.b32.xlu0 %v2661, 32
      %v2686 = vpop.permute.xlu0 %2685
      %2687 = vrot.lane.b32.xlu0 %v2663, 32
      %v2688 = vpop.permute.xlu0 %2687
      %2689 = vrot.lane.b32.xlu0 %v2665, 32
      %v2690 = vpop.permute.xlu0 %2689
      %v2691 = vsel %vm1064, %v2668, %v2670
      %v2692 = vsel %vm1064, %v2670, %v2672
      %v2693 = vsel %vm1064, %v2672, %v2674
      %v2694 = vsel %vm1064, %v2676, %v2678
      %v2695 = vsel %vm1064, %v2678, %v2680
      %v2696 = vsel %vm1064, %v2680, %v2682
      %v2697 = vsel %vm1064, %v2684, %v2686
      %v2698 = vsel %vm1064, %v2686, %v2688
      %v2699 = vsel %vm1064, %v2688, %v2690
      %2715 = vst.msk [vmem:[#allocation2] sm:$0xfe] %vm1089, %v2668
      %2716 = vst [vmem:[#allocation2 + $0x8] sm:$0xfe] %v2691
      %2717 = vst [vmem:[#allocation2 + $0x10] sm:$0xfe] %v2692
      %2718 = vst [vmem:[#allocation2 + $0x18] sm:$0xfe] %v2693
      %2719 = vst.msk [vmem:[#allocation2 + $0x20] sm:$0xfe] %vm1094, %v2674
      %2720 = vst.msk [vmem:[#allocation2 + $0x28] sm:$0xff] %vm1096, %v2676
      %2721 = vst [vmem:[#allocation2 + $0x30] sm:$0xff] %v2694
      %2722 = vst [vmem:[#allocation2 + $0x38] sm:$0xff] %v2695
      %2723 = vst [vmem:[#allocation2 + $0x40] sm:$0xff] %v2696
      %2724 = vst.msk [vmem:[#allocation2 + $0x48] sm:$0xff] %vm1064, %v2682
      %2725 = vst.msk [vmem:[#allocation2 + $0x50] sm:$0x1] %vm1102, %v2684
      %2726 = vst [vmem:[#allocation2 + $0x58] sm:$0x1] %v2697
      %2727 = vst [vmem:[#allocation2 + $0x60] sm:$0x1] %v2698
      %2728 = vst [vmem:[#allocation2 + $0x68] sm:$0x1] %v2699
      %2729 = vst.msk [vmem:[#allocation2 + $0x70] sm:$0x1] %vm1107, %v2690
      %v2730 = vld [vmem:[#allocation2] sm:$0xff]
      %v2731 = vld [vmem:[#allocation2 + $0x8] sm:$0xff]
      %v2732 = vld [vmem:[#allocation2 + $0x10] sm:$0xff]
      %v2733 = vld [vmem:[#allocation2 + $0x18] sm:$0xff]
      %v2734 = vld [vmem:[#allocation2 + $0x20] sm:$0xff]
      %v2735 = vld [vmem:[#allocation2 + $0x28] sm:$0xff]
      %v2736 = vld [vmem:[#allocation2 + $0x30] sm:$0xff]
      %v2737 = vld [vmem:[#allocation2 + $0x38] sm:$0xff]
      %v2738 = vld [vmem:[#allocation2 + $0x40] sm:$0xff]
      %v2739 = vld [vmem:[#allocation2 + $0x48] sm:$0xff]
      %v2740 = vld [vmem:[#allocation2 + $0x50] sm:$0x3]
      %v2741 = vld [vmem:[#allocation2 + $0x58] sm:$0x3]
      %v2742 = vld [vmem:[#allocation2 + $0x60] sm:$0x3]
      %v2743 = vld [vmem:[#allocation2 + $0x68] sm:$0x3]
      %v2744 = vld [vmem:[#allocation2 + $0x70] sm:$0x3]
      %vm2745 = vcmask 146432
      %v2747 = vsel %vm2745, %v552, 0
      %vm2749 = vcmask 1041408
      %v2751 = vsel %vm2749, %v2740, 0
      %v2754 = vsel %vm2749, %v2741, 0
      %v2757 = vsel %vm2749, %v2742, 0
      %v2760 = vsel %vm2749, %v2743, 0
      %v2763 = vsel %vm2749, %v2744, 0
      %2765 = vmatprep.subr.mxu0 0.0
      %2766 = vmatpush1.msra.mxu0 0.0
      %2767 = vmatprep.subr.mxu0 0.0
      %2768 = vmatpush1.msra.mxu0 0.0
      %2769 = vmatprep.subr.mxu0 0.0
      %2770 = vmatpush1.msra.mxu0 0.0
      %2771 = vmatprep.subr.mxu0 0.0
      %2772 = vmatpush1.msra.mxu0 0.0
      %2773 = vmatprep.subr.mxu0 0.0
      %2774 = vmatpush1.msra.mxu0 0.0
      %2775 = vmatprep.subr.mxu0 0.0
      %2776 = vmatpush1.msra.mxu0 0.0
      %2777 = vmatprep.subr.mxu0 0.0
      %2778 = vmatpush1.msra.mxu0 0.0
      %2779 = vmatprep.subr.mxu0 0.0
      %2780 = vmatpush1.msra.mxu0 0.0
      %2781 = vmatprep.subr.mxu0 0.0
      %2782 = vmatpush1.msra.mxu0 0.0
      %2783 = vmatprep.subr.mxu0 0.0
      %2784 = vmatpush1.msra.mxu0 0.0
      %2785 = vmatprep.subr.mxu0 0.0
      %2786 = vmatpush1.msra.mxu0 0.0
      %2787 = vmatprep.subr.mxu0 0.0
      %2788 = vmatpush1.msra.mxu0 0.0
      %2789 = vmatprep.subr.mxu0 0.0
      %2790 = vmatpush1.msra.mxu0 0.0
      %2791 = vmatprep.subr.mxu0 %v2754
      %2792 = vmatpush1.msra.mxu0 %v2751
      %2793 = vmatprep.subr.mxu0 %v2736
      %2794 = vmatpush1.msra.mxu0 %v2735
      %2795 = vmatprep.subr.mxu0 %v2731
      %2796 = vmatpush1.msra.mxu0 %v2730
      %2797 = vmatprep.subr.mxu0 0.0
      %2798 = vmatpush2.msra.mxu0 0.0
      %2799 = vmatprep.subr.mxu0 0.0
      %2800 = vmatpush2.msra.mxu0 0.0
      %2801 = vmatprep.subr.mxu0 0.0
      %2802 = vmatpush2.msra.mxu0 0.0
      %2803 = vmatprep.subr.mxu0 0.0
      %2804 = vmatpush2.msra.mxu0 0.0
      %2805 = vmatprep.subr.mxu0 0.0
      %2806 = vmatpush2.msra.mxu0 0.0
      %2807 = vmatprep.subr.mxu0 0.0
      %2808 = vmatpush2.msra.mxu0 0.0
      %2809 = vmatprep.subr.mxu0 0.0
      %2810 = vmatpush2.msra.mxu0 0.0
      %2811 = vmatprep.subr.mxu0 0.0
      %2812 = vmatpush2.msra.mxu0 0.0
      %2813 = vmatprep.subr.mxu0 0.0
      %2814 = vmatpush2.msra.mxu0 0.0
      %2815 = vmatprep.subr.mxu0 0.0
      %2816 = vmatpush2.msra.mxu0 0.0
      %2817 = vmatprep.subr.mxu0 0.0
      %2818 = vmatpush2.msra.mxu0 0.0
      %2819 = vmatprep.subr.mxu0 0.0
      %2820 = vmatpush2.msra.mxu0 0.0
      %2821 = vmatprep.subr.mxu0 0.0
      %2822 = vmatpush2.msra.mxu0 0.0
      %2823 = vmatprep.subr.mxu0 0.0
      %2824 = vmatpush2.msra.mxu0 0.0
      %2825 = vmatprep.subr.mxu0 0.0
      %2826 = vmatpush2.msra.mxu0 0.0
      %2827 = vmatprep.subr.mxu0 0.0
      %2828 = vmatpush2.msra.mxu0 0.0
      %2829 = vmatprep.mubr.f32.mxu0 0.0
      %2830 = vmatmul.mubr.f32.gmra.mxu0 %v2747
      %v2831 = vpop.f32.mrf.mxu0
      %v2832 = vadd.f32 0.0, %v2831
      %v2833 = vpop.f32.mrf.mxu0
      %v2834 = vadd.f32 0.0, %v2833
      %2835 = vdwg.mxu0
      %2836 = vmatprep.subr.mxu0 0.0
      %2837 = vmatpush1.msra.mxu0 0.0
      %2838 = vmatprep.subr.mxu0 0.0
      %2839 = vmatpush1.msra.mxu0 0.0
      %2840 = vmatprep.subr.mxu0 0.0
      %2841 = vmatpush1.msra.mxu0 0.0
      %2842 = vmatprep.subr.mxu0 0.0
      %2843 = vmatpush1.msra.mxu0 0.0
      %2844 = vmatprep.subr.mxu0 0.0
      %2845 = vmatpush1.msra.mxu0 0.0
      %2846 = vmatprep.subr.mxu0 0.0
      %2847 = vmatpush1.msra.mxu0 0.0
      %2848 = vmatprep.subr.mxu0 0.0
      %2849 = vmatpush1.msra.mxu0 0.0
      %2850 = vmatprep.subr.mxu0 0.0
      %2851 = vmatpush1.msra.mxu0 0.0
      %2852 = vmatprep.subr.mxu0 0.0
      %2853 = vmatpush1.msra.mxu0 0.0
      %2854 = vmatprep.subr.mxu0 0.0
      %2855 = vmatpush1.msra.mxu0 0.0
      %2856 = vmatprep.subr.mxu0 0.0
      %2857 = vmatpush1.msra.mxu0 0.0
      %2858 = vmatprep.subr.mxu0 0.0
      %2859 = vmatpush1.msra.mxu0 0.0
      %2860 = vmatprep.subr.mxu0 0.0
      %2861 = vmatpush1.msra.mxu0 0.0
      %2862 = vmatprep.subr.mxu0 %v2760
      %2863 = vmatpush1.msra.mxu0 %v2757
      %2864 = vmatprep.subr.mxu0 %v2738
      %2865 = vmatpush1.msra.mxu0 %v2737
      %2866 = vmatprep.subr.mxu0 %v2733
      %2867 = vmatpush1.msra.mxu0 %v2732
      %2868 = vmatprep.subr.mxu0 0.0
      %2869 = vmatpush2.msra.mxu0 0.0
      %2870 = vmatprep.subr.mxu0 0.0
      %2871 = vmatpush2.msra.mxu0 0.0
      %2872 = vmatprep.subr.mxu0 0.0
      %2873 = vmatpush2.msra.mxu0 0.0
      %2874 = vmatprep.subr.mxu0 0.0
      %2875 = vmatpush2.msra.mxu0 0.0
      %2876 = vmatprep.subr.mxu0 0.0
      %2877 = vmatpush2.msra.mxu0 0.0
      %2878 = vmatprep.subr.mxu0 0.0
      %2879 = vmatpush2.msra.mxu0 0.0
      %2880 = vmatprep.subr.mxu0 0.0
      %2881 = vmatpush2.msra.mxu0 0.0
      %2882 = vmatprep.subr.mxu0 0.0
      %2883 = vmatpush2.msra.mxu0 0.0
      %2884 = vmatprep.subr.mxu0 0.0
      %2885 = vmatpush2.msra.mxu0 0.0
      %2886 = vmatprep.subr.mxu0 0.0
      %2887 = vmatpush2.msra.mxu0 0.0
      %2888 = vmatprep.subr.mxu0 0.0
      %2889 = vmatpush2.msra.mxu0 0.0
      %2890 = vmatprep.subr.mxu0 0.0
      %2891 = vmatpush2.msra.mxu0 0.0
      %2892 = vmatprep.subr.mxu0 0.0
      %2893 = vmatpush2.msra.mxu0 0.0
      %2894 = vmatprep.subr.mxu0 0.0
      %2895 = vmatpush2.msra.mxu0 0.0
      %2896 = vmatprep.subr.mxu0 0.0
      %2897 = vmatpush2.msra.mxu0 0.0
      %2898 = vmatprep.subr.mxu0 0.0
      %2899 = vmatpush2.msra.mxu0 0.0
      %2900 = vmatprep.mubr.f32.mxu0 0.0
      %2901 = vmatmul.mubr.f32.gmra.mxu0 %v2747
      %v2902 = vpop.f32.mrf.mxu0
      %v2903 = vadd.f32 0.0, %v2902
      %v2904 = vpop.f32.mrf.mxu0
      %v2905 = vadd.f32 0.0, %v2904
      %2906 = vdwg.mxu0
      %2907 = vmatprep.subr.mxu0 0.0
      %2908 = vmatpush1.msra.mxu0 0.0
      %2909 = vmatprep.subr.mxu0 0.0
      %2910 = vmatpush1.msra.mxu0 0.0
      %2911 = vmatprep.subr.mxu0 0.0
      %2912 = vmatpush1.msra.mxu0 0.0
      %2913 = vmatprep.subr.mxu0 0.0
      %2914 = vmatpush1.msra.mxu0 0.0
      %2915 = vmatprep.subr.mxu0 0.0
      %2916 = vmatpush1.msra.mxu0 0.0
      %2917 = vmatprep.subr.mxu0 0.0
      %2918 = vmatpush1.msra.mxu0 0.0
      %2919 = vmatprep.subr.mxu0 0.0
      %2920 = vmatpush1.msra.mxu0 0.0
      %2921 = vmatprep.subr.mxu0 0.0
      %2922 = vmatpush1.msra.mxu0 0.0
      %2923 = vmatprep.subr.mxu0 0.0
      %2924 = vmatpush1.msra.mxu0 0.0
      %2925 = vmatprep.subr.mxu0 0.0
      %2926 = vmatpush1.msra.mxu0 0.0
      %2927 = vmatprep.subr.mxu0 0.0
      %2928 = vmatpush1.msra.mxu0 0.0
      %2929 = vmatprep.subr.mxu0 0.0
      %2930 = vmatpush1.msra.mxu0 0.0
      %2931 = vmatprep.subr.mxu0 0.0
      %2932 = vmatpush1.msra.mxu0 0.0
      %2933 = vmatprep.subr.mxu0 0.0
      %2934 = vmatpush1.msra.mxu0 %v2763
      %2935 = vmatprep.subr.mxu0 0.0
      %2936 = vmatpush1.msra.mxu0 %v2739
      %2937 = vmatprep.subr.mxu0 0.0
      %2938 = vmatpush1.msra.mxu0 %v2734
      %2939 = vmatprep.subr.mxu0 0.0
      %2940 = vmatpush2.msra.mxu0 0.0
      %2941 = vmatprep.subr.mxu0 0.0
      %2942 = vmatpush2.msra.mxu0 0.0
      %2943 = vmatprep.subr.mxu0 0.0
      %2944 = vmatpush2.msra.mxu0 0.0
      %2945 = vmatprep.subr.mxu0 0.0
      %2946 = vmatpush2.msra.mxu0 0.0
      %2947 = vmatprep.subr.mxu0 0.0
      %2948 = vmatpush2.msra.mxu0 0.0
      %2949 = vmatprep.subr.mxu0 0.0
      %2950 = vmatpush2.msra.mxu0 0.0
      %2951 = vmatprep.subr.mxu0 0.0
      %2952 = vmatpush2.msra.mxu0 0.0
      %2953 = vmatprep.subr.mxu0 0.0
      %2954 = vmatpush2.msra.mxu0 0.0
      %2955 = vmatprep.subr.mxu0 0.0
      %2956 = vmatpush2.msra.mxu0 0.0
      %2957 = vmatprep.subr.mxu0 0.0
      %2958 = vmatpush2.msra.mxu0 0.0
      %2959 = vmatprep.subr.mxu0 0.0
      %2960 = vmatpush2.msra.mxu0 0.0
      %2961 = vmatprep.subr.mxu0 0.0
      %2962 = vmatpush2.msra.mxu0 0.0
      %2963 = vmatprep.subr.mxu0 0.0
      %2964 = vmatpush2.msra.mxu0 0.0
      %2965 = vmatprep.subr.mxu0 0.0
      %2966 = vmatpush2.msra.mxu0 0.0
      %2967 = vmatprep.subr.mxu0 0.0
      %2968 = vmatpush2.msra.mxu0 0.0
      %2969 = vmatprep.subr.mxu0 0.0
      %2970 = vmatpush2.msra.mxu0 0.0
      %2971 = vmatprep.mubr.f32.mxu0 0.0
      %2972 = vmatmul.mubr.f32.gmra.mxu0 %v2747
      %v2973 = vpop.f32.mrf.mxu0
      %v2974 = vadd.f32 0.0, %v2973
      %v2975 = vpop.f32.mrf.mxu0
      %2976 = vdwg.mxu0
      %v2978 = vsel %vm2745, %v556, 0
      %2980 = vmatprep.subr.mxu0 0.0
      %2981 = vmatpush1.msra.mxu0 0.0
      %2982 = vmatprep.subr.mxu0 0.0
      %2983 = vmatpush1.msra.mxu0 0.0
      %2984 = vmatprep.subr.mxu0 0.0
      %2985 = vmatpush1.msra.mxu0 0.0
      %2986 = vmatprep.subr.mxu0 0.0
      %2987 = vmatpush1.msra.mxu0 0.0
      %2988 = vmatprep.subr.mxu0 0.0
      %2989 = vmatpush1.msra.mxu0 0.0
      %2990 = vmatprep.subr.mxu0 0.0
      %2991 = vmatpush1.msra.mxu0 0.0
      %2992 = vmatprep.subr.mxu0 0.0
      %2993 = vmatpush1.msra.mxu0 0.0
      %2994 = vmatprep.subr.mxu0 0.0
      %2995 = vmatpush1.msra.mxu0 0.0
      %2996 = vmatprep.subr.mxu0 0.0
      %2997 = vmatpush1.msra.mxu0 0.0
      %2998 = vmatprep.subr.mxu0 0.0
      %2999 = vmatpush1.msra.mxu0 0.0
      %3000 = vmatprep.subr.mxu0 0.0
      %3001 = vmatpush1.msra.mxu0 0.0
      %3002 = vmatprep.subr.mxu0 0.0
      %3003 = vmatpush1.msra.mxu0 0.0
      %3004 = vmatprep.subr.mxu0 0.0
      %3005 = vmatpush1.msra.mxu0 0.0
      %3006 = vmatprep.subr.mxu0 %v2754
      %3007 = vmatpush1.msra.mxu0 %v2751
      %3008 = vmatprep.subr.mxu0 %v2736
      %3009 = vmatpush1.msra.mxu0 %v2735
      %3010 = vmatprep.subr.mxu0 %v2731
      %3011 = vmatpush1.msra.mxu0 %v2730
      %3012 = vmatprep.subr.mxu0 0.0
      %3013 = vmatpush2.msra.mxu0 0.0
      %3014 = vmatprep.subr.mxu0 0.0
      %3015 = vmatpush2.msra.mxu0 0.0
      %3016 = vmatprep.subr.mxu0 0.0
      %3017 = vmatpush2.msra.mxu0 0.0
      %3018 = vmatprep.subr.mxu0 0.0
      %3019 = vmatpush2.msra.mxu0 0.0
      %3020 = vmatprep.subr.mxu0 0.0
      %3021 = vmatpush2.msra.mxu0 0.0
      %3022 = vmatprep.subr.mxu0 0.0
      %3023 = vmatpush2.msra.mxu0 0.0
      %3024 = vmatprep.subr.mxu0 0.0
      %3025 = vmatpush2.msra.mxu0 0.0
      %3026 = vmatprep.subr.mxu0 0.0
      %3027 = vmatpush2.msra.mxu0 0.0
      %3028 = vmatprep.subr.mxu0 0.0
      %3029 = vmatpush2.msra.mxu0 0.0
      %3030 = vmatprep.subr.mxu0 0.0
      %3031 = vmatpush2.msra.mxu0 0.0
      %3032 = vmatprep.subr.mxu0 0.0
      %3033 = vmatpush2.msra.mxu0 0.0
      %3034 = vmatprep.subr.mxu0 0.0
      %3035 = vmatpush2.msra.mxu0 0.0
      %3036 = vmatprep.subr.mxu0 0.0
      %3037 = vmatpush2.msra.mxu0 0.0
      %3038 = vmatprep.subr.mxu0 0.0
      %3039 = vmatpush2.msra.mxu0 0.0
      %3040 = vmatprep.subr.mxu0 0.0
      %3041 = vmatpush2.msra.mxu0 0.0
      %3042 = vmatprep.subr.mxu0 0.0
      %3043 = vmatpush2.msra.mxu0 0.0
      %3044 = vmatprep.mubr.f32.mxu0 0.0
      %3045 = vmatmul.mubr.f32.gmra.mxu0 %v2978
      %v3046 = vpop.f32.mrf.mxu0
      %v3047 = vadd.f32 0.0, %v3046
      %v3048 = vpop.f32.mrf.mxu0
      %v3049 = vadd.f32 0.0, %v3048
      %3050 = vdwg.mxu0
      %3051 = vmatprep.subr.mxu0 0.0
      %3052 = vmatpush1.msra.mxu0 0.0
      %3053 = vmatprep.subr.mxu0 0.0
      %3054 = vmatpush1.msra.mxu0 0.0
      %3055 = vmatprep.subr.mxu0 0.0
      %3056 = vmatpush1.msra.mxu0 0.0
      %3057 = vmatprep.subr.mxu0 0.0
      %3058 = vmatpush1.msra.mxu0 0.0
      %3059 = vmatprep.subr.mxu0 0.0
      %3060 = vmatpush1.msra.mxu0 0.0
      %3061 = vmatprep.subr.mxu0 0.0
      %3062 = vmatpush1.msra.mxu0 0.0
      %3063 = vmatprep.subr.mxu0 0.0
      %3064 = vmatpush1.msra.mxu0 0.0
      %3065 = vmatprep.subr.mxu0 0.0
      %3066 = vmatpush1.msra.mxu0 0.0
      %3067 = vmatprep.subr.mxu0 0.0
      %3068 = vmatpush1.msra.mxu0 0.0
      %3069 = vmatprep.subr.mxu0 0.0
      %3070 = vmatpush1.msra.mxu0 0.0
      %3071 = vmatprep.subr.mxu0 0.0
      %3072 = vmatpush1.msra.mxu0 0.0
      %3073 = vmatprep.subr.mxu0 0.0
      %3074 = vmatpush1.msra.mxu0 0.0
      %3075 = vmatprep.subr.mxu0 0.0
      %3076 = vmatpush1.msra.mxu0 0.0
      %3077 = vmatprep.subr.mxu0 %v2760
      %3078 = vmatpush1.msra.mxu0 %v2757
      %3079 = vmatprep.subr.mxu0 %v2738
      %3080 = vmatpush1.msra.mxu0 %v2737
      %3081 = vmatprep.subr.mxu0 %v2733
      %3082 = vmatpush1.msra.mxu0 %v2732
      %3083 = vmatprep.subr.mxu0 0.0
      %3084 = vmatpush2.msra.mxu0 0.0
      %3085 = vmatprep.subr.mxu0 0.0
      %3086 = vmatpush2.msra.mxu0 0.0
      %3087 = vmatprep.subr.mxu0 0.0
      %3088 = vmatpush2.msra.mxu0 0.0
      %3089 = vmatprep.subr.mxu0 0.0
      %3090 = vmatpush2.msra.mxu0 0.0
      %3091 = vmatprep.subr.mxu0 0.0
      %3092 = vmatpush2.msra.mxu0 0.0
      %3093 = vmatprep.subr.mxu0 0.0
      %3094 = vmatpush2.msra.mxu0 0.0
      %3095 = vmatprep.subr.mxu0 0.0
      %3096 = vmatpush2.msra.mxu0 0.0
      %3097 = vmatprep.subr.mxu0 0.0
      %3098 = vmatpush2.msra.mxu0 0.0
      %3099 = vmatprep.subr.mxu0 0.0
      %3100 = vmatpush2.msra.mxu0 0.0
      %3101 = vmatprep.subr.mxu0 0.0
      %3102 = vmatpush2.msra.mxu0 0.0
      %3103 = vmatprep.subr.mxu0 0.0
      %3104 = vmatpush2.msra.mxu0 0.0
      %3105 = vmatprep.subr.mxu0 0.0
      %3106 = vmatpush2.msra.mxu0 0.0
      %3107 = vmatprep.subr.mxu0 0.0
      %3108 = vmatpush2.msra.mxu0 0.0
      %3109 = vmatprep.subr.mxu0 0.0
      %3110 = vmatpush2.msra.mxu0 0.0
      %3111 = vmatprep.subr.mxu0 0.0
      %3112 = vmatpush2.msra.mxu0 0.0
      %3113 = vmatprep.subr.mxu0 0.0
      %3114 = vmatpush2.msra.mxu0 0.0
      %3115 = vmatprep.mubr.f32.mxu0 0.0
      %3116 = vmatmul.mubr.f32.gmra.mxu0 %v2978
      %v3117 = vpop.f32.mrf.mxu0
      %v3118 = vadd.f32 0.0, %v3117
      %v3119 = vpop.f32.mrf.mxu0
      %v3120 = vadd.f32 0.0, %v3119
      %3121 = vdwg.mxu0
      %3122 = vmatprep.subr.mxu0 0.0
      %3123 = vmatpush1.msra.mxu0 0.0
      %3124 = vmatprep.subr.mxu0 0.0
      %3125 = vmatpush1.msra.mxu0 0.0
      %3126 = vmatprep.subr.mxu0 0.0
      %3127 = vmatpush1.msra.mxu0 0.0
      %3128 = vmatprep.subr.mxu0 0.0
      %3129 = vmatpush1.msra.mxu0 0.0
      %3130 = vmatprep.subr.mxu0 0.0
      %3131 = vmatpush1.msra.mxu0 0.0
      %3132 = vmatprep.subr.mxu0 0.0
      %3133 = vmatpush1.msra.mxu0 0.0
      %3134 = vmatprep.subr.mxu0 0.0
      %3135 = vmatpush1.msra.mxu0 0.0
      %3136 = vmatprep.subr.mxu0 0.0
      %3137 = vmatpush1.msra.mxu0 0.0
      %3138 = vmatprep.subr.mxu0 0.0
      %3139 = vmatpush1.msra.mxu0 0.0
      %3140 = vmatprep.subr.mxu0 0.0
      %3141 = vmatpush1.msra.mxu0 0.0
      %3142 = vmatprep.subr.mxu0 0.0
      %3143 = vmatpush1.msra.mxu0 0.0
      %3144 = vmatprep.subr.mxu0 0.0
      %3145 = vmatpush1.msra.mxu0 0.0
      %3146 = vmatprep.subr.mxu0 0.0
      %3147 = vmatpush1.msra.mxu0 0.0
      %3148 = vmatprep.subr.mxu0 0.0
      %3149 = vmatpush1.msra.mxu0 %v2763
      %3150 = vmatprep.subr.mxu0 0.0
      %3151 = vmatpush1.msra.mxu0 %v2739
      %3152 = vmatprep.subr.mxu0 0.0
      %3153 = vmatpush1.msra.mxu0 %v2734
      %3154 = vmatprep.subr.mxu0 0.0
      %3155 = vmatpush2.msra.mxu0 0.0
      %3156 = vmatprep.subr.mxu0 0.0
      %3157 = vmatpush2.msra.mxu0 0.0
      %3158 = vmatprep.subr.mxu0 0.0
      %3159 = vmatpush2.msra.mxu0 0.0
      %3160 = vmatprep.subr.mxu0 0.0
      %3161 = vmatpush2.msra.mxu0 0.0
      %3162 = vmatprep.subr.mxu0 0.0
      %3163 = vmatpush2.msra.mxu0 0.0
      %3164 = vmatprep.subr.mxu0 0.0
      %3165 = vmatpush2.msra.mxu0 0.0
      %3166 = vmatprep.subr.mxu0 0.0
      %3167 = vmatpush2.msra.mxu0 0.0
      %3168 = vmatprep.subr.mxu0 0.0
      %3169 = vmatpush2.msra.mxu0 0.0
      %3170 = vmatprep.subr.mxu0 0.0
      %3171 = vmatpush2.msra.mxu0 0.0
      %3172 = vmatprep.subr.mxu0 0.0
      %3173 = vmatpush2.msra.mxu0 0.0
      %3174 = vmatprep.subr.mxu0 0.0
      %3175 = vmatpush2.msra.mxu0 0.0
      %3176 = vmatprep.subr.mxu0 0.0
      %3177 = vmatpush2.msra.mxu0 0.0
      %3178 = vmatprep.subr.mxu0 0.0
      %3179 = vmatpush2.msra.mxu0 0.0
      %3180 = vmatprep.subr.mxu0 0.0
      %3181 = vmatpush2.msra.mxu0 0.0
      %3182 = vmatprep.subr.mxu0 0.0
      %3183 = vmatpush2.msra.mxu0 0.0
      %3184 = vmatprep.subr.mxu0 0.0
      %3185 = vmatpush2.msra.mxu0 0.0
      %3186 = vmatprep.mubr.f32.mxu0 0.0
      %3187 = vmatmul.mubr.f32.gmra.mxu0 %v2978
      %v3188 = vpop.f32.mrf.mxu0
      %v3189 = vadd.f32 0.0, %v3188
      %v3190 = vpop.f32.mrf.mxu0
      %3191 = vdwg.mxu0
      %v3193 = vsel %vm2745, %v560, 0
      %3195 = vmatprep.subr.mxu0 0.0
      %3196 = vmatpush1.msra.mxu0 0.0
      %3197 = vmatprep.subr.mxu0 0.0
      %3198 = vmatpush1.msra.mxu0 0.0
      %3199 = vmatprep.subr.mxu0 0.0
      %3200 = vmatpush1.msra.mxu0 0.0
      %3201 = vmatprep.subr.mxu0 0.0
      %3202 = vmatpush1.msra.mxu0 0.0
      %3203 = vmatprep.subr.mxu0 0.0
      %3204 = vmatpush1.msra.mxu0 0.0
      %3205 = vmatprep.subr.mxu0 0.0
      %3206 = vmatpush1.msra.mxu0 0.0
      %3207 = vmatprep.subr.mxu0 0.0
      %3208 = vmatpush1.msra.mxu0 0.0
      %3209 = vmatprep.subr.mxu0 0.0
      %3210 = vmatpush1.msra.mxu0 0.0
      %3211 = vmatprep.subr.mxu0 0.0
      %3212 = vmatpush1.msra.mxu0 0.0
      %3213 = vmatprep.subr.mxu0 0.0
      %3214 = vmatpush1.msra.mxu0 0.0
      %3215 = vmatprep.subr.mxu0 0.0
      %3216 = vmatpush1.msra.mxu0 0.0
      %3217 = vmatprep.subr.mxu0 0.0
      %3218 = vmatpush1.msra.mxu0 0.0
      %3219 = vmatprep.subr.mxu0 0.0
      %3220 = vmatpush1.msra.mxu0 0.0
      %3221 = vmatprep.subr.mxu0 %v2754
      %3222 = vmatpush1.msra.mxu0 %v2751
      %3223 = vmatprep.subr.mxu0 %v2736
      %3224 = vmatpush1.msra.mxu0 %v2735
      %3225 = vmatprep.subr.mxu0 %v2731
      %3226 = vmatpush1.msra.mxu0 %v2730
      %3227 = vmatprep.subr.mxu0 0.0
      %3228 = vmatpush2.msra.mxu0 0.0
      %3229 = vmatprep.subr.mxu0 0.0
      %3230 = vmatpush2.msra.mxu0 0.0
      %3231 = vmatprep.subr.mxu0 0.0
      %3232 = vmatpush2.msra.mxu0 0.0
      %3233 = vmatprep.subr.mxu0 0.0
      %3234 = vmatpush2.msra.mxu0 0.0
      %3235 = vmatprep.subr.mxu0 0.0
      %3236 = vmatpush2.msra.mxu0 0.0
      %3237 = vmatprep.subr.mxu0 0.0
      %3238 = vmatpush2.msra.mxu0 0.0
      %3239 = vmatprep.subr.mxu0 0.0
      %3240 = vmatpush2.msra.mxu0 0.0
      %3241 = vmatprep.subr.mxu0 0.0
      %3242 = vmatpush2.msra.mxu0 0.0
      %3243 = vmatprep.subr.mxu0 0.0
      %3244 = vmatpush2.msra.mxu0 0.0
      %3245 = vmatprep.subr.mxu0 0.0
      %3246 = vmatpush2.msra.mxu0 0.0
      %3247 = vmatprep.subr.mxu0 0.0
      %3248 = vmatpush2.msra.mxu0 0.0
      %3249 = vmatprep.subr.mxu0 0.0
      %3250 = vmatpush2.msra.mxu0 0.0
      %3251 = vmatprep.subr.mxu0 0.0
      %3252 = vmatpush2.msra.mxu0 0.0
      %3253 = vmatprep.subr.mxu0 0.0
      %3254 = vmatpush2.msra.mxu0 0.0
      %3255 = vmatprep.subr.mxu0 0.0
      %3256 = vmatpush2.msra.mxu0 0.0
      %3257 = vmatprep.subr.mxu0 0.0
      %3258 = vmatpush2.msra.mxu0 0.0
      %3259 = vmatprep.mubr.f32.mxu0 0.0
      %3260 = vmatmul.mubr.f32.gmra.mxu0 %v3193
      %v3261 = vpop.f32.mrf.mxu0
      %v3262 = vadd.f32 0.0, %v3261
      %v3263 = vpop.f32.mrf.mxu0
      %v3264 = vadd.f32 0.0, %v3263
      %3265 = vdwg.mxu0
      %3266 = vmatprep.subr.mxu0 0.0
      %3267 = vmatpush1.msra.mxu0 0.0
      %3268 = vmatprep.subr.mxu0 0.0
      %3269 = vmatpush1.msra.mxu0 0.0
      %3270 = vmatprep.subr.mxu0 0.0
      %3271 = vmatpush1.msra.mxu0 0.0
      %3272 = vmatprep.subr.mxu0 0.0
      %3273 = vmatpush1.msra.mxu0 0.0
      %3274 = vmatprep.subr.mxu0 0.0
      %3275 = vmatpush1.msra.mxu0 0.0
      %3276 = vmatprep.subr.mxu0 0.0
      %3277 = vmatpush1.msra.mxu0 0.0
      %3278 = vmatprep.subr.mxu0 0.0
      %3279 = vmatpush1.msra.mxu0 0.0
      %3280 = vmatprep.subr.mxu0 0.0
      %3281 = vmatpush1.msra.mxu0 0.0
      %3282 = vmatprep.subr.mxu0 0.0
      %3283 = vmatpush1.msra.mxu0 0.0
      %3284 = vmatprep.subr.mxu0 0.0
      %3285 = vmatpush1.msra.mxu0 0.0
      %3286 = vmatprep.subr.mxu0 0.0
      %3287 = vmatpush1.msra.mxu0 0.0
      %3288 = vmatprep.subr.mxu0 0.0
      %3289 = vmatpush1.msra.mxu0 0.0
      %3290 = vmatprep.subr.mxu0 0.0
      %3291 = vmatpush1.msra.mxu0 0.0
      %3292 = vmatprep.subr.mxu0 %v2760
      %3293 = vmatpush1.msra.mxu0 %v2757
      %3294 = vmatprep.subr.mxu0 %v2738
      %3295 = vmatpush1.msra.mxu0 %v2737
      %3296 = vmatprep.subr.mxu0 %v2733
      %3297 = vmatpush1.msra.mxu0 %v2732
      %3298 = vmatprep.subr.mxu0 0.0
      %3299 = vmatpush2.msra.mxu0 0.0
      %3300 = vmatprep.subr.mxu0 0.0
      %3301 = vmatpush2.msra.mxu0 0.0
      %3302 = vmatprep.subr.mxu0 0.0
      %3303 = vmatpush2.msra.mxu0 0.0
      %3304 = vmatprep.subr.mxu0 0.0
      %3305 = vmatpush2.msra.mxu0 0.0
      %3306 = vmatprep.subr.mxu0 0.0
      %3307 = vmatpush2.msra.mxu0 0.0
      %3308 = vmatprep.subr.mxu0 0.0
      %3309 = vmatpush2.msra.mxu0 0.0
      %3310 = vmatprep.subr.mxu0 0.0
      %3311 = vmatpush2.msra.mxu0 0.0
      %3312 = vmatprep.subr.mxu0 0.0
      %3313 = vmatpush2.msra.mxu0 0.0
      %3314 = vmatprep.subr.mxu0 0.0
      %3315 = vmatpush2.msra.mxu0 0.0
      %3316 = vmatprep.subr.mxu0 0.0
      %3317 = vmatpush2.msra.mxu0 0.0
      %3318 = vmatprep.subr.mxu0 0.0
      %3319 = vmatpush2.msra.mxu0 0.0
      %3320 = vmatprep.subr.mxu0 0.0
      %3321 = vmatpush2.msra.mxu0 0.0
      %3322 = vmatprep.subr.mxu0 0.0
      %3323 = vmatpush2.msra.mxu0 0.0
      %3324 = vmatprep.subr.mxu0 0.0
      %3325 = vmatpush2.msra.mxu0 0.0
      %3326 = vmatprep.subr.mxu0 0.0
      %3327 = vmatpush2.msra.mxu0 0.0
      %3328 = vmatprep.subr.mxu0 0.0
      %3329 = vmatpush2.msra.mxu0 0.0
      %3330 = vmatprep.mubr.f32.mxu0 0.0
      %3331 = vmatmul.mubr.f32.gmra.mxu0 %v3193
      %v3332 = vpop.f32.mrf.mxu0
      %v3333 = vadd.f32 0.0, %v3332
      %v3334 = vpop.f32.mrf.mxu0
      %v3335 = vadd.f32 0.0, %v3334
      %3336 = vdwg.mxu0
      %3337 = vmatprep.subr.mxu0 0.0
      %3338 = vmatpush1.msra.mxu0 0.0
      %3339 = vmatprep.subr.mxu0 0.0
      %3340 = vmatpush1.msra.mxu0 0.0
      %3341 = vmatprep.subr.mxu0 0.0
      %3342 = vmatpush1.msra.mxu0 0.0
      %3343 = vmatprep.subr.mxu0 0.0
      %3344 = vmatpush1.msra.mxu0 0.0
      %3345 = vmatprep.subr.mxu0 0.0
      %3346 = vmatpush1.msra.mxu0 0.0
      %3347 = vmatprep.subr.mxu0 0.0
      %3348 = vmatpush1.msra.mxu0 0.0
      %3349 = vmatprep.subr.mxu0 0.0
      %3350 = vmatpush1.msra.mxu0 0.0
      %3351 = vmatprep.subr.mxu0 0.0
      %3352 = vmatpush1.msra.mxu0 0.0
      %3353 = vmatprep.subr.mxu0 0.0
      %3354 = vmatpush1.msra.mxu0 0.0
      %3355 = vmatprep.subr.mxu0 0.0
      %3356 = vmatpush1.msra.mxu0 0.0
      %3357 = vmatprep.subr.mxu0 0.0
      %3358 = vmatpush1.msra.mxu0 0.0
      %3359 = vmatprep.subr.mxu0 0.0
      %3360 = vmatpush1.msra.mxu0 0.0
      %3361 = vmatprep.subr.mxu0 0.0
      %3362 = vmatpush1.msra.mxu0 0.0
      %3363 = vmatprep.subr.mxu0 0.0
      %3364 = vmatpush1.msra.mxu0 %v2763
      %3365 = vmatprep.subr.mxu0 0.0
      %3366 = vmatpush1.msra.mxu0 %v2739
      %3367 = vmatprep.subr.mxu0 0.0
      %3368 = vmatpush1.msra.mxu0 %v2734
      %3369 = vmatprep.subr.mxu0 0.0
      %3370 = vmatpush2.msra.mxu0 0.0
      %3371 = vmatprep.subr.mxu0 0.0
      %3372 = vmatpush2.msra.mxu0 0.0
      %3373 = vmatprep.subr.mxu0 0.0
      %3374 = vmatpush2.msra.mxu0 0.0
      %3375 = vmatprep.subr.mxu0 0.0
      %3376 = vmatpush2.msra.mxu0 0.0
      %3377 = vmatprep.subr.mxu0 0.0
      %3378 = vmatpush2.msra.mxu0 0.0
      %3379 = vmatprep.subr.mxu0 0.0
      %3380 = vmatpush2.msra.mxu0 0.0
      %3381 = vmatprep.subr.mxu0 0.0
      %3382 = vmatpush2.msra.mxu0 0.0
      %3383 = vmatprep.subr.mxu0 0.0
      %3384 = vmatpush2.msra.mxu0 0.0
      %3385 = vmatprep.subr.mxu0 0.0
      %3386 = vmatpush2.msra.mxu0 0.0
      %3387 = vmatprep.subr.mxu0 0.0
      %3388 = vmatpush2.msra.mxu0 0.0
      %3389 = vmatprep.subr.mxu0 0.0
      %3390 = vmatpush2.msra.mxu0 0.0
      %3391 = vmatprep.subr.mxu0 0.0
      %3392 = vmatpush2.msra.mxu0 0.0
      %3393 = vmatprep.subr.mxu0 0.0
      %3394 = vmatpush2.msra.mxu0 0.0
      %3395 = vmatprep.subr.mxu0 0.0
      %3396 = vmatpush2.msra.mxu0 0.0
      %3397 = vmatprep.subr.mxu0 0.0
      %3398 = vmatpush2.msra.mxu0 0.0
      %3399 = vmatprep.subr.mxu0 0.0
      %3400 = vmatpush2.msra.mxu0 0.0
      %3401 = vmatprep.mubr.f32.mxu0 0.0
      %3402 = vmatmul.mubr.f32.gmra.mxu0 %v3193
      %v3403 = vpop.f32.mrf.mxu0
      %v3404 = vadd.f32 0.0, %v3403
      %v3405 = vpop.f32.mrf.mxu0
      %3406 = vdwg.mxu0
      %v3407 = vlaneseq
      %v3408 = vshrl.u32 %v3407, 7
      %v3409 = vsub.s32 0, %v3408
      %v3410 = vrot.slane %v2390, %v3409
      %v3411 = vlaneseq
      %v3412 = vshrl.u32 %v3411, 7
      %v3413 = vsub.s32 0, %v3412
      %v3414 = vrot.slane %v2391, %v3413
      %v3415 = vlaneseq
      %v3416 = vshrl.u32 %v3415, 7
      %v3417 = vsub.s32 0, %v3416
      %v3418 = vrot.slane %v2392, %v3417
      %v3419 = vlaneseq
      %v3420 = vshrl.u32 %v3419, 7
      %v3421 = vsub.s32 0, %v3420
      %v3422 = vrot.slane %v2393, %v3421
      %v3423 = vmul.f32 %v2832, %v3410
      %v3424 = vmul.f32 %v2834, %v3414
      %v3425 = vmul.f32 %v2903, %v3418
      %v3426 = vmul.f32 %v2905, %v3422
      %v3427 = vadd.f32 %v3423, 0.0
      %v3428 = vadd.f32 %v3424, 0.0
      %v3429 = vadd.f32 %v3425, 0.0
      %v3430 = vadd.f32 %v3426, 0.0
      %v3431 = vlaneseq
      %v3432 = vshrl.u32 %v3431, 7
      %v3433 = vsub.s32 1, %v3432
      %v3434 = vrot.slane %v2390, %v3433
      %v3435 = vlaneseq
      %v3436 = vshrl.u32 %v3435, 7
      %v3437 = vsub.s32 1, %v3436
      %v3438 = vrot.slane %v2391, %v3437
      %v3439 = vlaneseq
      %v3440 = vshrl.u32 %v3439, 7
      %v3441 = vsub.s32 1, %v3440
      %v3442 = vrot.slane %v2392, %v3441
      %v3443 = vlaneseq
      %v3444 = vshrl.u32 %v3443, 7
      %v3445 = vsub.s32 1, %v3444
      %v3446 = vrot.slane %v2393, %v3445
      %3451 = vrot.lane.b32.xlu0 %v3434, 32
      %v3452 = vpop.permute.xlu0 %3451
      %3453 = vrot.lane.b32.xlu0 %v3438, 32
      %v3454 = vpop.permute.xlu0 %3453
      %3455 = vrot.lane.b32.xlu0 %v3442, 32
      %v3456 = vpop.permute.xlu0 %3455
      %3457 = vrot.lane.b32.xlu0 %v3446, 32
      %v3458 = vpop.permute.xlu0 %3457
      %v3459 = vsel %vm1064, %v3452, %v3454
      %v3460 = vsel %vm1064, %v3454, %v3456
      %v3461 = vsel %vm1064, %v3456, %v3458
      %v3467 = vmul.f32 %v2832, %v3452
      %v3468 = vmul.f32 %v2834, %v3459
      %v3469 = vmul.f32 %v2903, %v3460
      %v3470 = vmul.f32 %v2905, %v3461
      %v3471 = vmul.f32 %v2974, %v3458
      %3477 = vrot.lane.b32.xlu0 %v3467, 96
      %v3478 = vpop.permute.xlu0 %3477
      %3479 = vrot.lane.b32.xlu0 %v3468, 96
      %v3480 = vpop.permute.xlu0 %3479
      %3481 = vrot.lane.b32.xlu0 %v3469, 96
      %v3482 = vpop.permute.xlu0 %3481
      %3483 = vrot.lane.b32.xlu0 %v3470, 96
      %v3484 = vpop.permute.xlu0 %3483
      %3485 = vrot.lane.b32.xlu0 %v3471, 96
      %v3486 = vpop.permute.xlu0 %3485
      %v3487 = vsel %vm1232, %v3478, %v3480
      %v3488 = vsel %vm1232, %v3480, %v3482
      %v3489 = vsel %vm1232, %v3482, %v3484
      %v3490 = vsel %vm1232, %v3484, %v3486
      %v3495 = vadd.f32 %v3427, %v3487
      %v3496 = vadd.f32 %v3428, %v3488
      %v3497 = vadd.f32 %v3429, %v3489
      %v3498 = vadd.f32 %v3430, %v3490
      %v3499 = vlaneseq
      %v3500 = vshrl.u32 %v3499, 7
      %v3501 = vsub.s32 2, %v3500
      %v3502 = vrot.slane %v2390, %v3501
      %v3503 = vlaneseq
      %v3504 = vshrl.u32 %v3503, 7
      %v3505 = vsub.s32 2, %v3504
      %v3506 = vrot.slane %v2391, %v3505
      %v3507 = vlaneseq
      %v3508 = vshrl.u32 %v3507, 7
      %v3509 = vsub.s32 2, %v3508
      %v3510 = vrot.slane %v2392, %v3509
      %v3511 = vlaneseq
      %v3512 = vshrl.u32 %v3511, 7
      %v3513 = vsub.s32 2, %v3512
      %v3514 = vrot.slane %v2393, %v3513
      %3519 = vrot.lane.b32.xlu0 %v3502, 64
      %v3520 = vpop.permute.xlu0 %3519
      %3521 = vrot.lane.b32.xlu0 %v3506, 64
      %v3522 = vpop.permute.xlu0 %3521
      %3523 = vrot.lane.b32.xlu0 %v3510, 64
      %v3524 = vpop.permute.xlu0 %3523
      %3525 = vrot.lane.b32.xlu0 %v3514, 64
      %v3526 = vpop.permute.xlu0 %3525
      %v3527 = vsel %vm532, %v3520, %v3522
      %v3528 = vsel %vm532, %v3522, %v3524
      %v3529 = vsel %vm532, %v3524, %v3526
      %v3535 = vmul.f32 %v2832, %v3520
      %v3536 = vmul.f32 %v2834, %v3527
      %v3537 = vmul.f32 %v2903, %v3528
      %v3538 = vmul.f32 %v2905, %v3529
      %v3539 = vmul.f32 %v2974, %v3526
      %3545 = vrot.lane.b32.xlu0 %v3535, 64
      %v3546 = vpop.permute.xlu0 %3545
      %3547 = vrot.lane.b32.xlu0 %v3536, 64
      %v3548 = vpop.permute.xlu0 %3547
      %3549 = vrot.lane.b32.xlu0 %v3537, 64
      %v3550 = vpop.permute.xlu0 %3549
      %3551 = vrot.lane.b32.xlu0 %v3538, 64
      %v3552 = vpop.permute.xlu0 %3551
      %3553 = vrot.lane.b32.xlu0 %v3539, 64
      %v3554 = vpop.permute.xlu0 %3553
      %v3555 = vsel %vm532, %v3546, %v3548
      %v3556 = vsel %vm532, %v3548, %v3550
      %v3557 = vsel %vm532, %v3550, %v3552
      %v3558 = vsel %vm532, %v3552, %v3554
      %v3563 = vadd.f32 %v3495, %v3555
      %v3564 = vadd.f32 %v3496, %v3556
      %v3565 = vadd.f32 %v3497, %v3557
      %v3566 = vadd.f32 %v3498, %v3558
      %v3567 = vlaneseq
      %v3568 = vshrl.u32 %v3567, 7
      %v3569 = vsub.s32 3, %v3568
      %v3570 = vrot.slane %v2390, %v3569
      %v3571 = vlaneseq
      %v3572 = vshrl.u32 %v3571, 7
      %v3573 = vsub.s32 3, %v3572
      %v3574 = vrot.slane %v2391, %v3573
      %v3575 = vlaneseq
      %v3576 = vshrl.u32 %v3575, 7
      %v3577 = vsub.s32 3, %v3576
      %v3578 = vrot.slane %v2392, %v3577
      %v3579 = vlaneseq
      %v3580 = vshrl.u32 %v3579, 7
      %v3581 = vsub.s32 3, %v3580
      %v3582 = vrot.slane %v2393, %v3581
      %v3583 = vmul.f32 %v3047, %v3570
      %v3584 = vmul.f32 %v3049, %v3574
      %v3585 = vmul.f32 %v3118, %v3578
      %v3586 = vmul.f32 %v3120, %v3582
      %v3587 = vadd.f32 %v3563, %v3583
      %v3588 = vadd.f32 %v3564, %v3584
      %v3589 = vadd.f32 %v3565, %v3585
      %v3590 = vadd.f32 %v3566, %v3586
      %v3591 = vlaneseq
      %v3592 = vshrl.u32 %v3591, 7
      %v3593 = vsub.s32 4, %v3592
      %v3594 = vrot.slane %v2390, %v3593
      %v3595 = vlaneseq
      %v3596 = vshrl.u32 %v3595, 7
      %v3597 = vsub.s32 4, %v3596
      %v3598 = vrot.slane %v2391, %v3597
      %v3599 = vlaneseq
      %v3600 = vshrl.u32 %v3599, 7
      %v3601 = vsub.s32 4, %v3600
      %v3602 = vrot.slane %v2392, %v3601
      %v3603 = vlaneseq
      %v3604 = vshrl.u32 %v3603, 7
      %v3605 = vsub.s32 4, %v3604
      %v3606 = vrot.slane %v2393, %v3605
      %3611 = vrot.lane.b32.xlu0 %v3594, 32
      %v3612 = vpop.permute.xlu0 %3611
      %3613 = vrot.lane.b32.xlu0 %v3598, 32
      %v3614 = vpop.permute.xlu0 %3613
      %3615 = vrot.lane.b32.xlu0 %v3602, 32
      %v3616 = vpop.permute.xlu0 %3615
      %3617 = vrot.lane.b32.xlu0 %v3606, 32
      %v3618 = vpop.permute.xlu0 %3617
      %v3619 = vsel %vm1064, %v3612, %v3614
      %v3620 = vsel %vm1064, %v3614, %v3616
      %v3621 = vsel %vm1064, %v3616, %v3618
      %v3627 = vmul.f32 %v3047, %v3612
      %v3628 = vmul.f32 %v3049, %v3619
      %v3629 = vmul.f32 %v3118, %v3620
      %v3630 = vmul.f32 %v3120, %v3621
      %v3631 = vmul.f32 %v3189, %v3618
      %3637 = vrot.lane.b32.xlu0 %v3627, 96
      %v3638 = vpop.permute.xlu0 %3637
      %3639 = vrot.lane.b32.xlu0 %v3628, 96
      %v3640 = vpop.permute.xlu0 %3639
      %3641 = vrot.lane.b32.xlu0 %v3629, 96
      %v3642 = vpop.permute.xlu0 %3641
      %3643 = vrot.lane.b32.xlu0 %v3630, 96
      %v3644 = vpop.permute.xlu0 %3643
      %3645 = vrot.lane.b32.xlu0 %v3631, 96
      %v3646 = vpop.permute.xlu0 %3645
      %v3647 = vsel %vm1232, %v3638, %v3640
      %v3648 = vsel %vm1232, %v3640, %v3642
      %v3649 = vsel %vm1232, %v3642, %v3644
      %v3650 = vsel %vm1232, %v3644, %v3646
      %v3655 = vadd.f32 %v3587, %v3647
      %v3656 = vadd.f32 %v3588, %v3648
      %v3657 = vadd.f32 %v3589, %v3649
      %v3658 = vadd.f32 %v3590, %v3650
      %v3659 = vlaneseq
      %v3660 = vshrl.u32 %v3659, 7
      %v3661 = vsub.s32 5, %v3660
      %v3662 = vrot.slane %v2390, %v3661
      %v3663 = vlaneseq
      %v3664 = vshrl.u32 %v3663, 7
      %v3665 = vsub.s32 5, %v3664
      %v3666 = vrot.slane %v2391, %v3665
      %v3667 = vlaneseq
      %v3668 = vshrl.u32 %v3667, 7
      %v3669 = vsub.s32 5, %v3668
      %v3670 = vrot.slane %v2392, %v3669
      %v3671 = vlaneseq
      %v3672 = vshrl.u32 %v3671, 7
      %v3673 = vsub.s32 5, %v3672
      %v3674 = vrot.slane %v2393, %v3673
      %3679 = vrot.lane.b32.xlu0 %v3662, 64
      %v3680 = vpop.permute.xlu0 %3679
      %3681 = vrot.lane.b32.xlu0 %v3666, 64
      %v3682 = vpop.permute.xlu0 %3681
      %3683 = vrot.lane.b32.xlu0 %v3670, 64
      %v3684 = vpop.permute.xlu0 %3683
      %3685 = vrot.lane.b32.xlu0 %v3674, 64
      %v3686 = vpop.permute.xlu0 %3685
      %v3687 = vsel %vm532, %v3680, %v3682
      %v3688 = vsel %vm532, %v3682, %v3684
      %v3689 = vsel %vm532, %v3684, %v3686
      %v3695 = vmul.f32 %v3047, %v3680
      %v3696 = vmul.f32 %v3049, %v3687
      %v3697 = vmul.f32 %v3118, %v3688
      %v3698 = vmul.f32 %v3120, %v3689
      %v3699 = vmul.f32 %v3189, %v3686
      %3705 = vrot.lane.b32.xlu0 %v3695, 64
      %v3706 = vpop.permute.xlu0 %3705
      %3707 = vrot.lane.b32.xlu0 %v3696, 64
      %v3708 = vpop.permute.xlu0 %3707
      %3709 = vrot.lane.b32.xlu0 %v3697, 64
      %v3710 = vpop.permute.xlu0 %3709
      %3711 = vrot.lane.b32.xlu0 %v3698, 64
      %v3712 = vpop.permute.xlu0 %3711
      %3713 = vrot.lane.b32.xlu0 %v3699, 64
      %v3714 = vpop.permute.xlu0 %3713
      %v3715 = vsel %vm532, %v3706, %v3708
      %v3716 = vsel %vm532, %v3708, %v3710
      %v3717 = vsel %vm532, %v3710, %v3712
      %v3718 = vsel %vm532, %v3712, %v3714
      %v3723 = vadd.f32 %v3655, %v3715
      %v3724 = vadd.f32 %v3656, %v3716
      %v3725 = vadd.f32 %v3657, %v3717
      %v3726 = vadd.f32 %v3658, %v3718
      %v3727 = vlaneseq
      %v3728 = vshrl.u32 %v3727, 7
      %v3729 = vsub.s32 6, %v3728
      %v3730 = vrot.slane %v2390, %v3729
      %v3731 = vlaneseq
      %v3732 = vshrl.u32 %v3731, 7
      %v3733 = vsub.s32 6, %v3732
      %v3734 = vrot.slane %v2391, %v3733
      %v3735 = vlaneseq
      %v3736 = vshrl.u32 %v3735, 7
      %v3737 = vsub.s32 6, %v3736
      %v3738 = vrot.slane %v2392, %v3737
      %v3739 = vlaneseq
      %v3740 = vshrl.u32 %v3739, 7
      %v3741 = vsub.s32 6, %v3740
      %v3742 = vrot.slane %v2393, %v3741
      %v3743 = vmul.f32 %v3262, %v3730
      %v3744 = vmul.f32 %v3264, %v3734
      %v3745 = vmul.f32 %v3333, %v3738
      %v3746 = vmul.f32 %v3335, %v3742
      %v3747 = vadd.f32 %v3723, %v3743
      %v3748 = vadd.f32 %v3724, %v3744
      %v3749 = vadd.f32 %v3725, %v3745
      %v3750 = vadd.f32 %v3726, %v3746
      %v3751 = vlaneseq
      %v3752 = vshrl.u32 %v3751, 7
      %v3753 = vsub.s32 7, %v3752
      %v3754 = vrot.slane %v2390, %v3753
      %v3755 = vlaneseq
      %v3756 = vshrl.u32 %v3755, 7
      %v3757 = vsub.s32 7, %v3756
      %v3758 = vrot.slane %v2391, %v3757
      %v3759 = vlaneseq
      %v3760 = vshrl.u32 %v3759, 7
      %v3761 = vsub.s32 7, %v3760
      %v3762 = vrot.slane %v2392, %v3761
      %v3763 = vlaneseq
      %v3764 = vshrl.u32 %v3763, 7
      %v3765 = vsub.s32 7, %v3764
      %v3766 = vrot.slane %v2393, %v3765
      %3771 = vrot.lane.b32.xlu0 %v3754, 32
      %v3772 = vpop.permute.xlu0 %3771
      %3773 = vrot.lane.b32.xlu0 %v3758, 32
      %v3774 = vpop.permute.xlu0 %3773
      %3775 = vrot.lane.b32.xlu0 %v3762, 32
      %v3776 = vpop.permute.xlu0 %3775
      %3777 = vrot.lane.b32.xlu0 %v3766, 32
      %v3778 = vpop.permute.xlu0 %3777
      %v3779 = vsel %vm1064, %v3772, %v3774
      %v3780 = vsel %vm1064, %v3774, %v3776
      %v3781 = vsel %vm1064, %v3776, %v3778
      %v3787 = vmul.f32 %v3262, %v3772
      %v3788 = vmul.f32 %v3264, %v3779
      %v3789 = vmul.f32 %v3333, %v3780
      %v3790 = vmul.f32 %v3335, %v3781
      %v3791 = vmul.f32 %v3404, %v3778
      %3797 = vrot.lane.b32.xlu0 %v3787, 96
      %v3798 = vpop.permute.xlu0 %3797
      %3799 = vrot.lane.b32.xlu0 %v3788, 96
      %v3800 = vpop.permute.xlu0 %3799
      %3801 = vrot.lane.b32.xlu0 %v3789, 96
      %v3802 = vpop.permute.xlu0 %3801
      %3803 = vrot.lane.b32.xlu0 %v3790, 96
      %v3804 = vpop.permute.xlu0 %3803
      %3805 = vrot.lane.b32.xlu0 %v3791, 96
      %v3806 = vpop.permute.xlu0 %3805
      %v3807 = vsel %vm1232, %v3798, %v3800
      %v3808 = vsel %vm1232, %v3800, %v3802
      %v3809 = vsel %vm1232, %v3802, %v3804
      %v3810 = vsel %vm1232, %v3804, %v3806
      %v3815 = vadd.f32 %v3747, %v3807
      %v3816 = vadd.f32 %v3748, %v3808
      %v3817 = vadd.f32 %v3749, %v3809
      %v3818 = vadd.f32 %v3750, %v3810
      %v3819 = vlaneseq
      %v3820 = vshrl.u32 %v3819, 7
      %v3821 = vsub.s32 0, %v3820
      %v3822 = vrot.slane %v2394, %v3821
      %v3823 = vlaneseq
      %v3824 = vshrl.u32 %v3823, 7
      %v3825 = vsub.s32 0, %v3824
      %v3826 = vrot.slane %v2395, %v3825
      %v3827 = vlaneseq
      %v3828 = vshrl.u32 %v3827, 7
      %v3829 = vsub.s32 0, %v3828
      %v3830 = vrot.slane %v2396, %v3829
      %v3831 = vlaneseq
      %v3832 = vshrl.u32 %v3831, 7
      %v3833 = vsub.s32 0, %v3832
      %v3834 = vrot.slane %v2397, %v3833
      %3839 = vrot.lane.b32.xlu0 %v3822, 64
      %v3840 = vpop.permute.xlu0 %3839
      %3841 = vrot.lane.b32.xlu0 %v3826, 64
      %v3842 = vpop.permute.xlu0 %3841
      %3843 = vrot.lane.b32.xlu0 %v3830, 64
      %v3844 = vpop.permute.xlu0 %3843
      %3845 = vrot.lane.b32.xlu0 %v3834, 64
      %v3846 = vpop.permute.xlu0 %3845
      %v3847 = vsel %vm532, %v3840, %v3842
      %v3848 = vsel %vm532, %v3842, %v3844
      %v3849 = vsel %vm532, %v3844, %v3846
      %v3855 = vmul.f32 %v3262, %v3840
      %v3856 = vmul.f32 %v3264, %v3847
      %v3857 = vmul.f32 %v3333, %v3848
      %v3858 = vmul.f32 %v3335, %v3849
      %v3859 = vmul.f32 %v3404, %v3846
      %3865 = vrot.lane.b32.xlu0 %v3855, 64
      %v3866 = vpop.permute.xlu0 %3865
      %3867 = vrot.lane.b32.xlu0 %v3856, 64
      %v3868 = vpop.permute.xlu0 %3867
      %3869 = vrot.lane.b32.xlu0 %v3857, 64
      %v3870 = vpop.permute.xlu0 %3869
      %3871 = vrot.lane.b32.xlu0 %v3858, 64
      %v3872 = vpop.permute.xlu0 %3871
      %3873 = vrot.lane.b32.xlu0 %v3859, 64
      %v3874 = vpop.permute.xlu0 %3873
      %v3875 = vsel %vm532, %v3866, %v3868
      %v3876 = vsel %vm532, %v3868, %v3870
      %v3877 = vsel %vm532, %v3870, %v3872
      %v3878 = vsel %vm532, %v3872, %v3874
      %v3883 = vadd.f32 %v3815, %v3875
      %v3884 = vadd.f32 %v3816, %v3876
      %v3885 = vadd.f32 %v3817, %v3877
      %v3886 = vadd.f32 %v3818, %v3878
      %v3888 = vlaneseq
      %v3889 = vshrl.u32 %v3888, 7
      %v3890 = vsub.s32 0, %v3889
      %v3891 = vrot.slane %v2398, %v3890
      %v3892 = vlaneseq
      %v3893 = vshrl.u32 %v3892, 7
      %v3894 = vsub.s32 1, %v3893
      %v3895 = vrot.slane %v2398, %v3894
      %v3896 = vlaneseq
      %v3897 = vshrl.u32 %v3896, 7
      %v3898 = vsub.s32 2, %v3897
      %v3899 = vrot.slane %v2398, %v3898
      %v3900 = vlaneseq
      %v3901 = vshrl.u32 %v3900, 7
      %v3902 = vsub.s32 3, %v3901
      %v3903 = vrot.slane %v2398, %v3902
      %v3908 = vadd.f32 %v3883, %v3891
      %v3909 = vadd.f32 %v3884, %v3895
      %v3910 = vadd.f32 %v3885, %v3899
      %v3911 = vadd.f32 %v3886, %v3903
      %v3912 = vmax.f32 %v3908, 0.0
      %v3913 = vmax.f32 %v3909, 0.0
      %v3914 = vmax.f32 %v3910, 0.0
      %v3915 = vmax.f32 %v3911, 0.0
      %v3917 = vlaneseq
      %v3918 = vshrl.u32 %v3917, 7
      %v3919 = vsub.s32 0, %v3918
      %v3920 = vrot.slane %v2463, %v3919
      %3922 = vmatprep.subr.mxu0 0.0
      %3923 = vmatpush1.msra.mxu0 %v2414
      %3924 = vmatprep.subr.mxu0 0.0
      %3925 = vmatpush1.msra.mxu0 %v2413
      %3926 = vmatprep.subr.mxu0 0.0
      %3927 = vmatpush1.msra.mxu0 %v2412
      %3928 = vmatprep.subr.mxu0 0.0
      %3929 = vmatpush1.msra.mxu0 %v2411
      %3930 = vmatprep.subr.mxu0 0.0
      %3931 = vmatpush1.msra.mxu0 %v2410
      %3932 = vmatprep.subr.mxu0 0.0
      %3933 = vmatpush1.msra.mxu0 %v2409
      %3934 = vmatprep.subr.mxu0 0.0
      %3935 = vmatpush1.msra.mxu0 %v2408
      %3936 = vmatprep.subr.mxu0 0.0
      %3937 = vmatpush1.msra.mxu0 %v2407
      %3938 = vmatprep.subr.mxu0 0.0
      %3939 = vmatpush1.msra.mxu0 %v2406
      %3940 = vmatprep.subr.mxu0 0.0
      %3941 = vmatpush1.msra.mxu0 %v2405
      %3942 = vmatprep.subr.mxu0 0.0
      %3943 = vmatpush1.msra.mxu0 %v2404
      %3944 = vmatprep.subr.mxu0 0.0
      %3945 = vmatpush1.msra.mxu0 %v2403
      %3946 = vmatprep.subr.mxu0 0.0
      %3947 = vmatpush1.msra.mxu0 %v2402
      %3948 = vmatprep.subr.mxu0 0.0
      %3949 = vmatpush1.msra.mxu0 %v2401
      %3950 = vmatprep.subr.mxu0 0.0
      %3951 = vmatpush1.msra.mxu0 %v2400
      %3952 = vmatprep.subr.mxu0 0.0
      %3953 = vmatpush1.msra.mxu0 %v2399
      %3954 = vmatprep.subr.mxu0 0.0
      %3955 = vmatpush2.msra.mxu0 %v2430
      %3956 = vmatprep.subr.mxu0 0.0
      %3957 = vmatpush2.msra.mxu0 %v2429
      %3958 = vmatprep.subr.mxu0 0.0
      %3959 = vmatpush2.msra.mxu0 %v2428
      %3960 = vmatprep.subr.mxu0 0.0
      %3961 = vmatpush2.msra.mxu0 %v2427
      %3962 = vmatprep.subr.mxu0 0.0
      %3963 = vmatpush2.msra.mxu0 %v2426
      %3964 = vmatprep.subr.mxu0 0.0
      %3965 = vmatpush2.msra.mxu0 %v2425
      %3966 = vmatprep.subr.mxu0 0.0
      %3967 = vmatpush2.msra.mxu0 %v2424
      %3968 = vmatprep.subr.mxu0 0.0
      %3969 = vmatpush2.msra.mxu0 %v2423
      %3970 = vmatprep.subr.mxu0 0.0
      %3971 = vmatpush2.msra.mxu0 %v2422
      %3972 = vmatprep.subr.mxu0 0.0
      %3973 = vmatpush2.msra.mxu0 %v2421
      %3974 = vmatprep.subr.mxu0 0.0
      %3975 = vmatpush2.msra.mxu0 %v2420
      %3976 = vmatprep.subr.mxu0 0.0
      %3977 = vmatpush2.msra.mxu0 %v2419
      %3978 = vmatprep.subr.mxu0 0.0
      %3979 = vmatpush2.msra.mxu0 %v2418
      %3980 = vmatprep.subr.mxu0 0.0
      %3981 = vmatpush2.msra.mxu0 %v2417
      %3982 = vmatprep.subr.mxu0 0.0
      %3983 = vmatpush2.msra.mxu0 %v2416
      %3984 = vmatprep.subr.mxu0 0.0
      %3985 = vmatpush2.msra.mxu0 %v2415
      %3986 = vmatprep.mubr.f32.mxu0 %v3913
      %3987 = vmatmul.mubr.f32.gmra.mxu0 %v3912
      %v3988 = vpop.f32.mrf.mxu0
      %v3989 = vadd.f32 %v3920, %v3988
      %v3990 = vpop.f32.mrf.mxu0
      %3991 = vdwg.mxu0
      %3992 = vmatprep.subr.mxu0 0.0
      %3993 = vmatpush1.msra.mxu0 %v2446
      %3994 = vmatprep.subr.mxu0 0.0
      %3995 = vmatpush1.msra.mxu0 %v2445
      %3996 = vmatprep.subr.mxu0 0.0
      %3997 = vmatpush1.msra.mxu0 %v2444
      %3998 = vmatprep.subr.mxu0 0.0
      %3999 = vmatpush1.msra.mxu0 %v2443
      %4000 = vmatprep.subr.mxu0 0.0
      %4001 = vmatpush1.msra.mxu0 %v2442
      %4002 = vmatprep.subr.mxu0 0.0
      %4003 = vmatpush1.msra.mxu0 %v2441
      %4004 = vmatprep.subr.mxu0 0.0
      %4005 = vmatpush1.msra.mxu0 %v2440
      %4006 = vmatprep.subr.mxu0 0.0
      %4007 = vmatpush1.msra.mxu0 %v2439
      %4008 = vmatprep.subr.mxu0 0.0
      %4009 = vmatpush1.msra.mxu0 %v2438
      %4010 = vmatprep.subr.mxu0 0.0
      %4011 = vmatpush1.msra.mxu0 %v2437
      %4012 = vmatprep.subr.mxu0 0.0
      %4013 = vmatpush1.msra.mxu0 %v2436
      %4014 = vmatprep.subr.mxu0 0.0
      %4015 = vmatpush1.msra.mxu0 %v2435
      %4016 = vmatprep.subr.mxu0 0.0
      %4017 = vmatpush1.msra.mxu0 %v2434
      %4018 = vmatprep.subr.mxu0 0.0
      %4019 = vmatpush1.msra.mxu0 %v2433
      %4020 = vmatprep.subr.mxu0 0.0
      %4021 = vmatpush1.msra.mxu0 %v2432
      %4022 = vmatprep.subr.mxu0 0.0
      %4023 = vmatpush1.msra.mxu0 %v2431
      %4024 = vmatprep.subr.mxu0 0.0
      %4025 = vmatpush2.msra.mxu0 %v2462
      %4026 = vmatprep.subr.mxu0 0.0
      %4027 = vmatpush2.msra.mxu0 %v2461
      %4028 = vmatprep.subr.mxu0 0.0
      %4029 = vmatpush2.msra.mxu0 %v2460
      %4030 = vmatprep.subr.mxu0 0.0
      %4031 = vmatpush2.msra.mxu0 %v2459
      %4032 = vmatprep.subr.mxu0 0.0
      %4033 = vmatpush2.msra.mxu0 %v2458
      %4034 = vmatprep.subr.mxu0 0.0
      %4035 = vmatpush2.msra.mxu0 %v2457
      %4036 = vmatprep.subr.mxu0 0.0
      %4037 = vmatpush2.msra.mxu0 %v2456
      %4038 = vmatprep.subr.mxu0 0.0
      %4039 = vmatpush2.msra.mxu0 %v2455
      %4040 = vmatprep.subr.mxu0 0.0
      %4041 = vmatpush2.msra.mxu0 %v2454
      %4042 = vmatprep.subr.mxu0 0.0
      %4043 = vmatpush2.msra.mxu0 %v2453
      %4044 = vmatprep.subr.mxu0 0.0
      %4045 = vmatpush2.msra.mxu0 %v2452
      %4046 = vmatprep.subr.mxu0 0.0
      %4047 = vmatpush2.msra.mxu0 %v2451
      %4048 = vmatprep.subr.mxu0 0.0
      %4049 = vmatpush2.msra.mxu0 %v2450
      %4050 = vmatprep.subr.mxu0 0.0
      %4051 = vmatpush2.msra.mxu0 %v2449
      %4052 = vmatprep.subr.mxu0 0.0
      %4053 = vmatpush2.msra.mxu0 %v2448
      %4054 = vmatprep.subr.mxu0 0.0
      %4055 = vmatpush2.msra.mxu0 %v2447
      %4056 = vmatprep.mubr.f32.mxu0 %v3915
      %4057 = vmatmul.mubr.f32.gmra.mxu0 %v3914
      %v4058 = vpop.f32.mrf.mxu0
      %v4059 = vadd.f32 %v3989, %v4058
      %v4060 = vpop.f32.mrf.mxu0
      %4061 = vdwg.mxu0
      %4062 = vst [vmem:[%s527] sm:$0xff] %v4059
      %v4063 = vld [vmem:[%s8] sm:$0xff]
      %v4064 = vld [vmem:[%s8 + $0x8] sm:$0xff]
      %v4065 = vld [vmem:[%s8 + $0x10] sm:$0xff]
      %v4066 = vld [vmem:[%s8 + $0x18] sm:$0xff]
      %v4067 = vld [vmem:[%s8 + $0x20] sm:$0xff]
      %v4068 = vld [vmem:[%s8 + $0x28] sm:$0xff]
      %v4069 = vld [vmem:[%s8 + $0x30] sm:$0xff]
      %v4070 = vld [vmem:[%s8 + $0x38] sm:$0xff]
      %v4071 = vld [vmem:[%s8 + $0x40] sm:$0xff]
      %v4072 = vld [vmem:[%s8 + $0x48] sm:$0xff]
      %v4073 = vld [vmem:[%s8 + $0x50] sm:$0xff]
      %v4074 = vld [vmem:[%s8 + $0x58] sm:$0xff]
      %v4075 = vld [vmem:[%s8 + $0x60] sm:$0xff]
      %v4076 = vld [vmem:[%s8 + $0x68] sm:$0xff]
      %v4077 = vld [vmem:[%s8 + $0x70] sm:$0xff]
      %v4078 = vld [vmem:[%s8 + $0x78] sm:$0xff]
      %v4079 = vld [vmem:[%s8 + $0x80] sm:$0xff]
      %v4080 = vld [vmem:[%s8 + $0x88] sm:$0xff]
      %v4081 = vld [vmem:[%s8 + $0x90] sm:$0xff]
      %v4082 = vld [vmem:[%s8 + $0x98] sm:$0xff]
      %v4083 = vld [vmem:[%s8 + $0xa0] sm:$0xff]
      %v4084 = vld [vmem:[%s8 + $0xa8] sm:$0xff]
      %v4085 = vld [vmem:[%s8 + $0xb0] sm:$0xff]
      %v4086 = vld [vmem:[%s8 + $0xb8] sm:$0xff]
      %v4087 = vld [vmem:[%s8 + $0xc0] sm:$0xff]
      %v4088 = vld [vmem:[%s8 + $0xc8] sm:$0xff]
      %v4089 = vld [vmem:[%s8 + $0xd0] sm:$0xff]
      %v4090 = vld [vmem:[%s8 + $0xd8] sm:$0xff]
      %v4091 = vld [vmem:[%s8 + $0xe0] sm:$0xff]
      %v4092 = vld [vmem:[%s8 + $0xe8] sm:$0xff]
      %v4093 = vld [vmem:[%s8 + $0xf0] sm:$0xff]
      %v4094 = vld [vmem:[%s8 + $0xf8] sm:$0xff]
      %v4095 = vld [vmem:[%s8 + $0x100] sm:$0xff]
      %v4096 = vld [vmem:[%s8 + $0x108] sm:$0xff]
      %v4097 = vld [vmem:[%s8 + $0x110] sm:$0xff]
      %v4098 = vld [vmem:[%s8 + $0x118] sm:$0xff]
      %v4099 = vld [vmem:[%s8 + $0x120] sm:$0xff]
      %v4100 = vld [vmem:[%s8 + $0x128] sm:$0xff]
      %v4101 = vld [vmem:[%s8 + $0x130] sm:$0xff]
      %v4102 = vld [vmem:[%s8 + $0x138] sm:$0xff]
      %v4103 = vld [vmem:[%s8 + $0x140] sm:$0xff]
      %v4104 = vld [vmem:[%s8 + $0x148] sm:$0xff]
      %v4105 = vld [vmem:[%s8 + $0x150] sm:$0xff]
      %v4106 = vld [vmem:[%s8 + $0x158] sm:$0xff]
      %v4107 = vld [vmem:[%s8 + $0x160] sm:$0xff]
      %v4108 = vld [vmem:[%s8 + $0x168] sm:$0xff]
      %v4109 = vld [vmem:[%s8 + $0x170] sm:$0xff]
      %v4110 = vld [vmem:[%s8 + $0x178] sm:$0xff]
      %v4111 = vld [vmem:[%s8 + $0x180] sm:$0xff]
      %v4112 = vld [vmem:[%s8 + $0x188] sm:$0xff]
      %v4113 = vld [vmem:[%s8 + $0x190] sm:$0xff]
      %v4114 = vld [vmem:[%s8 + $0x198] sm:$0xff]
      %v4115 = vld [vmem:[%s8 + $0x1a0] sm:$0xff]
      %v4116 = vld [vmem:[%s8 + $0x1a8] sm:$0xff]
      %v4117 = vld [vmem:[%s8 + $0x1b0] sm:$0xff]
      %v4118 = vld [vmem:[%s8 + $0x1b8] sm:$0xff]
      %v4119 = vld [vmem:[%s8 + $0x1c0] sm:$0xff]
      %v4120 = vld [vmem:[%s8 + $0x1c8] sm:$0xff]
      %v4121 = vld [vmem:[%s8 + $0x1d0] sm:$0xff]
      %v4122 = vld [vmem:[%s8 + $0x1d8] sm:$0xff]
      %v4123 = vld [vmem:[%s8 + $0x1e0] sm:$0xff]
      %v4124 = vld [vmem:[%s8 + $0x1e8] sm:$0xff]
      %v4125 = vld [vmem:[%s8 + $0x1f0] sm:$0xff]
      %v4126 = vld [vmem:[%s8 + $0x1f8] sm:$0xff]
      %v4127 = vld [vmem:[%s8 + $0x200] sm:$0xff]
      %v4128 = vld [vmem:[%s8 + $0x208] sm:$0xff]
      %v4129 = vld [vmem:[%s8 + $0x210] sm:$0xff]
      %v4130 = vld [vmem:[%s8 + $0x218] sm:$0xff]
      %v4131 = vld [vmem:[%s8 + $0x220] sm:$0xff]
      %v4132 = vld [vmem:[%s8 + $0x228] sm:$0xff]
      %v4133 = vld [vmem:[%s8 + $0x230] sm:$0xff]
      %v4134 = vld [vmem:[%s8 + $0x238] sm:$0xff]
      %v4135 = vld [vmem:[%s8 + $0x240] sm:$0xff]
      %v4136 = vld [vmem:[%s8 + $0x248] sm:$0xff]
      %v4137 = vld [vmem:[%s8 + $0x250] sm:$0xff]
      %v4138 = vld [vmem:[%s8 + $0x258] sm:$0xff]
      %v4139 = vld [vmem:[%s8 + $0x260] sm:$0xff]
      %v4140 = vld [vmem:[%s8 + $0x268] sm:$0xff]
      %v4141 = vld [vmem:[%s8 + $0x270] sm:$0xff]
      %v4142 = vld [vmem:[%s8 + $0x278] sm:$0xff]
      %v4143 = vld [vmem:[%s8 + $0x280] sm:$0xff]
      %v4144 = vld [vmem:[%s8 + $0x288] sm:$0xff]
      %v4145 = vld [vmem:[%s8 + $0x290] sm:$0xff]
      %v4146 = vld [vmem:[%s8 + $0x298] sm:$0xff]
      %v4147 = vld [vmem:[%s8 + $0x2a0] sm:$0xff]
      %v4148 = vld [vmem:[%s8 + $0x2a8] sm:$0xff]
      %v4149 = vld [vmem:[%s8 + $0x2b0] sm:$0xff]
      %v4150 = vld [vmem:[%s8 + $0x2b8] sm:$0xff]
      %v4151 = vld [vmem:[%s8 + $0x2c0] sm:$0xff]
      %v4152 = vld [vmem:[%s8 + $0x2c8] sm:$0xff]
      %v4153 = vld [vmem:[%s8 + $0x2d0] sm:$0xff]
      %v4154 = vld [vmem:[%s8 + $0x2d8] sm:$0xff]
      %v4155 = vld [vmem:[%s8 + $0x2e0] sm:$0xff]
      %v4156 = vld [vmem:[%s8 + $0x2e8] sm:$0xff]
      %v4157 = vld [vmem:[%s8 + $0x2f0] sm:$0xff]
      %v4158 = vld [vmem:[%s8 + $0x2f8] sm:$0xff]
      %v4159 = vld [vmem:[%s8 + $0x300] sm:$0xff]
      %v4160 = vld [vmem:[%s8 + $0x308] sm:$0xff]
      %v4161 = vld [vmem:[%s8 + $0x310] sm:$0xff]
      %v4162 = vld [vmem:[%s8 + $0x318] sm:$0xff]
      %v4163 = vld [vmem:[%s8 + $0x320] sm:$0xff]
      %v4164 = vld [vmem:[%s8 + $0x328] sm:$0xff]
      %v4165 = vld [vmem:[%s8 + $0x330] sm:$0xff]
      %v4166 = vld [vmem:[%s8 + $0x338] sm:$0xff]
      %v4167 = vld [vmem:[%s8 + $0x340] sm:$0xff]
      %v4168 = vld [vmem:[%s8 + $0x348] sm:$0xff]
      %v4169 = vld [vmem:[%s8 + $0x350] sm:$0xff]
      %v4170 = vld [vmem:[%s8 + $0x358] sm:$0xff]
      %v4171 = vld [vmem:[%s8 + $0x360] sm:$0xff]
      %v4172 = vld [vmem:[%s8 + $0x368] sm:$0xff]
      %v4173 = vld [vmem:[%s8 + $0x370] sm:$0xff]
      %v4174 = vld [vmem:[%s8 + $0x378] sm:$0xff]
      %v4175 = vld [vmem:[%s8 + $0x380] sm:$0xff]
      %v4176 = vld [vmem:[%s8 + $0x388] sm:$0xff]
      %v4177 = vld [vmem:[%s8 + $0x390] sm:$0xff]
      %v4178 = vld [vmem:[%s8 + $0x398] sm:$0xff]
      %v4179 = vld [vmem:[%s8 + $0x3a0] sm:$0xff]
      %v4180 = vld [vmem:[%s8 + $0x3a8] sm:$0xff]
      %v4181 = vld [vmem:[%s8 + $0x3b0] sm:$0xff]
      %v4182 = vld [vmem:[%s8 + $0x3b8] sm:$0xff]
      %v4183 = vld [vmem:[%s8 + $0x3c0] sm:$0xff]
      %v4184 = vld [vmem:[%s8 + $0x3c8] sm:$0xff]
      %v4185 = vld [vmem:[%s8 + $0x3d0] sm:$0xff]
      %v4186 = vld [vmem:[%s8 + $0x3d8] sm:$0xff]
      %v4187 = vld [vmem:[%s8 + $0x3e0] sm:$0xff]
      %v4188 = vld [vmem:[%s8 + $0x3e8] sm:$0xff]
      %v4189 = vld [vmem:[%s8 + $0x3f0] sm:$0xff]
      %v4190 = vld [vmem:[%s8 + $0x3f8] sm:$0xff]
      %v4191 = vld [vmem:[%s9] sm:$0xf]
      %v4192 = vld [vmem:[%s10] sm:$0xff]
      %v4193 = vld [vmem:[%s10 + $0x8] sm:$0xff]
      %v4194 = vld [vmem:[%s10 + $0x10] sm:$0xff]
      %v4195 = vld [vmem:[%s10 + $0x18] sm:$0xff]
      %v4196 = vld [vmem:[%s10 + $0x20] sm:$0x1]
      %v4197 = vld [vmem:[%s10 + $0x28] sm:$0x1]
      %v4198 = vld [vmem:[%s10 + $0x30] sm:$0x1]
      %v4199 = vld [vmem:[%s10 + $0x38] sm:$0x1]
      %v4200 = vld [vmem:[%s11] sm:$0xf]
      %v4201 = vld [vmem:[%s12] sm:$0xff]
      %v4202 = vld [vmem:[%s12 + $0x8] sm:$0xff]
      %v4203 = vld [vmem:[%s12 + $0x10] sm:$0xff]
      %v4204 = vld [vmem:[%s12 + $0x18] sm:$0xff]
      %v4205 = vld [vmem:[%s12 + $0x20] sm:$0xff]
      %v4206 = vld [vmem:[%s12 + $0x28] sm:$0xff]
      %v4207 = vld [vmem:[%s12 + $0x30] sm:$0xff]
      %v4208 = vld [vmem:[%s12 + $0x38] sm:$0xff]
      %v4209 = vld [vmem:[%s12 + $0x40] sm:$0xff]
      %v4210 = vld [vmem:[%s12 + $0x48] sm:$0xff]
      %v4211 = vld [vmem:[%s12 + $0x50] sm:$0xff]
      %v4212 = vld [vmem:[%s12 + $0x58] sm:$0xff]
      %v4213 = vld [vmem:[%s12 + $0x60] sm:$0xff]
      %v4214 = vld [vmem:[%s12 + $0x68] sm:$0xff]
      %v4215 = vld [vmem:[%s12 + $0x70] sm:$0xff]
      %v4216 = vld [vmem:[%s12 + $0x78] sm:$0xff]
      %v4217 = vld [vmem:[%s12 + $0x80] sm:$0xff]
      %v4218 = vld [vmem:[%s12 + $0x88] sm:$0xff]
      %v4219 = vld [vmem:[%s12 + $0x90] sm:$0xff]
      %v4220 = vld [vmem:[%s12 + $0x98] sm:$0xff]
      %v4221 = vld [vmem:[%s12 + $0xa0] sm:$0xff]
      %v4222 = vld [vmem:[%s12 + $0xa8] sm:$0xff]
      %v4223 = vld [vmem:[%s12 + $0xb0] sm:$0xff]
      %v4224 = vld [vmem:[%s12 + $0xb8] sm:$0xff]
      %v4225 = vld [vmem:[%s12 + $0xc0] sm:$0xff]
      %v4226 = vld [vmem:[%s12 + $0xc8] sm:$0xff]
      %v4227 = vld [vmem:[%s12 + $0xd0] sm:$0xff]
      %v4228 = vld [vmem:[%s12 + $0xd8] sm:$0xff]
      %v4229 = vld [vmem:[%s12 + $0xe0] sm:$0xff]
      %v4230 = vld [vmem:[%s12 + $0xe8] sm:$0xff]
      %v4231 = vld [vmem:[%s12 + $0xf0] sm:$0xff]
      %v4232 = vld [vmem:[%s12 + $0xf8] sm:$0xff]
      %v4233 = vld [vmem:[%s12 + $0x100] sm:$0xff]
      %v4234 = vld [vmem:[%s12 + $0x108] sm:$0xff]
      %v4235 = vld [vmem:[%s12 + $0x110] sm:$0xff]
      %v4236 = vld [vmem:[%s12 + $0x118] sm:$0xff]
      %v4237 = vld [vmem:[%s12 + $0x120] sm:$0xff]
      %v4238 = vld [vmem:[%s12 + $0x128] sm:$0xff]
      %v4239 = vld [vmem:[%s12 + $0x130] sm:$0xff]
      %v4240 = vld [vmem:[%s12 + $0x138] sm:$0xff]
      %v4241 = vld [vmem:[%s12 + $0x140] sm:$0xff]
      %v4242 = vld [vmem:[%s12 + $0x148] sm:$0xff]
      %v4243 = vld [vmem:[%s12 + $0x150] sm:$0xff]
      %v4244 = vld [vmem:[%s12 + $0x158] sm:$0xff]
      %v4245 = vld [vmem:[%s12 + $0x160] sm:$0xff]
      %v4246 = vld [vmem:[%s12 + $0x168] sm:$0xff]
      %v4247 = vld [vmem:[%s12 + $0x170] sm:$0xff]
      %v4248 = vld [vmem:[%s12 + $0x178] sm:$0xff]
      %v4249 = vld [vmem:[%s12 + $0x180] sm:$0xff]
      %v4250 = vld [vmem:[%s12 + $0x188] sm:$0xff]
      %v4251 = vld [vmem:[%s12 + $0x190] sm:$0xff]
      %v4252 = vld [vmem:[%s12 + $0x198] sm:$0xff]
      %v4253 = vld [vmem:[%s12 + $0x1a0] sm:$0xff]
      %v4254 = vld [vmem:[%s12 + $0x1a8] sm:$0xff]
      %v4255 = vld [vmem:[%s12 + $0x1b0] sm:$0xff]
      %v4256 = vld [vmem:[%s12 + $0x1b8] sm:$0xff]
      %v4257 = vld [vmem:[%s12 + $0x1c0] sm:$0xff]
      %v4258 = vld [vmem:[%s12 + $0x1c8] sm:$0xff]
      %v4259 = vld [vmem:[%s12 + $0x1d0] sm:$0xff]
      %v4260 = vld [vmem:[%s12 + $0x1d8] sm:$0xff]
      %v4261 = vld [vmem:[%s12 + $0x1e0] sm:$0xff]
      %v4262 = vld [vmem:[%s12 + $0x1e8] sm:$0xff]
      %v4263 = vld [vmem:[%s12 + $0x1f0] sm:$0xff]
      %v4264 = vld [vmem:[%s12 + $0x1f8] sm:$0xff]
      %v4265 = vld [vmem:[%s13] sm:$0x1]
      %v4267 = vlaneseq
      %v4268 = vshrl.u32 %v4267, 7
      %v4269 = vsub.s32 0, %v4268
      %v4270 = vrot.slane %v4191, %v4269
      %v4271 = vlaneseq
      %v4272 = vshrl.u32 %v4271, 7
      %v4273 = vsub.s32 1, %v4272
      %v4274 = vrot.slane %v4191, %v4273
      %v4275 = vlaneseq
      %v4276 = vshrl.u32 %v4275, 7
      %v4277 = vsub.s32 2, %v4276
      %v4278 = vrot.slane %v4191, %v4277
      %v4279 = vlaneseq
      %v4280 = vshrl.u32 %v4279, 7
      %v4281 = vsub.s32 3, %v4280
      %v4282 = vrot.slane %v4191, %v4281
      %4287 = vmatprep.subr.mxu0 %v4124
      %4288 = vmatpush1.msra.mxu0 %v4123
      %4289 = vmatprep.subr.mxu0 %v4120
      %4290 = vmatpush1.msra.mxu0 %v4119
      %4291 = vmatprep.subr.mxu0 %v4116
      %4292 = vmatpush1.msra.mxu0 %v4115
      %4293 = vmatprep.subr.mxu0 %v4112
      %4294 = vmatpush1.msra.mxu0 %v4111
      %4295 = vmatprep.subr.mxu0 %v4108
      %4296 = vmatpush1.msra.mxu0 %v4107
      %4297 = vmatprep.subr.mxu0 %v4104
      %4298 = vmatpush1.msra.mxu0 %v4103
      %4299 = vmatprep.subr.mxu0 %v4100
      %4300 = vmatpush1.msra.mxu0 %v4099
      %4301 = vmatprep.subr.mxu0 %v4096
      %4302 = vmatpush1.msra.mxu0 %v4095
      %4303 = vmatprep.subr.mxu0 %v4092
      %4304 = vmatpush1.msra.mxu0 %v4091
      %4305 = vmatprep.subr.mxu0 %v4088
      %4306 = vmatpush1.msra.mxu0 %v4087
      %4307 = vmatprep.subr.mxu0 %v4084
      %4308 = vmatpush1.msra.mxu0 %v4083
      %4309 = vmatprep.subr.mxu0 %v4080
      %4310 = vmatpush1.msra.mxu0 %v4079
      %4311 = vmatprep.subr.mxu0 %v4076
      %4312 = vmatpush1.msra.mxu0 %v4075
      %4313 = vmatprep.subr.mxu0 %v4072
      %4314 = vmatpush1.msra.mxu0 %v4071
      %4315 = vmatprep.subr.mxu0 %v4068
      %4316 = vmatpush1.msra.mxu0 %v4067
      %4317 = vmatprep.subr.mxu0 %v4064
      %4318 = vmatpush1.msra.mxu0 %v4063
      %4319 = vmatprep.subr.mxu0 %v4188
      %4320 = vmatpush2.msra.mxu0 %v4187
      %4321 = vmatprep.subr.mxu0 %v4184
      %4322 = vmatpush2.msra.mxu0 %v4183
      %4323 = vmatprep.subr.mxu0 %v4180
      %4324 = vmatpush2.msra.mxu0 %v4179
      %4325 = vmatprep.subr.mxu0 %v4176
      %4326 = vmatpush2.msra.mxu0 %v4175
      %4327 = vmatprep.subr.mxu0 %v4172
      %4328 = vmatpush2.msra.mxu0 %v4171
      %4329 = vmatprep.subr.mxu0 %v4168
      %4330 = vmatpush2.msra.mxu0 %v4167
      %4331 = vmatprep.subr.mxu0 %v4164
      %4332 = vmatpush2.msra.mxu0 %v4163
      %4333 = vmatprep.subr.mxu0 %v4160
      %4334 = vmatpush2.msra.mxu0 %v4159
      %4335 = vmatprep.subr.mxu0 %v4156
      %4336 = vmatpush2.msra.mxu0 %v4155
      %4337 = vmatprep.subr.mxu0 %v4152
      %4338 = vmatpush2.msra.mxu0 %v4151
      %4339 = vmatprep.subr.mxu0 %v4148
      %4340 = vmatpush2.msra.mxu0 %v4147
      %4341 = vmatprep.subr.mxu0 %v4144
      %4342 = vmatpush2.msra.mxu0 %v4143
      %4343 = vmatprep.subr.mxu0 %v4140
      %4344 = vmatpush2.msra.mxu0 %v4139
      %4345 = vmatprep.subr.mxu0 %v4136
      %4346 = vmatpush2.msra.mxu0 %v4135
      %4347 = vmatprep.subr.mxu0 %v4132
      %4348 = vmatpush2.msra.mxu0 %v4131
      %4349 = vmatprep.subr.mxu0 %v4128
      %4350 = vmatpush2.msra.mxu0 %v4127
      %4351 = vmatprep.mubr.f32.mxu0 %v566
      %4352 = vmatmul.mubr.f32.gmra.mxu0 %v565
      %v4353 = vpop.f32.mrf.mxu0
      %v4354 = vadd.f32 %v4270, %v4353
      %v4355 = vpop.f32.mrf.mxu0
      %v4356 = vadd.f32 %v4274, %v4355
      %4357 = vmatprep.mubr.f32.mxu0 %v568
      %4358 = vmatmul.mubr.f32.gmra.mxu0 %v567
      %v4359 = vpop.f32.mrf.mxu0
      %v4360 = vadd.f32 %v4270, %v4359
      %v4361 = vpop.f32.mrf.mxu0
      %v4362 = vadd.f32 %v4274, %v4361
      %4363 = vdwg.mxu0
      %4364 = vmatprep.subr.mxu0 %v4126
      %4365 = vmatpush1.msra.mxu0 %v4125
      %4366 = vmatprep.subr.mxu0 %v4122
      %4367 = vmatpush1.msra.mxu0 %v4121
      %4368 = vmatprep.subr.mxu0 %v4118
      %4369 = vmatpush1.msra.mxu0 %v4117
      %4370 = vmatprep.subr.mxu0 %v4114
      %4371 = vmatpush1.msra.mxu0 %v4113
      %4372 = vmatprep.subr.mxu0 %v4110
      %4373 = vmatpush1.msra.mxu0 %v4109
      %4374 = vmatprep.subr.mxu0 %v4106
      %4375 = vmatpush1.msra.mxu0 %v4105
      %4376 = vmatprep.subr.mxu0 %v4102
      %4377 = vmatpush1.msra.mxu0 %v4101
      %4378 = vmatprep.subr.mxu0 %v4098
      %4379 = vmatpush1.msra.mxu0 %v4097
      %4380 = vmatprep.subr.mxu0 %v4094
      %4381 = vmatpush1.msra.mxu0 %v4093
      %4382 = vmatprep.subr.mxu0 %v4090
      %4383 = vmatpush1.msra.mxu0 %v4089
      %4384 = vmatprep.subr.mxu0 %v4086
      %4385 = vmatpush1.msra.mxu0 %v4085
      %4386 = vmatprep.subr.mxu0 %v4082
      %4387 = vmatpush1.msra.mxu0 %v4081
      %4388 = vmatprep.subr.mxu0 %v4078
      %4389 = vmatpush1.msra.mxu0 %v4077
      %4390 = vmatprep.subr.mxu0 %v4074
      %4391 = vmatpush1.msra.mxu0 %v4073
      %4392 = vmatprep.subr.mxu0 %v4070
      %4393 = vmatpush1.msra.mxu0 %v4069
      %4394 = vmatprep.subr.mxu0 %v4066
      %4395 = vmatpush1.msra.mxu0 %v4065
      %4396 = vmatprep.subr.mxu0 %v4190
      %4397 = vmatpush2.msra.mxu0 %v4189
      %4398 = vmatprep.subr.mxu0 %v4186
      %4399 = vmatpush2.msra.mxu0 %v4185
      %4400 = vmatprep.subr.mxu0 %v4182
      %4401 = vmatpush2.msra.mxu0 %v4181
      %4402 = vmatprep.subr.mxu0 %v4178
      %4403 = vmatpush2.msra.mxu0 %v4177
      %4404 = vmatprep.subr.mxu0 %v4174
      %4405 = vmatpush2.msra.mxu0 %v4173
      %4406 = vmatprep.subr.mxu0 %v4170
      %4407 = vmatpush2.msra.mxu0 %v4169
      %4408 = vmatprep.subr.mxu0 %v4166
      %4409 = vmatpush2.msra.mxu0 %v4165
      %4410 = vmatprep.subr.mxu0 %v4162
      %4411 = vmatpush2.msra.mxu0 %v4161
      %4412 = vmatprep.subr.mxu0 %v4158
      %4413 = vmatpush2.msra.mxu0 %v4157
      %4414 = vmatprep.subr.mxu0 %v4154
      %4415 = vmatpush2.msra.mxu0 %v4153
      %4416 = vmatprep.subr.mxu0 %v4150
      %4417 = vmatpush2.msra.mxu0 %v4149
      %4418 = vmatprep.subr.mxu0 %v4146
      %4419 = vmatpush2.msra.mxu0 %v4145
      %4420 = vmatprep.subr.mxu0 %v4142
      %4421 = vmatpush2.msra.mxu0 %v4141
      %4422 = vmatprep.subr.mxu0 %v4138
      %4423 = vmatpush2.msra.mxu0 %v4137
      %4424 = vmatprep.subr.mxu0 %v4134
      %4425 = vmatpush2.msra.mxu0 %v4133
      %4426 = vmatprep.subr.mxu0 %v4130
      %4427 = vmatpush2.msra.mxu0 %v4129
      %4428 = vmatprep.mubr.f32.mxu0 %v566
      %4429 = vmatmul.mubr.f32.gmra.mxu0 %v565
      %v4430 = vpop.f32.mrf.mxu0
      %v4431 = vadd.f32 %v4278, %v4430
      %v4432 = vpop.f32.mrf.mxu0
      %v4433 = vadd.f32 %v4282, %v4432
      %4434 = vmatprep.mubr.f32.mxu0 %v568
      %4435 = vmatmul.mubr.f32.gmra.mxu0 %v567
      %v4436 = vpop.f32.mrf.mxu0
      %v4437 = vadd.f32 %v4278, %v4436
      %v4438 = vpop.f32.mrf.mxu0
      %v4439 = vadd.f32 %v4282, %v4438
      %4440 = vdwg.mxu0
      %v4441 = vmax.f32 %v4354, 0.0
      %v4442 = vmax.f32 %v4356, 0.0
      %v4443 = vmax.f32 %v4431, 0.0
      %v4444 = vmax.f32 %v4433, 0.0
      %v4445 = vmax.f32 %v4360, 0.0
      %v4446 = vmax.f32 %v4362, 0.0
      %v4447 = vmax.f32 %v4437, 0.0
      %v4448 = vmax.f32 %v4439, 0.0
      %v4457 = vrot.slane %v4441, 7
      %v4458 = vrot.slane %v4442, 7
      %v4459 = vrot.slane %v4443, 7
      %v4460 = vrot.slane %v4444, 7
      %v4461 = vrot.slane %v4445, 7
      %v4462 = vsel %vm1027, %v4457, %v4461
      %v4463 = vrot.slane %v4446, 7
      %v4464 = vsel %vm1027, %v4458, %v4463
      %v4465 = vrot.slane %v4447, 7
      %v4466 = vsel %vm1027, %v4459, %v4465
      %v4467 = vrot.slane %v4448, 7
      %v4468 = vsel %vm1027, %v4460, %v4467
      %4469 = vrot.lane.b32.xlu0 %v4457, 32
      %v4470 = vpop.permute.xlu0 %4469
      %4471 = vrot.lane.b32.xlu0 %v4458, 32
      %v4472 = vpop.permute.xlu0 %4471
      %4473 = vrot.lane.b32.xlu0 %v4459, 32
      %v4474 = vpop.permute.xlu0 %4473
      %4475 = vrot.lane.b32.xlu0 %v4460, 32
      %v4476 = vpop.permute.xlu0 %4475
      %4477 = vrot.lane.b32.xlu0 %v4462, 32
      %v4478 = vpop.permute.xlu0 %4477
      %4479 = vrot.lane.b32.xlu0 %v4464, 32
      %v4480 = vpop.permute.xlu0 %4479
      %4481 = vrot.lane.b32.xlu0 %v4466, 32
      %v4482 = vpop.permute.xlu0 %4481
      %4483 = vrot.lane.b32.xlu0 %v4468, 32
      %v4484 = vpop.permute.xlu0 %4483
      %4485 = vrot.lane.b32.xlu0 %v4461, 32
      %v4486 = vpop.permute.xlu0 %4485
      %4487 = vrot.lane.b32.xlu0 %v4463, 32
      %v4488 = vpop.permute.xlu0 %4487
      %4489 = vrot.lane.b32.xlu0 %v4465, 32
      %v4490 = vpop.permute.xlu0 %4489
      %4491 = vrot.lane.b32.xlu0 %v4467, 32
      %v4492 = vpop.permute.xlu0 %4491
      %v4493 = vsel %vm1064, %v4470, %v4472
      %v4494 = vsel %vm1064, %v4472, %v4474
      %v4495 = vsel %vm1064, %v4474, %v4476
      %v4496 = vsel %vm1064, %v4478, %v4480
      %v4497 = vsel %vm1064, %v4480, %v4482
      %v4498 = vsel %vm1064, %v4482, %v4484
      %v4499 = vsel %vm1064, %v4486, %v4488
      %v4500 = vsel %vm1064, %v4488, %v4490
      %v4501 = vsel %vm1064, %v4490, %v4492
      %4517 = vst.msk [vmem:[#allocation2] sm:$0xfe] %vm1089, %v4470
      %4518 = vst [vmem:[#allocation2 + $0x8] sm:$0xfe] %v4493
      %4519 = vst [vmem:[#allocation2 + $0x10] sm:$0xfe] %v4494
      %4520 = vst [vmem:[#allocation2 + $0x18] sm:$0xfe] %v4495
      %4521 = vst.msk [vmem:[#allocation2 + $0x20] sm:$0xfe] %vm1094, %v4476
      %4522 = vst.msk [vmem:[#allocation2 + $0x28] sm:$0xff] %vm1096, %v4478
      %4523 = vst [vmem:[#allocation2 + $0x30] sm:$0xff] %v4496
      %4524 = vst [vmem:[#allocation2 + $0x38] sm:$0xff] %v4497
      %4525 = vst [vmem:[#allocation2 + $0x40] sm:$0xff] %v4498
      %4526 = vst.msk [vmem:[#allocation2 + $0x48] sm:$0xff] %vm1064, %v4484
      %4527 = vst.msk [vmem:[#allocation2 + $0x50] sm:$0x1] %vm1102, %v4486
      %4528 = vst [vmem:[#allocation2 + $0x58] sm:$0x1] %v4499
      %4529 = vst [vmem:[#allocation2 + $0x60] sm:$0x1] %v4500
      %4530 = vst [vmem:[#allocation2 + $0x68] sm:$0x1] %v4501
      %4531 = vst.msk [vmem:[#allocation2 + $0x70] sm:$0x1] %vm1107, %v4492
      %v4532 = vld [vmem:[#allocation2] sm:$0xff]
      %v4533 = vld [vmem:[#allocation2 + $0x8] sm:$0xff]
      %v4534 = vld [vmem:[#allocation2 + $0x10] sm:$0xff]
      %v4535 = vld [vmem:[#allocation2 + $0x18] sm:$0xff]
      %v4536 = vld [vmem:[#allocation2 + $0x20] sm:$0xff]
      %v4537 = vld [vmem:[#allocation2 + $0x28] sm:$0xff]
      %v4538 = vld [vmem:[#allocation2 + $0x30] sm:$0xff]
      %v4539 = vld [vmem:[#allocation2 + $0x38] sm:$0xff]
      %v4540 = vld [vmem:[#allocation2 + $0x40] sm:$0xff]
      %v4541 = vld [vmem:[#allocation2 + $0x48] sm:$0xff]
      %v4542 = vld [vmem:[#allocation2 + $0x50] sm:$0x3]
      %v4543 = vld [vmem:[#allocation2 + $0x58] sm:$0x3]
      %v4544 = vld [vmem:[#allocation2 + $0x60] sm:$0x3]
      %v4545 = vld [vmem:[#allocation2 + $0x68] sm:$0x3]
      %v4546 = vld [vmem:[#allocation2 + $0x70] sm:$0x3]
      %v4548 = vsel %vm2749, %v4542, 0
      %v4551 = vsel %vm2749, %v4543, 0
      %v4554 = vsel %vm2749, %v4544, 0
      %v4557 = vsel %vm2749, %v4545, 0
      %v4560 = vsel %vm2749, %v4546, 0
      %4562 = vmatprep.subr.mxu0 0.0
      %4563 = vmatpush1.msra.mxu0 0.0
      %4564 = vmatprep.subr.mxu0 0.0
      %4565 = vmatpush1.msra.mxu0 0.0
      %4566 = vmatprep.subr.mxu0 0.0
      %4567 = vmatpush1.msra.mxu0 0.0
      %4568 = vmatprep.subr.mxu0 0.0
      %4569 = vmatpush1.msra.mxu0 0.0
      %4570 = vmatprep.subr.mxu0 0.0
      %4571 = vmatpush1.msra.mxu0 0.0
      %4572 = vmatprep.subr.mxu0 0.0
      %4573 = vmatpush1.msra.mxu0 0.0
      %4574 = vmatprep.subr.mxu0 0.0
      %4575 = vmatpush1.msra.mxu0 0.0
      %4576 = vmatprep.subr.mxu0 0.0
      %4577 = vmatpush1.msra.mxu0 0.0
      %4578 = vmatprep.subr.mxu0 0.0
      %4579 = vmatpush1.msra.mxu0 0.0
      %4580 = vmatprep.subr.mxu0 0.0
      %4581 = vmatpush1.msra.mxu0 0.0
      %4582 = vmatprep.subr.mxu0 0.0
      %4583 = vmatpush1.msra.mxu0 0.0
      %4584 = vmatprep.subr.mxu0 0.0
      %4585 = vmatpush1.msra.mxu0 0.0
      %4586 = vmatprep.subr.mxu0 0.0
      %4587 = vmatpush1.msra.mxu0 0.0
      %4588 = vmatprep.subr.mxu0 %v4551
      %4589 = vmatpush1.msra.mxu0 %v4548
      %4590 = vmatprep.subr.mxu0 %v4538
      %4591 = vmatpush1.msra.mxu0 %v4537
      %4592 = vmatprep.subr.mxu0 %v4533
      %4593 = vmatpush1.msra.mxu0 %v4532
      %4594 = vmatprep.subr.mxu0 0.0
      %4595 = vmatpush2.msra.mxu0 0.0
      %4596 = vmatprep.subr.mxu0 0.0
      %4597 = vmatpush2.msra.mxu0 0.0
      %4598 = vmatprep.subr.mxu0 0.0
      %4599 = vmatpush2.msra.mxu0 0.0
      %4600 = vmatprep.subr.mxu0 0.0
      %4601 = vmatpush2.msra.mxu0 0.0
      %4602 = vmatprep.subr.mxu0 0.0
      %4603 = vmatpush2.msra.mxu0 0.0
      %4604 = vmatprep.subr.mxu0 0.0
      %4605 = vmatpush2.msra.mxu0 0.0
      %4606 = vmatprep.subr.mxu0 0.0
      %4607 = vmatpush2.msra.mxu0 0.0
      %4608 = vmatprep.subr.mxu0 0.0
      %4609 = vmatpush2.msra.mxu0 0.0
      %4610 = vmatprep.subr.mxu0 0.0
      %4611 = vmatpush2.msra.mxu0 0.0
      %4612 = vmatprep.subr.mxu0 0.0
      %4613 = vmatpush2.msra.mxu0 0.0
      %4614 = vmatprep.subr.mxu0 0.0
      %4615 = vmatpush2.msra.mxu0 0.0
      %4616 = vmatprep.subr.mxu0 0.0
      %4617 = vmatpush2.msra.mxu0 0.0
      %4618 = vmatprep.subr.mxu0 0.0
      %4619 = vmatpush2.msra.mxu0 0.0
      %4620 = vmatprep.subr.mxu0 0.0
      %4621 = vmatpush2.msra.mxu0 0.0
      %4622 = vmatprep.subr.mxu0 0.0
      %4623 = vmatpush2.msra.mxu0 0.0
      %4624 = vmatprep.subr.mxu0 0.0
      %4625 = vmatpush2.msra.mxu0 0.0
      %4626 = vmatprep.mubr.f32.mxu0 0.0
      %4627 = vmatmul.mubr.f32.gmra.mxu0 %v2747
      %v4628 = vpop.f32.mrf.mxu0
      %v4629 = vadd.f32 0.0, %v4628
      %v4630 = vpop.f32.mrf.mxu0
      %v4631 = vadd.f32 0.0, %v4630
      %4632 = vdwg.mxu0
      %4633 = vmatprep.subr.mxu0 0.0
      %4634 = vmatpush1.msra.mxu0 0.0
      %4635 = vmatprep.subr.mxu0 0.0
      %4636 = vmatpush1.msra.mxu0 0.0
      %4637 = vmatprep.subr.mxu0 0.0
      %4638 = vmatpush1.msra.mxu0 0.0
      %4639 = vmatprep.subr.mxu0 0.0
      %4640 = vmatpush1.msra.mxu0 0.0
      %4641 = vmatprep.subr.mxu0 0.0
      %4642 = vmatpush1.msra.mxu0 0.0
      %4643 = vmatprep.subr.mxu0 0.0
      %4644 = vmatpush1.msra.mxu0 0.0
      %4645 = vmatprep.subr.mxu0 0.0
      %4646 = vmatpush1.msra.mxu0 0.0
      %4647 = vmatprep.subr.mxu0 0.0
      %4648 = vmatpush1.msra.mxu0 0.0
      %4649 = vmatprep.subr.mxu0 0.0
      %4650 = vmatpush1.msra.mxu0 0.0
      %4651 = vmatprep.subr.mxu0 0.0
      %4652 = vmatpush1.msra.mxu0 0.0
      %4653 = vmatprep.subr.mxu0 0.0
      %4654 = vmatpush1.msra.mxu0 0.0
      %4655 = vmatprep.subr.mxu0 0.0
      %4656 = vmatpush1.msra.mxu0 0.0
      %4657 = vmatprep.subr.mxu0 0.0
      %4658 = vmatpush1.msra.mxu0 0.0
      %4659 = vmatprep.subr.mxu0 %v4557
      %4660 = vmatpush1.msra.mxu0 %v4554
      %4661 = vmatprep.subr.mxu0 %v4540
      %4662 = vmatpush1.msra.mxu0 %v4539
      %4663 = vmatprep.subr.mxu0 %v4535
      %4664 = vmatpush1.msra.mxu0 %v4534
      %4665 = vmatprep.subr.mxu0 0.0
      %4666 = vmatpush2.msra.mxu0 0.0
      %4667 = vmatprep.subr.mxu0 0.0
      %4668 = vmatpush2.msra.mxu0 0.0
      %4669 = vmatprep.subr.mxu0 0.0
      %4670 = vmatpush2.msra.mxu0 0.0
      %4671 = vmatprep.subr.mxu0 0.0
      %4672 = vmatpush2.msra.mxu0 0.0
      %4673 = vmatprep.subr.mxu0 0.0
      %4674 = vmatpush2.msra.mxu0 0.0
      %4675 = vmatprep.subr.mxu0 0.0
      %4676 = vmatpush2.msra.mxu0 0.0
      %4677 = vmatprep.subr.mxu0 0.0
      %4678 = vmatpush2.msra.mxu0 0.0
      %4679 = vmatprep.subr.mxu0 0.0
      %4680 = vmatpush2.msra.mxu0 0.0
      %4681 = vmatprep.subr.mxu0 0.0
      %4682 = vmatpush2.msra.mxu0 0.0
      %4683 = vmatprep.subr.mxu0 0.0
      %4684 = vmatpush2.msra.mxu0 0.0
      %4685 = vmatprep.subr.mxu0 0.0
      %4686 = vmatpush2.msra.mxu0 0.0
      %4687 = vmatprep.subr.mxu0 0.0
      %4688 = vmatpush2.msra.mxu0 0.0
      %4689 = vmatprep.subr.mxu0 0.0
      %4690 = vmatpush2.msra.mxu0 0.0
      %4691 = vmatprep.subr.mxu0 0.0
      %4692 = vmatpush2.msra.mxu0 0.0
      %4693 = vmatprep.subr.mxu0 0.0
      %4694 = vmatpush2.msra.mxu0 0.0
      %4695 = vmatprep.subr.mxu0 0.0
      %4696 = vmatpush2.msra.mxu0 0.0
      %4697 = vmatprep.mubr.f32.mxu0 0.0
      %4698 = vmatmul.mubr.f32.gmra.mxu0 %v2747
      %v4699 = vpop.f32.mrf.mxu0
      %v4700 = vadd.f32 0.0, %v4699
      %v4701 = vpop.f32.mrf.mxu0
      %v4702 = vadd.f32 0.0, %v4701
      %4703 = vdwg.mxu0
      %4704 = vmatprep.subr.mxu0 0.0
      %4705 = vmatpush1.msra.mxu0 0.0
      %4706 = vmatprep.subr.mxu0 0.0
      %4707 = vmatpush1.msra.mxu0 0.0
      %4708 = vmatprep.subr.mxu0 0.0
      %4709 = vmatpush1.msra.mxu0 0.0
      %4710 = vmatprep.subr.mxu0 0.0
      %4711 = vmatpush1.msra.mxu0 0.0
      %4712 = vmatprep.subr.mxu0 0.0
      %4713 = vmatpush1.msra.mxu0 0.0
      %4714 = vmatprep.subr.mxu0 0.0
      %4715 = vmatpush1.msra.mxu0 0.0
      %4716 = vmatprep.subr.mxu0 0.0
      %4717 = vmatpush1.msra.mxu0 0.0
      %4718 = vmatprep.subr.mxu0 0.0
      %4719 = vmatpush1.msra.mxu0 0.0
      %4720 = vmatprep.subr.mxu0 0.0
      %4721 = vmatpush1.msra.mxu0 0.0
      %4722 = vmatprep.subr.mxu0 0.0
      %4723 = vmatpush1.msra.mxu0 0.0
      %4724 = vmatprep.subr.mxu0 0.0
      %4725 = vmatpush1.msra.mxu0 0.0
      %4726 = vmatprep.subr.mxu0 0.0
      %4727 = vmatpush1.msra.mxu0 0.0
      %4728 = vmatprep.subr.mxu0 0.0
      %4729 = vmatpush1.msra.mxu0 0.0
      %4730 = vmatprep.subr.mxu0 0.0
      %4731 = vmatpush1.msra.mxu0 %v4560
      %4732 = vmatprep.subr.mxu0 0.0
      %4733 = vmatpush1.msra.mxu0 %v4541
      %4734 = vmatprep.subr.mxu0 0.0
      %4735 = vmatpush1.msra.mxu0 %v4536
      %4736 = vmatprep.subr.mxu0 0.0
      %4737 = vmatpush2.msra.mxu0 0.0
      %4738 = vmatprep.subr.mxu0 0.0
      %4739 = vmatpush2.msra.mxu0 0.0
      %4740 = vmatprep.subr.mxu0 0.0
      %4741 = vmatpush2.msra.mxu0 0.0
      %4742 = vmatprep.subr.mxu0 0.0
      %4743 = vmatpush2.msra.mxu0 0.0
      %4744 = vmatprep.subr.mxu0 0.0
      %4745 = vmatpush2.msra.mxu0 0.0
      %4746 = vmatprep.subr.mxu0 0.0
      %4747 = vmatpush2.msra.mxu0 0.0
      %4748 = vmatprep.subr.mxu0 0.0
      %4749 = vmatpush2.msra.mxu0 0.0
      %4750 = vmatprep.subr.mxu0 0.0
      %4751 = vmatpush2.msra.mxu0 0.0
      %4752 = vmatprep.subr.mxu0 0.0
      %4753 = vmatpush2.msra.mxu0 0.0
      %4754 = vmatprep.subr.mxu0 0.0
      %4755 = vmatpush2.msra.mxu0 0.0
      %4756 = vmatprep.subr.mxu0 0.0
      %4757 = vmatpush2.msra.mxu0 0.0
      %4758 = vmatprep.subr.mxu0 0.0
      %4759 = vmatpush2.msra.mxu0 0.0
      %4760 = vmatprep.subr.mxu0 0.0
      %4761 = vmatpush2.msra.mxu0 0.0
      %4762 = vmatprep.subr.mxu0 0.0
      %4763 = vmatpush2.msra.mxu0 0.0
      %4764 = vmatprep.subr.mxu0 0.0
      %4765 = vmatpush2.msra.mxu0 0.0
      %4766 = vmatprep.subr.mxu0 0.0
      %4767 = vmatpush2.msra.mxu0 0.0
      %4768 = vmatprep.mubr.f32.mxu0 0.0
      %4769 = vmatmul.mubr.f32.gmra.mxu0 %v2747
      %v4770 = vpop.f32.mrf.mxu0
      %v4771 = vadd.f32 0.0, %v4770
      %v4772 = vpop.f32.mrf.mxu0
      %4773 = vdwg.mxu0
      %4774 = vmatprep.subr.mxu0 0.0
      %4775 = vmatpush1.msra.mxu0 0.0
      %4776 = vmatprep.subr.mxu0 0.0
      %4777 = vmatpush1.msra.mxu0 0.0
      %4778 = vmatprep.subr.mxu0 0.0
      %4779 = vmatpush1.msra.mxu0 0.0
      %4780 = vmatprep.subr.mxu0 0.0
      %4781 = vmatpush1.msra.mxu0 0.0
      %4782 = vmatprep.subr.mxu0 0.0
      %4783 = vmatpush1.msra.mxu0 0.0
      %4784 = vmatprep.subr.mxu0 0.0
      %4785 = vmatpush1.msra.mxu0 0.0
      %4786 = vmatprep.subr.mxu0 0.0
      %4787 = vmatpush1.msra.mxu0 0.0
      %4788 = vmatprep.subr.mxu0 0.0
      %4789 = vmatpush1.msra.mxu0 0.0
      %4790 = vmatprep.subr.mxu0 0.0
      %4791 = vmatpush1.msra.mxu0 0.0
      %4792 = vmatprep.subr.mxu0 0.0
      %4793 = vmatpush1.msra.mxu0 0.0
      %4794 = vmatprep.subr.mxu0 0.0
      %4795 = vmatpush1.msra.mxu0 0.0
      %4796 = vmatprep.subr.mxu0 0.0
      %4797 = vmatpush1.msra.mxu0 0.0
      %4798 = vmatprep.subr.mxu0 0.0
      %4799 = vmatpush1.msra.mxu0 0.0
      %4800 = vmatprep.subr.mxu0 %v4551
      %4801 = vmatpush1.msra.mxu0 %v4548
      %4802 = vmatprep.subr.mxu0 %v4538
      %4803 = vmatpush1.msra.mxu0 %v4537
      %4804 = vmatprep.subr.mxu0 %v4533
      %4805 = vmatpush1.msra.mxu0 %v4532
      %4806 = vmatprep.subr.mxu0 0.0
      %4807 = vmatpush2.msra.mxu0 0.0
      %4808 = vmatprep.subr.mxu0 0.0
      %4809 = vmatpush2.msra.mxu0 0.0
      %4810 = vmatprep.subr.mxu0 0.0
      %4811 = vmatpush2.msra.mxu0 0.0
      %4812 = vmatprep.subr.mxu0 0.0
      %4813 = vmatpush2.msra.mxu0 0.0
      %4814 = vmatprep.subr.mxu0 0.0
      %4815 = vmatpush2.msra.mxu0 0.0
      %4816 = vmatprep.subr.mxu0 0.0
      %4817 = vmatpush2.msra.mxu0 0.0
      %4818 = vmatprep.subr.mxu0 0.0
      %4819 = vmatpush2.msra.mxu0 0.0
      %4820 = vmatprep.subr.mxu0 0.0
      %4821 = vmatpush2.msra.mxu0 0.0
      %4822 = vmatprep.subr.mxu0 0.0
      %4823 = vmatpush2.msra.mxu0 0.0
      %4824 = vmatprep.subr.mxu0 0.0
      %4825 = vmatpush2.msra.mxu0 0.0
      %4826 = vmatprep.subr.mxu0 0.0
      %4827 = vmatpush2.msra.mxu0 0.0
      %4828 = vmatprep.subr.mxu0 0.0
      %4829 = vmatpush2.msra.mxu0 0.0
      %4830 = vmatprep.subr.mxu0 0.0
      %4831 = vmatpush2.msra.mxu0 0.0
      %4832 = vmatprep.subr.mxu0 0.0
      %4833 = vmatpush2.msra.mxu0 0.0
      %4834 = vmatprep.subr.mxu0 0.0
      %4835 = vmatpush2.msra.mxu0 0.0
      %4836 = vmatprep.subr.mxu0 0.0
      %4837 = vmatpush2.msra.mxu0 0.0
      %4838 = vmatprep.mubr.f32.mxu0 0.0
      %4839 = vmatmul.mubr.f32.gmra.mxu0 %v2978
      %v4840 = vpop.f32.mrf.mxu0
      %v4841 = vadd.f32 0.0, %v4840
      %v4842 = vpop.f32.mrf.mxu0
      %v4843 = vadd.f32 0.0, %v4842
      %4844 = vdwg.mxu0
      %4845 = vmatprep.subr.mxu0 0.0
      %4846 = vmatpush1.msra.mxu0 0.0
      %4847 = vmatprep.subr.mxu0 0.0
      %4848 = vmatpush1.msra.mxu0 0.0
      %4849 = vmatprep.subr.mxu0 0.0
      %4850 = vmatpush1.msra.mxu0 0.0
      %4851 = vmatprep.subr.mxu0 0.0
      %4852 = vmatpush1.msra.mxu0 0.0
      %4853 = vmatprep.subr.mxu0 0.0
      %4854 = vmatpush1.msra.mxu0 0.0
      %4855 = vmatprep.subr.mxu0 0.0
      %4856 = vmatpush1.msra.mxu0 0.0
      %4857 = vmatprep.subr.mxu0 0.0
      %4858 = vmatpush1.msra.mxu0 0.0
      %4859 = vmatprep.subr.mxu0 0.0
      %4860 = vmatpush1.msra.mxu0 0.0
      %4861 = vmatprep.subr.mxu0 0.0
      %4862 = vmatpush1.msra.mxu0 0.0
      %4863 = vmatprep.subr.mxu0 0.0
      %4864 = vmatpush1.msra.mxu0 0.0
      %4865 = vmatprep.subr.mxu0 0.0
      %4866 = vmatpush1.msra.mxu0 0.0
      %4867 = vmatprep.subr.mxu0 0.0
      %4868 = vmatpush1.msra.mxu0 0.0
      %4869 = vmatprep.subr.mxu0 0.0
      %4870 = vmatpush1.msra.mxu0 0.0
      %4871 = vmatprep.subr.mxu0 %v4557
      %4872 = vmatpush1.msra.mxu0 %v4554
      %4873 = vmatprep.subr.mxu0 %v4540
      %4874 = vmatpush1.msra.mxu0 %v4539
      %4875 = vmatprep.subr.mxu0 %v4535
      %4876 = vmatpush1.msra.mxu0 %v4534
      %4877 = vmatprep.subr.mxu0 0.0
      %4878 = vmatpush2.msra.mxu0 0.0
      %4879 = vmatprep.subr.mxu0 0.0
      %4880 = vmatpush2.msra.mxu0 0.0
      %4881 = vmatprep.subr.mxu0 0.0
      %4882 = vmatpush2.msra.mxu0 0.0
      %4883 = vmatprep.subr.mxu0 0.0
      %4884 = vmatpush2.msra.mxu0 0.0
      %4885 = vmatprep.subr.mxu0 0.0
      %4886 = vmatpush2.msra.mxu0 0.0
      %4887 = vmatprep.subr.mxu0 0.0
      %4888 = vmatpush2.msra.mxu0 0.0
      %4889 = vmatprep.subr.mxu0 0.0
      %4890 = vmatpush2.msra.mxu0 0.0
      %4891 = vmatprep.subr.mxu0 0.0
      %4892 = vmatpush2.msra.mxu0 0.0
      %4893 = vmatprep.subr.mxu0 0.0
      %4894 = vmatpush2.msra.mxu0 0.0
      %4895 = vmatprep.subr.mxu0 0.0
      %4896 = vmatpush2.msra.mxu0 0.0
      %4897 = vmatprep.subr.mxu0 0.0
      %4898 = vmatpush2.msra.mxu0 0.0
      %4899 = vmatprep.subr.mxu0 0.0
      %4900 = vmatpush2.msra.mxu0 0.0
      %4901 = vmatprep.subr.mxu0 0.0
      %4902 = vmatpush2.msra.mxu0 0.0
      %4903 = vmatprep.subr.mxu0 0.0
      %4904 = vmatpush2.msra.mxu0 0.0
      %4905 = vmatprep.subr.mxu0 0.0
      %4906 = vmatpush2.msra.mxu0 0.0
      %4907 = vmatprep.subr.mxu0 0.0
      %4908 = vmatpush2.msra.mxu0 0.0
      %4909 = vmatprep.mubr.f32.mxu0 0.0
      %4910 = vmatmul.mubr.f32.gmra.mxu0 %v2978
      %v4911 = vpop.f32.mrf.mxu0
      %v4912 = vadd.f32 0.0, %v4911
      %v4913 = vpop.f32.mrf.mxu0
      %v4914 = vadd.f32 0.0, %v4913
      %4915 = vdwg.mxu0
      %4916 = vmatprep.subr.mxu0 0.0
      %4917 = vmatpush1.msra.mxu0 0.0
      %4918 = vmatprep.subr.mxu0 0.0
      %4919 = vmatpush1.msra.mxu0 0.0
      %4920 = vmatprep.subr.mxu0 0.0
      %4921 = vmatpush1.msra.mxu0 0.0
      %4922 = vmatprep.subr.mxu0 0.0
      %4923 = vmatpush1.msra.mxu0 0.0
      %4924 = vmatprep.subr.mxu0 0.0
      %4925 = vmatpush1.msra.mxu0 0.0
      %4926 = vmatprep.subr.mxu0 0.0
      %4927 = vmatpush1.msra.mxu0 0.0
      %4928 = vmatprep.subr.mxu0 0.0
      %4929 = vmatpush1.msra.mxu0 0.0
      %4930 = vmatprep.subr.mxu0 0.0
      %4931 = vmatpush1.msra.mxu0 0.0
      %4932 = vmatprep.subr.mxu0 0.0
      %4933 = vmatpush1.msra.mxu0 0.0
      %4934 = vmatprep.subr.mxu0 0.0
      %4935 = vmatpush1.msra.mxu0 0.0
      %4936 = vmatprep.subr.mxu0 0.0
      %4937 = vmatpush1.msra.mxu0 0.0
      %4938 = vmatprep.subr.mxu0 0.0
      %4939 = vmatpush1.msra.mxu0 0.0
      %4940 = vmatprep.subr.mxu0 0.0
      %4941 = vmatpush1.msra.mxu0 0.0
      %4942 = vmatprep.subr.mxu0 0.0
      %4943 = vmatpush1.msra.mxu0 %v4560
      %4944 = vmatprep.subr.mxu0 0.0
      %4945 = vmatpush1.msra.mxu0 %v4541
      %4946 = vmatprep.subr.mxu0 0.0
      %4947 = vmatpush1.msra.mxu0 %v4536
      %4948 = vmatprep.subr.mxu0 0.0
      %4949 = vmatpush2.msra.mxu0 0.0
      %4950 = vmatprep.subr.mxu0 0.0
      %4951 = vmatpush2.msra.mxu0 0.0
      %4952 = vmatprep.subr.mxu0 0.0
      %4953 = vmatpush2.msra.mxu0 0.0
      %4954 = vmatprep.subr.mxu0 0.0
      %4955 = vmatpush2.msra.mxu0 0.0
      %4956 = vmatprep.subr.mxu0 0.0
      %4957 = vmatpush2.msra.mxu0 0.0
      %4958 = vmatprep.subr.mxu0 0.0
      %4959 = vmatpush2.msra.mxu0 0.0
      %4960 = vmatprep.subr.mxu0 0.0
      %4961 = vmatpush2.msra.mxu0 0.0
      %4962 = vmatprep.subr.mxu0 0.0
      %4963 = vmatpush2.msra.mxu0 0.0
      %4964 = vmatprep.subr.mxu0 0.0
      %4965 = vmatpush2.msra.mxu0 0.0
      %4966 = vmatprep.subr.mxu0 0.0
      %4967 = vmatpush2.msra.mxu0 0.0
      %4968 = vmatprep.subr.mxu0 0.0
      %4969 = vmatpush2.msra.mxu0 0.0
      %4970 = vmatprep.subr.mxu0 0.0
      %4971 = vmatpush2.msra.mxu0 0.0
      %4972 = vmatprep.subr.mxu0 0.0
      %4973 = vmatpush2.msra.mxu0 0.0
      %4974 = vmatprep.subr.mxu0 0.0
      %4975 = vmatpush2.msra.mxu0 0.0
      %4976 = vmatprep.subr.mxu0 0.0
      %4977 = vmatpush2.msra.mxu0 0.0
      %4978 = vmatprep.subr.mxu0 0.0
      %4979 = vmatpush2.msra.mxu0 0.0
      %4980 = vmatprep.mubr.f32.mxu0 0.0
      %4981 = vmatmul.mubr.f32.gmra.mxu0 %v2978
      %v4982 = vpop.f32.mrf.mxu0
      %v4983 = vadd.f32 0.0, %v4982
      %v4984 = vpop.f32.mrf.mxu0
      %4985 = vdwg.mxu0
      %4986 = vmatprep.subr.mxu0 0.0
      %4987 = vmatpush1.msra.mxu0 0.0
      %4988 = vmatprep.subr.mxu0 0.0
      %4989 = vmatpush1.msra.mxu0 0.0
      %4990 = vmatprep.subr.mxu0 0.0
      %4991 = vmatpush1.msra.mxu0 0.0
      %4992 = vmatprep.subr.mxu0 0.0
      %4993 = vmatpush1.msra.mxu0 0.0
      %4994 = vmatprep.subr.mxu0 0.0
      %4995 = vmatpush1.msra.mxu0 0.0
      %4996 = vmatprep.subr.mxu0 0.0
      %4997 = vmatpush1.msra.mxu0 0.0
      %4998 = vmatprep.subr.mxu0 0.0
      %4999 = vmatpush1.msra.mxu0 0.0
      %5000 = vmatprep.subr.mxu0 0.0
      %5001 = vmatpush1.msra.mxu0 0.0
      %5002 = vmatprep.subr.mxu0 0.0
      %5003 = vmatpush1.msra.mxu0 0.0
      %5004 = vmatprep.subr.mxu0 0.0
      %5005 = vmatpush1.msra.mxu0 0.0
      %5006 = vmatprep.subr.mxu0 0.0
      %5007 = vmatpush1.msra.mxu0 0.0
      %5008 = vmatprep.subr.mxu0 0.0
      %5009 = vmatpush1.msra.mxu0 0.0
      %5010 = vmatprep.subr.mxu0 0.0
      %5011 = vmatpush1.msra.mxu0 0.0
      %5012 = vmatprep.subr.mxu0 %v4551
      %5013 = vmatpush1.msra.mxu0 %v4548
      %5014 = vmatprep.subr.mxu0 %v4538
      %5015 = vmatpush1.msra.mxu0 %v4537
      %5016 = vmatprep.subr.mxu0 %v4533
      %5017 = vmatpush1.msra.mxu0 %v4532
      %5018 = vmatprep.subr.mxu0 0.0
      %5019 = vmatpush2.msra.mxu0 0.0
      %5020 = vmatprep.subr.mxu0 0.0
      %5021 = vmatpush2.msra.mxu0 0.0
      %5022 = vmatprep.subr.mxu0 0.0
      %5023 = vmatpush2.msra.mxu0 0.0
      %5024 = vmatprep.subr.mxu0 0.0
      %5025 = vmatpush2.msra.mxu0 0.0
      %5026 = vmatprep.subr.mxu0 0.0
      %5027 = vmatpush2.msra.mxu0 0.0
      %5028 = vmatprep.subr.mxu0 0.0
      %5029 = vmatpush2.msra.mxu0 0.0
      %5030 = vmatprep.subr.mxu0 0.0
      %5031 = vmatpush2.msra.mxu0 0.0
      %5032 = vmatprep.subr.mxu0 0.0
      %5033 = vmatpush2.msra.mxu0 0.0
      %5034 = vmatprep.subr.mxu0 0.0
      %5035 = vmatpush2.msra.mxu0 0.0
      %5036 = vmatprep.subr.mxu0 0.0
      %5037 = vmatpush2.msra.mxu0 0.0
      %5038 = vmatprep.subr.mxu0 0.0
      %5039 = vmatpush2.msra.mxu0 0.0
      %5040 = vmatprep.subr.mxu0 0.0
      %5041 = vmatpush2.msra.mxu0 0.0
      %5042 = vmatprep.subr.mxu0 0.0
      %5043 = vmatpush2.msra.mxu0 0.0
      %5044 = vmatprep.subr.mxu0 0.0
      %5045 = vmatpush2.msra.mxu0 0.0
      %5046 = vmatprep.subr.mxu0 0.0
      %5047 = vmatpush2.msra.mxu0 0.0
      %5048 = vmatprep.subr.mxu0 0.0
      %5049 = vmatpush2.msra.mxu0 0.0
      %5050 = vmatprep.mubr.f32.mxu0 0.0
      %5051 = vmatmul.mubr.f32.gmra.mxu0 %v3193
      %v5052 = vpop.f32.mrf.mxu0
      %v5053 = vadd.f32 0.0, %v5052
      %v5054 = vpop.f32.mrf.mxu0
      %v5055 = vadd.f32 0.0, %v5054
      %5056 = vdwg.mxu0
      %5057 = vmatprep.subr.mxu0 0.0
      %5058 = vmatpush1.msra.mxu0 0.0
      %5059 = vmatprep.subr.mxu0 0.0
      %5060 = vmatpush1.msra.mxu0 0.0
      %5061 = vmatprep.subr.mxu0 0.0
      %5062 = vmatpush1.msra.mxu0 0.0
      %5063 = vmatprep.subr.mxu0 0.0
      %5064 = vmatpush1.msra.mxu0 0.0
      %5065 = vmatprep.subr.mxu0 0.0
      %5066 = vmatpush1.msra.mxu0 0.0
      %5067 = vmatprep.subr.mxu0 0.0
      %5068 = vmatpush1.msra.mxu0 0.0
      %5069 = vmatprep.subr.mxu0 0.0
      %5070 = vmatpush1.msra.mxu0 0.0
      %5071 = vmatprep.subr.mxu0 0.0
      %5072 = vmatpush1.msra.mxu0 0.0
      %5073 = vmatprep.subr.mxu0 0.0
      %5074 = vmatpush1.msra.mxu0 0.0
      %5075 = vmatprep.subr.mxu0 0.0
      %5076 = vmatpush1.msra.mxu0 0.0
      %5077 = vmatprep.subr.mxu0 0.0
      %5078 = vmatpush1.msra.mxu0 0.0
      %5079 = vmatprep.subr.mxu0 0.0
      %5080 = vmatpush1.msra.mxu0 0.0
      %5081 = vmatprep.subr.mxu0 0.0
      %5082 = vmatpush1.msra.mxu0 0.0
      %5083 = vmatprep.subr.mxu0 %v4557
      %5084 = vmatpush1.msra.mxu0 %v4554
      %5085 = vmatprep.subr.mxu0 %v4540
      %5086 = vmatpush1.msra.mxu0 %v4539
      %5087 = vmatprep.subr.mxu0 %v4535
      %5088 = vmatpush1.msra.mxu0 %v4534
      %5089 = vmatprep.subr.mxu0 0.0
      %5090 = vmatpush2.msra.mxu0 0.0
      %5091 = vmatprep.subr.mxu0 0.0
      %5092 = vmatpush2.msra.mxu0 0.0
      %5093 = vmatprep.subr.mxu0 0.0
      %5094 = vmatpush2.msra.mxu0 0.0
      %5095 = vmatprep.subr.mxu0 0.0
      %5096 = vmatpush2.msra.mxu0 0.0
      %5097 = vmatprep.subr.mxu0 0.0
      %5098 = vmatpush2.msra.mxu0 0.0
      %5099 = vmatprep.subr.mxu0 0.0
      %5100 = vmatpush2.msra.mxu0 0.0
      %5101 = vmatprep.subr.mxu0 0.0
      %5102 = vmatpush2.msra.mxu0 0.0
      %5103 = vmatprep.subr.mxu0 0.0
      %5104 = vmatpush2.msra.mxu0 0.0
      %5105 = vmatprep.subr.mxu0 0.0
      %5106 = vmatpush2.msra.mxu0 0.0
      %5107 = vmatprep.subr.mxu0 0.0
      %5108 = vmatpush2.msra.mxu0 0.0
      %5109 = vmatprep.subr.mxu0 0.0
      %5110 = vmatpush2.msra.mxu0 0.0
      %5111 = vmatprep.subr.mxu0 0.0
      %5112 = vmatpush2.msra.mxu0 0.0
      %5113 = vmatprep.subr.mxu0 0.0
      %5114 = vmatpush2.msra.mxu0 0.0
      %5115 = vmatprep.subr.mxu0 0.0
      %5116 = vmatpush2.msra.mxu0 0.0
      %5117 = vmatprep.subr.mxu0 0.0
      %5118 = vmatpush2.msra.mxu0 0.0
      %5119 = vmatprep.subr.mxu0 0.0
      %5120 = vmatpush2.msra.mxu0 0.0
      %5121 = vmatprep.mubr.f32.mxu0 0.0
      %5122 = vmatmul.mubr.f32.gmra.mxu0 %v3193
      %v5123 = vpop.f32.mrf.mxu0
      %v5124 = vadd.f32 0.0, %v5123
      %v5125 = vpop.f32.mrf.mxu0
      %v5126 = vadd.f32 0.0, %v5125
      %5127 = vdwg.mxu0
      %5128 = vmatprep.subr.mxu0 0.0
      %5129 = vmatpush1.msra.mxu0 0.0
      %5130 = vmatprep.subr.mxu0 0.0
      %5131 = vmatpush1.msra.mxu0 0.0
      %5132 = vmatprep.subr.mxu0 0.0
      %5133 = vmatpush1.msra.mxu0 0.0
      %5134 = vmatprep.subr.mxu0 0.0
      %5135 = vmatpush1.msra.mxu0 0.0
      %5136 = vmatprep.subr.mxu0 0.0
      %5137 = vmatpush1.msra.mxu0 0.0
      %5138 = vmatprep.subr.mxu0 0.0
      %5139 = vmatpush1.msra.mxu0 0.0
      %5140 = vmatprep.subr.mxu0 0.0
      %5141 = vmatpush1.msra.mxu0 0.0
      %5142 = vmatprep.subr.mxu0 0.0
      %5143 = vmatpush1.msra.mxu0 0.0
      %5144 = vmatprep.subr.mxu0 0.0
      %5145 = vmatpush1.msra.mxu0 0.0
      %5146 = vmatprep.subr.mxu0 0.0
      %5147 = vmatpush1.msra.mxu0 0.0
      %5148 = vmatprep.subr.mxu0 0.0
      %5149 = vmatpush1.msra.mxu0 0.0
      %5150 = vmatprep.subr.mxu0 0.0
      %5151 = vmatpush1.msra.mxu0 0.0
      %5152 = vmatprep.subr.mxu0 0.0
      %5153 = vmatpush1.msra.mxu0 0.0
      %5154 = vmatprep.subr.mxu0 0.0
      %5155 = vmatpush1.msra.mxu0 %v4560
      %5156 = vmatprep.subr.mxu0 0.0
      %5157 = vmatpush1.msra.mxu0 %v4541
      %5158 = vmatprep.subr.mxu0 0.0
      %5159 = vmatpush1.msra.mxu0 %v4536
      %5160 = vmatprep.subr.mxu0 0.0
      %5161 = vmatpush2.msra.mxu0 0.0
      %5162 = vmatprep.subr.mxu0 0.0
      %5163 = vmatpush2.msra.mxu0 0.0
      %5164 = vmatprep.subr.mxu0 0.0
      %5165 = vmatpush2.msra.mxu0 0.0
      %5166 = vmatprep.subr.mxu0 0.0
      %5167 = vmatpush2.msra.mxu0 0.0
      %5168 = vmatprep.subr.mxu0 0.0
      %5169 = vmatpush2.msra.mxu0 0.0
      %5170 = vmatprep.subr.mxu0 0.0
      %5171 = vmatpush2.msra.mxu0 0.0
      %5172 = vmatprep.subr.mxu0 0.0
      %5173 = vmatpush2.msra.mxu0 0.0
      %5174 = vmatprep.subr.mxu0 0.0
      %5175 = vmatpush2.msra.mxu0 0.0
      %5176 = vmatprep.subr.mxu0 0.0
      %5177 = vmatpush2.msra.mxu0 0.0
      %5178 = vmatprep.subr.mxu0 0.0
      %5179 = vmatpush2.msra.mxu0 0.0
      %5180 = vmatprep.subr.mxu0 0.0
      %5181 = vmatpush2.msra.mxu0 0.0
      %5182 = vmatprep.subr.mxu0 0.0
      %5183 = vmatpush2.msra.mxu0 0.0
      %5184 = vmatprep.subr.mxu0 0.0
      %5185 = vmatpush2.msra.mxu0 0.0
      %5186 = vmatprep.subr.mxu0 0.0
      %5187 = vmatpush2.msra.mxu0 0.0
      %5188 = vmatprep.subr.mxu0 0.0
      %5189 = vmatpush2.msra.mxu0 0.0
      %5190 = vmatprep.subr.mxu0 0.0
      %5191 = vmatpush2.msra.mxu0 0.0
      %5192 = vmatprep.mubr.f32.mxu0 0.0
      %5193 = vmatmul.mubr.f32.gmra.mxu0 %v3193
      %v5194 = vpop.f32.mrf.mxu0
      %v5195 = vadd.f32 0.0, %v5194
      %v5196 = vpop.f32.mrf.mxu0
      %5197 = vdwg.mxu0
      %v5198 = vlaneseq
      %v5199 = vshrl.u32 %v5198, 7
      %v5200 = vsub.s32 0, %v5199
      %v5201 = vrot.slane %v4192, %v5200
      %v5202 = vlaneseq
      %v5203 = vshrl.u32 %v5202, 7
      %v5204 = vsub.s32 0, %v5203
      %v5205 = vrot.slane %v4193, %v5204
      %v5206 = vlaneseq
      %v5207 = vshrl.u32 %v5206, 7
      %v5208 = vsub.s32 0, %v5207
      %v5209 = vrot.slane %v4194, %v5208
      %v5210 = vlaneseq
      %v5211 = vshrl.u32 %v5210, 7
      %v5212 = vsub.s32 0, %v5211
      %v5213 = vrot.slane %v4195, %v5212
      %v5214 = vmul.f32 %v4629, %v5201
      %v5215 = vmul.f32 %v4631, %v5205
      %v5216 = vmul.f32 %v4700, %v5209
      %v5217 = vmul.f32 %v4702, %v5213
      %v5218 = vadd.f32 %v5214, 0.0
      %v5219 = vadd.f32 %v5215, 0.0
      %v5220 = vadd.f32 %v5216, 0.0
      %v5221 = vadd.f32 %v5217, 0.0
      %v5222 = vlaneseq
      %v5223 = vshrl.u32 %v5222, 7
      %v5224 = vsub.s32 1, %v5223
      %v5225 = vrot.slane %v4192, %v5224
      %v5226 = vlaneseq
      %v5227 = vshrl.u32 %v5226, 7
      %v5228 = vsub.s32 1, %v5227
      %v5229 = vrot.slane %v4193, %v5228
      %v5230 = vlaneseq
      %v5231 = vshrl.u32 %v5230, 7
      %v5232 = vsub.s32 1, %v5231
      %v5233 = vrot.slane %v4194, %v5232
      %v5234 = vlaneseq
      %v5235 = vshrl.u32 %v5234, 7
      %v5236 = vsub.s32 1, %v5235
      %v5237 = vrot.slane %v4195, %v5236
      %5242 = vrot.lane.b32.xlu0 %v5225, 32
      %v5243 = vpop.permute.xlu0 %5242
      %5244 = vrot.lane.b32.xlu0 %v5229, 32
      %v5245 = vpop.permute.xlu0 %5244
      %5246 = vrot.lane.b32.xlu0 %v5233, 32
      %v5247 = vpop.permute.xlu0 %5246
      %5248 = vrot.lane.b32.xlu0 %v5237, 32
      %v5249 = vpop.permute.xlu0 %5248
      %v5250 = vsel %vm1064, %v5243, %v5245
      %v5251 = vsel %vm1064, %v5245, %v5247
      %v5252 = vsel %vm1064, %v5247, %v5249
      %v5258 = vmul.f32 %v4629, %v5243
      %v5259 = vmul.f32 %v4631, %v5250
      %v5260 = vmul.f32 %v4700, %v5251
      %v5261 = vmul.f32 %v4702, %v5252
      %v5262 = vmul.f32 %v4771, %v5249
      %5268 = vrot.lane.b32.xlu0 %v5258, 96
      %v5269 = vpop.permute.xlu0 %5268
      %5270 = vrot.lane.b32.xlu0 %v5259, 96
      %v5271 = vpop.permute.xlu0 %5270
      %5272 = vrot.lane.b32.xlu0 %v5260, 96
      %v5273 = vpop.permute.xlu0 %5272
      %5274 = vrot.lane.b32.xlu0 %v5261, 96
      %v5275 = vpop.permute.xlu0 %5274
      %5276 = vrot.lane.b32.xlu0 %v5262, 96
      %v5277 = vpop.permute.xlu0 %5276
      %v5278 = vsel %vm1232, %v5269, %v5271
      %v5279 = vsel %vm1232, %v5271, %v5273
      %v5280 = vsel %vm1232, %v5273, %v5275
      %v5281 = vsel %vm1232, %v5275, %v5277
      %v5286 = vadd.f32 %v5218, %v5278
      %v5287 = vadd.f32 %v5219, %v5279
      %v5288 = vadd.f32 %v5220, %v5280
      %v5289 = vadd.f32 %v5221, %v5281
      %v5290 = vlaneseq
      %v5291 = vshrl.u32 %v5290, 7
      %v5292 = vsub.s32 2, %v5291
      %v5293 = vrot.slane %v4192, %v5292
      %v5294 = vlaneseq
      %v5295 = vshrl.u32 %v5294, 7
      %v5296 = vsub.s32 2, %v5295
      %v5297 = vrot.slane %v4193, %v5296
      %v5298 = vlaneseq
      %v5299 = vshrl.u32 %v5298, 7
      %v5300 = vsub.s32 2, %v5299
      %v5301 = vrot.slane %v4194, %v5300
      %v5302 = vlaneseq
      %v5303 = vshrl.u32 %v5302, 7
      %v5304 = vsub.s32 2, %v5303
      %v5305 = vrot.slane %v4195, %v5304
      %5310 = vrot.lane.b32.xlu0 %v5293, 64
      %v5311 = vpop.permute.xlu0 %5310
      %5312 = vrot.lane.b32.xlu0 %v5297, 64
      %v5313 = vpop.permute.xlu0 %5312
      %5314 = vrot.lane.b32.xlu0 %v5301, 64
      %v5315 = vpop.permute.xlu0 %5314
      %5316 = vrot.lane.b32.xlu0 %v5305, 64
      %v5317 = vpop.permute.xlu0 %5316
      %v5318 = vsel %vm532, %v5311, %v5313
      %v5319 = vsel %vm532, %v5313, %v5315
      %v5320 = vsel %vm532, %v5315, %v5317
      %v5326 = vmul.f32 %v4629, %v5311
      %v5327 = vmul.f32 %v4631, %v5318
      %v5328 = vmul.f32 %v4700, %v5319
      %v5329 = vmul.f32 %v4702, %v5320
      %v5330 = vmul.f32 %v4771, %v5317
      %5336 = vrot.lane.b32.xlu0 %v5326, 64
      %v5337 = vpop.permute.xlu0 %5336
      %5338 = vrot.lane.b32.xlu0 %v5327, 64
      %v5339 = vpop.permute.xlu0 %5338
      %5340 = vrot.lane.b32.xlu0 %v5328, 64
      %v5341 = vpop.permute.xlu0 %5340
      %5342 = vrot.lane.b32.xlu0 %v5329, 64
      %v5343 = vpop.permute.xlu0 %5342
      %5344 = vrot.lane.b32.xlu0 %v5330, 64
      %v5345 = vpop.permute.xlu0 %5344
      %v5346 = vsel %vm532, %v5337, %v5339
      %v5347 = vsel %vm532, %v5339, %v5341
      %v5348 = vsel %vm532, %v5341, %v5343
      %v5349 = vsel %vm532, %v5343, %v5345
      %v5354 = vadd.f32 %v5286, %v5346
      %v5355 = vadd.f32 %v5287, %v5347
      %v5356 = vadd.f32 %v5288, %v5348
      %v5357 = vadd.f32 %v5289, %v5349
      %v5358 = vlaneseq
      %v5359 = vshrl.u32 %v5358, 7
      %v5360 = vsub.s32 3, %v5359
      %v5361 = vrot.slane %v4192, %v5360
      %v5362 = vlaneseq
      %v5363 = vshrl.u32 %v5362, 7
      %v5364 = vsub.s32 3, %v5363
      %v5365 = vrot.slane %v4193, %v5364
      %v5366 = vlaneseq
      %v5367 = vshrl.u32 %v5366, 7
      %v5368 = vsub.s32 3, %v5367
      %v5369 = vrot.slane %v4194, %v5368
      %v5370 = vlaneseq
      %v5371 = vshrl.u32 %v5370, 7
      %v5372 = vsub.s32 3, %v5371
      %v5373 = vrot.slane %v4195, %v5372
      %v5374 = vmul.f32 %v4841, %v5361
      %v5375 = vmul.f32 %v4843, %v5365
      %v5376 = vmul.f32 %v4912, %v5369
      %v5377 = vmul.f32 %v4914, %v5373
      %v5378 = vadd.f32 %v5354, %v5374
      %v5379 = vadd.f32 %v5355, %v5375
      %v5380 = vadd.f32 %v5356, %v5376
      %v5381 = vadd.f32 %v5357, %v5377
      %v5382 = vlaneseq
      %v5383 = vshrl.u32 %v5382, 7
      %v5384 = vsub.s32 4, %v5383
      %v5385 = vrot.slane %v4192, %v5384
      %v5386 = vlaneseq
      %v5387 = vshrl.u32 %v5386, 7
      %v5388 = vsub.s32 4, %v5387
      %v5389 = vrot.slane %v4193, %v5388
      %v5390 = vlaneseq
      %v5391 = vshrl.u32 %v5390, 7
      %v5392 = vsub.s32 4, %v5391
      %v5393 = vrot.slane %v4194, %v5392
      %v5394 = vlaneseq
      %v5395 = vshrl.u32 %v5394, 7
      %v5396 = vsub.s32 4, %v5395
      %v5397 = vrot.slane %v4195, %v5396
      %5402 = vrot.lane.b32.xlu0 %v5385, 32
      %v5403 = vpop.permute.xlu0 %5402
      %5404 = vrot.lane.b32.xlu0 %v5389, 32
      %v5405 = vpop.permute.xlu0 %5404
      %5406 = vrot.lane.b32.xlu0 %v5393, 32
      %v5407 = vpop.permute.xlu0 %5406
      %5408 = vrot.lane.b32.xlu0 %v5397, 32
      %v5409 = vpop.permute.xlu0 %5408
      %v5410 = vsel %vm1064, %v5403, %v5405
      %v5411 = vsel %vm1064, %v5405, %v5407
      %v5412 = vsel %vm1064, %v5407, %v5409
      %v5418 = vmul.f32 %v4841, %v5403
      %v5419 = vmul.f32 %v4843, %v5410
      %v5420 = vmul.f32 %v4912, %v5411
      %v5421 = vmul.f32 %v4914, %v5412
      %v5422 = vmul.f32 %v4983, %v5409
      %5428 = vrot.lane.b32.xlu0 %v5418, 96
      %v5429 = vpop.permute.xlu0 %5428
      %5430 = vrot.lane.b32.xlu0 %v5419, 96
      %v5431 = vpop.permute.xlu0 %5430
      %5432 = vrot.lane.b32.xlu0 %v5420, 96
      %v5433 = vpop.permute.xlu0 %5432
      %5434 = vrot.lane.b32.xlu0 %v5421, 96
      %v5435 = vpop.permute.xlu0 %5434
      %5436 = vrot.lane.b32.xlu0 %v5422, 96
      %v5437 = vpop.permute.xlu0 %5436
      %v5438 = vsel %vm1232, %v5429, %v5431
      %v5439 = vsel %vm1232, %v5431, %v5433
      %v5440 = vsel %vm1232, %v5433, %v5435
      %v5441 = vsel %vm1232, %v5435, %v5437
      %v5446 = vadd.f32 %v5378, %v5438
      %v5447 = vadd.f32 %v5379, %v5439
      %v5448 = vadd.f32 %v5380, %v5440
      %v5449 = vadd.f32 %v5381, %v5441
      %v5450 = vlaneseq
      %v5451 = vshrl.u32 %v5450, 7
      %v5452 = vsub.s32 5, %v5451
      %v5453 = vrot.slane %v4192, %v5452
      %v5454 = vlaneseq
      %v5455 = vshrl.u32 %v5454, 7
      %v5456 = vsub.s32 5, %v5455
      %v5457 = vrot.slane %v4193, %v5456
      %v5458 = vlaneseq
      %v5459 = vshrl.u32 %v5458, 7
      %v5460 = vsub.s32 5, %v5459
      %v5461 = vrot.slane %v4194, %v5460
      %v5462 = vlaneseq
      %v5463 = vshrl.u32 %v5462, 7
      %v5464 = vsub.s32 5, %v5463
      %v5465 = vrot.slane %v4195, %v5464
      %5470 = vrot.lane.b32.xlu0 %v5453, 64
      %v5471 = vpop.permute.xlu0 %5470
      %5472 = vrot.lane.b32.xlu0 %v5457, 64
      %v5473 = vpop.permute.xlu0 %5472
      %5474 = vrot.lane.b32.xlu0 %v5461, 64
      %v5475 = vpop.permute.xlu0 %5474
      %5476 = vrot.lane.b32.xlu0 %v5465, 64
      %v5477 = vpop.permute.xlu0 %5476
      %v5478 = vsel %vm532, %v5471, %v5473
      %v5479 = vsel %vm532, %v5473, %v5475
      %v5480 = vsel %vm532, %v5475, %v5477
      %v5486 = vmul.f32 %v4841, %v5471
      %v5487 = vmul.f32 %v4843, %v5478
      %v5488 = vmul.f32 %v4912, %v5479
      %v5489 = vmul.f32 %v4914, %v5480
      %v5490 = vmul.f32 %v4983, %v5477
      %5496 = vrot.lane.b32.xlu0 %v5486, 64
      %v5497 = vpop.permute.xlu0 %5496
      %5498 = vrot.lane.b32.xlu0 %v5487, 64
      %v5499 = vpop.permute.xlu0 %5498
      %5500 = vrot.lane.b32.xlu0 %v5488, 64
      %v5501 = vpop.permute.xlu0 %5500
      %5502 = vrot.lane.b32.xlu0 %v5489, 64
      %v5503 = vpop.permute.xlu0 %5502
      %5504 = vrot.lane.b32.xlu0 %v5490, 64
      %v5505 = vpop.permute.xlu0 %5504
      %v5506 = vsel %vm532, %v5497, %v5499
      %v5507 = vsel %vm532, %v5499, %v5501
      %v5508 = vsel %vm532, %v5501, %v5503
      %v5509 = vsel %vm532, %v5503, %v5505
      %v5514 = vadd.f32 %v5446, %v5506
      %v5515 = vadd.f32 %v5447, %v5507
      %v5516 = vadd.f32 %v5448, %v5508
      %v5517 = vadd.f32 %v5449, %v5509
      %v5518 = vlaneseq
      %v5519 = vshrl.u32 %v5518, 7
      %v5520 = vsub.s32 6, %v5519
      %v5521 = vrot.slane %v4192, %v5520
      %v5522 = vlaneseq
      %v5523 = vshrl.u32 %v5522, 7
      %v5524 = vsub.s32 6, %v5523
      %v5525 = vrot.slane %v4193, %v5524
      %v5526 = vlaneseq
      %v5527 = vshrl.u32 %v5526, 7
      %v5528 = vsub.s32 6, %v5527
      %v5529 = vrot.slane %v4194, %v5528
      %v5530 = vlaneseq
      %v5531 = vshrl.u32 %v5530, 7
      %v5532 = vsub.s32 6, %v5531
      %v5533 = vrot.slane %v4195, %v5532
      %v5534 = vmul.f32 %v5053, %v5521
      %v5535 = vmul.f32 %v5055, %v5525
      %v5536 = vmul.f32 %v5124, %v5529
      %v5537 = vmul.f32 %v5126, %v5533
      %v5538 = vadd.f32 %v5514, %v5534
      %v5539 = vadd.f32 %v5515, %v5535
      %v5540 = vadd.f32 %v5516, %v5536
      %v5541 = vadd.f32 %v5517, %v5537
      %v5542 = vlaneseq
      %v5543 = vshrl.u32 %v5542, 7
      %v5544 = vsub.s32 7, %v5543
      %v5545 = vrot.slane %v4192, %v5544
      %v5546 = vlaneseq
      %v5547 = vshrl.u32 %v5546, 7
      %v5548 = vsub.s32 7, %v5547
      %v5549 = vrot.slane %v4193, %v5548
      %v5550 = vlaneseq
      %v5551 = vshrl.u32 %v5550, 7
      %v5552 = vsub.s32 7, %v5551
      %v5553 = vrot.slane %v4194, %v5552
      %v5554 = vlaneseq
      %v5555 = vshrl.u32 %v5554, 7
      %v5556 = vsub.s32 7, %v5555
      %v5557 = vrot.slane %v4195, %v5556
      %5562 = vrot.lane.b32.xlu0 %v5545, 32
      %v5563 = vpop.permute.xlu0 %5562
      %5564 = vrot.lane.b32.xlu0 %v5549, 32
      %v5565 = vpop.permute.xlu0 %5564
      %5566 = vrot.lane.b32.xlu0 %v5553, 32
      %v5567 = vpop.permute.xlu0 %5566
      %5568 = vrot.lane.b32.xlu0 %v5557, 32
      %v5569 = vpop.permute.xlu0 %5568
      %v5570 = vsel %vm1064, %v5563, %v5565
      %v5571 = vsel %vm1064, %v5565, %v5567
      %v5572 = vsel %vm1064, %v5567, %v5569
      %v5578 = vmul.f32 %v5053, %v5563
      %v5579 = vmul.f32 %v5055, %v5570
      %v5580 = vmul.f32 %v5124, %v5571
      %v5581 = vmul.f32 %v5126, %v5572
      %v5582 = vmul.f32 %v5195, %v5569
      %5588 = vrot.lane.b32.xlu0 %v5578, 96
      %v5589 = vpop.permute.xlu0 %5588
      %5590 = vrot.lane.b32.xlu0 %v5579, 96
      %v5591 = vpop.permute.xlu0 %5590
      %5592 = vrot.lane.b32.xlu0 %v5580, 96
      %v5593 = vpop.permute.xlu0 %5592
      %5594 = vrot.lane.b32.xlu0 %v5581, 96
      %v5595 = vpop.permute.xlu0 %5594
      %5596 = vrot.lane.b32.xlu0 %v5582, 96
      %v5597 = vpop.permute.xlu0 %5596
      %v5598 = vsel %vm1232, %v5589, %v5591
      %v5599 = vsel %vm1232, %v5591, %v5593
      %v5600 = vsel %vm1232, %v5593, %v5595
      %v5601 = vsel %vm1232, %v5595, %v5597
      %v5606 = vadd.f32 %v5538, %v5598
      %v5607 = vadd.f32 %v5539, %v5599
      %v5608 = vadd.f32 %v5540, %v5600
      %v5609 = vadd.f32 %v5541, %v5601
      %v5610 = vlaneseq
      %v5611 = vshrl.u32 %v5610, 7
      %v5612 = vsub.s32 0, %v5611
      %v5613 = vrot.slane %v4196, %v5612
      %v5614 = vlaneseq
      %v5615 = vshrl.u32 %v5614, 7
      %v5616 = vsub.s32 0, %v5615
      %v5617 = vrot.slane %v4197, %v5616
      %v5618 = vlaneseq
      %v5619 = vshrl.u32 %v5618, 7
      %v5620 = vsub.s32 0, %v5619
      %v5621 = vrot.slane %v4198, %v5620
      %v5622 = vlaneseq
      %v5623 = vshrl.u32 %v5622, 7
      %v5624 = vsub.s32 0, %v5623
      %v5625 = vrot.slane %v4199, %v5624
      %5630 = vrot.lane.b32.xlu0 %v5613, 64
      %v5631 = vpop.permute.xlu0 %5630
      %5632 = vrot.lane.b32.xlu0 %v5617, 64
      %v5633 = vpop.permute.xlu0 %5632
      %5634 = vrot.lane.b32.xlu0 %v5621, 64
      %v5635 = vpop.permute.xlu0 %5634
      %5636 = vrot.lane.b32.xlu0 %v5625, 64
      %v5637 = vpop.permute.xlu0 %5636
      %v5638 = vsel %vm532, %v5631, %v5633
      %v5639 = vsel %vm532, %v5633, %v5635
      %v5640 = vsel %vm532, %v5635, %v5637
      %v5646 = vmul.f32 %v5053, %v5631
      %v5647 = vmul.f32 %v5055, %v5638
      %v5648 = vmul.f32 %v5124, %v5639
      %v5649 = vmul.f32 %v5126, %v5640
      %v5650 = vmul.f32 %v5195, %v5637
      %5656 = vrot.lane.b32.xlu0 %v5646, 64
      %v5657 = vpop.permute.xlu0 %5656
      %5658 = vrot.lane.b32.xlu0 %v5647, 64
      %v5659 = vpop.permute.xlu0 %5658
      %5660 = vrot.lane.b32.xlu0 %v5648, 64
      %v5661 = vpop.permute.xlu0 %5660
      %5662 = vrot.lane.b32.xlu0 %v5649, 64
      %v5663 = vpop.permute.xlu0 %5662
      %5664 = vrot.lane.b32.xlu0 %v5650, 64
      %v5665 = vpop.permute.xlu0 %5664
      %v5666 = vsel %vm532, %v5657, %v5659
      %v5667 = vsel %vm532, %v5659, %v5661
      %v5668 = vsel %vm532, %v5661, %v5663
      %v5669 = vsel %vm532, %v5663, %v5665
      %v5674 = vadd.f32 %v5606, %v5666
      %v5675 = vadd.f32 %v5607, %v5667
      %v5676 = vadd.f32 %v5608, %v5668
      %v5677 = vadd.f32 %v5609, %v5669
      %v5679 = vlaneseq
      %v5680 = vshrl.u32 %v5679, 7
      %v5681 = vsub.s32 0, %v5680
      %v5682 = vrot.slane %v4200, %v5681
      %v5683 = vlaneseq
      %v5684 = vshrl.u32 %v5683, 7
      %v5685 = vsub.s32 1, %v5684
      %v5686 = vrot.slane %v4200, %v5685
      %v5687 = vlaneseq
      %v5688 = vshrl.u32 %v5687, 7
      %v5689 = vsub.s32 2, %v5688
      %v5690 = vrot.slane %v4200, %v5689
      %v5691 = vlaneseq
      %v5692 = vshrl.u32 %v5691, 7
      %v5693 = vsub.s32 3, %v5692
      %v5694 = vrot.slane %v4200, %v5693
      %v5699 = vadd.f32 %v5674, %v5682
      %v5700 = vadd.f32 %v5675, %v5686
      %v5701 = vadd.f32 %v5676, %v5690
      %v5702 = vadd.f32 %v5677, %v5694
      %v5703 = vmax.f32 %v5699, 0.0
      %v5704 = vmax.f32 %v5700, 0.0
      %v5705 = vmax.f32 %v5701, 0.0
      %v5706 = vmax.f32 %v5702, 0.0
      %v5708 = vlaneseq
      %v5709 = vshrl.u32 %v5708, 7
      %v5710 = vsub.s32 0, %v5709
      %v5711 = vrot.slane %v4265, %v5710
      %5713 = vmatprep.subr.mxu0 0.0
      %5714 = vmatpush1.msra.mxu0 %v4216
      %5715 = vmatprep.subr.mxu0 0.0
      %5716 = vmatpush1.msra.mxu0 %v4215
      %5717 = vmatprep.subr.mxu0 0.0
      %5718 = vmatpush1.msra.mxu0 %v4214
      %5719 = vmatprep.subr.mxu0 0.0
      %5720 = vmatpush1.msra.mxu0 %v4213
      %5721 = vmatprep.subr.mxu0 0.0
      %5722 = vmatpush1.msra.mxu0 %v4212
      %5723 = vmatprep.subr.mxu0 0.0
      %5724 = vmatpush1.msra.mxu0 %v4211
      %5725 = vmatprep.subr.mxu0 0.0
      %5726 = vmatpush1.msra.mxu0 %v4210
      %5727 = vmatprep.subr.mxu0 0.0
      %5728 = vmatpush1.msra.mxu0 %v4209
      %5729 = vmatprep.subr.mxu0 0.0
      %5730 = vmatpush1.msra.mxu0 %v4208
      %5731 = vmatprep.subr.mxu0 0.0
      %5732 = vmatpush1.msra.mxu0 %v4207
      %5733 = vmatprep.subr.mxu0 0.0
      %5734 = vmatpush1.msra.mxu0 %v4206
      %5735 = vmatprep.subr.mxu0 0.0
      %5736 = vmatpush1.msra.mxu0 %v4205
      %5737 = vmatprep.subr.mxu0 0.0
      %5738 = vmatpush1.msra.mxu0 %v4204
      %5739 = vmatprep.subr.mxu0 0.0
      %5740 = vmatpush1.msra.mxu0 %v4203
      %5741 = vmatprep.subr.mxu0 0.0
      %5742 = vmatpush1.msra.mxu0 %v4202
      %5743 = vmatprep.subr.mxu0 0.0
      %5744 = vmatpush1.msra.mxu0 %v4201
      %5745 = vmatprep.subr.mxu0 0.0
      %5746 = vmatpush2.msra.mxu0 %v4232
      %5747 = vmatprep.subr.mxu0 0.0
      %5748 = vmatpush2.msra.mxu0 %v4231
      %5749 = vmatprep.subr.mxu0 0.0
      %5750 = vmatpush2.msra.mxu0 %v4230
      %5751 = vmatprep.subr.mxu0 0.0
      %5752 = vmatpush2.msra.mxu0 %v4229
      %5753 = vmatprep.subr.mxu0 0.0
      %5754 = vmatpush2.msra.mxu0 %v4228
      %5755 = vmatprep.subr.mxu0 0.0
      %5756 = vmatpush2.msra.mxu0 %v4227
      %5757 = vmatprep.subr.mxu0 0.0
      %5758 = vmatpush2.msra.mxu0 %v4226
      %5759 = vmatprep.subr.mxu0 0.0
      %5760 = vmatpush2.msra.mxu0 %v4225
      %5761 = vmatprep.subr.mxu0 0.0
      %5762 = vmatpush2.msra.mxu0 %v4224
      %5763 = vmatprep.subr.mxu0 0.0
      %5764 = vmatpush2.msra.mxu0 %v4223
      %5765 = vmatprep.subr.mxu0 0.0
      %5766 = vmatpush2.msra.mxu0 %v4222
      %5767 = vmatprep.subr.mxu0 0.0
      %5768 = vmatpush2.msra.mxu0 %v4221
      %5769 = vmatprep.subr.mxu0 0.0
      %5770 = vmatpush2.msra.mxu0 %v4220
      %5771 = vmatprep.subr.mxu0 0.0
      %5772 = vmatpush2.msra.mxu0 %v4219
      %5773 = vmatprep.subr.mxu0 0.0
      %5774 = vmatpush2.msra.mxu0 %v4218
      %5775 = vmatprep.subr.mxu0 0.0
      %5776 = vmatpush2.msra.mxu0 %v4217
      %5777 = vmatprep.mubr.f32.mxu0 %v5704
      %5778 = vmatmul.mubr.f32.gmra.mxu0 %v5703
      %v5779 = vpop.f32.mrf.mxu0
      %v5780 = vadd.f32 %v5711, %v5779
      %v5781 = vpop.f32.mrf.mxu0
      %5782 = vdwg.mxu0
      %5783 = vmatprep.subr.mxu0 0.0
      %5784 = vmatpush1.msra.mxu0 %v4248
      %5785 = vmatprep.subr.mxu0 0.0
      %5786 = vmatpush1.msra.mxu0 %v4247
      %5787 = vmatprep.subr.mxu0 0.0
      %5788 = vmatpush1.msra.mxu0 %v4246
      %5789 = vmatprep.subr.mxu0 0.0
      %5790 = vmatpush1.msra.mxu0 %v4245
      %5791 = vmatprep.subr.mxu0 0.0
      %5792 = vmatpush1.msra.mxu0 %v4244
      %5793 = vmatprep.subr.mxu0 0.0
      %5794 = vmatpush1.msra.mxu0 %v4243
      %5795 = vmatprep.subr.mxu0 0.0
      %5796 = vmatpush1.msra.mxu0 %v4242
      %5797 = vmatprep.subr.mxu0 0.0
      %5798 = vmatpush1.msra.mxu0 %v4241
      %5799 = vmatprep.subr.mxu0 0.0
      %5800 = vmatpush1.msra.mxu0 %v4240
      %5801 = vmatprep.subr.mxu0 0.0
      %5802 = vmatpush1.msra.mxu0 %v4239
      %5803 = vmatprep.subr.mxu0 0.0
      %5804 = vmatpush1.msra.mxu0 %v4238
      %5805 = vmatprep.subr.mxu0 0.0
      %5806 = vmatpush1.msra.mxu0 %v4237
      %5807 = vmatprep.subr.mxu0 0.0
      %5808 = vmatpush1.msra.mxu0 %v4236
      %5809 = vmatprep.subr.mxu0 0.0
      %5810 = vmatpush1.msra.mxu0 %v4235
      %5811 = vmatprep.subr.mxu0 0.0
      %5812 = vmatpush1.msra.mxu0 %v4234
      %5813 = vmatprep.subr.mxu0 0.0
      %5814 = vmatpush1.msra.mxu0 %v4233
      %5815 = vmatprep.subr.mxu0 0.0
      %5816 = vmatpush2.msra.mxu0 %v4264
      %5817 = vmatprep.subr.mxu0 0.0
      %5818 = vmatpush2.msra.mxu0 %v4263
      %5819 = vmatprep.subr.mxu0 0.0
      %5820 = vmatpush2.msra.mxu0 %v4262
      %5821 = vmatprep.subr.mxu0 0.0
      %5822 = vmatpush2.msra.mxu0 %v4261
      %5823 = vmatprep.subr.mxu0 0.0
      %5824 = vmatpush2.msra.mxu0 %v4260
      %5825 = vmatprep.subr.mxu0 0.0
      %5826 = vmatpush2.msra.mxu0 %v4259
      %5827 = vmatprep.subr.mxu0 0.0
      %5828 = vmatpush2.msra.mxu0 %v4258
      %5829 = vmatprep.subr.mxu0 0.0
      %5830 = vmatpush2.msra.mxu0 %v4257
      %5831 = vmatprep.subr.mxu0 0.0
      %5832 = vmatpush2.msra.mxu0 %v4256
      %5833 = vmatprep.subr.mxu0 0.0
      %5834 = vmatpush2.msra.mxu0 %v4255
      %5835 = vmatprep.subr.mxu0 0.0
      %5836 = vmatpush2.msra.mxu0 %v4254
      %5837 = vmatprep.subr.mxu0 0.0
      %5838 = vmatpush2.msra.mxu0 %v4253
      %5839 = vmatprep.subr.mxu0 0.0
      %5840 = vmatpush2.msra.mxu0 %v4252
      %5841 = vmatprep.subr.mxu0 0.0
      %5842 = vmatpush2.msra.mxu0 %v4251
      %5843 = vmatprep.subr.mxu0 0.0
      %5844 = vmatpush2.msra.mxu0 %v4250
      %5845 = vmatprep.subr.mxu0 0.0
      %5846 = vmatpush2.msra.mxu0 %v4249
      %5847 = vmatprep.mubr.f32.mxu0 %v5706
      %5848 = vmatmul.mubr.f32.gmra.mxu0 %v5705
      %v5849 = vpop.f32.mrf.mxu0
      %v5850 = vadd.f32 %v5780, %v5849
      %v5851 = vpop.f32.mrf.mxu0
      %5852 = vdwg.mxu0
      %s5853 = scalar_lea.vmem %s527, 8
      %5854 = vst [vmem:[%s5853] sm:$0xff] %v5850
      %p5855 = scmp.lt.s32.totalorder %s27, 1
      %s5856 = scalar_select %p5855, %s27, 1
      %s5857 = smul.addr %s5856, 4
      %s5858 = smul.addr %s5857, 8
      %s5859 = scalar_lea.vmem %s14, %s5858
      %p5860 = scmp.lt.s32.totalorder %s27, 1
      %s5861 = scalar_select %p5860, %s27, 1
      %s5862 = smul.addr %s5861, 2
      %s5863 = smul.addr %s5862, 8
      %s5864 = scalar_lea.vmem %s15, %s5863
      // Predicated region
      $region77: #{fuse_diff_v2.1} parent=75 // pred_check
        %p5865 = pneg %p349
      $region78: #{fuse_diff_v2.1} parent=75 // pred_check_branch
        %5867 = sbr.rel (%p5865) target = $region80
      $region79: #{fuse_diff_v2.1} parent=75 // pred_region
        _
      $region80: #{fuse_diff_v2.1} parent=75 // pred_fallthru
        _
      // Predicated region
      $region81: #{fuse_diff_v2.1} parent=75 // pred_check
        %p5868 = pneg %p375
      $region82: #{fuse_diff_v2.1} parent=75 // pred_check_branch
        %5870 = sbr.rel (%p5868) target = $region84
      $region83: #{fuse_diff_v2.1} parent=75 // pred_region
        _
      $region84: #{fuse_diff_v2.1} parent=75 // pred_fallthru
        _
    $region76: #{fuse_diff_v2.1} parent=5 // pred_fallthru
      _
    %p5871 = scmp.le.s32.totalorder 2, %s22
    // Predicated region
    $region85: #{fuse_diff_v2.1} parent=5 // pred_check
      %p5872 = pneg %p5871
    $region86: #{fuse_diff_v2.1} parent=5 // pred_check_branch
      %5874 = sbr.rel (%p5872) target = $region88
    $region87: #{fuse_diff_v2.1} parent=5 // pred_region
      %s5875 = ssub.s32 %s22, 2
      // Predicated region
      $region89: #{fuse_diff_v2.1} parent=87 // pred_check
        %p5876 = pneg %p355
      $region90: #{fuse_diff_v2.1} parent=87 // pred_check_branch
        %5878 = sbr.rel (%p5876) target = $region92
      $region91: #{fuse_diff_v2.1} parent=87 // pred_region
        %p5879 = scmp.lt.s32.totalorder %s28, 1
        %s5880 = scalar_select %p5879, %s28, 1
        %s5881 = smul.addr %s5880, 4
        %s5882 = smul.addr %s5881, 8
        %s5883 = scalar_lea.vmem %s14, %s5882
      $region92: #{fuse_diff_v2.1} parent=87 // pred_fallthru
        _
      // Predicated region
      $region93: #{fuse_diff_v2.1} parent=87 // pred_check
        %p5884 = pneg %p381
      $region94: #{fuse_diff_v2.1} parent=87 // pred_check_branch
        %5886 = sbr.rel (%p5884) target = $region96
      $region95: #{fuse_diff_v2.1} parent=87 // pred_region
        %p5887 = scmp.lt.s32.totalorder %s28, 1
        %s5888 = scalar_select %p5887, %s28, 1
        %s5889 = smul.addr %s5888, 2
        %s5890 = smul.addr %s5889, 8
        %s5891 = scalar_lea.vmem %s15, %s5890
      $region96: #{fuse_diff_v2.1} parent=87 // pred_fallthru
        _
    $region88: #{fuse_diff_v2.1} parent=5 // pred_fallthru
      _
  $region6: #{fuse_diff_v2.1} parent=0 // loop_footer
    %s26 = sadd.s32 1, %s22
  $region7: #{fuse_diff_v2.1} parent=0 // loop_footer_branch
    %21 = sbr.rel target = $region3
  $region8: #{fuse_diff_v2.1} parent=0 // loop_exit
    _

</llo_original>
